<compile_context>
chip_gen: v5e
topology: v5e:2x2
jax: 0.10.0
libtpu: 0.0.40
codegen_flags: <defaults>
</compile_context>

<pallas_src>
import functools

import jax
import jax.numpy as jnp
from jax.experimental import pallas as pl
from jax.experimental.pallas import tpu as pltpu

NEG_SLOPE = 0.01  # PyTorch nn.LeakyReLU default


def _leaky_relu(x):
    return jnp.where(x > 0, x, NEG_SLOPE * x)


# --------------------------------------------------------------------------
# Kernel
# --------------------------------------------------------------------------
def head_kernel(feat_ref, w1_ref, w2_ref, b2_ref, w3_ref, b3_ref,
                out_ref, acc_ref, *, hw, g, inv_hw, multi_c):
    # feat_ref: [TILE_B, TILE_CG, L]  with L = g*hw   (lane-dense packing)
    # w1_ref  : [g, TILE_CG, 512]     bf16, rows reordered so w1_ref[j, cg, :]
    #                                 is the Linear1 row of channel cg*g + j.
    x = feat_ref[...]

    # Per-group spatial sum fused into the first matmul.  The HW sum is done
    # in f32; only the MXU operands are bf16 (accumulate in f32).
    part = None
    for j in range(g):                                   # static unroll, g <= 16
        seg = x[:, :, j * hw:(j + 1) * hw].astype(jnp.float32)
        pj = jnp.sum(seg, axis=-1).astype(jnp.bfloat16)  # [TILE_B, TILE_CG]
        d = jnp.dot(pj, w1_ref[j],
                    preferred_element_type=jnp.float32)  # [TILE_B, 512] f32
        part = d if part is None else part + d

    def epilogue(h1pre):
        # mean-pool scale + LeakyReLU (Dropout = identity in eval mode)
        h1 = _leaky_relu(h1pre * inv_hw)                              # [TILE_B, 512]
        # Linear(512 -> 128) + bias + LeakyReLU (kept in f32; tiny matmul)
        h2 = jnp.dot(h1, w2_ref[...], preferred_element_type=jnp.float32)
        h2 = _leaky_relu(h2 + b2_ref[...])                            # [TILE_B, 128]
        # Linear(128 -> 1): VPU multiply + lane reduce
        out = jnp.sum(h2 * w3_ref[...], axis=-1, keepdims=True) + b3_ref[...]
        out_ref[...] = out.astype(out_ref.dtype)

    if multi_c:
        c = pl.program_id(1)

        @pl.when(c == 0)
        def _init():
            acc_ref[...] = jnp.zeros_like(acc_ref)

        acc_ref[...] += part

        @pl.when(c == pl.num_programs(1) - 1)
        def _finalize():
            epilogue(acc_ref[...])
    else:
        # Single channel block: no accumulator round trip at all.
        epilogue(part)


# --------------------------------------------------------------------------
# Tile / VMEM sizing helpers
# --------------------------------------------------------------------------
def _vmem_budget():
    cap = None
    try:
        info = pltpu.get_tpu_info()
        cap = int(getattr(info, "vmem_capacity_bytes", 0)) or None
    except Exception:
        cap = None
    if not cap:
        cap = 64 << 20          # conservative: smallest per-core VMEM (v7x)
    budget = max(8 << 20, min(int(cap * 0.6), cap - (16 << 20)))
    return budget, cap


def _largest_divisor_leq(n, cap):
    best = 1
    for d in range(1, min(n, cap) + 1):
        if n % d == 0:
            best = d
    return best


def _choose_tiles(B, C, g, l_pad, feat_bytes, budget):
    # Batch tile: fill the MXU rows (up to 256), but keep >=2 batch blocks for
    # large B so the "parallel" axis can shard across v7x's two TensorCores.
    # (Non-power-of-two B falls back to its largest divisor — always correct.)
    cap_b = 256 if B < 32 else max(8, min(256, B // 2))
    tile_b = _largest_divisor_leq(B, cap_b)
    fixed = 2 * (512 * 128 * 4) + (256 << 10)     # w2 (double-buffered) + misc
    while True:
        for tile_c in (2048, 1024, 512, 256):
            if tile_c > C or C % tile_c or tile_c % g:
                continue
            feat_tile = tile_b * (tile_c // g) * l_pad * feat_bytes
            w1_tile = tile_c * 512 * 2                     # bf16
            need = 2 * feat_tile + 2 * w1_tile + tile_b * 512 * 4 + fixed
            if need <= budget:
                return tile_b, tile_c
        if tile_b == 1:
            return 1, 256
        tile_b = _largest_divisor_leq(B, max(1, tile_b // 2))


# --------------------------------------------------------------------------
# Wrapper
# --------------------------------------------------------------------------
def seresnext_wind_exp_head(feat_nchw, params, *, tile_b=None, tile_c=None):
    """Pool + head MLP of Seresnext_Wind_Exp on a backbone feature map.

    feat_nchw: [B, 2048, H, W] (PyTorch NCHW layout, any float dtype).
    params: dict with w1 [2048,512], w2 [512,128], b2 [128], w3 [128,1], b3 [1].
    Returns: [B, 1] float32.
    """
    B, C, H, W = feat_nchw.shape
    assert C == 2048, "head expects 2048-channel backbone features"
    HW = H * W

    # Lane-packing group: pack g channels into one (<=128)-lane row.  Free
    # reshape (H, W, and channel groups are contiguous in NCHW).
    max_g = min(max(128 // max(HW, 1), 1), 16)
    g = 1
    while g * 2 <= max_g and C % (g * 2) == 0:
        g *= 2
    CG = C // g
    L = g * HW
    feat = feat_nchw.reshape(B, CG, L)

    # Weights.  w1 is reordered once so row [j, cg, :] is channel cg*g + j,
    # and stored bf16 (halves its HBM/VMEM bytes and hits the bf16 MXU path).
    w1r = (params["w1"].reshape(CG, g, 512)
           .transpose(1, 0, 2).astype(jnp.bfloat16))          # [g, CG, 512]
    w2 = params["w2"].astype(jnp.float32)                      # [512, 128]
    b2 = params["b2"].reshape(1, 128).astype(jnp.float32)      # [1, 128]
    w3 = params["w3"].reshape(1, 128).astype(jnp.float32)      # [1, 128] row
    b3 = params["b3"].reshape(1, 1).astype(jnp.float32)        # [1, 1]

    fbytes = jnp.dtype(feat.dtype).itemsize
    l_pad = ((L + 127) // 128) * 128                           # VMEM lane padding
    budget, vmem_cap = _vmem_budget()

    if tile_b is None or tile_c is None:
        tb, tc = _choose_tiles(B, C, g, l_pad, fbytes, budget)
        tile_b = tile_b or tb
        tile_c = tile_c or tc
    assert B % tile_b == 0 and C % tile_c == 0 and tile_c % g == 0
    tile_cg = tile_c // g
    n_b, n_c = B // tile_b, C // tile_c
    multi_c = n_c > 1

    # VMEM limit derived from the actual tile bytes (stays below physical
    # capacity on 64 MiB v7x parts, uses more on 128 MiB v5e/v6e parts).
    need = (2 * tile_b * tile_cg * l_pad * fbytes + 2 * tile_c * 512 * 2
            + tile_b * 512 * 4 + 2 * (512 * 128 * 4) + (256 << 10))
    vmem_limit = int(min(vmem_cap, max(32 << 20, need + (8 << 20))))

    kernel = functools.partial(head_kernel, hw=HW, g=g,
                               inv_hw=1.0 / float(HW), multi_c=multi_c)

    flops = 2 * B * C * 512 + 2 * B * 512 * 128 + 4 * B * 128 + B * C * HW
    bytes_accessed = (feat.size * fbytes + (n_b if multi_c else 1) * w1r.size * 2
                      + w2.size * 4 + B * 4)

    return pl.pallas_call(
        kernel,
        out_shape=jax.ShapeDtypeStruct((B, 1), jnp.float32),
        grid_spec=pltpu.PrefetchScalarGridSpec(
            num_scalar_prefetch=0,
            grid=(n_b, n_c),
            in_specs=[
                # Streamed, double-buffered feature tiles (lane-dense).
                pl.BlockSpec((tile_b, tile_cg, L), lambda b, c: (b, c, 0)),
                # w1: constant over the batch axis; when n_c == 1 its block
                # index is constant -> DMA'd exactly once for the whole call.
                pl.BlockSpec((g, tile_cg, 512), lambda b, c: (0, c, 0)),
                # Small weights: constant index maps -> fetched once, resident.
                pl.BlockSpec((512, 128), lambda b, c: (0, 0)),
                pl.BlockSpec((1, 128), lambda b, c: (0, 0)),
                pl.BlockSpec((1, 128), lambda b, c: (0, 0)),
                pl.BlockSpec((1, 1), lambda b, c: (0, 0)),
            ],
            out_specs=pl.BlockSpec((tile_b, 1), lambda b, c: (b, 0)),
            scratch_shapes=[pltpu.VMEM((tile_b, 512), jnp.float32)],
        ),
        compiler_params=pltpu.CompilerParams(
            dimension_semantics=("parallel", "arbitrary"),
            vmem_limit_bytes=vmem_limit,
        ),
        cost_estimate=pl.CostEstimate(flops=int(flops), transcendentals=0,
                                      bytes_accessed=int(bytes_accessed)),
    )(feat, w1r, w2, b2, w3, b3)


# --------------------------------------------------------------------------
# Synthetic params + plain-JAX reference
# --------------------------------------------------------------------------
def init_params(key):
    k1, k2, k3, k4, k5 = jax.random.split(key, 5)
    return {
        "w1": jax.random.normal(k1, (2048, 512), jnp.float32) * 0.02,
        "w2": jax.random.normal(k2, (512, 128), jnp.float32) * 0.05,
        "b2": jax.random.normal(k3, (128,), jnp.float32) * 0.01,
        "w3": jax.random.normal(k4, (128, 1), jnp.float32) * 0.1,
        "b3": jax.random.normal(k5, (1,), jnp.float32) * 0.01,
    }


def reference_head(feat_nchw, params):
    pooled = jnp.mean(feat_nchw.astype(jnp.float32), axis=(2, 3))   # [B, 2048]
    h1 = _leaky_relu(pooled @ params["w1"])                         # [B, 512]
    h2 = _leaky_relu(h1 @ params["w2"] + params["b2"])              # [B, 128]
    return h2 @ params["w3"] + params["b3"]                         # [B, 1]


if __name__ == "__main__":
    key = jax.random.PRNGKey(0)
    kf1, kf2, kf3, kp = jax.random.split(key, 4)
    params = init_params(kp)
    TOL = dict(atol=3e-2, rtol=3e-2)   # bf16 MXU path vs f32 reference

    # 1) Typical backbone output for a 128x128 input: 4x4 spatial.
    #    Lane-packed (g=8), single channel block -> single-step fast path.
    B, C, H, W = 2, 2048, 4, 4
    feat = jax.random.normal(kf1, (B, C, H, W), jnp.float32)
    out = jax.block_until_ready(seresnext_wind_exp_head(feat, params))
    ref = reference_head(feat, params)
    assert out.shape == (B, 1)
    assert jnp.allclose(out, ref, **TOL), (out, ref)

    # 2) Forced multi-block tiling: exercises the channel-reduction
    #    accumulator, multiple batch blocks and bf16 feature streaming.
    B2 = 16
    feat2 = jax.random.normal(kf2, (B2, C, H, W), jnp.bfloat16)
    out2 = jax.block_until_ready(
        seresnext_wind_exp_head(feat2, params, tile_b=8, tile_c=512))
    ref2 = reference_head(feat2, params)
    assert out2.shape == (B2, 1)
    assert jnp.allclose(out2, ref2, **TOL), (out2, ref2)

    # 3) Large spatial map (HW > 128) -> unpacked g=1 fallback path.
    B3, H3, W3 = 2, 12, 12
    feat3 = jax.random.normal(kf3, (B3, C, H3, W3), jnp.float32)
    out3 = jax.block_until_ready(seresnext_wind_exp_head(feat3, params))
    ref3 = reference_head(feat3, params)
    assert out3.shape == (B3, 1)
    assert jnp.allclose(out3, ref3, **TOL), (out3, ref3)

    print("KERNEL_OK")
</pallas_src>

<mosaic_0001>
module attributes {stable_mosaic.version = 11 : i64} {
  func.func @head_kernel(%arg0: i32, %arg1: i32, %arg2: memref<2x256x128xf32, #tpu.memory_space<vmem>>, %arg3: memref<8x256x512xbf16, #tpu.memory_space<vmem>>, %arg4: memref<512x128xf32, #tpu.memory_space<vmem>>, %arg5: memref<1x128xf32, #tpu.memory_space<vmem>>, %arg6: memref<1x128xf32, #tpu.memory_space<vmem>>, %arg7: memref<1x1xf32, #tpu.memory_space<vmem>>, %arg8: memref<2x1xf32, #tpu.memory_space<vmem>>, %arg9: memref<2x512xf32, #tpu.memory_space<vmem>>) attributes {dimension_semantics = [#tpu.dimension_semantics<parallel>, #tpu.dimension_semantics<arbitrary>], iteration_bounds = array<i64: 1, 1>, scalar_prefetch = 0 : i64, scratch_operands = 1 : i64, tpu.core_type = #tpu.core_type<tc>, window_params = [{transform_indices = @transform_0, window_bounds = array<i64: 2, 256, 128>}, {transform_indices = @transform_1, window_bounds = array<i64: 8, 256, 512>}, {pipeline_mode = #tpu.pipeline_mode<synchronous>, transform_indices = @transform_2, window_bounds = array<i64: 512, 128>}, {pipeline_mode = #tpu.pipeline_mode<synchronous>, transform_indices = @transform_3, window_bounds = array<i64: 1, 128>}, {pipeline_mode = #tpu.pipeline_mode<synchronous>, transform_indices = @transform_4, window_bounds = array<i64: 1, 128>}, {pipeline_mode = #tpu.pipeline_mode<synchronous>, transform_indices = @transform_5, window_bounds = array<i64: 1, 1>}, {transform_indices = @transform_6, window_bounds = array<i64: 2, 1>}]} {
    %c0 = arith.constant 0 : index
    %c0_0 = arith.constant 0 : index
    %c0_1 = arith.constant 0 : index
    %0 = vector.load %arg2[%c0, %c0_0, %c0_1] : memref<2x256x128xf32, #tpu.memory_space<vmem>>, vector<2x256x128xf32>
    %1 = vector.extract_strided_slice %0 {offsets = [0, 0, 0], sizes = [2, 256, 16], strides = [1, 1, 1]} : vector<2x256x128xf32> to vector<2x256x16xf32>
    %cst = arith.constant dense<0.000000e+00> : vector<2x256xf32>
    %2 = vector.multi_reduction <add>, %1, %cst [2] : vector<2x256x16xf32> to vector<2x256xf32>
    %3 = arith.truncf %2 : vector<2x256xf32> to vector<2x256xbf16>
    %c0_2 = arith.constant 0 : index
    %c0_3 = arith.constant 0 : index
    %c0_4 = arith.constant 0 : index
    %4 = vector.load %arg3[%c0_2, %c0_3, %c0_4] : memref<8x256x512xbf16, #tpu.memory_space<vmem>>, vector<1x256x512xbf16>
    %5 = vector.shape_cast %4 : vector<1x256x512xbf16> to vector<256x512xbf16>
    %cst_5 = arith.constant dense<0.000000e+00> : vector<2x512xf32>
    %6 = tpu.matmul %3, %5, %cst_5 {dimension_numbers = #tpu.dot_dimension_numbers<[1], [0], [0], [1], [0, 0, 1, 1], [], []>} : vector<2x256xbf16>, vector<256x512xbf16>, vector<2x512xf32> -> vector<2x512xf32>
    %7 = vector.extract_strided_slice %0 {offsets = [0, 0, 16], sizes = [2, 256, 16], strides = [1, 1, 1]} : vector<2x256x128xf32> to vector<2x256x16xf32>
    %cst_6 = arith.constant dense<0.000000e+00> : vector<2x256xf32>
    %8 = vector.multi_reduction <add>, %7, %cst_6 [2] : vector<2x256x16xf32> to vector<2x256xf32>
    %9 = arith.truncf %8 : vector<2x256xf32> to vector<2x256xbf16>
    %c1 = arith.constant 1 : index
    %c0_7 = arith.constant 0 : index
    %c0_8 = arith.constant 0 : index
    %10 = vector.load %arg3[%c1, %c0_7, %c0_8] : memref<8x256x512xbf16, #tpu.memory_space<vmem>>, vector<1x256x512xbf16>
    %11 = vector.shape_cast %10 : vector<1x256x512xbf16> to vector<256x512xbf16>
    %cst_9 = arith.constant dense<0.000000e+00> : vector<2x512xf32>
    %12 = tpu.matmul %9, %11, %cst_9 {dimension_numbers = #tpu.dot_dimension_numbers<[1], [0], [0], [1], [0, 0, 1, 1], [], []>} : vector<2x256xbf16>, vector<256x512xbf16>, vector<2x512xf32> -> vector<2x512xf32>
    %13 = arith.addf %6, %12 : vector<2x512xf32>
    %14 = vector.extract_strided_slice %0 {offsets = [0, 0, 32], sizes = [2, 256, 16], strides = [1, 1, 1]} : vector<2x256x128xf32> to vector<2x256x16xf32>
    %cst_10 = arith.constant dense<0.000000e+00> : vector<2x256xf32>
    %15 = vector.multi_reduction <add>, %14, %cst_10 [2] : vector<2x256x16xf32> to vector<2x256xf32>
    %16 = arith.truncf %15 : vector<2x256xf32> to vector<2x256xbf16>
    %c2 = arith.constant 2 : index
    %c0_11 = arith.constant 0 : index
    %c0_12 = arith.constant 0 : index
    %17 = vector.load %arg3[%c2, %c0_11, %c0_12] : memref<8x256x512xbf16, #tpu.memory_space<vmem>>, vector<1x256x512xbf16>
    %18 = vector.shape_cast %17 : vector<1x256x512xbf16> to vector<256x512xbf16>
    %cst_13 = arith.constant dense<0.000000e+00> : vector<2x512xf32>
    %19 = tpu.matmul %16, %18, %cst_13 {dimension_numbers = #tpu.dot_dimension_numbers<[1], [0], [0], [1], [0, 0, 1, 1], [], []>} : vector<2x256xbf16>, vector<256x512xbf16>, vector<2x512xf32> -> vector<2x512xf32>
    %20 = arith.addf %13, %19 : vector<2x512xf32>
    %21 = vector.extract_strided_slice %0 {offsets = [0, 0, 48], sizes = [2, 256, 16], strides = [1, 1, 1]} : vector<2x256x128xf32> to vector<2x256x16xf32>
    %cst_14 = arith.constant dense<0.000000e+00> : vector<2x256xf32>
    %22 = vector.multi_reduction <add>, %21, %cst_14 [2] : vector<2x256x16xf32> to vector<2x256xf32>
    %23 = arith.truncf %22 : vector<2x256xf32> to vector<2x256xbf16>
    %c3 = arith.constant 3 : index
    %c0_15 = arith.constant 0 : index
    %c0_16 = arith.constant 0 : index
    %24 = vector.load %arg3[%c3, %c0_15, %c0_16] : memref<8x256x512xbf16, #tpu.memory_space<vmem>>, vector<1x256x512xbf16>
    %25 = vector.shape_cast %24 : vector<1x256x512xbf16> to vector<256x512xbf16>
    %cst_17 = arith.constant dense<0.000000e+00> : vector<2x512xf32>
    %26 = tpu.matmul %23, %25, %cst_17 {dimension_numbers = #tpu.dot_dimension_numbers<[1], [0], [0], [1], [0, 0, 1, 1], [], []>} : vector<2x256xbf16>, vector<256x512xbf16>, vector<2x512xf32> -> vector<2x512xf32>
    %27 = arith.addf %20, %26 : vector<2x512xf32>
    %28 = vector.extract_strided_slice %0 {offsets = [0, 0, 64], sizes = [2, 256, 16], strides = [1, 1, 1]} : vector<2x256x128xf32> to vector<2x256x16xf32>
    %cst_18 = arith.constant dense<0.000000e+00> : vector<2x256xf32>
    %29 = vector.multi_reduction <add>, %28, %cst_18 [2] : vector<2x256x16xf32> to vector<2x256xf32>
    %30 = arith.truncf %29 : vector<2x256xf32> to vector<2x256xbf16>
    %c4 = arith.constant 4 : index
    %c0_19 = arith.constant 0 : index
    %c0_20 = arith.constant 0 : index
    %31 = vector.load %arg3[%c4, %c0_19, %c0_20] : memref<8x256x512xbf16, #tpu.memory_space<vmem>>, vector<1x256x512xbf16>
    %32 = vector.shape_cast %31 : vector<1x256x512xbf16> to vector<256x512xbf16>
    %cst_21 = arith.constant dense<0.000000e+00> : vector<2x512xf32>
    %33 = tpu.matmul %30, %32, %cst_21 {dimension_numbers = #tpu.dot_dimension_numbers<[1], [0], [0], [1], [0, 0, 1, 1], [], []>} : vector<2x256xbf16>, vector<256x512xbf16>, vector<2x512xf32> -> vector<2x512xf32>
    %34 = arith.addf %27, %33 : vector<2x512xf32>
    %35 = vector.extract_strided_slice %0 {offsets = [0, 0, 80], sizes = [2, 256, 16], strides = [1, 1, 1]} : vector<2x256x128xf32> to vector<2x256x16xf32>
    %cst_22 = arith.constant dense<0.000000e+00> : vector<2x256xf32>
    %36 = vector.multi_reduction <add>, %35, %cst_22 [2] : vector<2x256x16xf32> to vector<2x256xf32>
    %37 = arith.truncf %36 : vector<2x256xf32> to vector<2x256xbf16>
    %c5 = arith.constant 5 : index
    %c0_23 = arith.constant 0 : index
    %c0_24 = arith.constant 0 : index
    %38 = vector.load %arg3[%c5, %c0_23, %c0_24] : memref<8x256x512xbf16, #tpu.memory_space<vmem>>, vector<1x256x512xbf16>
    %39 = vector.shape_cast %38 : vector<1x256x512xbf16> to vector<256x512xbf16>
    %cst_25 = arith.constant dense<0.000000e+00> : vector<2x512xf32>
    %40 = tpu.matmul %37, %39, %cst_25 {dimension_numbers = #tpu.dot_dimension_numbers<[1], [0], [0], [1], [0, 0, 1, 1], [], []>} : vector<2x256xbf16>, vector<256x512xbf16>, vector<2x512xf32> -> vector<2x512xf32>
    %41 = arith.addf %34, %40 : vector<2x512xf32>
    %42 = vector.extract_strided_slice %0 {offsets = [0, 0, 96], sizes = [2, 256, 16], strides = [1, 1, 1]} : vector<2x256x128xf32> to vector<2x256x16xf32>
    %cst_26 = arith.constant dense<0.000000e+00> : vector<2x256xf32>
    %43 = vector.multi_reduction <add>, %42, %cst_26 [2] : vector<2x256x16xf32> to vector<2x256xf32>
    %44 = arith.truncf %43 : vector<2x256xf32> to vector<2x256xbf16>
    %c6 = arith.constant 6 : index
    %c0_27 = arith.constant 0 : index
    %c0_28 = arith.constant 0 : index
    %45 = vector.load %arg3[%c6, %c0_27, %c0_28] : memref<8x256x512xbf16, #tpu.memory_space<vmem>>, vector<1x256x512xbf16>
    %46 = vector.shape_cast %45 : vector<1x256x512xbf16> to vector<256x512xbf16>
    %cst_29 = arith.constant dense<0.000000e+00> : vector<2x512xf32>
    %47 = tpu.matmul %44, %46, %cst_29 {dimension_numbers = #tpu.dot_dimension_numbers<[1], [0], [0], [1], [0, 0, 1, 1], [], []>} : vector<2x256xbf16>, vector<256x512xbf16>, vector<2x512xf32> -> vector<2x512xf32>
    %48 = arith.addf %41, %47 : vector<2x512xf32>
    %49 = vector.extract_strided_slice %0 {offsets = [0, 0, 112], sizes = [2, 256, 16], strides = [1, 1, 1]} : vector<2x256x128xf32> to vector<2x256x16xf32>
    %cst_30 = arith.constant dense<0.000000e+00> : vector<2x256xf32>
    %50 = vector.multi_reduction <add>, %49, %cst_30 [2] : vector<2x256x16xf32> to vector<2x256xf32>
    %51 = arith.truncf %50 : vector<2x256xf32> to vector<2x256xbf16>
    %c7 = arith.constant 7 : index
    %c0_31 = arith.constant 0 : index
    %c0_32 = arith.constant 0 : index
    %52 = vector.load %arg3[%c7, %c0_31, %c0_32] : memref<8x256x512xbf16, #tpu.memory_space<vmem>>, vector<1x256x512xbf16>
    %53 = vector.shape_cast %52 : vector<1x256x512xbf16> to vector<256x512xbf16>
    %cst_33 = arith.constant dense<0.000000e+00> : vector<2x512xf32>
    %54 = tpu.matmul %51, %53, %cst_33 {dimension_numbers = #tpu.dot_dimension_numbers<[1], [0], [0], [1], [0, 0, 1, 1], [], []>} : vector<2x256xbf16>, vector<256x512xbf16>, vector<2x512xf32> -> vector<2x512xf32>
    %55 = arith.addf %48, %54 : vector<2x512xf32>
    %cst_34 = arith.constant 6.250000e-02 : f32
    %56 = vector.broadcast %cst_34 : f32 to vector<2x512xf32>
    %57 = arith.mulf %55, %56 : vector<2x512xf32>
    %cst_35 = arith.constant 0.000000e+00 : f32
    %58 = vector.broadcast %cst_35 : f32 to vector<2x512xf32>
    %59 = arith.cmpf ogt, %57, %58 : vector<2x512xf32>
    %cst_36 = arith.constant 0.00999999977 : f32
    %60 = vector.broadcast %cst_36 : f32 to vector<2x512xf32>
    %61 = arith.mulf %60, %57 : vector<2x512xf32>
    %62 = arith.select %59, %57, %61 : vector<2x512xi1>, vector<2x512xf32>
    %c0_37 = arith.constant 0 : index
    %c0_38 = arith.constant 0 : index
    %63 = vector.load %arg4[%c0_37, %c0_38] : memref<512x128xf32, #tpu.memory_space<vmem>>, vector<512x128xf32>
    %cst_39 = arith.constant dense<0.000000e+00> : vector<2x128xf32>
    %64 = tpu.matmul %62, %63, %cst_39 {dimension_numbers = #tpu.dot_dimension_numbers<[1], [0], [0], [1], [0, 0, 1, 1], [], []>} : vector<2x512xf32>, vector<512x128xf32>, vector<2x128xf32> -> vector<2x128xf32>
    %c0_40 = arith.constant 0 : index
    %c0_41 = arith.constant 0 : index
    %65 = vector.load %arg5[%c0_40, %c0_41] : memref<1x128xf32, #tpu.memory_space<vmem>>, vector<1x128xf32>
    %66 = vector.broadcast %65 : vector<1x128xf32> to vector<2x128xf32>
    %67 = arith.addf %64, %66 : vector<2x128xf32>
    %cst_42 = arith.constant 0.000000e+00 : f32
    %68 = vector.broadcast %cst_42 : f32 to vector<2x128xf32>
    %69 = arith.cmpf ogt, %67, %68 : vector<2x128xf32>
    %cst_43 = arith.constant 0.00999999977 : f32
    %70 = vector.broadcast %cst_43 : f32 to vector<2x128xf32>
    %71 = arith.mulf %70, %67 : vector<2x128xf32>
    %72 = arith.select %69, %67, %71 : vector<2x128xi1>, vector<2x128xf32>
    %c0_44 = arith.constant 0 : index
    %c0_45 = arith.constant 0 : index
    %73 = vector.load %arg6[%c0_44, %c0_45] : memref<1x128xf32, #tpu.memory_space<vmem>>, vector<1x128xf32>
    %74 = vector.broadcast %73 : vector<1x128xf32> to vector<2x128xf32>
    %75 = arith.mulf %72, %74 : vector<2x128xf32>
    %cst_46 = arith.constant dense<0.000000e+00> : vector<2xf32>
    %76 = vector.multi_reduction <add>, %75, %cst_46 [1] : vector<2x128xf32> to vector<2xf32>
    %77 = vector.shape_cast %76 : vector<2xf32> to vector<2x1xf32>
    %c0_47 = arith.constant 0 : index
    %c0_48 = arith.constant 0 : index
    %78 = vector.load %arg7[%c0_47, %c0_48] : memref<1x1xf32, #tpu.memory_space<vmem>>, vector<1x1xf32>
    %79 = vector.broadcast %78 : vector<1x1xf32> to vector<2x1xf32>
    %80 = arith.addf %77, %79 : vector<2x1xf32>
    %c0_49 = arith.constant 0 : index
    %c0_50 = arith.constant 0 : index
    %81 = vector.load %arg8[%c0_49, %c0_50] : memref<2x1xf32, #tpu.memory_space<vmem>>, vector<2x1xf32>
    tpu.vector_store %arg8[%c0_49, %c0_50], %80 {strides = array<i32>} : memref<2x1xf32, #tpu.memory_space<vmem>>, vector<2x1xf32>,
    return
  }
  func.func @transform_0(%arg0: i32, %arg1: i32) -> (i32, i32, i32) {
    %c0_i32 = arith.constant 0 : i32
    %c0_i32_0 = arith.constant 0 : i32
    return %arg0, %arg1, %c0_i32 : i32, i32, i32
  }
  func.func @transform_1(%arg0: i32, %arg1: i32) -> (i32, i32, i32) {
    %c0_i32 = arith.constant 0 : i32
    %c0_i32_0 = arith.constant 0 : i32
    %c0_i32_1 = arith.constant 0 : i32
    return %c0_i32, %arg1, %c0_i32_0 : i32, i32, i32
  }
  func.func @transform_2(%arg0: i32, %arg1: i32) -> (i32, i32) {
    %c0_i32 = arith.constant 0 : i32
    %c0_i32_0 = arith.constant 0 : i32
    %c0_i32_1 = arith.constant 0 : i32
    return %c0_i32, %c0_i32_0 : i32, i32
  }
  func.func @transform_3(%arg0: i32, %arg1: i32) -> (i32, i32) {
    %c0_i32 = arith.constant 0 : i32
    %c0_i32_0 = arith.constant 0 : i32
    %c0_i32_1 = arith.constant 0 : i32
    return %c0_i32, %c0_i32_0 : i32, i32
  }
  func.func @transform_4(%arg0: i32, %arg1: i32) -> (i32, i32) {
    %c0_i32 = arith.constant 0 : i32
    %c0_i32_0 = arith.constant 0 : i32
    %c0_i32_1 = arith.constant 0 : i32
    return %c0_i32, %c0_i32_0 : i32, i32
  }
  func.func @transform_5(%arg0: i32, %arg1: i32) -> (i32, i32) {
    %c0_i32 = arith.constant 0 : i32
    %c0_i32_0 = arith.constant 0 : i32
    %c0_i32_1 = arith.constant 0 : i32
    return %c0_i32, %c0_i32_0 : i32, i32
  }
  func.func @transform_6(%arg0: i32, %arg1: i32) -> (i32, i32) {
    %c0_i32 = arith.constant 0 : i32
    %c0_i32_0 = arith.constant 0 : i32
    return %arg0, %c0_i32 : i32, i32
  }
}

</mosaic_0001>

<llo_original>
// kernel: tpu_custom_call.1
$region0: #{tpu_custom_call.1}
  #allocation0 [shape = 'u32[]', space=smem, size = 0x4, offset = 0x4, fixed_abs, tag = 'smem constant byte address 0x4 - core index']
  #allocation1 [shape = 'u32[72,128]{1,0:T(1,128)}', space=vmem, size = 0x9000, scoped, tag = 'internal scratch']
  #allocation2 [shape = 'f32[2,512]{1,0:T(2,128)}', space=vmem, size = 0x1000, scoped, tag = 'scratch operand']
  #allocation3 [shape = 'f32[1,1]{1,0:T(1,128)S(1)}', space=vmem, size = 0x200, scoped, tag = 'scoped memory for tpu_custom_call.1']
  %s0 = inlined_call_operand.hbm [shape: f32[2,256,128], index: 0, kind: input, shape index: {}]
  %s1 = inlined_call_operand.hbm [shape: bf16[8,256,512], index: 1, kind: input, shape index: {}]
  %s2 = inlined_call_operand.hbm [shape: f32[512,128], index: 2, kind: input, shape index: {}]
  %s3 = inlined_call_operand.hbm [shape: f32[1,128], index: 3, kind: input, shape index: {}]
  %s4 = inlined_call_operand.hbm [shape: f32[1,128], index: 4, kind: input, shape index: {}]
  %s5 = inlined_call_operand.<no memory space> [shape: f32[1,1], index: 5, kind: input, shape index: {}]
  %s6 = inlined_call_operand.vmem [shape: f32[2,1], index: 6, kind: output, shape index: {}]
  %s7 = sld [smem:[#allocation0]]
  $region54: #{tpu_custom_call.1} parent=0
    _
  %s9 = ssub.s32 1, %s7
  %s10 = scalar_select 0, %s9, %s7
  %v11 = vstv %s5
  %12 = vst [vmem:[#allocation3] sm:$0x1] %v11
  $region1: #{tpu_custom_call.1} parent=0
    #allocation4 [shape = 'u8[262144]{0}', space=vmem, size = 0x40000, scoped, tag = 'input window, operand 0, single buffered']
    #allocation5 [shape = 's32[1]{0}', space=sflag, size = 0x4, scoped, tag = 'scoped memory for tpu_custom_call.1']
    #allocation6 [shape = 'u8[2097152]{0}', space=vmem, size = 0x200000, scoped, tag = 'input window, operand 1, single buffered']
    #allocation7 [shape = 's32[1]{0}', space=sflag, size = 0x4, scoped, tag = 'scoped memory for tpu_custom_call.1']
    #allocation8 [shape = 'u8[262144]{0}', space=vmem, size = 0x40000, scoped, tag = 'input window, operand 2, single buffered']
    #allocation9 [shape = 'u8[512]{0}', space=vmem, size = 0x400, scoped, tag = 'input window, operand 3, single buffered']
    #allocation10 [shape = 's32[1]{0}', space=sflag, size = 0x4, scoped, tag = 'scoped memory for tpu_custom_call.1']
    #allocation11 [shape = 'u8[512]{0}', space=vmem, size = 0x400, scoped, tag = 'input window, operand 4, single buffered']
    %13 = vsyncpa [#allocation5], 0
    %14 = vsyncpa [#allocation7], 0
    %15 = vsyncpa [#allocation10], 0
    // Predicated region
    $region2: #{tpu_custom_call.1} parent=1 // pred_check
      _
    $region3: #{tpu_custom_call.1} parent=1 // pred_check_branch
      %17 = sbr.rel (0) target = $region5
    $region4: #{tpu_custom_call.1} parent=1 // pred_region
      %19 = vsyncadd [#allocation5], 0
      %s20 = sshll.u32 %s0, 4
      %s21 = int_to_ptr.hbm [resolvable:$true] %s20
      %s22 = sshll.u32 [#allocation4], 4
      %s23 = int_to_ptr.vmem [resolvable:$true] %s22
      %28 = dma.hbm_to_vmem [thread:$0]  %s21, 8192, %s23, [#allocation5], 128, 128, 8
    $region5: #{tpu_custom_call.1} parent=1 // pred_fallthru
      _
    // Predicated region
    $region6: #{tpu_custom_call.1} parent=1 // pred_check
      _
    $region7: #{tpu_custom_call.1} parent=1 // pred_check_branch
      %30 = sbr.rel (0) target = $region9
    $region8: #{tpu_custom_call.1} parent=1 // pred_region
      %32 = vsyncadd [#allocation7], 0
      %s33 = sshll.u32 %s1, 4
      %s34 = int_to_ptr.hbm [resolvable:$true] %s33
      %s35 = sshll.u32 [#allocation6], 4
      %s36 = int_to_ptr.vmem [resolvable:$true] %s35
      %41 = dma.hbm_to_vmem [thread:$0]  %s34, 65536, %s36, [#allocation7], 256, 256, 16
    $region9: #{tpu_custom_call.1} parent=1 // pred_fallthru
      _
    // Predicated region
    $region10: #{tpu_custom_call.1} parent=1 // pred_check
      _
    $region11: #{tpu_custom_call.1} parent=1 // pred_check_branch
      %43 = sbr.rel (0) target = $region13
    $region12: #{tpu_custom_call.1} parent=1 // pred_region
      %45 = vsyncadd [#allocation7], 0
      %s46 = sshll.u32 %s2, 4
      %s47 = int_to_ptr.hbm [resolvable:$true] %s46
      %s48 = sshll.u32 [#allocation8], 4
      %s49 = int_to_ptr.vmem [resolvable:$true] %s48
      %54 = dma.hbm_to_vmem [thread:$0]  %s47, 8192, %s49, [#allocation7], 128, 128, 8
    $region13: #{tpu_custom_call.1} parent=1 // pred_fallthru
      _
    // Predicated region
    $region14: #{tpu_custom_call.1} parent=1 // pred_check
      _
    $region15: #{tpu_custom_call.1} parent=1 // pred_check_branch
      %56 = sbr.rel (0) target = $region17
    $region16: #{tpu_custom_call.1} parent=1 // pred_region
      %58 = vsyncadd [#allocation10], 0
      %s60 = sshll.u32 %s3, 4
      %s61 = int_to_ptr.hbm [resolvable:$true] %s60
      %s62 = sshll.u32 [#allocation9], 4
      %s63 = int_to_ptr.vmem [resolvable:$true] %s62
      %65 = dma.hbm_to_vmem [thread:$0]  %s61, 16, %s63, [#allocation10]
    $region17: #{tpu_custom_call.1} parent=1 // pred_fallthru
      _
    // Predicated region
    $region18: #{tpu_custom_call.1} parent=1 // pred_check
      _
    $region19: #{tpu_custom_call.1} parent=1 // pred_check_branch
      %67 = sbr.rel (0) target = $region21
    $region20: #{tpu_custom_call.1} parent=1 // pred_region
      %69 = vsyncadd [#allocation10], 0
      %s71 = sshll.u32 %s4, 4
      %s72 = int_to_ptr.hbm [resolvable:$true] %s71
      %s73 = sshll.u32 [#allocation11], 4
      %s74 = int_to_ptr.vmem [resolvable:$true] %s73
      %76 = dma.hbm_to_vmem [thread:$0]  %s72, 16, %s74, [#allocation10]
    $region21: #{tpu_custom_call.1} parent=1 // pred_fallthru
      _
    // Predicated region
    $region22: #{tpu_custom_call.1} parent=1 // pred_check
      _
    $region23: #{tpu_custom_call.1} parent=1 // pred_check_branch
      %78 = sbr.rel (0) target = $region25
    $region24: #{tpu_custom_call.1} parent=1 // pred_region
      _
    $region25: #{tpu_custom_call.1} parent=1 // pred_fallthru
      _
    // Predicated region
    $region26: #{tpu_custom_call.1} parent=1 // pred_check
      _
    $region27: #{tpu_custom_call.1} parent=1 // pred_check_branch
      %80 = sbr.rel (0) target = $region29
    $region28: #{tpu_custom_call.1} parent=1 // pred_region
      %82 = dma.done [#allocation5], 8192
    $region29: #{tpu_custom_call.1} parent=1 // pred_fallthru
      _
    // Predicated region
    $region30: #{tpu_custom_call.1} parent=1 // pred_check
      _
    $region31: #{tpu_custom_call.1} parent=1 // pred_check_branch
      %84 = sbr.rel (0) target = $region33
    $region32: #{tpu_custom_call.1} parent=1 // pred_region
      %86 = dma.done [#allocation7], 65536
    $region33: #{tpu_custom_call.1} parent=1 // pred_fallthru
      _
    // Predicated region
    $region34: #{tpu_custom_call.1} parent=1 // pred_check
      _
    $region35: #{tpu_custom_call.1} parent=1 // pred_check_branch
      %88 = sbr.rel (0) target = $region37
    $region36: #{tpu_custom_call.1} parent=1 // pred_region
      %90 = dma.done [#allocation7], 8192
    $region37: #{tpu_custom_call.1} parent=1 // pred_fallthru
      _
    // Predicated region
    $region38: #{tpu_custom_call.1} parent=1 // pred_check
      _
    $region39: #{tpu_custom_call.1} parent=1 // pred_check_branch
      %92 = sbr.rel (0) target = $region41
    $region40: #{tpu_custom_call.1} parent=1 // pred_region
      %94 = dma.done [#allocation10], 16
    $region41: #{tpu_custom_call.1} parent=1 // pred_fallthru
      _
    // Predicated region
    $region42: #{tpu_custom_call.1} parent=1 // pred_check
      _
    $region43: #{tpu_custom_call.1} parent=1 // pred_check_branch
      %96 = sbr.rel (0) target = $region45
    $region44: #{tpu_custom_call.1} parent=1 // pred_region
      %98 = dma.done [#allocation10], 16
    $region45: #{tpu_custom_call.1} parent=1 // pred_fallthru
      _
    %v99 = vld [vmem:[#allocation4] sm:$0xff]
    %v100 = vld [vmem:[#allocation4 + $0x8] sm:$0xff]
    %v101 = vld [vmem:[#allocation4 + $0x10] sm:$0xff]
    %v102 = vld [vmem:[#allocation4 + $0x18] sm:$0xff]
    %v103 = vld [vmem:[#allocation4 + $0x20] sm:$0xff]
    %v104 = vld [vmem:[#allocation4 + $0x28] sm:$0xff]
    %v105 = vld [vmem:[#allocation4 + $0x30] sm:$0xff]
    %v106 = vld [vmem:[#allocation4 + $0x38] sm:$0xff]
    %v107 = vld [vmem:[#allocation4 + $0x40] sm:$0xff]
    %v108 = vld [vmem:[#allocation4 + $0x48] sm:$0xff]
    %v109 = vld [vmem:[#allocation4 + $0x50] sm:$0xff]
    %v110 = vld [vmem:[#allocation4 + $0x58] sm:$0xff]
    %v111 = vld [vmem:[#allocation4 + $0x60] sm:$0xff]
    %v112 = vld [vmem:[#allocation4 + $0x68] sm:$0xff]
    %v113 = vld [vmem:[#allocation4 + $0x70] sm:$0xff]
    %v114 = vld [vmem:[#allocation4 + $0x78] sm:$0xff]
    %v115 = vld [vmem:[#allocation4 + $0x80] sm:$0xff]
    %v116 = vld [vmem:[#allocation4 + $0x88] sm:$0xff]
    %v117 = vld [vmem:[#allocation4 + $0x90] sm:$0xff]
    %v118 = vld [vmem:[#allocation4 + $0x98] sm:$0xff]
    %v119 = vld [vmem:[#allocation4 + $0xa0] sm:$0xff]
    %v120 = vld [vmem:[#allocation4 + $0xa8] sm:$0xff]
    %v121 = vld [vmem:[#allocation4 + $0xb0] sm:$0xff]
    %v122 = vld [vmem:[#allocation4 + $0xb8] sm:$0xff]
    %v123 = vld [vmem:[#allocation4 + $0xc0] sm:$0xff]
    %v124 = vld [vmem:[#allocation4 + $0xc8] sm:$0xff]
    %v125 = vld [vmem:[#allocation4 + $0xd0] sm:$0xff]
    %v126 = vld [vmem:[#allocation4 + $0xd8] sm:$0xff]
    %v127 = vld [vmem:[#allocation4 + $0xe0] sm:$0xff]
    %v128 = vld [vmem:[#allocation4 + $0xe8] sm:$0xff]
    %v129 = vld [vmem:[#allocation4 + $0xf0] sm:$0xff]
    %v130 = vld [vmem:[#allocation4 + $0xf8] sm:$0xff]
    %v131 = vld [vmem:[#allocation4 + $0x100] sm:$0xff]
    %v132 = vld [vmem:[#allocation4 + $0x108] sm:$0xff]
    %v133 = vld [vmem:[#allocation4 + $0x110] sm:$0xff]
    %v134 = vld [vmem:[#allocation4 + $0x118] sm:$0xff]
    %v135 = vld [vmem:[#allocation4 + $0x120] sm:$0xff]
    %v136 = vld [vmem:[#allocation4 + $0x128] sm:$0xff]
    %v137 = vld [vmem:[#allocation4 + $0x130] sm:$0xff]
    %v138 = vld [vmem:[#allocation4 + $0x138] sm:$0xff]
    %v139 = vld [vmem:[#allocation4 + $0x140] sm:$0xff]
    %v140 = vld [vmem:[#allocation4 + $0x148] sm:$0xff]
    %v141 = vld [vmem:[#allocation4 + $0x150] sm:$0xff]
    %v142 = vld [vmem:[#allocation4 + $0x158] sm:$0xff]
    %v143 = vld [vmem:[#allocation4 + $0x160] sm:$0xff]
    %v144 = vld [vmem:[#allocation4 + $0x168] sm:$0xff]
    %v145 = vld [vmem:[#allocation4 + $0x170] sm:$0xff]
    %v146 = vld [vmem:[#allocation4 + $0x178] sm:$0xff]
    %v147 = vld [vmem:[#allocation4 + $0x180] sm:$0xff]
    %v148 = vld [vmem:[#allocation4 + $0x188] sm:$0xff]
    %v149 = vld [vmem:[#allocation4 + $0x190] sm:$0xff]
    %v150 = vld [vmem:[#allocation4 + $0x198] sm:$0xff]
    %v151 = vld [vmem:[#allocation4 + $0x1a0] sm:$0xff]
    %v152 = vld [vmem:[#allocation4 + $0x1a8] sm:$0xff]
    %v153 = vld [vmem:[#allocation4 + $0x1b0] sm:$0xff]
    %v154 = vld [vmem:[#allocation4 + $0x1b8] sm:$0xff]
    %v155 = vld [vmem:[#allocation4 + $0x1c0] sm:$0xff]
    %v156 = vld [vmem:[#allocation4 + $0x1c8] sm:$0xff]
    %v157 = vld [vmem:[#allocation4 + $0x1d0] sm:$0xff]
    %v158 = vld [vmem:[#allocation4 + $0x1d8] sm:$0xff]
    %v159 = vld [vmem:[#allocation4 + $0x1e0] sm:$0xff]
    %v160 = vld [vmem:[#allocation4 + $0x1e8] sm:$0xff]
    %v161 = vld [vmem:[#allocation4 + $0x1f0] sm:$0xff]
    %v162 = vld [vmem:[#allocation4 + $0x1f8] sm:$0xff]
    %vm163 = vcmask 130048
    %v164 = vsel %vm163, %v99, 0.0
    %165 = vadd.xlane.f32.xlu0 %v164
    %v166 = vpop.xlane.xlu0 %165
    %v167 = vsel %vm163, %v100, 0.0
    %168 = vadd.xlane.f32.xlu0 %v167
    %v169 = vpop.xlane.xlu0 %168
    %v170 = vsel %vm163, %v101, 0.0
    %171 = vadd.xlane.f32.xlu0 %v170
    %v172 = vpop.xlane.xlu0 %171
    %v173 = vsel %vm163, %v102, 0.0
    %174 = vadd.xlane.f32.xlu0 %v173
    %v175 = vpop.xlane.xlu0 %174
    %v176 = vsel %vm163, %v103, 0.0
    %177 = vadd.xlane.f32.xlu0 %v176
    %v178 = vpop.xlane.xlu0 %177
    %v179 = vsel %vm163, %v104, 0.0
    %180 = vadd.xlane.f32.xlu0 %v179
    %v181 = vpop.xlane.xlu0 %180
    %v182 = vsel %vm163, %v105, 0.0
    %183 = vadd.xlane.f32.xlu0 %v182
    %v184 = vpop.xlane.xlu0 %183
    %v185 = vsel %vm163, %v106, 0.0
    %186 = vadd.xlane.f32.xlu0 %v185
    %v187 = vpop.xlane.xlu0 %186
    %v188 = vsel %vm163, %v107, 0.0
    %189 = vadd.xlane.f32.xlu0 %v188
    %v190 = vpop.xlane.xlu0 %189
    %v191 = vsel %vm163, %v108, 0.0
    %192 = vadd.xlane.f32.xlu0 %v191
    %v193 = vpop.xlane.xlu0 %192
    %v194 = vsel %vm163, %v109, 0.0
    %195 = vadd.xlane.f32.xlu0 %v194
    %v196 = vpop.xlane.xlu0 %195
    %v197 = vsel %vm163, %v110, 0.0
    %198 = vadd.xlane.f32.xlu0 %v197
    %v199 = vpop.xlane.xlu0 %198
    %v200 = vsel %vm163, %v111, 0.0
    %201 = vadd.xlane.f32.xlu0 %v200
    %v202 = vpop.xlane.xlu0 %201
    %v203 = vsel %vm163, %v112, 0.0
    %204 = vadd.xlane.f32.xlu0 %v203
    %v205 = vpop.xlane.xlu0 %204
    %v206 = vsel %vm163, %v113, 0.0
    %207 = vadd.xlane.f32.xlu0 %v206
    %v208 = vpop.xlane.xlu0 %207
    %v209 = vsel %vm163, %v114, 0.0
    %210 = vadd.xlane.f32.xlu0 %v209
    %v211 = vpop.xlane.xlu0 %210
    %v212 = vsel %vm163, %v115, 0.0
    %213 = vadd.xlane.f32.xlu0 %v212
    %v214 = vpop.xlane.xlu0 %213
    %v215 = vsel %vm163, %v116, 0.0
    %216 = vadd.xlane.f32.xlu0 %v215
    %v217 = vpop.xlane.xlu0 %216
    %v218 = vsel %vm163, %v117, 0.0
    %219 = vadd.xlane.f32.xlu0 %v218
    %v220 = vpop.xlane.xlu0 %219
    %v221 = vsel %vm163, %v118, 0.0
    %222 = vadd.xlane.f32.xlu0 %v221
    %v223 = vpop.xlane.xlu0 %222
    %v224 = vsel %vm163, %v119, 0.0
    %225 = vadd.xlane.f32.xlu0 %v224
    %v226 = vpop.xlane.xlu0 %225
    %v227 = vsel %vm163, %v120, 0.0
    %228 = vadd.xlane.f32.xlu0 %v227
    %v229 = vpop.xlane.xlu0 %228
    %v230 = vsel %vm163, %v121, 0.0
    %231 = vadd.xlane.f32.xlu0 %v230
    %v232 = vpop.xlane.xlu0 %231
    %v233 = vsel %vm163, %v122, 0.0
    %234 = vadd.xlane.f32.xlu0 %v233
    %v235 = vpop.xlane.xlu0 %234
    %v236 = vsel %vm163, %v123, 0.0
    %237 = vadd.xlane.f32.xlu0 %v236
    %v238 = vpop.xlane.xlu0 %237
    %v239 = vsel %vm163, %v124, 0.0
    %240 = vadd.xlane.f32.xlu0 %v239
    %v241 = vpop.xlane.xlu0 %240
    %v242 = vsel %vm163, %v125, 0.0
    %243 = vadd.xlane.f32.xlu0 %v242
    %v244 = vpop.xlane.xlu0 %243
    %v245 = vsel %vm163, %v126, 0.0
    %246 = vadd.xlane.f32.xlu0 %v245
    %v247 = vpop.xlane.xlu0 %246
    %v248 = vsel %vm163, %v127, 0.0
    %249 = vadd.xlane.f32.xlu0 %v248
    %v250 = vpop.xlane.xlu0 %249
    %v251 = vsel %vm163, %v128, 0.0
    %252 = vadd.xlane.f32.xlu0 %v251
    %v253 = vpop.xlane.xlu0 %252
    %v254 = vsel %vm163, %v129, 0.0
    %255 = vadd.xlane.f32.xlu0 %v254
    %v256 = vpop.xlane.xlu0 %255
    %v257 = vsel %vm163, %v130, 0.0
    %258 = vadd.xlane.f32.xlu0 %v257
    %v259 = vpop.xlane.xlu0 %258
    %v260 = vsel %vm163, %v131, 0.0
    %261 = vadd.xlane.f32.xlu0 %v260
    %v262 = vpop.xlane.xlu0 %261
    %v263 = vsel %vm163, %v132, 0.0
    %264 = vadd.xlane.f32.xlu0 %v263
    %v265 = vpop.xlane.xlu0 %264
    %v266 = vsel %vm163, %v133, 0.0
    %267 = vadd.xlane.f32.xlu0 %v266
    %v268 = vpop.xlane.xlu0 %267
    %v269 = vsel %vm163, %v134, 0.0
    %270 = vadd.xlane.f32.xlu0 %v269
    %v271 = vpop.xlane.xlu0 %270
    %v272 = vsel %vm163, %v135, 0.0
    %273 = vadd.xlane.f32.xlu0 %v272
    %v274 = vpop.xlane.xlu0 %273
    %v275 = vsel %vm163, %v136, 0.0
    %276 = vadd.xlane.f32.xlu0 %v275
    %v277 = vpop.xlane.xlu0 %276
    %v278 = vsel %vm163, %v137, 0.0
    %279 = vadd.xlane.f32.xlu0 %v278
    %v280 = vpop.xlane.xlu0 %279
    %v281 = vsel %vm163, %v138, 0.0
    %282 = vadd.xlane.f32.xlu0 %v281
    %v283 = vpop.xlane.xlu0 %282
    %v284 = vsel %vm163, %v139, 0.0
    %285 = vadd.xlane.f32.xlu0 %v284
    %v286 = vpop.xlane.xlu0 %285
    %v287 = vsel %vm163, %v140, 0.0
    %288 = vadd.xlane.f32.xlu0 %v287
    %v289 = vpop.xlane.xlu0 %288
    %v290 = vsel %vm163, %v141, 0.0
    %291 = vadd.xlane.f32.xlu0 %v290
    %v292 = vpop.xlane.xlu0 %291
    %v293 = vsel %vm163, %v142, 0.0
    %294 = vadd.xlane.f32.xlu0 %v293
    %v295 = vpop.xlane.xlu0 %294
    %v296 = vsel %vm163, %v143, 0.0
    %297 = vadd.xlane.f32.xlu0 %v296
    %v298 = vpop.xlane.xlu0 %297
    %v299 = vsel %vm163, %v144, 0.0
    %300 = vadd.xlane.f32.xlu0 %v299
    %v301 = vpop.xlane.xlu0 %300
    %v302 = vsel %vm163, %v145, 0.0
    %303 = vadd.xlane.f32.xlu0 %v302
    %v304 = vpop.xlane.xlu0 %303
    %v305 = vsel %vm163, %v146, 0.0
    %306 = vadd.xlane.f32.xlu0 %v305
    %v307 = vpop.xlane.xlu0 %306
    %v308 = vsel %vm163, %v147, 0.0
    %309 = vadd.xlane.f32.xlu0 %v308
    %v310 = vpop.xlane.xlu0 %309
    %v311 = vsel %vm163, %v148, 0.0
    %312 = vadd.xlane.f32.xlu0 %v311
    %v313 = vpop.xlane.xlu0 %312
    %v314 = vsel %vm163, %v149, 0.0
    %315 = vadd.xlane.f32.xlu0 %v314
    %v316 = vpop.xlane.xlu0 %315
    %v317 = vsel %vm163, %v150, 0.0
    %318 = vadd.xlane.f32.xlu0 %v317
    %v319 = vpop.xlane.xlu0 %318
    %v320 = vsel %vm163, %v151, 0.0
    %321 = vadd.xlane.f32.xlu0 %v320
    %v322 = vpop.xlane.xlu0 %321
    %v323 = vsel %vm163, %v152, 0.0
    %324 = vadd.xlane.f32.xlu0 %v323
    %v325 = vpop.xlane.xlu0 %324
    %v326 = vsel %vm163, %v153, 0.0
    %327 = vadd.xlane.f32.xlu0 %v326
    %v328 = vpop.xlane.xlu0 %327
    %v329 = vsel %vm163, %v154, 0.0
    %330 = vadd.xlane.f32.xlu0 %v329
    %v331 = vpop.xlane.xlu0 %330
    %v332 = vsel %vm163, %v155, 0.0
    %333 = vadd.xlane.f32.xlu0 %v332
    %v334 = vpop.xlane.xlu0 %333
    %v335 = vsel %vm163, %v156, 0.0
    %336 = vadd.xlane.f32.xlu0 %v335
    %v337 = vpop.xlane.xlu0 %336
    %v338 = vsel %vm163, %v157, 0.0
    %339 = vadd.xlane.f32.xlu0 %v338
    %v340 = vpop.xlane.xlu0 %339
    %v341 = vsel %vm163, %v158, 0.0
    %342 = vadd.xlane.f32.xlu0 %v341
    %v343 = vpop.xlane.xlu0 %342
    %v344 = vsel %vm163, %v159, 0.0
    %345 = vadd.xlane.f32.xlu0 %v344
    %v346 = vpop.xlane.xlu0 %345
    %v347 = vsel %vm163, %v160, 0.0
    %348 = vadd.xlane.f32.xlu0 %v347
    %v349 = vpop.xlane.xlu0 %348
    %v350 = vsel %vm163, %v161, 0.0
    %351 = vadd.xlane.f32.xlu0 %v350
    %v352 = vpop.xlane.xlu0 %351
    %v353 = vsel %vm163, %v162, 0.0
    %354 = vadd.xlane.f32.xlu0 %v353
    %v355 = vpop.xlane.xlu0 %354
    %v356 = vpack.c.bf16 %v169, %v166
    %v357 = vpack.c.bf16 %v175, %v172
    %v358 = vpack.c.bf16 %v181, %v178
    %v359 = vpack.c.bf16 %v187, %v184
    %v360 = vpack.c.bf16 %v193, %v190
    %v361 = vpack.c.bf16 %v199, %v196
    %v362 = vpack.c.bf16 %v205, %v202
    %v363 = vpack.c.bf16 %v211, %v208
    %v364 = vpack.c.bf16 %v217, %v214
    %v365 = vpack.c.bf16 %v223, %v220
    %v366 = vpack.c.bf16 %v229, %v226
    %v367 = vpack.c.bf16 %v235, %v232
    %v368 = vpack.c.bf16 %v241, %v238
    %v369 = vpack.c.bf16 %v247, %v244
    %v370 = vpack.c.bf16 %v253, %v250
    %v371 = vpack.c.bf16 %v259, %v256
    %v372 = vpack.c.bf16 %v265, %v262
    %v373 = vpack.c.bf16 %v271, %v268
    %v374 = vpack.c.bf16 %v277, %v274
    %v375 = vpack.c.bf16 %v283, %v280
    %v376 = vpack.c.bf16 %v289, %v286
    %v377 = vpack.c.bf16 %v295, %v292
    %v378 = vpack.c.bf16 %v301, %v298
    %v379 = vpack.c.bf16 %v307, %v304
    %v380 = vpack.c.bf16 %v313, %v310
    %v381 = vpack.c.bf16 %v319, %v316
    %v382 = vpack.c.bf16 %v325, %v322
    %v383 = vpack.c.bf16 %v331, %v328
    %v384 = vpack.c.bf16 %v337, %v334
    %v385 = vpack.c.bf16 %v343, %v340
    %v386 = vpack.c.bf16 %v349, %v346
    %v387 = vpack.c.bf16 %v355, %v352
    %v388 = vld [vmem:[#allocation6] sm:$0xff]
    %v389 = vld [vmem:[#allocation6 + $0x8] sm:$0xff]
    %v390 = vld [vmem:[#allocation6 + $0x10] sm:$0xff]
    %v391 = vld [vmem:[#allocation6 + $0x18] sm:$0xff]
    %v392 = vld [vmem:[#allocation6 + $0x20] sm:$0xff]
    %v393 = vld [vmem:[#allocation6 + $0x28] sm:$0xff]
    %v394 = vld [vmem:[#allocation6 + $0x30] sm:$0xff]
    %v395 = vld [vmem:[#allocation6 + $0x38] sm:$0xff]
    %v396 = vld [vmem:[#allocation6 + $0x40] sm:$0xff]
    %v397 = vld [vmem:[#allocation6 + $0x48] sm:$0xff]
    %v398 = vld [vmem:[#allocation6 + $0x50] sm:$0xff]
    %v399 = vld [vmem:[#allocation6 + $0x58] sm:$0xff]
    %v400 = vld [vmem:[#allocation6 + $0x60] sm:$0xff]
    %v401 = vld [vmem:[#allocation6 + $0x68] sm:$0xff]
    %v402 = vld [vmem:[#allocation6 + $0x70] sm:$0xff]
    %v403 = vld [vmem:[#allocation6 + $0x78] sm:$0xff]
    %v404 = vld [vmem:[#allocation6 + $0x80] sm:$0xff]
    %v405 = vld [vmem:[#allocation6 + $0x88] sm:$0xff]
    %v406 = vld [vmem:[#allocation6 + $0x90] sm:$0xff]
    %v407 = vld [vmem:[#allocation6 + $0x98] sm:$0xff]
    %v408 = vld [vmem:[#allocation6 + $0xa0] sm:$0xff]
    %v409 = vld [vmem:[#allocation6 + $0xa8] sm:$0xff]
    %v410 = vld [vmem:[#allocation6 + $0xb0] sm:$0xff]
    %v411 = vld [vmem:[#allocation6 + $0xb8] sm:$0xff]
    %v412 = vld [vmem:[#allocation6 + $0xc0] sm:$0xff]
    %v413 = vld [vmem:[#allocation6 + $0xc8] sm:$0xff]
    %v414 = vld [vmem:[#allocation6 + $0xd0] sm:$0xff]
    %v415 = vld [vmem:[#allocation6 + $0xd8] sm:$0xff]
    %v416 = vld [vmem:[#allocation6 + $0xe0] sm:$0xff]
    %v417 = vld [vmem:[#allocation6 + $0xe8] sm:$0xff]
    %v418 = vld [vmem:[#allocation6 + $0xf0] sm:$0xff]
    %v419 = vld [vmem:[#allocation6 + $0xf8] sm:$0xff]
    %v420 = vld [vmem:[#allocation6 + $0x100] sm:$0xff]
    %v421 = vld [vmem:[#allocation6 + $0x108] sm:$0xff]
    %v422 = vld [vmem:[#allocation6 + $0x110] sm:$0xff]
    %v423 = vld [vmem:[#allocation6 + $0x118] sm:$0xff]
    %v424 = vld [vmem:[#allocation6 + $0x120] sm:$0xff]
    %v425 = vld [vmem:[#allocation6 + $0x128] sm:$0xff]
    %v426 = vld [vmem:[#allocation6 + $0x130] sm:$0xff]
    %v427 = vld [vmem:[#allocation6 + $0x138] sm:$0xff]
    %v428 = vld [vmem:[#allocation6 + $0x140] sm:$0xff]
    %v429 = vld [vmem:[#allocation6 + $0x148] sm:$0xff]
    %v430 = vld [vmem:[#allocation6 + $0x150] sm:$0xff]
    %v431 = vld [vmem:[#allocation6 + $0x158] sm:$0xff]
    %v432 = vld [vmem:[#allocation6 + $0x160] sm:$0xff]
    %v433 = vld [vmem:[#allocation6 + $0x168] sm:$0xff]
    %v434 = vld [vmem:[#allocation6 + $0x170] sm:$0xff]
    %v435 = vld [vmem:[#allocation6 + $0x178] sm:$0xff]
    %v436 = vld [vmem:[#allocation6 + $0x180] sm:$0xff]
    %v437 = vld [vmem:[#allocation6 + $0x188] sm:$0xff]
    %v438 = vld [vmem:[#allocation6 + $0x190] sm:$0xff]
    %v439 = vld [vmem:[#allocation6 + $0x198] sm:$0xff]
    %v440 = vld [vmem:[#allocation6 + $0x1a0] sm:$0xff]
    %v441 = vld [vmem:[#allocation6 + $0x1a8] sm:$0xff]
    %v442 = vld [vmem:[#allocation6 + $0x1b0] sm:$0xff]
    %v443 = vld [vmem:[#allocation6 + $0x1b8] sm:$0xff]
    %v444 = vld [vmem:[#allocation6 + $0x1c0] sm:$0xff]
    %v445 = vld [vmem:[#allocation6 + $0x1c8] sm:$0xff]
    %v446 = vld [vmem:[#allocation6 + $0x1d0] sm:$0xff]
    %v447 = vld [vmem:[#allocation6 + $0x1d8] sm:$0xff]
    %v448 = vld [vmem:[#allocation6 + $0x1e0] sm:$0xff]
    %v449 = vld [vmem:[#allocation6 + $0x1e8] sm:$0xff]
    %v450 = vld [vmem:[#allocation6 + $0x1f0] sm:$0xff]
    %v451 = vld [vmem:[#allocation6 + $0x1f8] sm:$0xff]
    %516 = vrot.lane.b32.xlu0 %v99, 112
    %v517 = vpop.permute.xlu0 %516
    %518 = vrot.lane.b32.xlu0 %v100, 112
    %v519 = vpop.permute.xlu0 %518
    %520 = vrot.lane.b32.xlu0 %v101, 112
    %v521 = vpop.permute.xlu0 %520
    %522 = vrot.lane.b32.xlu0 %v102, 112
    %v523 = vpop.permute.xlu0 %522
    %524 = vrot.lane.b32.xlu0 %v103, 112
    %v525 = vpop.permute.xlu0 %524
    %526 = vrot.lane.b32.xlu0 %v104, 112
    %v527 = vpop.permute.xlu0 %526
    %528 = vrot.lane.b32.xlu0 %v105, 112
    %v529 = vpop.permute.xlu0 %528
    %530 = vrot.lane.b32.xlu0 %v106, 112
    %v531 = vpop.permute.xlu0 %530
    %532 = vrot.lane.b32.xlu0 %v107, 112
    %v533 = vpop.permute.xlu0 %532
    %534 = vrot.lane.b32.xlu0 %v108, 112
    %v535 = vpop.permute.xlu0 %534
    %536 = vrot.lane.b32.xlu0 %v109, 112
    %v537 = vpop.permute.xlu0 %536
    %538 = vrot.lane.b32.xlu0 %v110, 112
    %v539 = vpop.permute.xlu0 %538
    %540 = vrot.lane.b32.xlu0 %v111, 112
    %v541 = vpop.permute.xlu0 %540
    %542 = vrot.lane.b32.xlu0 %v112, 112
    %v543 = vpop.permute.xlu0 %542
    %544 = vrot.lane.b32.xlu0 %v113, 112
    %v545 = vpop.permute.xlu0 %544
    %546 = vrot.lane.b32.xlu0 %v114, 112
    %v547 = vpop.permute.xlu0 %546
    %548 = vrot.lane.b32.xlu0 %v115, 112
    %v549 = vpop.permute.xlu0 %548
    %550 = vrot.lane.b32.xlu0 %v116, 112
    %v551 = vpop.permute.xlu0 %550
    %552 = vrot.lane.b32.xlu0 %v117, 112
    %v553 = vpop.permute.xlu0 %552
    %554 = vrot.lane.b32.xlu0 %v118, 112
    %v555 = vpop.permute.xlu0 %554
    %556 = vrot.lane.b32.xlu0 %v119, 112
    %v557 = vpop.permute.xlu0 %556
    %558 = vrot.lane.b32.xlu0 %v120, 112
    %v559 = vpop.permute.xlu0 %558
    %560 = vrot.lane.b32.xlu0 %v121, 112
    %v561 = vpop.permute.xlu0 %560
    %562 = vrot.lane.b32.xlu0 %v122, 112
    %v563 = vpop.permute.xlu0 %562
    %564 = vrot.lane.b32.xlu0 %v123, 112
    %v565 = vpop.permute.xlu0 %564
    %566 = vrot.lane.b32.xlu0 %v124, 112
    %v567 = vpop.permute.xlu0 %566
    %568 = vrot.lane.b32.xlu0 %v125, 112
    %v569 = vpop.permute.xlu0 %568
    %570 = vrot.lane.b32.xlu0 %v126, 112
    %v571 = vpop.permute.xlu0 %570
    %572 = vrot.lane.b32.xlu0 %v127, 112
    %v573 = vpop.permute.xlu0 %572
    %574 = vrot.lane.b32.xlu0 %v128, 112
    %v575 = vpop.permute.xlu0 %574
    %576 = vrot.lane.b32.xlu0 %v129, 112
    %v577 = vpop.permute.xlu0 %576
    %578 = vrot.lane.b32.xlu0 %v130, 112
    %v579 = vpop.permute.xlu0 %578
    %580 = vrot.lane.b32.xlu0 %v131, 112
    %v581 = vpop.permute.xlu0 %580
    %582 = vrot.lane.b32.xlu0 %v132, 112
    %v583 = vpop.permute.xlu0 %582
    %584 = vrot.lane.b32.xlu0 %v133, 112
    %v585 = vpop.permute.xlu0 %584
    %586 = vrot.lane.b32.xlu0 %v134, 112
    %v587 = vpop.permute.xlu0 %586
    %588 = vrot.lane.b32.xlu0 %v135, 112
    %v589 = vpop.permute.xlu0 %588
    %590 = vrot.lane.b32.xlu0 %v136, 112
    %v591 = vpop.permute.xlu0 %590
    %592 = vrot.lane.b32.xlu0 %v137, 112
    %v593 = vpop.permute.xlu0 %592
    %594 = vrot.lane.b32.xlu0 %v138, 112
    %v595 = vpop.permute.xlu0 %594
    %596 = vrot.lane.b32.xlu0 %v139, 112
    %v597 = vpop.permute.xlu0 %596
    %598 = vrot.lane.b32.xlu0 %v140, 112
    %v599 = vpop.permute.xlu0 %598
    %600 = vrot.lane.b32.xlu0 %v141, 112
    %v601 = vpop.permute.xlu0 %600
    %602 = vrot.lane.b32.xlu0 %v142, 112
    %v603 = vpop.permute.xlu0 %602
    %604 = vrot.lane.b32.xlu0 %v143, 112
    %v605 = vpop.permute.xlu0 %604
    %606 = vrot.lane.b32.xlu0 %v144, 112
    %v607 = vpop.permute.xlu0 %606
    %608 = vrot.lane.b32.xlu0 %v145, 112
    %v609 = vpop.permute.xlu0 %608
    %610 = vrot.lane.b32.xlu0 %v146, 112
    %v611 = vpop.permute.xlu0 %610
    %612 = vrot.lane.b32.xlu0 %v147, 112
    %v613 = vpop.permute.xlu0 %612
    %614 = vrot.lane.b32.xlu0 %v148, 112
    %v615 = vpop.permute.xlu0 %614
    %616 = vrot.lane.b32.xlu0 %v149, 112
    %v617 = vpop.permute.xlu0 %616
    %618 = vrot.lane.b32.xlu0 %v150, 112
    %v619 = vpop.permute.xlu0 %618
    %620 = vrot.lane.b32.xlu0 %v151, 112
    %v621 = vpop.permute.xlu0 %620
    %622 = vrot.lane.b32.xlu0 %v152, 112
    %v623 = vpop.permute.xlu0 %622
    %624 = vrot.lane.b32.xlu0 %v153, 112
    %v625 = vpop.permute.xlu0 %624
    %626 = vrot.lane.b32.xlu0 %v154, 112
    %v627 = vpop.permute.xlu0 %626
    %628 = vrot.lane.b32.xlu0 %v155, 112
    %v629 = vpop.permute.xlu0 %628
    %630 = vrot.lane.b32.xlu0 %v156, 112
    %v631 = vpop.permute.xlu0 %630
    %632 = vrot.lane.b32.xlu0 %v157, 112
    %v633 = vpop.permute.xlu0 %632
    %634 = vrot.lane.b32.xlu0 %v158, 112
    %v635 = vpop.permute.xlu0 %634
    %636 = vrot.lane.b32.xlu0 %v159, 112
    %v637 = vpop.permute.xlu0 %636
    %638 = vrot.lane.b32.xlu0 %v160, 112
    %v639 = vpop.permute.xlu0 %638
    %640 = vrot.lane.b32.xlu0 %v161, 112
    %v641 = vpop.permute.xlu0 %640
    %642 = vrot.lane.b32.xlu0 %v162, 112
    %v643 = vpop.permute.xlu0 %642
    %v708 = vsel %vm163, %v517, 0.0
    %709 = vadd.xlane.f32.xlu0 %v708
    %v710 = vpop.xlane.xlu0 %709
    %v711 = vsel %vm163, %v519, 0.0
    %712 = vadd.xlane.f32.xlu0 %v711
    %v713 = vpop.xlane.xlu0 %712
    %v714 = vsel %vm163, %v521, 0.0
    %715 = vadd.xlane.f32.xlu0 %v714
    %v716 = vpop.xlane.xlu0 %715
    %v717 = vsel %vm163, %v523, 0.0
    %718 = vadd.xlane.f32.xlu0 %v717
    %v719 = vpop.xlane.xlu0 %718
    %v720 = vsel %vm163, %v525, 0.0
    %721 = vadd.xlane.f32.xlu0 %v720
    %v722 = vpop.xlane.xlu0 %721
    %v723 = vsel %vm163, %v527, 0.0
    %724 = vadd.xlane.f32.xlu0 %v723
    %v725 = vpop.xlane.xlu0 %724
    %v726 = vsel %vm163, %v529, 0.0
    %727 = vadd.xlane.f32.xlu0 %v726
    %v728 = vpop.xlane.xlu0 %727
    %v729 = vsel %vm163, %v531, 0.0
    %730 = vadd.xlane.f32.xlu0 %v729
    %v731 = vpop.xlane.xlu0 %730
    %v732 = vsel %vm163, %v533, 0.0
    %733 = vadd.xlane.f32.xlu0 %v732
    %v734 = vpop.xlane.xlu0 %733
    %v735 = vsel %vm163, %v535, 0.0
    %736 = vadd.xlane.f32.xlu0 %v735
    %v737 = vpop.xlane.xlu0 %736
    %v738 = vsel %vm163, %v537, 0.0
    %739 = vadd.xlane.f32.xlu0 %v738
    %v740 = vpop.xlane.xlu0 %739
    %v741 = vsel %vm163, %v539, 0.0
    %742 = vadd.xlane.f32.xlu0 %v741
    %v743 = vpop.xlane.xlu0 %742
    %v744 = vsel %vm163, %v541, 0.0
    %745 = vadd.xlane.f32.xlu0 %v744
    %v746 = vpop.xlane.xlu0 %745
    %v747 = vsel %vm163, %v543, 0.0
    %748 = vadd.xlane.f32.xlu0 %v747
    %v749 = vpop.xlane.xlu0 %748
    %v750 = vsel %vm163, %v545, 0.0
    %751 = vadd.xlane.f32.xlu0 %v750
    %v752 = vpop.xlane.xlu0 %751
    %v753 = vsel %vm163, %v547, 0.0
    %754 = vadd.xlane.f32.xlu0 %v753
    %v755 = vpop.xlane.xlu0 %754
    %v756 = vsel %vm163, %v549, 0.0
    %757 = vadd.xlane.f32.xlu0 %v756
    %v758 = vpop.xlane.xlu0 %757
    %v759 = vsel %vm163, %v551, 0.0
    %760 = vadd.xlane.f32.xlu0 %v759
    %v761 = vpop.xlane.xlu0 %760
    %v762 = vsel %vm163, %v553, 0.0
    %763 = vadd.xlane.f32.xlu0 %v762
    %v764 = vpop.xlane.xlu0 %763
    %v765 = vsel %vm163, %v555, 0.0
    %766 = vadd.xlane.f32.xlu0 %v765
    %v767 = vpop.xlane.xlu0 %766
    %v768 = vsel %vm163, %v557, 0.0
    %769 = vadd.xlane.f32.xlu0 %v768
    %v770 = vpop.xlane.xlu0 %769
    %v771 = vsel %vm163, %v559, 0.0
    %772 = vadd.xlane.f32.xlu0 %v771
    %v773 = vpop.xlane.xlu0 %772
    %v774 = vsel %vm163, %v561, 0.0
    %775 = vadd.xlane.f32.xlu0 %v774
    %v776 = vpop.xlane.xlu0 %775
    %v777 = vsel %vm163, %v563, 0.0
    %778 = vadd.xlane.f32.xlu0 %v777
    %v779 = vpop.xlane.xlu0 %778
    %v780 = vsel %vm163, %v565, 0.0
    %781 = vadd.xlane.f32.xlu0 %v780
    %v782 = vpop.xlane.xlu0 %781
    %v783 = vsel %vm163, %v567, 0.0
    %784 = vadd.xlane.f32.xlu0 %v783
    %v785 = vpop.xlane.xlu0 %784
    %v786 = vsel %vm163, %v569, 0.0
    %787 = vadd.xlane.f32.xlu0 %v786
    %v788 = vpop.xlane.xlu0 %787
    %v789 = vsel %vm163, %v571, 0.0
    %790 = vadd.xlane.f32.xlu0 %v789
    %v791 = vpop.xlane.xlu0 %790
    %v792 = vsel %vm163, %v573, 0.0
    %793 = vadd.xlane.f32.xlu0 %v792
    %v794 = vpop.xlane.xlu0 %793
    %v795 = vsel %vm163, %v575, 0.0
    %796 = vadd.xlane.f32.xlu0 %v795
    %v797 = vpop.xlane.xlu0 %796
    %v798 = vsel %vm163, %v577, 0.0
    %799 = vadd.xlane.f32.xlu0 %v798
    %v800 = vpop.xlane.xlu0 %799
    %v801 = vsel %vm163, %v579, 0.0
    %802 = vadd.xlane.f32.xlu0 %v801
    %v803 = vpop.xlane.xlu0 %802
    %v804 = vsel %vm163, %v581, 0.0
    %805 = vadd.xlane.f32.xlu0 %v804
    %v806 = vpop.xlane.xlu0 %805
    %v807 = vsel %vm163, %v583, 0.0
    %808 = vadd.xlane.f32.xlu0 %v807
    %v809 = vpop.xlane.xlu0 %808
    %v810 = vsel %vm163, %v585, 0.0
    %811 = vadd.xlane.f32.xlu0 %v810
    %v812 = vpop.xlane.xlu0 %811
    %v813 = vsel %vm163, %v587, 0.0
    %814 = vadd.xlane.f32.xlu0 %v813
    %v815 = vpop.xlane.xlu0 %814
    %v816 = vsel %vm163, %v589, 0.0
    %817 = vadd.xlane.f32.xlu0 %v816
    %v818 = vpop.xlane.xlu0 %817
    %v819 = vsel %vm163, %v591, 0.0
    %820 = vadd.xlane.f32.xlu0 %v819
    %v821 = vpop.xlane.xlu0 %820
    %v822 = vsel %vm163, %v593, 0.0
    %823 = vadd.xlane.f32.xlu0 %v822
    %v824 = vpop.xlane.xlu0 %823
    %v825 = vsel %vm163, %v595, 0.0
    %826 = vadd.xlane.f32.xlu0 %v825
    %v827 = vpop.xlane.xlu0 %826
    %v828 = vsel %vm163, %v597, 0.0
    %829 = vadd.xlane.f32.xlu0 %v828
    %v830 = vpop.xlane.xlu0 %829
    %v831 = vsel %vm163, %v599, 0.0
    %832 = vadd.xlane.f32.xlu0 %v831
    %v833 = vpop.xlane.xlu0 %832
    %v834 = vsel %vm163, %v601, 0.0
    %835 = vadd.xlane.f32.xlu0 %v834
    %v836 = vpop.xlane.xlu0 %835
    %v837 = vsel %vm163, %v603, 0.0
    %838 = vadd.xlane.f32.xlu0 %v837
    %v839 = vpop.xlane.xlu0 %838
    %v840 = vsel %vm163, %v605, 0.0
    %841 = vadd.xlane.f32.xlu0 %v840
    %v842 = vpop.xlane.xlu0 %841
    %v843 = vsel %vm163, %v607, 0.0
    %844 = vadd.xlane.f32.xlu0 %v843
    %v845 = vpop.xlane.xlu0 %844
    %v846 = vsel %vm163, %v609, 0.0
    %847 = vadd.xlane.f32.xlu0 %v846
    %v848 = vpop.xlane.xlu0 %847
    %v849 = vsel %vm163, %v611, 0.0
    %850 = vadd.xlane.f32.xlu0 %v849
    %v851 = vpop.xlane.xlu0 %850
    %v852 = vsel %vm163, %v613, 0.0
    %853 = vadd.xlane.f32.xlu0 %v852
    %v854 = vpop.xlane.xlu0 %853
    %v855 = vsel %vm163, %v615, 0.0
    %856 = vadd.xlane.f32.xlu0 %v855
    %v857 = vpop.xlane.xlu0 %856
    %v858 = vsel %vm163, %v617, 0.0
    %859 = vadd.xlane.f32.xlu0 %v858
    %v860 = vpop.xlane.xlu0 %859
    %v861 = vsel %vm163, %v619, 0.0
    %862 = vadd.xlane.f32.xlu0 %v861
    %v863 = vpop.xlane.xlu0 %862
    %v864 = vsel %vm163, %v621, 0.0
    %865 = vadd.xlane.f32.xlu0 %v864
    %v866 = vpop.xlane.xlu0 %865
    %v867 = vsel %vm163, %v623, 0.0
    %868 = vadd.xlane.f32.xlu0 %v867
    %v869 = vpop.xlane.xlu0 %868
    %v870 = vsel %vm163, %v625, 0.0
    %871 = vadd.xlane.f32.xlu0 %v870
    %v872 = vpop.xlane.xlu0 %871
    %v873 = vsel %vm163, %v627, 0.0
    %874 = vadd.xlane.f32.xlu0 %v873
    %v875 = vpop.xlane.xlu0 %874
    %v876 = vsel %vm163, %v629, 0.0
    %877 = vadd.xlane.f32.xlu0 %v876
    %v878 = vpop.xlane.xlu0 %877
    %v879 = vsel %vm163, %v631, 0.0
    %880 = vadd.xlane.f32.xlu0 %v879
    %v881 = vpop.xlane.xlu0 %880
    %v882 = vsel %vm163, %v633, 0.0
    %883 = vadd.xlane.f32.xlu0 %v882
    %v884 = vpop.xlane.xlu0 %883
    %v885 = vsel %vm163, %v635, 0.0
    %886 = vadd.xlane.f32.xlu0 %v885
    %v887 = vpop.xlane.xlu0 %886
    %v888 = vsel %vm163, %v637, 0.0
    %889 = vadd.xlane.f32.xlu0 %v888
    %v890 = vpop.xlane.xlu0 %889
    %v891 = vsel %vm163, %v639, 0.0
    %892 = vadd.xlane.f32.xlu0 %v891
    %v893 = vpop.xlane.xlu0 %892
    %v894 = vsel %vm163, %v641, 0.0
    %895 = vadd.xlane.f32.xlu0 %v894
    %v896 = vpop.xlane.xlu0 %895
    %v897 = vsel %vm163, %v643, 0.0
    %898 = vadd.xlane.f32.xlu0 %v897
    %v899 = vpop.xlane.xlu0 %898
    %v900 = vpack.c.bf16 %v713, %v710
    %v901 = vpack.c.bf16 %v719, %v716
    %v902 = vpack.c.bf16 %v725, %v722
    %v903 = vpack.c.bf16 %v731, %v728
    %v904 = vpack.c.bf16 %v737, %v734
    %v905 = vpack.c.bf16 %v743, %v740
    %v906 = vpack.c.bf16 %v749, %v746
    %v907 = vpack.c.bf16 %v755, %v752
    %v908 = vpack.c.bf16 %v761, %v758
    %v909 = vpack.c.bf16 %v767, %v764
    %v910 = vpack.c.bf16 %v773, %v770
    %v911 = vpack.c.bf16 %v779, %v776
    %v912 = vpack.c.bf16 %v785, %v782
    %v913 = vpack.c.bf16 %v791, %v788
    %v914 = vpack.c.bf16 %v797, %v794
    %v915 = vpack.c.bf16 %v803, %v800
    %v916 = vpack.c.bf16 %v809, %v806
    %v917 = vpack.c.bf16 %v815, %v812
    %v918 = vpack.c.bf16 %v821, %v818
    %v919 = vpack.c.bf16 %v827, %v824
    %v920 = vpack.c.bf16 %v833, %v830
    %v921 = vpack.c.bf16 %v839, %v836
    %v922 = vpack.c.bf16 %v845, %v842
    %v923 = vpack.c.bf16 %v851, %v848
    %v924 = vpack.c.bf16 %v857, %v854
    %v925 = vpack.c.bf16 %v863, %v860
    %v926 = vpack.c.bf16 %v869, %v866
    %v927 = vpack.c.bf16 %v875, %v872
    %v928 = vpack.c.bf16 %v881, %v878
    %v929 = vpack.c.bf16 %v887, %v884
    %v930 = vpack.c.bf16 %v893, %v890
    %v931 = vpack.c.bf16 %v899, %v896
    %s932 = scalar_lea.vmem [#allocation6], 512
    %v933 = vld [vmem:[%s932] sm:$0xff]
    %v934 = vld [vmem:[%s932 + $0x8] sm:$0xff]
    %v935 = vld [vmem:[%s932 + $0x10] sm:$0xff]
    %v936 = vld [vmem:[%s932 + $0x18] sm:$0xff]
    %v937 = vld [vmem:[%s932 + $0x20] sm:$0xff]
    %v938 = vld [vmem:[%s932 + $0x28] sm:$0xff]
    %v939 = vld [vmem:[%s932 + $0x30] sm:$0xff]
    %v940 = vld [vmem:[%s932 + $0x38] sm:$0xff]
    %v941 = vld [vmem:[%s932 + $0x40] sm:$0xff]
    %v942 = vld [vmem:[%s932 + $0x48] sm:$0xff]
    %v943 = vld [vmem:[%s932 + $0x50] sm:$0xff]
    %v944 = vld [vmem:[%s932 + $0x58] sm:$0xff]
    %v945 = vld [vmem:[%s932 + $0x60] sm:$0xff]
    %v946 = vld [vmem:[%s932 + $0x68] sm:$0xff]
    %v947 = vld [vmem:[%s932 + $0x70] sm:$0xff]
    %v948 = vld [vmem:[%s932 + $0x78] sm:$0xff]
    %v949 = vld [vmem:[%s932 + $0x80] sm:$0xff]
    %v950 = vld [vmem:[%s932 + $0x88] sm:$0xff]
    %v951 = vld [vmem:[%s932 + $0x90] sm:$0xff]
    %v952 = vld [vmem:[%s932 + $0x98] sm:$0xff]
    %v953 = vld [vmem:[%s932 + $0xa0] sm:$0xff]
    %v954 = vld [vmem:[%s932 + $0xa8] sm:$0xff]
    %v955 = vld [vmem:[%s932 + $0xb0] sm:$0xff]
    %v956 = vld [vmem:[%s932 + $0xb8] sm:$0xff]
    %v957 = vld [vmem:[%s932 + $0xc0] sm:$0xff]
    %v958 = vld [vmem:[%s932 + $0xc8] sm:$0xff]
    %v959 = vld [vmem:[%s932 + $0xd0] sm:$0xff]
    %v960 = vld [vmem:[%s932 + $0xd8] sm:$0xff]
    %v961 = vld [vmem:[%s932 + $0xe0] sm:$0xff]
    %v962 = vld [vmem:[%s932 + $0xe8] sm:$0xff]
    %v963 = vld [vmem:[%s932 + $0xf0] sm:$0xff]
    %v964 = vld [vmem:[%s932 + $0xf8] sm:$0xff]
    %v965 = vld [vmem:[%s932 + $0x100] sm:$0xff]
    %v966 = vld [vmem:[%s932 + $0x108] sm:$0xff]
    %v967 = vld [vmem:[%s932 + $0x110] sm:$0xff]
    %v968 = vld [vmem:[%s932 + $0x118] sm:$0xff]
    %v969 = vld [vmem:[%s932 + $0x120] sm:$0xff]
    %v970 = vld [vmem:[%s932 + $0x128] sm:$0xff]
    %v971 = vld [vmem:[%s932 + $0x130] sm:$0xff]
    %v972 = vld [vmem:[%s932 + $0x138] sm:$0xff]
    %v973 = vld [vmem:[%s932 + $0x140] sm:$0xff]
    %v974 = vld [vmem:[%s932 + $0x148] sm:$0xff]
    %v975 = vld [vmem:[%s932 + $0x150] sm:$0xff]
    %v976 = vld [vmem:[%s932 + $0x158] sm:$0xff]
    %v977 = vld [vmem:[%s932 + $0x160] sm:$0xff]
    %v978 = vld [vmem:[%s932 + $0x168] sm:$0xff]
    %v979 = vld [vmem:[%s932 + $0x170] sm:$0xff]
    %v980 = vld [vmem:[%s932 + $0x178] sm:$0xff]
    %v981 = vld [vmem:[%s932 + $0x180] sm:$0xff]
    %v982 = vld [vmem:[%s932 + $0x188] sm:$0xff]
    %v983 = vld [vmem:[%s932 + $0x190] sm:$0xff]
    %v984 = vld [vmem:[%s932 + $0x198] sm:$0xff]
    %v985 = vld [vmem:[%s932 + $0x1a0] sm:$0xff]
    %v986 = vld [vmem:[%s932 + $0x1a8] sm:$0xff]
    %v987 = vld [vmem:[%s932 + $0x1b0] sm:$0xff]
    %v988 = vld [vmem:[%s932 + $0x1b8] sm:$0xff]
    %v989 = vld [vmem:[%s932 + $0x1c0] sm:$0xff]
    %v990 = vld [vmem:[%s932 + $0x1c8] sm:$0xff]
    %v991 = vld [vmem:[%s932 + $0x1d0] sm:$0xff]
    %v992 = vld [vmem:[%s932 + $0x1d8] sm:$0xff]
    %v993 = vld [vmem:[%s932 + $0x1e0] sm:$0xff]
    %v994 = vld [vmem:[%s932 + $0x1e8] sm:$0xff]
    %v995 = vld [vmem:[%s932 + $0x1f0] sm:$0xff]
    %v996 = vld [vmem:[%s932 + $0x1f8] sm:$0xff]
    %v1029 = vunpack.c.l.b16 %v900
    %v1030 = vunpack.c.h.b16 %v900
    %v1031 = vunpack.c.l.b16 %v901
    %v1032 = vunpack.c.h.b16 %v901
    %v1033 = vunpack.c.l.b16 %v902
    %v1034 = vunpack.c.h.b16 %v902
    %v1035 = vunpack.c.l.b16 %v903
    %v1036 = vunpack.c.h.b16 %v903
    %v1037 = vunpack.c.l.b16 %v904
    %v1038 = vunpack.c.h.b16 %v904
    %v1039 = vunpack.c.l.b16 %v905
    %v1040 = vunpack.c.h.b16 %v905
    %v1041 = vunpack.c.l.b16 %v906
    %v1042 = vunpack.c.h.b16 %v906
    %v1043 = vunpack.c.l.b16 %v907
    %v1044 = vunpack.c.h.b16 %v907
    %v1045 = vunpack.c.l.b16 %v908
    %v1046 = vunpack.c.h.b16 %v908
    %v1047 = vunpack.c.l.b16 %v909
    %v1048 = vunpack.c.h.b16 %v909
    %v1049 = vunpack.c.l.b16 %v910
    %v1050 = vunpack.c.h.b16 %v910
    %v1051 = vunpack.c.l.b16 %v911
    %v1052 = vunpack.c.h.b16 %v911
    %v1053 = vunpack.c.l.b16 %v912
    %v1054 = vunpack.c.h.b16 %v912
    %v1055 = vunpack.c.l.b16 %v913
    %v1056 = vunpack.c.h.b16 %v913
    %v1057 = vunpack.c.l.b16 %v914
    %v1058 = vunpack.c.h.b16 %v914
    %v1059 = vunpack.c.l.b16 %v915
    %v1060 = vunpack.c.h.b16 %v915
    %v1061 = vunpack.c.l.b16 %v916
    %v1062 = vunpack.c.h.b16 %v916
    %v1063 = vunpack.c.l.b16 %v917
    %v1064 = vunpack.c.h.b16 %v917
    %v1065 = vunpack.c.l.b16 %v918
    %v1066 = vunpack.c.h.b16 %v918
    %v1067 = vunpack.c.l.b16 %v919
    %v1068 = vunpack.c.h.b16 %v919
    %v1069 = vunpack.c.l.b16 %v920
    %v1070 = vunpack.c.h.b16 %v920
    %v1071 = vunpack.c.l.b16 %v921
    %v1072 = vunpack.c.h.b16 %v921
    %v1073 = vunpack.c.l.b16 %v922
    %v1074 = vunpack.c.h.b16 %v922
    %v1075 = vunpack.c.l.b16 %v923
    %v1076 = vunpack.c.h.b16 %v923
    %v1077 = vunpack.c.l.b16 %v924
    %v1078 = vunpack.c.h.b16 %v924
    %v1079 = vunpack.c.l.b16 %v925
    %v1080 = vunpack.c.h.b16 %v925
    %v1081 = vunpack.c.l.b16 %v926
    %v1082 = vunpack.c.h.b16 %v926
    %v1083 = vunpack.c.l.b16 %v927
    %v1084 = vunpack.c.h.b16 %v927
    %v1085 = vunpack.c.l.b16 %v928
    %v1086 = vunpack.c.h.b16 %v928
    %v1087 = vunpack.c.l.b16 %v929
    %v1088 = vunpack.c.h.b16 %v929
    %v1089 = vunpack.c.l.b16 %v930
    %v1090 = vunpack.c.h.b16 %v930
    %v1091 = vunpack.c.l.b16 %v931
    %v1092 = vunpack.c.h.b16 %v931
    %v1093 = vlaneseq
    %v1094 = vand.u32 %v1093, 127
    %v1095 = vperm.slane %v1029, %v1094
    %v1096 = vadd.s32 %v1094, 4294967288
    %v1097 = vperm.slane %v1030, %v1096
    %vm1098 = vcmask 130112
    %v1099 = vsel %vm1098, %v1097, %v1095
    %v1100 = vadd.s32 %v1094, 4294967280
    %v1101 = vperm.slane %v1031, %v1100
    %vm1102 = vcmask 195712
    %v1103 = vsel %vm1102, %v1101, %v1099
    %v1104 = vadd.s32 %v1094, 4294967272
    %v1105 = vperm.slane %v1032, %v1104
    %vm1106 = vcmask 261312
    %v1107 = vsel %vm1106, %v1105, %v1103
    %v1108 = vadd.s32 %v1094, 4294967264
    %v1109 = vperm.slane %v1033, %v1108
    %vm1110 = vcmask 326912
    %v1111 = vsel %vm1110, %v1109, %v1107
    %v1112 = vadd.s32 %v1094, 4294967256
    %v1113 = vperm.slane %v1034, %v1112
    %vm1114 = vcmask 392512
    %v1115 = vsel %vm1114, %v1113, %v1111
    %v1116 = vadd.s32 %v1094, 4294967248
    %v1117 = vperm.slane %v1035, %v1116
    %vm1118 = vcmask 458112
    %v1119 = vsel %vm1118, %v1117, %v1115
    %v1120 = vadd.s32 %v1094, 4294967240
    %v1121 = vperm.slane %v1036, %v1120
    %vm1122 = vcmask 523712
    %v1123 = vsel %vm1122, %v1121, %v1119
    %v1124 = vadd.s32 %v1094, 4294967232
    %v1125 = vperm.slane %v1037, %v1124
    %vm1126 = vcmask 589312
    %v1127 = vsel %vm1126, %v1125, %v1123
    %v1128 = vadd.s32 %v1094, 4294967224
    %v1129 = vperm.slane %v1038, %v1128
    %vm1130 = vcmask 654912
    %v1131 = vsel %vm1130, %v1129, %v1127
    %v1132 = vadd.s32 %v1094, 4294967216
    %v1133 = vperm.slane %v1039, %v1132
    %vm1134 = vcmask 720512
    %v1135 = vsel %vm1134, %v1133, %v1131
    %v1136 = vadd.s32 %v1094, 4294967208
    %v1137 = vperm.slane %v1040, %v1136
    %vm1138 = vcmask 786112
    %v1139 = vsel %vm1138, %v1137, %v1135
    %v1140 = vadd.s32 %v1094, 4294967200
    %v1141 = vperm.slane %v1041, %v1140
    %vm1142 = vcmask 851712
    %v1143 = vsel %vm1142, %v1141, %v1139
    %v1144 = vadd.s32 %v1094, 4294967192
    %v1145 = vperm.slane %v1042, %v1144
    %vm1146 = vcmask 917312
    %v1147 = vsel %vm1146, %v1145, %v1143
    %v1148 = vadd.s32 %v1094, 4294967184
    %v1149 = vperm.slane %v1043, %v1148
    %vm1150 = vcmask 982912
    %v1151 = vsel %vm1150, %v1149, %v1147
    %v1152 = vadd.s32 %v1094, 4294967176
    %v1153 = vperm.slane %v1044, %v1152
    %vm1154 = vcmask 1048512
    %v1155 = vsel %vm1154, %v1153, %v1151
    %v1156 = vperm.slane %v1045, %v1094
    %v1157 = vperm.slane %v1046, %v1096
    %v1158 = vsel %vm1098, %v1157, %v1156
    %v1159 = vperm.slane %v1047, %v1100
    %v1160 = vsel %vm1102, %v1159, %v1158
    %v1161 = vperm.slane %v1048, %v1104
    %v1162 = vsel %vm1106, %v1161, %v1160
    %v1163 = vperm.slane %v1049, %v1108
    %v1164 = vsel %vm1110, %v1163, %v1162
    %v1165 = vperm.slane %v1050, %v1112
    %v1166 = vsel %vm1114, %v1165, %v1164
    %v1167 = vperm.slane %v1051, %v1116
    %v1168 = vsel %vm1118, %v1167, %v1166
    %v1169 = vperm.slane %v1052, %v1120
    %v1170 = vsel %vm1122, %v1169, %v1168
    %v1171 = vperm.slane %v1053, %v1124
    %v1172 = vsel %vm1126, %v1171, %v1170
    %v1173 = vperm.slane %v1054, %v1128
    %v1174 = vsel %vm1130, %v1173, %v1172
    %v1175 = vperm.slane %v1055, %v1132
    %v1176 = vsel %vm1134, %v1175, %v1174
    %v1177 = vperm.slane %v1056, %v1136
    %v1178 = vsel %vm1138, %v1177, %v1176
    %v1179 = vperm.slane %v1057, %v1140
    %v1180 = vsel %vm1142, %v1179, %v1178
    %v1181 = vperm.slane %v1058, %v1144
    %v1182 = vsel %vm1146, %v1181, %v1180
    %v1183 = vperm.slane %v1059, %v1148
    %v1184 = vsel %vm1150, %v1183, %v1182
    %v1185 = vperm.slane %v1060, %v1152
    %v1186 = vsel %vm1154, %v1185, %v1184
    %v1187 = vperm.slane %v1061, %v1094
    %v1188 = vperm.slane %v1062, %v1096
    %v1189 = vsel %vm1098, %v1188, %v1187
    %v1190 = vperm.slane %v1063, %v1100
    %v1191 = vsel %vm1102, %v1190, %v1189
    %v1192 = vperm.slane %v1064, %v1104
    %v1193 = vsel %vm1106, %v1192, %v1191
    %v1194 = vperm.slane %v1065, %v1108
    %v1195 = vsel %vm1110, %v1194, %v1193
    %v1196 = vperm.slane %v1066, %v1112
    %v1197 = vsel %vm1114, %v1196, %v1195
    %v1198 = vperm.slane %v1067, %v1116
    %v1199 = vsel %vm1118, %v1198, %v1197
    %v1200 = vperm.slane %v1068, %v1120
    %v1201 = vsel %vm1122, %v1200, %v1199
    %v1202 = vperm.slane %v1069, %v1124
    %v1203 = vsel %vm1126, %v1202, %v1201
    %v1204 = vperm.slane %v1070, %v1128
    %v1205 = vsel %vm1130, %v1204, %v1203
    %v1206 = vperm.slane %v1071, %v1132
    %v1207 = vsel %vm1134, %v1206, %v1205
    %v1208 = vperm.slane %v1072, %v1136
    %v1209 = vsel %vm1138, %v1208, %v1207
    %v1210 = vperm.slane %v1073, %v1140
    %v1211 = vsel %vm1142, %v1210, %v1209
    %v1212 = vperm.slane %v1074, %v1144
    %v1213 = vsel %vm1146, %v1212, %v1211
    %v1214 = vperm.slane %v1075, %v1148
    %v1215 = vsel %vm1150, %v1214, %v1213
    %v1216 = vperm.slane %v1076, %v1152
    %v1217 = vsel %vm1154, %v1216, %v1215
    %v1218 = vperm.slane %v1077, %v1094
    %v1219 = vperm.slane %v1078, %v1096
    %v1220 = vsel %vm1098, %v1219, %v1218
    %v1221 = vperm.slane %v1079, %v1100
    %v1222 = vsel %vm1102, %v1221, %v1220
    %v1223 = vperm.slane %v1080, %v1104
    %v1224 = vsel %vm1106, %v1223, %v1222
    %v1225 = vperm.slane %v1081, %v1108
    %v1226 = vsel %vm1110, %v1225, %v1224
    %v1227 = vperm.slane %v1082, %v1112
    %v1228 = vsel %vm1114, %v1227, %v1226
    %v1229 = vperm.slane %v1083, %v1116
    %v1230 = vsel %vm1118, %v1229, %v1228
    %v1231 = vperm.slane %v1084, %v1120
    %v1232 = vsel %vm1122, %v1231, %v1230
    %v1233 = vperm.slane %v1085, %v1124
    %v1234 = vsel %vm1126, %v1233, %v1232
    %v1235 = vperm.slane %v1086, %v1128
    %v1236 = vsel %vm1130, %v1235, %v1234
    %v1237 = vperm.slane %v1087, %v1132
    %v1238 = vsel %vm1134, %v1237, %v1236
    %v1239 = vperm.slane %v1088, %v1136
    %v1240 = vsel %vm1138, %v1239, %v1238
    %v1241 = vperm.slane %v1089, %v1140
    %v1242 = vsel %vm1142, %v1241, %v1240
    %v1243 = vperm.slane %v1090, %v1144
    %v1244 = vsel %vm1146, %v1243, %v1242
    %v1245 = vperm.slane %v1091, %v1148
    %v1246 = vsel %vm1150, %v1245, %v1244
    %v1247 = vperm.slane %v1092, %v1152
    %v1248 = vsel %vm1154, %v1247, %v1246
    %vm1249 = vcmask 1041409
    %v1250 = vsel %vm1249, %v1217, %v1155
    %v1251 = vsel %vm1249, %v1248, %v1186
    %v1252 = vpack.c.b16 %v1250, %v1250
    %v1253 = vpack.c.b16 %v1251, %v1251
    %v1320 = vunpack.c.l.b16 %v933
    %v1321 = vunpack.c.h.b16 %v933
    %v1322 = vunpack.c.l.b16 %v934
    %v1323 = vunpack.c.h.b16 %v934
    %v1324 = vunpack.c.l.b16 %v935
    %v1325 = vunpack.c.h.b16 %v935
    %v1326 = vunpack.c.l.b16 %v936
    %v1327 = vunpack.c.h.b16 %v936
    %v1328 = vunpack.c.l.b16 %v937
    %v1329 = vunpack.c.h.b16 %v937
    %v1330 = vunpack.c.l.b16 %v938
    %v1331 = vunpack.c.h.b16 %v938
    %v1332 = vunpack.c.l.b16 %v939
    %v1333 = vunpack.c.h.b16 %v939
    %v1334 = vunpack.c.l.b16 %v940
    %v1335 = vunpack.c.h.b16 %v940
    %v1336 = vunpack.c.l.b16 %v941
    %v1337 = vunpack.c.h.b16 %v941
    %v1338 = vunpack.c.l.b16 %v942
    %v1339 = vunpack.c.h.b16 %v942
    %v1340 = vunpack.c.l.b16 %v943
    %v1341 = vunpack.c.h.b16 %v943
    %v1342 = vunpack.c.l.b16 %v944
    %v1343 = vunpack.c.h.b16 %v944
    %v1344 = vunpack.c.l.b16 %v945
    %v1345 = vunpack.c.h.b16 %v945
    %v1346 = vunpack.c.l.b16 %v946
    %v1347 = vunpack.c.h.b16 %v946
    %v1348 = vunpack.c.l.b16 %v947
    %v1349 = vunpack.c.h.b16 %v947
    %v1350 = vunpack.c.l.b16 %v948
    %v1351 = vunpack.c.h.b16 %v948
    %v1352 = vunpack.c.l.b16 %v949
    %v1353 = vunpack.c.h.b16 %v949
    %v1354 = vunpack.c.l.b16 %v950
    %v1355 = vunpack.c.h.b16 %v950
    %v1356 = vunpack.c.l.b16 %v951
    %v1357 = vunpack.c.h.b16 %v951
    %v1358 = vunpack.c.l.b16 %v952
    %v1359 = vunpack.c.h.b16 %v952
    %v1360 = vunpack.c.l.b16 %v953
    %v1361 = vunpack.c.h.b16 %v953
    %v1362 = vunpack.c.l.b16 %v954
    %v1363 = vunpack.c.h.b16 %v954
    %v1364 = vunpack.c.l.b16 %v955
    %v1365 = vunpack.c.h.b16 %v955
    %v1366 = vunpack.c.l.b16 %v956
    %v1367 = vunpack.c.h.b16 %v956
    %v1368 = vunpack.c.l.b16 %v957
    %v1369 = vunpack.c.h.b16 %v957
    %v1370 = vunpack.c.l.b16 %v958
    %v1371 = vunpack.c.h.b16 %v958
    %v1372 = vunpack.c.l.b16 %v959
    %v1373 = vunpack.c.h.b16 %v959
    %v1374 = vunpack.c.l.b16 %v960
    %v1375 = vunpack.c.h.b16 %v960
    %v1376 = vunpack.c.l.b16 %v961
    %v1377 = vunpack.c.h.b16 %v961
    %v1378 = vunpack.c.l.b16 %v962
    %v1379 = vunpack.c.h.b16 %v962
    %v1380 = vunpack.c.l.b16 %v963
    %v1381 = vunpack.c.h.b16 %v963
    %v1382 = vunpack.c.l.b16 %v964
    %v1383 = vunpack.c.h.b16 %v964
    %v1384 = vunpack.c.l.b16 %v965
    %v1385 = vunpack.c.h.b16 %v965
    %v1386 = vunpack.c.l.b16 %v966
    %v1387 = vunpack.c.h.b16 %v966
    %v1388 = vunpack.c.l.b16 %v967
    %v1389 = vunpack.c.h.b16 %v967
    %v1390 = vunpack.c.l.b16 %v968
    %v1391 = vunpack.c.h.b16 %v968
    %v1392 = vunpack.c.l.b16 %v969
    %v1393 = vunpack.c.h.b16 %v969
    %v1394 = vunpack.c.l.b16 %v970
    %v1395 = vunpack.c.h.b16 %v970
    %v1396 = vunpack.c.l.b16 %v971
    %v1397 = vunpack.c.h.b16 %v971
    %v1398 = vunpack.c.l.b16 %v972
    %v1399 = vunpack.c.h.b16 %v972
    %v1400 = vunpack.c.l.b16 %v973
    %v1401 = vunpack.c.h.b16 %v973
    %v1402 = vunpack.c.l.b16 %v974
    %v1403 = vunpack.c.h.b16 %v974
    %v1404 = vunpack.c.l.b16 %v975
    %v1405 = vunpack.c.h.b16 %v975
    %v1406 = vunpack.c.l.b16 %v976
    %v1407 = vunpack.c.h.b16 %v976
    %v1408 = vunpack.c.l.b16 %v977
    %v1409 = vunpack.c.h.b16 %v977
    %v1410 = vunpack.c.l.b16 %v978
    %v1411 = vunpack.c.h.b16 %v978
    %v1412 = vunpack.c.l.b16 %v979
    %v1413 = vunpack.c.h.b16 %v979
    %v1414 = vunpack.c.l.b16 %v980
    %v1415 = vunpack.c.h.b16 %v980
    %v1416 = vunpack.c.l.b16 %v981
    %v1417 = vunpack.c.h.b16 %v981
    %v1418 = vunpack.c.l.b16 %v982
    %v1419 = vunpack.c.h.b16 %v982
    %v1420 = vunpack.c.l.b16 %v983
    %v1421 = vunpack.c.h.b16 %v983
    %v1422 = vunpack.c.l.b16 %v984
    %v1423 = vunpack.c.h.b16 %v984
    %v1424 = vunpack.c.l.b16 %v985
    %v1425 = vunpack.c.h.b16 %v985
    %v1426 = vunpack.c.l.b16 %v986
    %v1427 = vunpack.c.h.b16 %v986
    %v1428 = vunpack.c.l.b16 %v987
    %v1429 = vunpack.c.h.b16 %v987
    %v1430 = vunpack.c.l.b16 %v988
    %v1431 = vunpack.c.h.b16 %v988
    %v1432 = vunpack.c.l.b16 %v989
    %v1433 = vunpack.c.h.b16 %v989
    %v1434 = vunpack.c.l.b16 %v990
    %v1435 = vunpack.c.h.b16 %v990
    %v1436 = vunpack.c.l.b16 %v991
    %v1437 = vunpack.c.h.b16 %v991
    %v1438 = vunpack.c.l.b16 %v992
    %v1439 = vunpack.c.h.b16 %v992
    %v1440 = vunpack.c.l.b16 %v993
    %v1441 = vunpack.c.h.b16 %v993
    %v1442 = vunpack.c.l.b16 %v994
    %v1443 = vunpack.c.h.b16 %v994
    %v1444 = vunpack.c.l.b16 %v995
    %v1445 = vunpack.c.h.b16 %v995
    %v1446 = vunpack.c.l.b16 %v996
    %v1447 = vunpack.c.h.b16 %v996
    %v1448 = vpack.c.b16 %v1324, %v1320
    %v1449 = vpack.c.b16 %v1325, %v1321
    %v1450 = vpack.c.b16 %v1326, %v1322
    %v1451 = vpack.c.b16 %v1327, %v1323
    %v1452 = vpack.c.b16 %v1332, %v1328
    %v1453 = vpack.c.b16 %v1333, %v1329
    %v1454 = vpack.c.b16 %v1334, %v1330
    %v1455 = vpack.c.b16 %v1335, %v1331
    %v1456 = vpack.c.b16 %v1340, %v1336
    %v1457 = vpack.c.b16 %v1341, %v1337
    %v1458 = vpack.c.b16 %v1342, %v1338
    %v1459 = vpack.c.b16 %v1343, %v1339
    %v1460 = vpack.c.b16 %v1348, %v1344
    %v1461 = vpack.c.b16 %v1349, %v1345
    %v1462 = vpack.c.b16 %v1350, %v1346
    %v1463 = vpack.c.b16 %v1351, %v1347
    %v1464 = vpack.c.b16 %v1356, %v1352
    %v1465 = vpack.c.b16 %v1357, %v1353
    %v1466 = vpack.c.b16 %v1358, %v1354
    %v1467 = vpack.c.b16 %v1359, %v1355
    %v1468 = vpack.c.b16 %v1364, %v1360
    %v1469 = vpack.c.b16 %v1365, %v1361
    %v1470 = vpack.c.b16 %v1366, %v1362
    %v1471 = vpack.c.b16 %v1367, %v1363
    %v1472 = vpack.c.b16 %v1372, %v1368
    %v1473 = vpack.c.b16 %v1373, %v1369
    %v1474 = vpack.c.b16 %v1374, %v1370
    %v1475 = vpack.c.b16 %v1375, %v1371
    %v1476 = vpack.c.b16 %v1380, %v1376
    %v1477 = vpack.c.b16 %v1381, %v1377
    %v1478 = vpack.c.b16 %v1382, %v1378
    %v1479 = vpack.c.b16 %v1383, %v1379
    %v1480 = vpack.c.b16 %v1388, %v1384
    %v1481 = vpack.c.b16 %v1389, %v1385
    %v1482 = vpack.c.b16 %v1390, %v1386
    %v1483 = vpack.c.b16 %v1391, %v1387
    %v1484 = vpack.c.b16 %v1396, %v1392
    %v1485 = vpack.c.b16 %v1397, %v1393
    %v1486 = vpack.c.b16 %v1398, %v1394
    %v1487 = vpack.c.b16 %v1399, %v1395
    %v1488 = vpack.c.b16 %v1404, %v1400
    %v1489 = vpack.c.b16 %v1405, %v1401
    %v1490 = vpack.c.b16 %v1406, %v1402
    %v1491 = vpack.c.b16 %v1407, %v1403
    %v1492 = vpack.c.b16 %v1412, %v1408
    %v1493 = vpack.c.b16 %v1413, %v1409
    %v1494 = vpack.c.b16 %v1414, %v1410
    %v1495 = vpack.c.b16 %v1415, %v1411
    %v1496 = vpack.c.b16 %v1420, %v1416
    %v1497 = vpack.c.b16 %v1421, %v1417
    %v1498 = vpack.c.b16 %v1422, %v1418
    %v1499 = vpack.c.b16 %v1423, %v1419
    %v1500 = vpack.c.b16 %v1428, %v1424
    %v1501 = vpack.c.b16 %v1429, %v1425
    %v1502 = vpack.c.b16 %v1430, %v1426
    %v1503 = vpack.c.b16 %v1431, %v1427
    %v1504 = vpack.c.b16 %v1436, %v1432
    %v1505 = vpack.c.b16 %v1437, %v1433
    %v1506 = vpack.c.b16 %v1438, %v1434
    %v1507 = vpack.c.b16 %v1439, %v1435
    %v1508 = vpack.c.b16 %v1444, %v1440
    %v1509 = vpack.c.b16 %v1445, %v1441
    %v1510 = vpack.c.b16 %v1446, %v1442
    %v1511 = vpack.c.b16 %v1447, %v1443
    %1576 = vmatpush.bf16.msra.mxu0 %v1476
    %1577 = vmatpush.bf16.msra.mxu0 %v1472
    %1578 = vmatpush.bf16.msra.mxu0 %v1468
    %1579 = vmatpush.bf16.msra.mxu0 %v1464
    %1580 = vmatpush.bf16.msra.mxu0 %v1460
    %1581 = vmatpush.bf16.msra.mxu0 %v1456
    %1582 = vmatpush.bf16.msra.mxu0 %v1452
    %1583 = vmatpush.bf16.msra.mxu0 %v1448
    %1584 = vmatmul.bf16.gmra.mxu0 %v1252
    %v1585 = vpop.f32.mrf.mxu0
    %v1586 = vadd.f32 0.0, %v1585
    %v1587 = vpop.f32.mrf.mxu0
    %1588 = vdwg.mxu0
    %1589 = vmatpush.bf16.msra.mxu0 %v1508
    %1590 = vmatpush.bf16.msra.mxu0 %v1504
    %1591 = vmatpush.bf16.msra.mxu0 %v1500
    %1592 = vmatpush.bf16.msra.mxu0 %v1496
    %1593 = vmatpush.bf16.msra.mxu0 %v1492
    %1594 = vmatpush.bf16.msra.mxu0 %v1488
    %1595 = vmatpush.bf16.msra.mxu0 %v1484
    %1596 = vmatpush.bf16.msra.mxu0 %v1480
    %1597 = vmatmul.bf16.gmra.mxu0 %v1253
    %v1598 = vpop.f32.mrf.mxu0
    %v1599 = vadd.f32 %v1586, %v1598
    %v1600 = vpop.f32.mrf.mxu0
    %1601 = vdwg.mxu0
    %1602 = vmatpush.bf16.msra.mxu0 %v1477
    %1603 = vmatpush.bf16.msra.mxu0 %v1473
    %1604 = vmatpush.bf16.msra.mxu0 %v1469
    %1605 = vmatpush.bf16.msra.mxu0 %v1465
    %1606 = vmatpush.bf16.msra.mxu0 %v1461
    %1607 = vmatpush.bf16.msra.mxu0 %v1457
    %1608 = vmatpush.bf16.msra.mxu0 %v1453
    %1609 = vmatpush.bf16.msra.mxu0 %v1449
    %1610 = vmatmul.bf16.gmra.mxu0 %v1252
    %v1611 = vpop.f32.mrf.mxu0
    %v1612 = vadd.f32 0.0, %v1611
    %v1613 = vpop.f32.mrf.mxu0
    %1614 = vdwg.mxu0
    %1615 = vmatpush.bf16.msra.mxu0 %v1509
    %1616 = vmatpush.bf16.msra.mxu0 %v1505
    %1617 = vmatpush.bf16.msra.mxu0 %v1501
    %1618 = vmatpush.bf16.msra.mxu0 %v1497
    %1619 = vmatpush.bf16.msra.mxu0 %v1493
    %1620 = vmatpush.bf16.msra.mxu0 %v1489
    %1621 = vmatpush.bf16.msra.mxu0 %v1485
    %1622 = vmatpush.bf16.msra.mxu0 %v1481
    %1623 = vmatmul.bf16.gmra.mxu0 %v1253
    %v1624 = vpop.f32.mrf.mxu0
    %v1625 = vadd.f32 %v1612, %v1624
    %v1626 = vpop.f32.mrf.mxu0
    %1627 = vdwg.mxu0
    %1628 = vmatpush.bf16.msra.mxu0 %v1478
    %1629 = vmatpush.bf16.msra.mxu0 %v1474
    %1630 = vmatpush.bf16.msra.mxu0 %v1470
    %1631 = vmatpush.bf16.msra.mxu0 %v1466
    %1632 = vmatpush.bf16.msra.mxu0 %v1462
    %1633 = vmatpush.bf16.msra.mxu0 %v1458
    %1634 = vmatpush.bf16.msra.mxu0 %v1454
    %1635 = vmatpush.bf16.msra.mxu0 %v1450
    %1636 = vmatmul.bf16.gmra.mxu0 %v1252
    %v1637 = vpop.f32.mrf.mxu0
    %v1638 = vadd.f32 0.0, %v1637
    %v1639 = vpop.f32.mrf.mxu0
    %1640 = vdwg.mxu0
    %1641 = vmatpush.bf16.msra.mxu0 %v1510
    %1642 = vmatpush.bf16.msra.mxu0 %v1506
    %1643 = vmatpush.bf16.msra.mxu0 %v1502
    %1644 = vmatpush.bf16.msra.mxu0 %v1498
    %1645 = vmatpush.bf16.msra.mxu0 %v1494
    %1646 = vmatpush.bf16.msra.mxu0 %v1490
    %1647 = vmatpush.bf16.msra.mxu0 %v1486
    %1648 = vmatpush.bf16.msra.mxu0 %v1482
    %1649 = vmatmul.bf16.gmra.mxu0 %v1253
    %v1650 = vpop.f32.mrf.mxu0
    %v1651 = vadd.f32 %v1638, %v1650
    %v1652 = vpop.f32.mrf.mxu0
    %1653 = vdwg.mxu0
    %1654 = vmatpush.bf16.msra.mxu0 %v1479
    %1655 = vmatpush.bf16.msra.mxu0 %v1475
    %1656 = vmatpush.bf16.msra.mxu0 %v1471
    %1657 = vmatpush.bf16.msra.mxu0 %v1467
    %1658 = vmatpush.bf16.msra.mxu0 %v1463
    %1659 = vmatpush.bf16.msra.mxu0 %v1459
    %1660 = vmatpush.bf16.msra.mxu0 %v1455
    %1661 = vmatpush.bf16.msra.mxu0 %v1451
    %1662 = vmatmul.bf16.gmra.mxu0 %v1252
    %v1663 = vpop.f32.mrf.mxu0
    %v1664 = vadd.f32 0.0, %v1663
    %v1665 = vpop.f32.mrf.mxu0
    %1666 = vdwg.mxu0
    %1667 = vmatpush.bf16.msra.mxu0 %v1511
    %1668 = vmatpush.bf16.msra.mxu0 %v1507
    %1669 = vmatpush.bf16.msra.mxu0 %v1503
    %1670 = vmatpush.bf16.msra.mxu0 %v1499
    %1671 = vmatpush.bf16.msra.mxu0 %v1495
    %1672 = vmatpush.bf16.msra.mxu0 %v1491
    %1673 = vmatpush.bf16.msra.mxu0 %v1487
    %1674 = vmatpush.bf16.msra.mxu0 %v1483
    %1675 = vmatmul.bf16.gmra.mxu0 %v1253
    %v1676 = vpop.f32.mrf.mxu0
    %v1677 = vadd.f32 %v1664, %v1676
    %v1678 = vpop.f32.mrf.mxu0
    %1679 = vdwg.mxu0
    %v1712 = vunpack.c.l.b16 %v356
    %v1713 = vunpack.c.h.b16 %v356
    %v1714 = vunpack.c.l.b16 %v357
    %v1715 = vunpack.c.h.b16 %v357
    %v1716 = vunpack.c.l.b16 %v358
    %v1717 = vunpack.c.h.b16 %v358
    %v1718 = vunpack.c.l.b16 %v359
    %v1719 = vunpack.c.h.b16 %v359
    %v1720 = vunpack.c.l.b16 %v360
    %v1721 = vunpack.c.h.b16 %v360
    %v1722 = vunpack.c.l.b16 %v361
    %v1723 = vunpack.c.h.b16 %v361
    %v1724 = vunpack.c.l.b16 %v362
    %v1725 = vunpack.c.h.b16 %v362
    %v1726 = vunpack.c.l.b16 %v363
    %v1727 = vunpack.c.h.b16 %v363
    %v1728 = vunpack.c.l.b16 %v364
    %v1729 = vunpack.c.h.b16 %v364
    %v1730 = vunpack.c.l.b16 %v365
    %v1731 = vunpack.c.h.b16 %v365
    %v1732 = vunpack.c.l.b16 %v366
    %v1733 = vunpack.c.h.b16 %v366
    %v1734 = vunpack.c.l.b16 %v367
    %v1735 = vunpack.c.h.b16 %v367
    %v1736 = vunpack.c.l.b16 %v368
    %v1737 = vunpack.c.h.b16 %v368
    %v1738 = vunpack.c.l.b16 %v369
    %v1739 = vunpack.c.h.b16 %v369
    %v1740 = vunpack.c.l.b16 %v370
    %v1741 = vunpack.c.h.b16 %v370
    %v1742 = vunpack.c.l.b16 %v371
    %v1743 = vunpack.c.h.b16 %v371
    %v1744 = vunpack.c.l.b16 %v372
    %v1745 = vunpack.c.h.b16 %v372
    %v1746 = vunpack.c.l.b16 %v373
    %v1747 = vunpack.c.h.b16 %v373
    %v1748 = vunpack.c.l.b16 %v374
    %v1749 = vunpack.c.h.b16 %v374
    %v1750 = vunpack.c.l.b16 %v375
    %v1751 = vunpack.c.h.b16 %v375
    %v1752 = vunpack.c.l.b16 %v376
    %v1753 = vunpack.c.h.b16 %v376
    %v1754 = vunpack.c.l.b16 %v377
    %v1755 = vunpack.c.h.b16 %v377
    %v1756 = vunpack.c.l.b16 %v378
    %v1757 = vunpack.c.h.b16 %v378
    %v1758 = vunpack.c.l.b16 %v379
    %v1759 = vunpack.c.h.b16 %v379
    %v1760 = vunpack.c.l.b16 %v380
    %v1761 = vunpack.c.h.b16 %v380
    %v1762 = vunpack.c.l.b16 %v381
    %v1763 = vunpack.c.h.b16 %v381
    %v1764 = vunpack.c.l.b16 %v382
    %v1765 = vunpack.c.h.b16 %v382
    %v1766 = vunpack.c.l.b16 %v383
    %v1767 = vunpack.c.h.b16 %v383
    %v1768 = vunpack.c.l.b16 %v384
    %v1769 = vunpack.c.h.b16 %v384
    %v1770 = vunpack.c.l.b16 %v385
    %v1771 = vunpack.c.h.b16 %v385
    %v1772 = vunpack.c.l.b16 %v386
    %v1773 = vunpack.c.h.b16 %v386
    %v1774 = vunpack.c.l.b16 %v387
    %v1775 = vunpack.c.h.b16 %v387
    %v1776 = vperm.slane %v1712, %v1094
    %v1777 = vperm.slane %v1713, %v1096
    %v1778 = vsel %vm1098, %v1777, %v1776
    %v1779 = vperm.slane %v1714, %v1100
    %v1780 = vsel %vm1102, %v1779, %v1778
    %v1781 = vperm.slane %v1715, %v1104
    %v1782 = vsel %vm1106, %v1781, %v1780
    %v1783 = vperm.slane %v1716, %v1108
    %v1784 = vsel %vm1110, %v1783, %v1782
    %v1785 = vperm.slane %v1717, %v1112
    %v1786 = vsel %vm1114, %v1785, %v1784
    %v1787 = vperm.slane %v1718, %v1116
    %v1788 = vsel %vm1118, %v1787, %v1786
    %v1789 = vperm.slane %v1719, %v1120
    %v1790 = vsel %vm1122, %v1789, %v1788
    %v1791 = vperm.slane %v1720, %v1124
    %v1792 = vsel %vm1126, %v1791, %v1790
    %v1793 = vperm.slane %v1721, %v1128
    %v1794 = vsel %vm1130, %v1793, %v1792
    %v1795 = vperm.slane %v1722, %v1132
    %v1796 = vsel %vm1134, %v1795, %v1794
    %v1797 = vperm.slane %v1723, %v1136
    %v1798 = vsel %vm1138, %v1797, %v1796
    %v1799 = vperm.slane %v1724, %v1140
    %v1800 = vsel %vm1142, %v1799, %v1798
    %v1801 = vperm.slane %v1725, %v1144
    %v1802 = vsel %vm1146, %v1801, %v1800
    %v1803 = vperm.slane %v1726, %v1148
    %v1804 = vsel %vm1150, %v1803, %v1802
    %v1805 = vperm.slane %v1727, %v1152
    %v1806 = vsel %vm1154, %v1805, %v1804
    %v1807 = vperm.slane %v1728, %v1094
    %v1808 = vperm.slane %v1729, %v1096
    %v1809 = vsel %vm1098, %v1808, %v1807
    %v1810 = vperm.slane %v1730, %v1100
    %v1811 = vsel %vm1102, %v1810, %v1809
    %v1812 = vperm.slane %v1731, %v1104
    %v1813 = vsel %vm1106, %v1812, %v1811
    %v1814 = vperm.slane %v1732, %v1108
    %v1815 = vsel %vm1110, %v1814, %v1813
    %v1816 = vperm.slane %v1733, %v1112
    %v1817 = vsel %vm1114, %v1816, %v1815
    %v1818 = vperm.slane %v1734, %v1116
    %v1819 = vsel %vm1118, %v1818, %v1817
    %v1820 = vperm.slane %v1735, %v1120
    %v1821 = vsel %vm1122, %v1820, %v1819
    %v1822 = vperm.slane %v1736, %v1124
    %v1823 = vsel %vm1126, %v1822, %v1821
    %v1824 = vperm.slane %v1737, %v1128
    %v1825 = vsel %vm1130, %v1824, %v1823
    %v1826 = vperm.slane %v1738, %v1132
    %v1827 = vsel %vm1134, %v1826, %v1825
    %v1828 = vperm.slane %v1739, %v1136
    %v1829 = vsel %vm1138, %v1828, %v1827
    %v1830 = vperm.slane %v1740, %v1140
    %v1831 = vsel %vm1142, %v1830, %v1829
    %v1832 = vperm.slane %v1741, %v1144
    %v1833 = vsel %vm1146, %v1832, %v1831
    %v1834 = vperm.slane %v1742, %v1148
    %v1835 = vsel %vm1150, %v1834, %v1833
    %v1836 = vperm.slane %v1743, %v1152
    %v1837 = vsel %vm1154, %v1836, %v1835
    %v1838 = vperm.slane %v1744, %v1094
    %v1839 = vperm.slane %v1745, %v1096
    %v1840 = vsel %vm1098, %v1839, %v1838
    %v1841 = vperm.slane %v1746, %v1100
    %v1842 = vsel %vm1102, %v1841, %v1840
    %v1843 = vperm.slane %v1747, %v1104
    %v1844 = vsel %vm1106, %v1843, %v1842
    %v1845 = vperm.slane %v1748, %v1108
    %v1846 = vsel %vm1110, %v1845, %v1844
    %v1847 = vperm.slane %v1749, %v1112
    %v1848 = vsel %vm1114, %v1847, %v1846
    %v1849 = vperm.slane %v1750, %v1116
    %v1850 = vsel %vm1118, %v1849, %v1848
    %v1851 = vperm.slane %v1751, %v1120
    %v1852 = vsel %vm1122, %v1851, %v1850
    %v1853 = vperm.slane %v1752, %v1124
    %v1854 = vsel %vm1126, %v1853, %v1852
    %v1855 = vperm.slane %v1753, %v1128
    %v1856 = vsel %vm1130, %v1855, %v1854
    %v1857 = vperm.slane %v1754, %v1132
    %v1858 = vsel %vm1134, %v1857, %v1856
    %v1859 = vperm.slane %v1755, %v1136
    %v1860 = vsel %vm1138, %v1859, %v1858
    %v1861 = vperm.slane %v1756, %v1140
    %v1862 = vsel %vm1142, %v1861, %v1860
    %v1863 = vperm.slane %v1757, %v1144
    %v1864 = vsel %vm1146, %v1863, %v1862
    %v1865 = vperm.slane %v1758, %v1148
    %v1866 = vsel %vm1150, %v1865, %v1864
    %v1867 = vperm.slane %v1759, %v1152
    %v1868 = vsel %vm1154, %v1867, %v1866
    %v1869 = vperm.slane %v1760, %v1094
    %v1870 = vperm.slane %v1761, %v1096
    %v1871 = vsel %vm1098, %v1870, %v1869
    %v1872 = vperm.slane %v1762, %v1100
    %v1873 = vsel %vm1102, %v1872, %v1871
    %v1874 = vperm.slane %v1763, %v1104
    %v1875 = vsel %vm1106, %v1874, %v1873
    %v1876 = vperm.slane %v1764, %v1108
    %v1877 = vsel %vm1110, %v1876, %v1875
    %v1878 = vperm.slane %v1765, %v1112
    %v1879 = vsel %vm1114, %v1878, %v1877
    %v1880 = vperm.slane %v1766, %v1116
    %v1881 = vsel %vm1118, %v1880, %v1879
    %v1882 = vperm.slane %v1767, %v1120
    %v1883 = vsel %vm1122, %v1882, %v1881
    %v1884 = vperm.slane %v1768, %v1124
    %v1885 = vsel %vm1126, %v1884, %v1883
    %v1886 = vperm.slane %v1769, %v1128
    %v1887 = vsel %vm1130, %v1886, %v1885
    %v1888 = vperm.slane %v1770, %v1132
    %v1889 = vsel %vm1134, %v1888, %v1887
    %v1890 = vperm.slane %v1771, %v1136
    %v1891 = vsel %vm1138, %v1890, %v1889
    %v1892 = vperm.slane %v1772, %v1140
    %v1893 = vsel %vm1142, %v1892, %v1891
    %v1894 = vperm.slane %v1773, %v1144
    %v1895 = vsel %vm1146, %v1894, %v1893
    %v1896 = vperm.slane %v1774, %v1148
    %v1897 = vsel %vm1150, %v1896, %v1895
    %v1898 = vperm.slane %v1775, %v1152
    %v1899 = vsel %vm1154, %v1898, %v1897
    %v1900 = vsel %vm1249, %v1868, %v1806
    %v1901 = vsel %vm1249, %v1899, %v1837
    %v1902 = vpack.c.b16 %v1900, %v1900
    %v1903 = vpack.c.b16 %v1901, %v1901
    %v1970 = vunpack.c.l.b16 %v388
    %v1971 = vunpack.c.h.b16 %v388
    %v1972 = vunpack.c.l.b16 %v389
    %v1973 = vunpack.c.h.b16 %v389
    %v1974 = vunpack.c.l.b16 %v390
    %v1975 = vunpack.c.h.b16 %v390
    %v1976 = vunpack.c.l.b16 %v391
    %v1977 = vunpack.c.h.b16 %v391
    %v1978 = vunpack.c.l.b16 %v392
    %v1979 = vunpack.c.h.b16 %v392
    %v1980 = vunpack.c.l.b16 %v393
    %v1981 = vunpack.c.h.b16 %v393
    %v1982 = vunpack.c.l.b16 %v394
    %v1983 = vunpack.c.h.b16 %v394
    %v1984 = vunpack.c.l.b16 %v395
    %v1985 = vunpack.c.h.b16 %v395
    %v1986 = vunpack.c.l.b16 %v396
    %v1987 = vunpack.c.h.b16 %v396
    %v1988 = vunpack.c.l.b16 %v397
    %v1989 = vunpack.c.h.b16 %v397
    %v1990 = vunpack.c.l.b16 %v398
    %v1991 = vunpack.c.h.b16 %v398
    %v1992 = vunpack.c.l.b16 %v399
    %v1993 = vunpack.c.h.b16 %v399
    %v1994 = vunpack.c.l.b16 %v400
    %v1995 = vunpack.c.h.b16 %v400
    %v1996 = vunpack.c.l.b16 %v401
    %v1997 = vunpack.c.h.b16 %v401
    %v1998 = vunpack.c.l.b16 %v402
    %v1999 = vunpack.c.h.b16 %v402
    %v2000 = vunpack.c.l.b16 %v403
    %v2001 = vunpack.c.h.b16 %v403
    %v2002 = vunpack.c.l.b16 %v404
    %v2003 = vunpack.c.h.b16 %v404
    %v2004 = vunpack.c.l.b16 %v405
    %v2005 = vunpack.c.h.b16 %v405
    %v2006 = vunpack.c.l.b16 %v406
    %v2007 = vunpack.c.h.b16 %v406
    %v2008 = vunpack.c.l.b16 %v407
    %v2009 = vunpack.c.h.b16 %v407
    %v2010 = vunpack.c.l.b16 %v408
    %v2011 = vunpack.c.h.b16 %v408
    %v2012 = vunpack.c.l.b16 %v409
    %v2013 = vunpack.c.h.b16 %v409
    %v2014 = vunpack.c.l.b16 %v410
    %v2015 = vunpack.c.h.b16 %v410
    %v2016 = vunpack.c.l.b16 %v411
    %v2017 = vunpack.c.h.b16 %v411
    %v2018 = vunpack.c.l.b16 %v412
    %v2019 = vunpack.c.h.b16 %v412
    %v2020 = vunpack.c.l.b16 %v413
    %v2021 = vunpack.c.h.b16 %v413
    %v2022 = vunpack.c.l.b16 %v414
    %v2023 = vunpack.c.h.b16 %v414
    %v2024 = vunpack.c.l.b16 %v415
    %v2025 = vunpack.c.h.b16 %v415
    %v2026 = vunpack.c.l.b16 %v416
    %v2027 = vunpack.c.h.b16 %v416
    %v2028 = vunpack.c.l.b16 %v417
    %v2029 = vunpack.c.h.b16 %v417
    %v2030 = vunpack.c.l.b16 %v418
    %v2031 = vunpack.c.h.b16 %v418
    %v2032 = vunpack.c.l.b16 %v419
    %v2033 = vunpack.c.h.b16 %v419
    %v2034 = vunpack.c.l.b16 %v420
    %v2035 = vunpack.c.h.b16 %v420
    %v2036 = vunpack.c.l.b16 %v421
    %v2037 = vunpack.c.h.b16 %v421
    %v2038 = vunpack.c.l.b16 %v422
    %v2039 = vunpack.c.h.b16 %v422
    %v2040 = vunpack.c.l.b16 %v423
    %v2041 = vunpack.c.h.b16 %v423
    %v2042 = vunpack.c.l.b16 %v424
    %v2043 = vunpack.c.h.b16 %v424
    %v2044 = vunpack.c.l.b16 %v425
    %v2045 = vunpack.c.h.b16 %v425
    %v2046 = vunpack.c.l.b16 %v426
    %v2047 = vunpack.c.h.b16 %v426
    %v2048 = vunpack.c.l.b16 %v427
    %v2049 = vunpack.c.h.b16 %v427
    %v2050 = vunpack.c.l.b16 %v428
    %v2051 = vunpack.c.h.b16 %v428
    %v2052 = vunpack.c.l.b16 %v429
    %v2053 = vunpack.c.h.b16 %v429
    %v2054 = vunpack.c.l.b16 %v430
    %v2055 = vunpack.c.h.b16 %v430
    %v2056 = vunpack.c.l.b16 %v431
    %v2057 = vunpack.c.h.b16 %v431
    %v2058 = vunpack.c.l.b16 %v432
    %v2059 = vunpack.c.h.b16 %v432
    %v2060 = vunpack.c.l.b16 %v433
    %v2061 = vunpack.c.h.b16 %v433
    %v2062 = vunpack.c.l.b16 %v434
    %v2063 = vunpack.c.h.b16 %v434
    %v2064 = vunpack.c.l.b16 %v435
    %v2065 = vunpack.c.h.b16 %v435
    %v2066 = vunpack.c.l.b16 %v436
    %v2067 = vunpack.c.h.b16 %v436
    %v2068 = vunpack.c.l.b16 %v437
    %v2069 = vunpack.c.h.b16 %v437
    %v2070 = vunpack.c.l.b16 %v438
    %v2071 = vunpack.c.h.b16 %v438
    %v2072 = vunpack.c.l.b16 %v439
    %v2073 = vunpack.c.h.b16 %v439
    %v2074 = vunpack.c.l.b16 %v440
    %v2075 = vunpack.c.h.b16 %v440
    %v2076 = vunpack.c.l.b16 %v441
    %v2077 = vunpack.c.h.b16 %v441
    %v2078 = vunpack.c.l.b16 %v442
    %v2079 = vunpack.c.h.b16 %v442
    %v2080 = vunpack.c.l.b16 %v443
    %v2081 = vunpack.c.h.b16 %v443
    %v2082 = vunpack.c.l.b16 %v444
    %v2083 = vunpack.c.h.b16 %v444
    %v2084 = vunpack.c.l.b16 %v445
    %v2085 = vunpack.c.h.b16 %v445
    %v2086 = vunpack.c.l.b16 %v446
    %v2087 = vunpack.c.h.b16 %v446
    %v2088 = vunpack.c.l.b16 %v447
    %v2089 = vunpack.c.h.b16 %v447
    %v2090 = vunpack.c.l.b16 %v448
    %v2091 = vunpack.c.h.b16 %v448
    %v2092 = vunpack.c.l.b16 %v449
    %v2093 = vunpack.c.h.b16 %v449
    %v2094 = vunpack.c.l.b16 %v450
    %v2095 = vunpack.c.h.b16 %v450
    %v2096 = vunpack.c.l.b16 %v451
    %v2097 = vunpack.c.h.b16 %v451
    %v2098 = vpack.c.b16 %v1974, %v1970
    %v2099 = vpack.c.b16 %v1975, %v1971
    %v2100 = vpack.c.b16 %v1976, %v1972
    %v2101 = vpack.c.b16 %v1977, %v1973
    %v2102 = vpack.c.b16 %v1982, %v1978
    %v2103 = vpack.c.b16 %v1983, %v1979
    %v2104 = vpack.c.b16 %v1984, %v1980
    %v2105 = vpack.c.b16 %v1985, %v1981
    %v2106 = vpack.c.b16 %v1990, %v1986
    %v2107 = vpack.c.b16 %v1991, %v1987
    %v2108 = vpack.c.b16 %v1992, %v1988
    %v2109 = vpack.c.b16 %v1993, %v1989
    %v2110 = vpack.c.b16 %v1998, %v1994
    %v2111 = vpack.c.b16 %v1999, %v1995
    %v2112 = vpack.c.b16 %v2000, %v1996
    %v2113 = vpack.c.b16 %v2001, %v1997
    %v2114 = vpack.c.b16 %v2006, %v2002
    %v2115 = vpack.c.b16 %v2007, %v2003
    %v2116 = vpack.c.b16 %v2008, %v2004
    %v2117 = vpack.c.b16 %v2009, %v2005
    %v2118 = vpack.c.b16 %v2014, %v2010
    %v2119 = vpack.c.b16 %v2015, %v2011
    %v2120 = vpack.c.b16 %v2016, %v2012
    %v2121 = vpack.c.b16 %v2017, %v2013
    %v2122 = vpack.c.b16 %v2022, %v2018
    %v2123 = vpack.c.b16 %v2023, %v2019
    %v2124 = vpack.c.b16 %v2024, %v2020
    %v2125 = vpack.c.b16 %v2025, %v2021
    %v2126 = vpack.c.b16 %v2030, %v2026
    %v2127 = vpack.c.b16 %v2031, %v2027
    %v2128 = vpack.c.b16 %v2032, %v2028
    %v2129 = vpack.c.b16 %v2033, %v2029
    %v2130 = vpack.c.b16 %v2038, %v2034
    %v2131 = vpack.c.b16 %v2039, %v2035
    %v2132 = vpack.c.b16 %v2040, %v2036
    %v2133 = vpack.c.b16 %v2041, %v2037
    %v2134 = vpack.c.b16 %v2046, %v2042
    %v2135 = vpack.c.b16 %v2047, %v2043
    %v2136 = vpack.c.b16 %v2048, %v2044
    %v2137 = vpack.c.b16 %v2049, %v2045
    %v2138 = vpack.c.b16 %v2054, %v2050
    %v2139 = vpack.c.b16 %v2055, %v2051
    %v2140 = vpack.c.b16 %v2056, %v2052
    %v2141 = vpack.c.b16 %v2057, %v2053
    %v2142 = vpack.c.b16 %v2062, %v2058
    %v2143 = vpack.c.b16 %v2063, %v2059
    %v2144 = vpack.c.b16 %v2064, %v2060
    %v2145 = vpack.c.b16 %v2065, %v2061
    %v2146 = vpack.c.b16 %v2070, %v2066
    %v2147 = vpack.c.b16 %v2071, %v2067
    %v2148 = vpack.c.b16 %v2072, %v2068
    %v2149 = vpack.c.b16 %v2073, %v2069
    %v2150 = vpack.c.b16 %v2078, %v2074
    %v2151 = vpack.c.b16 %v2079, %v2075
    %v2152 = vpack.c.b16 %v2080, %v2076
    %v2153 = vpack.c.b16 %v2081, %v2077
    %v2154 = vpack.c.b16 %v2086, %v2082
    %v2155 = vpack.c.b16 %v2087, %v2083
    %v2156 = vpack.c.b16 %v2088, %v2084
    %v2157 = vpack.c.b16 %v2089, %v2085
    %v2158 = vpack.c.b16 %v2094, %v2090
    %v2159 = vpack.c.b16 %v2095, %v2091
    %v2160 = vpack.c.b16 %v2096, %v2092
    %v2161 = vpack.c.b16 %v2097, %v2093
    %2226 = vmatpush.bf16.msra.mxu0 %v2126
    %2227 = vmatpush.bf16.msra.mxu0 %v2122
    %2228 = vmatpush.bf16.msra.mxu0 %v2118
    %2229 = vmatpush.bf16.msra.mxu0 %v2114
    %2230 = vmatpush.bf16.msra.mxu0 %v2110
    %2231 = vmatpush.bf16.msra.mxu0 %v2106
    %2232 = vmatpush.bf16.msra.mxu0 %v2102
    %2233 = vmatpush.bf16.msra.mxu0 %v2098
    %2234 = vmatmul.bf16.gmra.mxu0 %v1902
    %v2235 = vpop.f32.mrf.mxu0
    %v2236 = vadd.f32 %v1599, %v2235
    %v2237 = vpop.f32.mrf.mxu0
    %2238 = vdwg.mxu0
    %2239 = vmatpush.bf16.msra.mxu0 %v2158
    %2240 = vmatpush.bf16.msra.mxu0 %v2154
    %2241 = vmatpush.bf16.msra.mxu0 %v2150
    %2242 = vmatpush.bf16.msra.mxu0 %v2146
    %2243 = vmatpush.bf16.msra.mxu0 %v2142
    %2244 = vmatpush.bf16.msra.mxu0 %v2138
    %2245 = vmatpush.bf16.msra.mxu0 %v2134
    %2246 = vmatpush.bf16.msra.mxu0 %v2130
    %2247 = vmatmul.bf16.gmra.mxu0 %v1903
    %v2248 = vpop.f32.mrf.mxu0
    %v2249 = vadd.f32 %v2236, %v2248
    %v2250 = vpop.f32.mrf.mxu0
    %2251 = vdwg.mxu0
    %2252 = vmatpush.bf16.msra.mxu0 %v2127
    %2253 = vmatpush.bf16.msra.mxu0 %v2123
    %2254 = vmatpush.bf16.msra.mxu0 %v2119
    %2255 = vmatpush.bf16.msra.mxu0 %v2115
    %2256 = vmatpush.bf16.msra.mxu0 %v2111
    %2257 = vmatpush.bf16.msra.mxu0 %v2107
    %2258 = vmatpush.bf16.msra.mxu0 %v2103
    %2259 = vmatpush.bf16.msra.mxu0 %v2099
    %2260 = vmatmul.bf16.gmra.mxu0 %v1902
    %v2261 = vpop.f32.mrf.mxu0
    %v2262 = vadd.f32 %v1625, %v2261
    %v2263 = vpop.f32.mrf.mxu0
    %2264 = vdwg.mxu0
    %2265 = vmatpush.bf16.msra.mxu0 %v2159
    %2266 = vmatpush.bf16.msra.mxu0 %v2155
    %2267 = vmatpush.bf16.msra.mxu0 %v2151
    %2268 = vmatpush.bf16.msra.mxu0 %v2147
    %2269 = vmatpush.bf16.msra.mxu0 %v2143
    %2270 = vmatpush.bf16.msra.mxu0 %v2139
    %2271 = vmatpush.bf16.msra.mxu0 %v2135
    %2272 = vmatpush.bf16.msra.mxu0 %v2131
    %2273 = vmatmul.bf16.gmra.mxu0 %v1903
    %v2274 = vpop.f32.mrf.mxu0
    %v2275 = vadd.f32 %v2262, %v2274
    %v2276 = vpop.f32.mrf.mxu0
    %2277 = vdwg.mxu0
    %2278 = vmatpush.bf16.msra.mxu0 %v2128
    %2279 = vmatpush.bf16.msra.mxu0 %v2124
    %2280 = vmatpush.bf16.msra.mxu0 %v2120
    %2281 = vmatpush.bf16.msra.mxu0 %v2116
    %2282 = vmatpush.bf16.msra.mxu0 %v2112
    %2283 = vmatpush.bf16.msra.mxu0 %v2108
    %2284 = vmatpush.bf16.msra.mxu0 %v2104
    %2285 = vmatpush.bf16.msra.mxu0 %v2100
    %2286 = vmatmul.bf16.gmra.mxu0 %v1902
    %v2287 = vpop.f32.mrf.mxu0
    %v2288 = vadd.f32 %v1651, %v2287
    %v2289 = vpop.f32.mrf.mxu0
    %2290 = vdwg.mxu0
    %2291 = vmatpush.bf16.msra.mxu0 %v2160
    %2292 = vmatpush.bf16.msra.mxu0 %v2156
    %2293 = vmatpush.bf16.msra.mxu0 %v2152
    %2294 = vmatpush.bf16.msra.mxu0 %v2148
    %2295 = vmatpush.bf16.msra.mxu0 %v2144
    %2296 = vmatpush.bf16.msra.mxu0 %v2140
    %2297 = vmatpush.bf16.msra.mxu0 %v2136
    %2298 = vmatpush.bf16.msra.mxu0 %v2132
    %2299 = vmatmul.bf16.gmra.mxu0 %v1903
    %v2300 = vpop.f32.mrf.mxu0
    %v2301 = vadd.f32 %v2288, %v2300
    %v2302 = vpop.f32.mrf.mxu0
    %2303 = vdwg.mxu0
    %2304 = vmatpush.bf16.msra.mxu0 %v2129
    %2305 = vmatpush.bf16.msra.mxu0 %v2125
    %2306 = vmatpush.bf16.msra.mxu0 %v2121
    %2307 = vmatpush.bf16.msra.mxu0 %v2117
    %2308 = vmatpush.bf16.msra.mxu0 %v2113
    %2309 = vmatpush.bf16.msra.mxu0 %v2109
    %2310 = vmatpush.bf16.msra.mxu0 %v2105
    %2311 = vmatpush.bf16.msra.mxu0 %v2101
    %2312 = vmatmul.bf16.gmra.mxu0 %v1902
    %v2313 = vpop.f32.mrf.mxu0
    %v2314 = vadd.f32 %v1677, %v2313
    %v2315 = vpop.f32.mrf.mxu0
    %2316 = vdwg.mxu0
    %2317 = vmatpush.bf16.msra.mxu0 %v2161
    %2318 = vmatpush.bf16.msra.mxu0 %v2157
    %2319 = vmatpush.bf16.msra.mxu0 %v2153
    %2320 = vmatpush.bf16.msra.mxu0 %v2149
    %2321 = vmatpush.bf16.msra.mxu0 %v2145
    %2322 = vmatpush.bf16.msra.mxu0 %v2141
    %2323 = vmatpush.bf16.msra.mxu0 %v2137
    %2324 = vmatpush.bf16.msra.mxu0 %v2133
    %2325 = vmatmul.bf16.gmra.mxu0 %v1903
    %v2326 = vpop.f32.mrf.mxu0
    %v2327 = vadd.f32 %v2314, %v2326
    %v2328 = vpop.f32.mrf.mxu0
    %2329 = vdwg.mxu0
    %2330 = vrot.lane.b32.xlu0 %v99, 96
    %v2331 = vpop.permute.xlu0 %2330
    %2332 = vrot.lane.b32.xlu0 %v100, 96
    %v2333 = vpop.permute.xlu0 %2332
    %2334 = vrot.lane.b32.xlu0 %v101, 96
    %v2335 = vpop.permute.xlu0 %2334
    %2336 = vrot.lane.b32.xlu0 %v102, 96
    %v2337 = vpop.permute.xlu0 %2336
    %2338 = vrot.lane.b32.xlu0 %v103, 96
    %v2339 = vpop.permute.xlu0 %2338
    %2340 = vrot.lane.b32.xlu0 %v104, 96
    %v2341 = vpop.permute.xlu0 %2340
    %2342 = vrot.lane.b32.xlu0 %v105, 96
    %v2343 = vpop.permute.xlu0 %2342
    %2344 = vrot.lane.b32.xlu0 %v106, 96
    %v2345 = vpop.permute.xlu0 %2344
    %2346 = vrot.lane.b32.xlu0 %v107, 96
    %v2347 = vpop.permute.xlu0 %2346
    %2348 = vrot.lane.b32.xlu0 %v108, 96
    %v2349 = vpop.permute.xlu0 %2348
    %2350 = vrot.lane.b32.xlu0 %v109, 96
    %v2351 = vpop.permute.xlu0 %2350
    %2352 = vrot.lane.b32.xlu0 %v110, 96
    %v2353 = vpop.permute.xlu0 %2352
    %2354 = vrot.lane.b32.xlu0 %v111, 96
    %v2355 = vpop.permute.xlu0 %2354
    %2356 = vrot.lane.b32.xlu0 %v112, 96
    %v2357 = vpop.permute.xlu0 %2356
    %2358 = vrot.lane.b32.xlu0 %v113, 96
    %v2359 = vpop.permute.xlu0 %2358
    %2360 = vrot.lane.b32.xlu0 %v114, 96
    %v2361 = vpop.permute.xlu0 %2360
    %2362 = vrot.lane.b32.xlu0 %v115, 96
    %v2363 = vpop.permute.xlu0 %2362
    %2364 = vrot.lane.b32.xlu0 %v116, 96
    %v2365 = vpop.permute.xlu0 %2364
    %2366 = vrot.lane.b32.xlu0 %v117, 96
    %v2367 = vpop.permute.xlu0 %2366
    %2368 = vrot.lane.b32.xlu0 %v118, 96
    %v2369 = vpop.permute.xlu0 %2368
    %2370 = vrot.lane.b32.xlu0 %v119, 96
    %v2371 = vpop.permute.xlu0 %2370
    %2372 = vrot.lane.b32.xlu0 %v120, 96
    %v2373 = vpop.permute.xlu0 %2372
    %2374 = vrot.lane.b32.xlu0 %v121, 96
    %v2375 = vpop.permute.xlu0 %2374
    %2376 = vrot.lane.b32.xlu0 %v122, 96
    %v2377 = vpop.permute.xlu0 %2376
    %2378 = vrot.lane.b32.xlu0 %v123, 96
    %v2379 = vpop.permute.xlu0 %2378
    %2380 = vrot.lane.b32.xlu0 %v124, 96
    %v2381 = vpop.permute.xlu0 %2380
    %2382 = vrot.lane.b32.xlu0 %v125, 96
    %v2383 = vpop.permute.xlu0 %2382
    %2384 = vrot.lane.b32.xlu0 %v126, 96
    %v2385 = vpop.permute.xlu0 %2384
    %2386 = vrot.lane.b32.xlu0 %v127, 96
    %v2387 = vpop.permute.xlu0 %2386
    %2388 = vrot.lane.b32.xlu0 %v128, 96
    %v2389 = vpop.permute.xlu0 %2388
    %2390 = vrot.lane.b32.xlu0 %v129, 96
    %v2391 = vpop.permute.xlu0 %2390
    %2392 = vrot.lane.b32.xlu0 %v130, 96
    %v2393 = vpop.permute.xlu0 %2392
    %2394 = vrot.lane.b32.xlu0 %v131, 96
    %v2395 = vpop.permute.xlu0 %2394
    %2396 = vrot.lane.b32.xlu0 %v132, 96
    %v2397 = vpop.permute.xlu0 %2396
    %2398 = vrot.lane.b32.xlu0 %v133, 96
    %v2399 = vpop.permute.xlu0 %2398
    %2400 = vrot.lane.b32.xlu0 %v134, 96
    %v2401 = vpop.permute.xlu0 %2400
    %2402 = vrot.lane.b32.xlu0 %v135, 96
    %v2403 = vpop.permute.xlu0 %2402
    %2404 = vrot.lane.b32.xlu0 %v136, 96
    %v2405 = vpop.permute.xlu0 %2404
    %2406 = vrot.lane.b32.xlu0 %v137, 96
    %v2407 = vpop.permute.xlu0 %2406
    %2408 = vrot.lane.b32.xlu0 %v138, 96
    %v2409 = vpop.permute.xlu0 %2408
    %2410 = vrot.lane.b32.xlu0 %v139, 96
    %v2411 = vpop.permute.xlu0 %2410
    %2412 = vrot.lane.b32.xlu0 %v140, 96
    %v2413 = vpop.permute.xlu0 %2412
    %2414 = vrot.lane.b32.xlu0 %v141, 96
    %v2415 = vpop.permute.xlu0 %2414
    %2416 = vrot.lane.b32.xlu0 %v142, 96
    %v2417 = vpop.permute.xlu0 %2416
    %2418 = vrot.lane.b32.xlu0 %v143, 96
    %v2419 = vpop.permute.xlu0 %2418
    %2420 = vrot.lane.b32.xlu0 %v144, 96
    %v2421 = vpop.permute.xlu0 %2420
    %2422 = vrot.lane.b32.xlu0 %v145, 96
    %v2423 = vpop.permute.xlu0 %2422
    %2424 = vrot.lane.b32.xlu0 %v146, 96
    %v2425 = vpop.permute.xlu0 %2424
    %2426 = vrot.lane.b32.xlu0 %v147, 96
    %v2427 = vpop.permute.xlu0 %2426
    %2428 = vrot.lane.b32.xlu0 %v148, 96
    %v2429 = vpop.permute.xlu0 %2428
    %2430 = vrot.lane.b32.xlu0 %v149, 96
    %v2431 = vpop.permute.xlu0 %2430
    %2432 = vrot.lane.b32.xlu0 %v150, 96
    %v2433 = vpop.permute.xlu0 %2432
    %2434 = vrot.lane.b32.xlu0 %v151, 96
    %v2435 = vpop.permute.xlu0 %2434
    %2436 = vrot.lane.b32.xlu0 %v152, 96
    %v2437 = vpop.permute.xlu0 %2436
    %2438 = vrot.lane.b32.xlu0 %v153, 96
    %v2439 = vpop.permute.xlu0 %2438
    %2440 = vrot.lane.b32.xlu0 %v154, 96
    %v2441 = vpop.permute.xlu0 %2440
    %2442 = vrot.lane.b32.xlu0 %v155, 96
    %v2443 = vpop.permute.xlu0 %2442
    %2444 = vrot.lane.b32.xlu0 %v156, 96
    %v2445 = vpop.permute.xlu0 %2444
    %2446 = vrot.lane.b32.xlu0 %v157, 96
    %v2447 = vpop.permute.xlu0 %2446
    %2448 = vrot.lane.b32.xlu0 %v158, 96
    %v2449 = vpop.permute.xlu0 %2448
    %2450 = vrot.lane.b32.xlu0 %v159, 96
    %v2451 = vpop.permute.xlu0 %2450
    %2452 = vrot.lane.b32.xlu0 %v160, 96
    %v2453 = vpop.permute.xlu0 %2452
    %2454 = vrot.lane.b32.xlu0 %v161, 96
    %v2455 = vpop.permute.xlu0 %2454
    %2456 = vrot.lane.b32.xlu0 %v162, 96
    %v2457 = vpop.permute.xlu0 %2456
    %v2522 = vsel %vm163, %v2331, 0.0
    %2523 = vadd.xlane.f32.xlu0 %v2522
    %v2524 = vpop.xlane.xlu0 %2523
    %v2525 = vsel %vm163, %v2333, 0.0
    %2526 = vadd.xlane.f32.xlu0 %v2525
    %v2527 = vpop.xlane.xlu0 %2526
    %v2528 = vsel %vm163, %v2335, 0.0
    %2529 = vadd.xlane.f32.xlu0 %v2528
    %v2530 = vpop.xlane.xlu0 %2529
    %v2531 = vsel %vm163, %v2337, 0.0
    %2532 = vadd.xlane.f32.xlu0 %v2531
    %v2533 = vpop.xlane.xlu0 %2532
    %v2534 = vsel %vm163, %v2339, 0.0
    %2535 = vadd.xlane.f32.xlu0 %v2534
    %v2536 = vpop.xlane.xlu0 %2535
    %v2537 = vsel %vm163, %v2341, 0.0
    %2538 = vadd.xlane.f32.xlu0 %v2537
    %v2539 = vpop.xlane.xlu0 %2538
    %v2540 = vsel %vm163, %v2343, 0.0
    %2541 = vadd.xlane.f32.xlu0 %v2540
    %v2542 = vpop.xlane.xlu0 %2541
    %v2543 = vsel %vm163, %v2345, 0.0
    %2544 = vadd.xlane.f32.xlu0 %v2543
    %v2545 = vpop.xlane.xlu0 %2544
    %v2546 = vsel %vm163, %v2347, 0.0
    %2547 = vadd.xlane.f32.xlu0 %v2546
    %v2548 = vpop.xlane.xlu0 %2547
    %v2549 = vsel %vm163, %v2349, 0.0
    %2550 = vadd.xlane.f32.xlu0 %v2549
    %v2551 = vpop.xlane.xlu0 %2550
    %v2552 = vsel %vm163, %v2351, 0.0
    %2553 = vadd.xlane.f32.xlu0 %v2552
    %v2554 = vpop.xlane.xlu0 %2553
    %v2555 = vsel %vm163, %v2353, 0.0
    %2556 = vadd.xlane.f32.xlu0 %v2555
    %v2557 = vpop.xlane.xlu0 %2556
    %v2558 = vsel %vm163, %v2355, 0.0
    %2559 = vadd.xlane.f32.xlu0 %v2558
    %v2560 = vpop.xlane.xlu0 %2559
    %v2561 = vsel %vm163, %v2357, 0.0
    %2562 = vadd.xlane.f32.xlu0 %v2561
    %v2563 = vpop.xlane.xlu0 %2562
    %v2564 = vsel %vm163, %v2359, 0.0
    %2565 = vadd.xlane.f32.xlu0 %v2564
    %v2566 = vpop.xlane.xlu0 %2565
    %v2567 = vsel %vm163, %v2361, 0.0
    %2568 = vadd.xlane.f32.xlu0 %v2567
    %v2569 = vpop.xlane.xlu0 %2568
    %v2570 = vsel %vm163, %v2363, 0.0
    %2571 = vadd.xlane.f32.xlu0 %v2570
    %v2572 = vpop.xlane.xlu0 %2571
    %v2573 = vsel %vm163, %v2365, 0.0
    %2574 = vadd.xlane.f32.xlu0 %v2573
    %v2575 = vpop.xlane.xlu0 %2574
    %v2576 = vsel %vm163, %v2367, 0.0
    %2577 = vadd.xlane.f32.xlu0 %v2576
    %v2578 = vpop.xlane.xlu0 %2577
    %v2579 = vsel %vm163, %v2369, 0.0
    %2580 = vadd.xlane.f32.xlu0 %v2579
    %v2581 = vpop.xlane.xlu0 %2580
    %v2582 = vsel %vm163, %v2371, 0.0
    %2583 = vadd.xlane.f32.xlu0 %v2582
    %v2584 = vpop.xlane.xlu0 %2583
    %v2585 = vsel %vm163, %v2373, 0.0
    %2586 = vadd.xlane.f32.xlu0 %v2585
    %v2587 = vpop.xlane.xlu0 %2586
    %v2588 = vsel %vm163, %v2375, 0.0
    %2589 = vadd.xlane.f32.xlu0 %v2588
    %v2590 = vpop.xlane.xlu0 %2589
    %v2591 = vsel %vm163, %v2377, 0.0
    %2592 = vadd.xlane.f32.xlu0 %v2591
    %v2593 = vpop.xlane.xlu0 %2592
    %v2594 = vsel %vm163, %v2379, 0.0
    %2595 = vadd.xlane.f32.xlu0 %v2594
    %v2596 = vpop.xlane.xlu0 %2595
    %v2597 = vsel %vm163, %v2381, 0.0
    %2598 = vadd.xlane.f32.xlu0 %v2597
    %v2599 = vpop.xlane.xlu0 %2598
    %v2600 = vsel %vm163, %v2383, 0.0
    %2601 = vadd.xlane.f32.xlu0 %v2600
    %v2602 = vpop.xlane.xlu0 %2601
    %v2603 = vsel %vm163, %v2385, 0.0
    %2604 = vadd.xlane.f32.xlu0 %v2603
    %v2605 = vpop.xlane.xlu0 %2604
    %v2606 = vsel %vm163, %v2387, 0.0
    %2607 = vadd.xlane.f32.xlu0 %v2606
    %v2608 = vpop.xlane.xlu0 %2607
    %v2609 = vsel %vm163, %v2389, 0.0
    %2610 = vadd.xlane.f32.xlu0 %v2609
    %v2611 = vpop.xlane.xlu0 %2610
    %v2612 = vsel %vm163, %v2391, 0.0
    %2613 = vadd.xlane.f32.xlu0 %v2612
    %v2614 = vpop.xlane.xlu0 %2613
    %v2615 = vsel %vm163, %v2393, 0.0
    %2616 = vadd.xlane.f32.xlu0 %v2615
    %v2617 = vpop.xlane.xlu0 %2616
    %v2618 = vsel %vm163, %v2395, 0.0
    %2619 = vadd.xlane.f32.xlu0 %v2618
    %v2620 = vpop.xlane.xlu0 %2619
    %v2621 = vsel %vm163, %v2397, 0.0
    %2622 = vadd.xlane.f32.xlu0 %v2621
    %v2623 = vpop.xlane.xlu0 %2622
    %v2624 = vsel %vm163, %v2399, 0.0
    %2625 = vadd.xlane.f32.xlu0 %v2624
    %v2626 = vpop.xlane.xlu0 %2625
    %v2627 = vsel %vm163, %v2401, 0.0
    %2628 = vadd.xlane.f32.xlu0 %v2627
    %v2629 = vpop.xlane.xlu0 %2628
    %v2630 = vsel %vm163, %v2403, 0.0
    %2631 = vadd.xlane.f32.xlu0 %v2630
    %v2632 = vpop.xlane.xlu0 %2631
    %v2633 = vsel %vm163, %v2405, 0.0
    %2634 = vadd.xlane.f32.xlu0 %v2633
    %v2635 = vpop.xlane.xlu0 %2634
    %v2636 = vsel %vm163, %v2407, 0.0
    %2637 = vadd.xlane.f32.xlu0 %v2636
    %v2638 = vpop.xlane.xlu0 %2637
    %v2639 = vsel %vm163, %v2409, 0.0
    %2640 = vadd.xlane.f32.xlu0 %v2639
    %v2641 = vpop.xlane.xlu0 %2640
    %v2642 = vsel %vm163, %v2411, 0.0
    %2643 = vadd.xlane.f32.xlu0 %v2642
    %v2644 = vpop.xlane.xlu0 %2643
    %v2645 = vsel %vm163, %v2413, 0.0
    %2646 = vadd.xlane.f32.xlu0 %v2645
    %v2647 = vpop.xlane.xlu0 %2646
    %v2648 = vsel %vm163, %v2415, 0.0
    %2649 = vadd.xlane.f32.xlu0 %v2648
    %v2650 = vpop.xlane.xlu0 %2649
    %v2651 = vsel %vm163, %v2417, 0.0
    %2652 = vadd.xlane.f32.xlu0 %v2651
    %v2653 = vpop.xlane.xlu0 %2652
    %v2654 = vsel %vm163, %v2419, 0.0
    %2655 = vadd.xlane.f32.xlu0 %v2654
    %v2656 = vpop.xlane.xlu0 %2655
    %v2657 = vsel %vm163, %v2421, 0.0
    %2658 = vadd.xlane.f32.xlu0 %v2657
    %v2659 = vpop.xlane.xlu0 %2658
    %v2660 = vsel %vm163, %v2423, 0.0
    %2661 = vadd.xlane.f32.xlu0 %v2660
    %v2662 = vpop.xlane.xlu0 %2661
    %v2663 = vsel %vm163, %v2425, 0.0
    %2664 = vadd.xlane.f32.xlu0 %v2663
    %v2665 = vpop.xlane.xlu0 %2664
    %v2666 = vsel %vm163, %v2427, 0.0
    %2667 = vadd.xlane.f32.xlu0 %v2666
    %v2668 = vpop.xlane.xlu0 %2667
    %v2669 = vsel %vm163, %v2429, 0.0
    %2670 = vadd.xlane.f32.xlu0 %v2669
    %v2671 = vpop.xlane.xlu0 %2670
    %v2672 = vsel %vm163, %v2431, 0.0
    %2673 = vadd.xlane.f32.xlu0 %v2672
    %v2674 = vpop.xlane.xlu0 %2673
    %v2675 = vsel %vm163, %v2433, 0.0
    %2676 = vadd.xlane.f32.xlu0 %v2675
    %v2677 = vpop.xlane.xlu0 %2676
    %v2678 = vsel %vm163, %v2435, 0.0
    %2679 = vadd.xlane.f32.xlu0 %v2678
    %v2680 = vpop.xlane.xlu0 %2679
    %v2681 = vsel %vm163, %v2437, 0.0
    %2682 = vadd.xlane.f32.xlu0 %v2681
    %v2683 = vpop.xlane.xlu0 %2682
    %v2684 = vsel %vm163, %v2439, 0.0
    %2685 = vadd.xlane.f32.xlu0 %v2684
    %v2686 = vpop.xlane.xlu0 %2685
    %v2687 = vsel %vm163, %v2441, 0.0
    %2688 = vadd.xlane.f32.xlu0 %v2687
    %v2689 = vpop.xlane.xlu0 %2688
    %v2690 = vsel %vm163, %v2443, 0.0
    %2691 = vadd.xlane.f32.xlu0 %v2690
    %v2692 = vpop.xlane.xlu0 %2691
    %v2693 = vsel %vm163, %v2445, 0.0
    %2694 = vadd.xlane.f32.xlu0 %v2693
    %v2695 = vpop.xlane.xlu0 %2694
    %v2696 = vsel %vm163, %v2447, 0.0
    %2697 = vadd.xlane.f32.xlu0 %v2696
    %v2698 = vpop.xlane.xlu0 %2697
    %v2699 = vsel %vm163, %v2449, 0.0
    %2700 = vadd.xlane.f32.xlu0 %v2699
    %v2701 = vpop.xlane.xlu0 %2700
    %v2702 = vsel %vm163, %v2451, 0.0
    %2703 = vadd.xlane.f32.xlu0 %v2702
    %v2704 = vpop.xlane.xlu0 %2703
    %v2705 = vsel %vm163, %v2453, 0.0
    %2706 = vadd.xlane.f32.xlu0 %v2705
    %v2707 = vpop.xlane.xlu0 %2706
    %v2708 = vsel %vm163, %v2455, 0.0
    %2709 = vadd.xlane.f32.xlu0 %v2708
    %v2710 = vpop.xlane.xlu0 %2709
    %v2711 = vsel %vm163, %v2457, 0.0
    %2712 = vadd.xlane.f32.xlu0 %v2711
    %v2713 = vpop.xlane.xlu0 %2712
    %v2714 = vpack.c.bf16 %v2527, %v2524
    %v2715 = vpack.c.bf16 %v2533, %v2530
    %v2716 = vpack.c.bf16 %v2539, %v2536
    %v2717 = vpack.c.bf16 %v2545, %v2542
    %v2718 = vpack.c.bf16 %v2551, %v2548
    %v2719 = vpack.c.bf16 %v2557, %v2554
    %v2720 = vpack.c.bf16 %v2563, %v2560
    %v2721 = vpack.c.bf16 %v2569, %v2566
    %v2722 = vpack.c.bf16 %v2575, %v2572
    %v2723 = vpack.c.bf16 %v2581, %v2578
    %v2724 = vpack.c.bf16 %v2587, %v2584
    %v2725 = vpack.c.bf16 %v2593, %v2590
    %v2726 = vpack.c.bf16 %v2599, %v2596
    %v2727 = vpack.c.bf16 %v2605, %v2602
    %v2728 = vpack.c.bf16 %v2611, %v2608
    %v2729 = vpack.c.bf16 %v2617, %v2614
    %v2730 = vpack.c.bf16 %v2623, %v2620
    %v2731 = vpack.c.bf16 %v2629, %v2626
    %v2732 = vpack.c.bf16 %v2635, %v2632
    %v2733 = vpack.c.bf16 %v2641, %v2638
    %v2734 = vpack.c.bf16 %v2647, %v2644
    %v2735 = vpack.c.bf16 %v2653, %v2650
    %v2736 = vpack.c.bf16 %v2659, %v2656
    %v2737 = vpack.c.bf16 %v2665, %v2662
    %v2738 = vpack.c.bf16 %v2671, %v2668
    %v2739 = vpack.c.bf16 %v2677, %v2674
    %v2740 = vpack.c.bf16 %v2683, %v2680
    %v2741 = vpack.c.bf16 %v2689, %v2686
    %v2742 = vpack.c.bf16 %v2695, %v2692
    %v2743 = vpack.c.bf16 %v2701, %v2698
    %v2744 = vpack.c.bf16 %v2707, %v2704
    %v2745 = vpack.c.bf16 %v2713, %v2710
    %s2746 = scalar_lea.vmem [#allocation6], 1024
    %v2747 = vld [vmem:[%s2746] sm:$0xff]
    %v2748 = vld [vmem:[%s2746 + $0x8] sm:$0xff]
    %v2749 = vld [vmem:[%s2746 + $0x10] sm:$0xff]
    %v2750 = vld [vmem:[%s2746 + $0x18] sm:$0xff]
    %v2751 = vld [vmem:[%s2746 + $0x20] sm:$0xff]
    %v2752 = vld [vmem:[%s2746 + $0x28] sm:$0xff]
    %v2753 = vld [vmem:[%s2746 + $0x30] sm:$0xff]
    %v2754 = vld [vmem:[%s2746 + $0x38] sm:$0xff]
    %v2755 = vld [vmem:[%s2746 + $0x40] sm:$0xff]
    %v2756 = vld [vmem:[%s2746 + $0x48] sm:$0xff]
    %v2757 = vld [vmem:[%s2746 + $0x50] sm:$0xff]
    %v2758 = vld [vmem:[%s2746 + $0x58] sm:$0xff]
    %v2759 = vld [vmem:[%s2746 + $0x60] sm:$0xff]
    %v2760 = vld [vmem:[%s2746 + $0x68] sm:$0xff]
    %v2761 = vld [vmem:[%s2746 + $0x70] sm:$0xff]
    %v2762 = vld [vmem:[%s2746 + $0x78] sm:$0xff]
    %v2763 = vld [vmem:[%s2746 + $0x80] sm:$0xff]
    %v2764 = vld [vmem:[%s2746 + $0x88] sm:$0xff]
    %v2765 = vld [vmem:[%s2746 + $0x90] sm:$0xff]
    %v2766 = vld [vmem:[%s2746 + $0x98] sm:$0xff]
    %v2767 = vld [vmem:[%s2746 + $0xa0] sm:$0xff]
    %v2768 = vld [vmem:[%s2746 + $0xa8] sm:$0xff]
    %v2769 = vld [vmem:[%s2746 + $0xb0] sm:$0xff]
    %v2770 = vld [vmem:[%s2746 + $0xb8] sm:$0xff]
    %v2771 = vld [vmem:[%s2746 + $0xc0] sm:$0xff]
    %v2772 = vld [vmem:[%s2746 + $0xc8] sm:$0xff]
    %v2773 = vld [vmem:[%s2746 + $0xd0] sm:$0xff]
    %v2774 = vld [vmem:[%s2746 + $0xd8] sm:$0xff]
    %v2775 = vld [vmem:[%s2746 + $0xe0] sm:$0xff]
    %v2776 = vld [vmem:[%s2746 + $0xe8] sm:$0xff]
    %v2777 = vld [vmem:[%s2746 + $0xf0] sm:$0xff]
    %v2778 = vld [vmem:[%s2746 + $0xf8] sm:$0xff]
    %v2779 = vld [vmem:[%s2746 + $0x100] sm:$0xff]
    %v2780 = vld [vmem:[%s2746 + $0x108] sm:$0xff]
    %v2781 = vld [vmem:[%s2746 + $0x110] sm:$0xff]
    %v2782 = vld [vmem:[%s2746 + $0x118] sm:$0xff]
    %v2783 = vld [vmem:[%s2746 + $0x120] sm:$0xff]
    %v2784 = vld [vmem:[%s2746 + $0x128] sm:$0xff]
    %v2785 = vld [vmem:[%s2746 + $0x130] sm:$0xff]
    %v2786 = vld [vmem:[%s2746 + $0x138] sm:$0xff]
    %v2787 = vld [vmem:[%s2746 + $0x140] sm:$0xff]
    %v2788 = vld [vmem:[%s2746 + $0x148] sm:$0xff]
    %v2789 = vld [vmem:[%s2746 + $0x150] sm:$0xff]
    %v2790 = vld [vmem:[%s2746 + $0x158] sm:$0xff]
    %v2791 = vld [vmem:[%s2746 + $0x160] sm:$0xff]
    %v2792 = vld [vmem:[%s2746 + $0x168] sm:$0xff]
    %v2793 = vld [vmem:[%s2746 + $0x170] sm:$0xff]
    %v2794 = vld [vmem:[%s2746 + $0x178] sm:$0xff]
    %v2795 = vld [vmem:[%s2746 + $0x180] sm:$0xff]
    %v2796 = vld [vmem:[%s2746 + $0x188] sm:$0xff]
    %v2797 = vld [vmem:[%s2746 + $0x190] sm:$0xff]
    %v2798 = vld [vmem:[%s2746 + $0x198] sm:$0xff]
    %v2799 = vld [vmem:[%s2746 + $0x1a0] sm:$0xff]
    %v2800 = vld [vmem:[%s2746 + $0x1a8] sm:$0xff]
    %v2801 = vld [vmem:[%s2746 + $0x1b0] sm:$0xff]
    %v2802 = vld [vmem:[%s2746 + $0x1b8] sm:$0xff]
    %v2803 = vld [vmem:[%s2746 + $0x1c0] sm:$0xff]
    %v2804 = vld [vmem:[%s2746 + $0x1c8] sm:$0xff]
    %v2805 = vld [vmem:[%s2746 + $0x1d0] sm:$0xff]
    %v2806 = vld [vmem:[%s2746 + $0x1d8] sm:$0xff]
    %v2807 = vld [vmem:[%s2746 + $0x1e0] sm:$0xff]
    %v2808 = vld [vmem:[%s2746 + $0x1e8] sm:$0xff]
    %v2809 = vld [vmem:[%s2746 + $0x1f0] sm:$0xff]
    %v2810 = vld [vmem:[%s2746 + $0x1f8] sm:$0xff]
    %v2843 = vunpack.c.l.b16 %v2714
    %v2844 = vunpack.c.h.b16 %v2714
    %v2845 = vunpack.c.l.b16 %v2715
    %v2846 = vunpack.c.h.b16 %v2715
    %v2847 = vunpack.c.l.b16 %v2716
    %v2848 = vunpack.c.h.b16 %v2716
    %v2849 = vunpack.c.l.b16 %v2717
    %v2850 = vunpack.c.h.b16 %v2717
    %v2851 = vunpack.c.l.b16 %v2718
    %v2852 = vunpack.c.h.b16 %v2718
    %v2853 = vunpack.c.l.b16 %v2719
    %v2854 = vunpack.c.h.b16 %v2719
    %v2855 = vunpack.c.l.b16 %v2720
    %v2856 = vunpack.c.h.b16 %v2720
    %v2857 = vunpack.c.l.b16 %v2721
    %v2858 = vunpack.c.h.b16 %v2721
    %v2859 = vunpack.c.l.b16 %v2722
    %v2860 = vunpack.c.h.b16 %v2722
    %v2861 = vunpack.c.l.b16 %v2723
    %v2862 = vunpack.c.h.b16 %v2723
    %v2863 = vunpack.c.l.b16 %v2724
    %v2864 = vunpack.c.h.b16 %v2724
    %v2865 = vunpack.c.l.b16 %v2725
    %v2866 = vunpack.c.h.b16 %v2725
    %v2867 = vunpack.c.l.b16 %v2726
    %v2868 = vunpack.c.h.b16 %v2726
    %v2869 = vunpack.c.l.b16 %v2727
    %v2870 = vunpack.c.h.b16 %v2727
    %v2871 = vunpack.c.l.b16 %v2728
    %v2872 = vunpack.c.h.b16 %v2728
    %v2873 = vunpack.c.l.b16 %v2729
    %v2874 = vunpack.c.h.b16 %v2729
    %v2875 = vunpack.c.l.b16 %v2730
    %v2876 = vunpack.c.h.b16 %v2730
    %v2877 = vunpack.c.l.b16 %v2731
    %v2878 = vunpack.c.h.b16 %v2731
    %v2879 = vunpack.c.l.b16 %v2732
    %v2880 = vunpack.c.h.b16 %v2732
    %v2881 = vunpack.c.l.b16 %v2733
    %v2882 = vunpack.c.h.b16 %v2733
    %v2883 = vunpack.c.l.b16 %v2734
    %v2884 = vunpack.c.h.b16 %v2734
    %v2885 = vunpack.c.l.b16 %v2735
    %v2886 = vunpack.c.h.b16 %v2735
    %v2887 = vunpack.c.l.b16 %v2736
    %v2888 = vunpack.c.h.b16 %v2736
    %v2889 = vunpack.c.l.b16 %v2737
    %v2890 = vunpack.c.h.b16 %v2737
    %v2891 = vunpack.c.l.b16 %v2738
    %v2892 = vunpack.c.h.b16 %v2738
    %v2893 = vunpack.c.l.b16 %v2739
    %v2894 = vunpack.c.h.b16 %v2739
    %v2895 = vunpack.c.l.b16 %v2740
    %v2896 = vunpack.c.h.b16 %v2740
    %v2897 = vunpack.c.l.b16 %v2741
    %v2898 = vunpack.c.h.b16 %v2741
    %v2899 = vunpack.c.l.b16 %v2742
    %v2900 = vunpack.c.h.b16 %v2742
    %v2901 = vunpack.c.l.b16 %v2743
    %v2902 = vunpack.c.h.b16 %v2743
    %v2903 = vunpack.c.l.b16 %v2744
    %v2904 = vunpack.c.h.b16 %v2744
    %v2905 = vunpack.c.l.b16 %v2745
    %v2906 = vunpack.c.h.b16 %v2745
    %v2907 = vperm.slane %v2843, %v1094
    %v2908 = vperm.slane %v2844, %v1096
    %v2909 = vsel %vm1098, %v2908, %v2907
    %v2910 = vperm.slane %v2845, %v1100
    %v2911 = vsel %vm1102, %v2910, %v2909
    %v2912 = vperm.slane %v2846, %v1104
    %v2913 = vsel %vm1106, %v2912, %v2911
    %v2914 = vperm.slane %v2847, %v1108
    %v2915 = vsel %vm1110, %v2914, %v2913
    %v2916 = vperm.slane %v2848, %v1112
    %v2917 = vsel %vm1114, %v2916, %v2915
    %v2918 = vperm.slane %v2849, %v1116
    %v2919 = vsel %vm1118, %v2918, %v2917
    %v2920 = vperm.slane %v2850, %v1120
    %v2921 = vsel %vm1122, %v2920, %v2919
    %v2922 = vperm.slane %v2851, %v1124
    %v2923 = vsel %vm1126, %v2922, %v2921
    %v2924 = vperm.slane %v2852, %v1128
    %v2925 = vsel %vm1130, %v2924, %v2923
    %v2926 = vperm.slane %v2853, %v1132
    %v2927 = vsel %vm1134, %v2926, %v2925
    %v2928 = vperm.slane %v2854, %v1136
    %v2929 = vsel %vm1138, %v2928, %v2927
    %v2930 = vperm.slane %v2855, %v1140
    %v2931 = vsel %vm1142, %v2930, %v2929
    %v2932 = vperm.slane %v2856, %v1144
    %v2933 = vsel %vm1146, %v2932, %v2931
    %v2934 = vperm.slane %v2857, %v1148
    %v2935 = vsel %vm1150, %v2934, %v2933
    %v2936 = vperm.slane %v2858, %v1152
    %v2937 = vsel %vm1154, %v2936, %v2935
    %v2938 = vperm.slane %v2859, %v1094
    %v2939 = vperm.slane %v2860, %v1096
    %v2940 = vsel %vm1098, %v2939, %v2938
    %v2941 = vperm.slane %v2861, %v1100
    %v2942 = vsel %vm1102, %v2941, %v2940
    %v2943 = vperm.slane %v2862, %v1104
    %v2944 = vsel %vm1106, %v2943, %v2942
    %v2945 = vperm.slane %v2863, %v1108
    %v2946 = vsel %vm1110, %v2945, %v2944
    %v2947 = vperm.slane %v2864, %v1112
    %v2948 = vsel %vm1114, %v2947, %v2946
    %v2949 = vperm.slane %v2865, %v1116
    %v2950 = vsel %vm1118, %v2949, %v2948
    %v2951 = vperm.slane %v2866, %v1120
    %v2952 = vsel %vm1122, %v2951, %v2950
    %v2953 = vperm.slane %v2867, %v1124
    %v2954 = vsel %vm1126, %v2953, %v2952
    %v2955 = vperm.slane %v2868, %v1128
    %v2956 = vsel %vm1130, %v2955, %v2954
    %v2957 = vperm.slane %v2869, %v1132
    %v2958 = vsel %vm1134, %v2957, %v2956
    %v2959 = vperm.slane %v2870, %v1136
    %v2960 = vsel %vm1138, %v2959, %v2958
    %v2961 = vperm.slane %v2871, %v1140
    %v2962 = vsel %vm1142, %v2961, %v2960
    %v2963 = vperm.slane %v2872, %v1144
    %v2964 = vsel %vm1146, %v2963, %v2962
    %v2965 = vperm.slane %v2873, %v1148
    %v2966 = vsel %vm1150, %v2965, %v2964
    %v2967 = vperm.slane %v2874, %v1152
    %v2968 = vsel %vm1154, %v2967, %v2966
    %v2969 = vperm.slane %v2875, %v1094
    %v2970 = vperm.slane %v2876, %v1096
    %v2971 = vsel %vm1098, %v2970, %v2969
    %v2972 = vperm.slane %v2877, %v1100
    %v2973 = vsel %vm1102, %v2972, %v2971
    %v2974 = vperm.slane %v2878, %v1104
    %v2975 = vsel %vm1106, %v2974, %v2973
    %v2976 = vperm.slane %v2879, %v1108
    %v2977 = vsel %vm1110, %v2976, %v2975
    %v2978 = vperm.slane %v2880, %v1112
    %v2979 = vsel %vm1114, %v2978, %v2977
    %v2980 = vperm.slane %v2881, %v1116
    %v2981 = vsel %vm1118, %v2980, %v2979
    %v2982 = vperm.slane %v2882, %v1120
    %v2983 = vsel %vm1122, %v2982, %v2981
    %v2984 = vperm.slane %v2883, %v1124
    %v2985 = vsel %vm1126, %v2984, %v2983
    %v2986 = vperm.slane %v2884, %v1128
    %v2987 = vsel %vm1130, %v2986, %v2985
    %v2988 = vperm.slane %v2885, %v1132
    %v2989 = vsel %vm1134, %v2988, %v2987
    %v2990 = vperm.slane %v2886, %v1136
    %v2991 = vsel %vm1138, %v2990, %v2989
    %v2992 = vperm.slane %v2887, %v1140
    %v2993 = vsel %vm1142, %v2992, %v2991
    %v2994 = vperm.slane %v2888, %v1144
    %v2995 = vsel %vm1146, %v2994, %v2993
    %v2996 = vperm.slane %v2889, %v1148
    %v2997 = vsel %vm1150, %v2996, %v2995
    %v2998 = vperm.slane %v2890, %v1152
    %v2999 = vsel %vm1154, %v2998, %v2997
    %v3000 = vperm.slane %v2891, %v1094
    %v3001 = vperm.slane %v2892, %v1096
    %v3002 = vsel %vm1098, %v3001, %v3000
    %v3003 = vperm.slane %v2893, %v1100
    %v3004 = vsel %vm1102, %v3003, %v3002
    %v3005 = vperm.slane %v2894, %v1104
    %v3006 = vsel %vm1106, %v3005, %v3004
    %v3007 = vperm.slane %v2895, %v1108
    %v3008 = vsel %vm1110, %v3007, %v3006
    %v3009 = vperm.slane %v2896, %v1112
    %v3010 = vsel %vm1114, %v3009, %v3008
    %v3011 = vperm.slane %v2897, %v1116
    %v3012 = vsel %vm1118, %v3011, %v3010
    %v3013 = vperm.slane %v2898, %v1120
    %v3014 = vsel %vm1122, %v3013, %v3012
    %v3015 = vperm.slane %v2899, %v1124
    %v3016 = vsel %vm1126, %v3015, %v3014
    %v3017 = vperm.slane %v2900, %v1128
    %v3018 = vsel %vm1130, %v3017, %v3016
    %v3019 = vperm.slane %v2901, %v1132
    %v3020 = vsel %vm1134, %v3019, %v3018
    %v3021 = vperm.slane %v2902, %v1136
    %v3022 = vsel %vm1138, %v3021, %v3020
    %v3023 = vperm.slane %v2903, %v1140
    %v3024 = vsel %vm1142, %v3023, %v3022
    %v3025 = vperm.slane %v2904, %v1144
    %v3026 = vsel %vm1146, %v3025, %v3024
    %v3027 = vperm.slane %v2905, %v1148
    %v3028 = vsel %vm1150, %v3027, %v3026
    %v3029 = vperm.slane %v2906, %v1152
    %v3030 = vsel %vm1154, %v3029, %v3028
    %v3031 = vsel %vm1249, %v2999, %v2937
    %v3032 = vsel %vm1249, %v3030, %v2968
    %v3033 = vpack.c.b16 %v3031, %v3031
    %v3034 = vpack.c.b16 %v3032, %v3032
    %v3101 = vunpack.c.l.b16 %v2747
    %v3102 = vunpack.c.h.b16 %v2747
    %v3103 = vunpack.c.l.b16 %v2748
    %v3104 = vunpack.c.h.b16 %v2748
    %v3105 = vunpack.c.l.b16 %v2749
    %v3106 = vunpack.c.h.b16 %v2749
    %v3107 = vunpack.c.l.b16 %v2750
    %v3108 = vunpack.c.h.b16 %v2750
    %v3109 = vunpack.c.l.b16 %v2751
    %v3110 = vunpack.c.h.b16 %v2751
    %v3111 = vunpack.c.l.b16 %v2752
    %v3112 = vunpack.c.h.b16 %v2752
    %v3113 = vunpack.c.l.b16 %v2753
    %v3114 = vunpack.c.h.b16 %v2753
    %v3115 = vunpack.c.l.b16 %v2754
    %v3116 = vunpack.c.h.b16 %v2754
    %v3117 = vunpack.c.l.b16 %v2755
    %v3118 = vunpack.c.h.b16 %v2755
    %v3119 = vunpack.c.l.b16 %v2756
    %v3120 = vunpack.c.h.b16 %v2756
    %v3121 = vunpack.c.l.b16 %v2757
    %v3122 = vunpack.c.h.b16 %v2757
    %v3123 = vunpack.c.l.b16 %v2758
    %v3124 = vunpack.c.h.b16 %v2758
    %v3125 = vunpack.c.l.b16 %v2759
    %v3126 = vunpack.c.h.b16 %v2759
    %v3127 = vunpack.c.l.b16 %v2760
    %v3128 = vunpack.c.h.b16 %v2760
    %v3129 = vunpack.c.l.b16 %v2761
    %v3130 = vunpack.c.h.b16 %v2761
    %v3131 = vunpack.c.l.b16 %v2762
    %v3132 = vunpack.c.h.b16 %v2762
    %v3133 = vunpack.c.l.b16 %v2763
    %v3134 = vunpack.c.h.b16 %v2763
    %v3135 = vunpack.c.l.b16 %v2764
    %v3136 = vunpack.c.h.b16 %v2764
    %v3137 = vunpack.c.l.b16 %v2765
    %v3138 = vunpack.c.h.b16 %v2765
    %v3139 = vunpack.c.l.b16 %v2766
    %v3140 = vunpack.c.h.b16 %v2766
    %v3141 = vunpack.c.l.b16 %v2767
    %v3142 = vunpack.c.h.b16 %v2767
    %v3143 = vunpack.c.l.b16 %v2768
    %v3144 = vunpack.c.h.b16 %v2768
    %v3145 = vunpack.c.l.b16 %v2769
    %v3146 = vunpack.c.h.b16 %v2769
    %v3147 = vunpack.c.l.b16 %v2770
    %v3148 = vunpack.c.h.b16 %v2770
    %v3149 = vunpack.c.l.b16 %v2771
    %v3150 = vunpack.c.h.b16 %v2771
    %v3151 = vunpack.c.l.b16 %v2772
    %v3152 = vunpack.c.h.b16 %v2772
    %v3153 = vunpack.c.l.b16 %v2773
    %v3154 = vunpack.c.h.b16 %v2773
    %v3155 = vunpack.c.l.b16 %v2774
    %v3156 = vunpack.c.h.b16 %v2774
    %v3157 = vunpack.c.l.b16 %v2775
    %v3158 = vunpack.c.h.b16 %v2775
    %v3159 = vunpack.c.l.b16 %v2776
    %v3160 = vunpack.c.h.b16 %v2776
    %v3161 = vunpack.c.l.b16 %v2777
    %v3162 = vunpack.c.h.b16 %v2777
    %v3163 = vunpack.c.l.b16 %v2778
    %v3164 = vunpack.c.h.b16 %v2778
    %v3165 = vunpack.c.l.b16 %v2779
    %v3166 = vunpack.c.h.b16 %v2779
    %v3167 = vunpack.c.l.b16 %v2780
    %v3168 = vunpack.c.h.b16 %v2780
    %v3169 = vunpack.c.l.b16 %v2781
    %v3170 = vunpack.c.h.b16 %v2781
    %v3171 = vunpack.c.l.b16 %v2782
    %v3172 = vunpack.c.h.b16 %v2782
    %v3173 = vunpack.c.l.b16 %v2783
    %v3174 = vunpack.c.h.b16 %v2783
    %v3175 = vunpack.c.l.b16 %v2784
    %v3176 = vunpack.c.h.b16 %v2784
    %v3177 = vunpack.c.l.b16 %v2785
    %v3178 = vunpack.c.h.b16 %v2785
    %v3179 = vunpack.c.l.b16 %v2786
    %v3180 = vunpack.c.h.b16 %v2786
    %v3181 = vunpack.c.l.b16 %v2787
    %v3182 = vunpack.c.h.b16 %v2787
    %v3183 = vunpack.c.l.b16 %v2788
    %v3184 = vunpack.c.h.b16 %v2788
    %v3185 = vunpack.c.l.b16 %v2789
    %v3186 = vunpack.c.h.b16 %v2789
    %v3187 = vunpack.c.l.b16 %v2790
    %v3188 = vunpack.c.h.b16 %v2790
    %v3189 = vunpack.c.l.b16 %v2791
    %v3190 = vunpack.c.h.b16 %v2791
    %v3191 = vunpack.c.l.b16 %v2792
    %v3192 = vunpack.c.h.b16 %v2792
    %v3193 = vunpack.c.l.b16 %v2793
    %v3194 = vunpack.c.h.b16 %v2793
    %v3195 = vunpack.c.l.b16 %v2794
    %v3196 = vunpack.c.h.b16 %v2794
    %v3197 = vunpack.c.l.b16 %v2795
    %v3198 = vunpack.c.h.b16 %v2795
    %v3199 = vunpack.c.l.b16 %v2796
    %v3200 = vunpack.c.h.b16 %v2796
    %v3201 = vunpack.c.l.b16 %v2797
    %v3202 = vunpack.c.h.b16 %v2797
    %v3203 = vunpack.c.l.b16 %v2798
    %v3204 = vunpack.c.h.b16 %v2798
    %v3205 = vunpack.c.l.b16 %v2799
    %v3206 = vunpack.c.h.b16 %v2799
    %v3207 = vunpack.c.l.b16 %v2800
    %v3208 = vunpack.c.h.b16 %v2800
    %v3209 = vunpack.c.l.b16 %v2801
    %v3210 = vunpack.c.h.b16 %v2801
    %v3211 = vunpack.c.l.b16 %v2802
    %v3212 = vunpack.c.h.b16 %v2802
    %v3213 = vunpack.c.l.b16 %v2803
    %v3214 = vunpack.c.h.b16 %v2803
    %v3215 = vunpack.c.l.b16 %v2804
    %v3216 = vunpack.c.h.b16 %v2804
    %v3217 = vunpack.c.l.b16 %v2805
    %v3218 = vunpack.c.h.b16 %v2805
    %v3219 = vunpack.c.l.b16 %v2806
    %v3220 = vunpack.c.h.b16 %v2806
    %v3221 = vunpack.c.l.b16 %v2807
    %v3222 = vunpack.c.h.b16 %v2807
    %v3223 = vunpack.c.l.b16 %v2808
    %v3224 = vunpack.c.h.b16 %v2808
    %v3225 = vunpack.c.l.b16 %v2809
    %v3226 = vunpack.c.h.b16 %v2809
    %v3227 = vunpack.c.l.b16 %v2810
    %v3228 = vunpack.c.h.b16 %v2810
    %v3229 = vpack.c.b16 %v3105, %v3101
    %v3230 = vpack.c.b16 %v3106, %v3102
    %v3231 = vpack.c.b16 %v3107, %v3103
    %v3232 = vpack.c.b16 %v3108, %v3104
    %v3233 = vpack.c.b16 %v3113, %v3109
    %v3234 = vpack.c.b16 %v3114, %v3110
    %v3235 = vpack.c.b16 %v3115, %v3111
    %v3236 = vpack.c.b16 %v3116, %v3112
    %v3237 = vpack.c.b16 %v3121, %v3117
    %v3238 = vpack.c.b16 %v3122, %v3118
    %v3239 = vpack.c.b16 %v3123, %v3119
    %v3240 = vpack.c.b16 %v3124, %v3120
    %v3241 = vpack.c.b16 %v3129, %v3125
    %v3242 = vpack.c.b16 %v3130, %v3126
    %v3243 = vpack.c.b16 %v3131, %v3127
    %v3244 = vpack.c.b16 %v3132, %v3128
    %v3245 = vpack.c.b16 %v3137, %v3133
    %v3246 = vpack.c.b16 %v3138, %v3134
    %v3247 = vpack.c.b16 %v3139, %v3135
    %v3248 = vpack.c.b16 %v3140, %v3136
    %v3249 = vpack.c.b16 %v3145, %v3141
    %v3250 = vpack.c.b16 %v3146, %v3142
    %v3251 = vpack.c.b16 %v3147, %v3143
    %v3252 = vpack.c.b16 %v3148, %v3144
    %v3253 = vpack.c.b16 %v3153, %v3149
    %v3254 = vpack.c.b16 %v3154, %v3150
    %v3255 = vpack.c.b16 %v3155, %v3151
    %v3256 = vpack.c.b16 %v3156, %v3152
    %v3257 = vpack.c.b16 %v3161, %v3157
    %v3258 = vpack.c.b16 %v3162, %v3158
    %v3259 = vpack.c.b16 %v3163, %v3159
    %v3260 = vpack.c.b16 %v3164, %v3160
    %v3261 = vpack.c.b16 %v3169, %v3165
    %v3262 = vpack.c.b16 %v3170, %v3166
    %v3263 = vpack.c.b16 %v3171, %v3167
    %v3264 = vpack.c.b16 %v3172, %v3168
    %v3265 = vpack.c.b16 %v3177, %v3173
    %v3266 = vpack.c.b16 %v3178, %v3174
    %v3267 = vpack.c.b16 %v3179, %v3175
    %v3268 = vpack.c.b16 %v3180, %v3176
    %v3269 = vpack.c.b16 %v3185, %v3181
    %v3270 = vpack.c.b16 %v3186, %v3182
    %v3271 = vpack.c.b16 %v3187, %v3183
    %v3272 = vpack.c.b16 %v3188, %v3184
    %v3273 = vpack.c.b16 %v3193, %v3189
    %v3274 = vpack.c.b16 %v3194, %v3190
    %v3275 = vpack.c.b16 %v3195, %v3191
    %v3276 = vpack.c.b16 %v3196, %v3192
    %v3277 = vpack.c.b16 %v3201, %v3197
    %v3278 = vpack.c.b16 %v3202, %v3198
    %v3279 = vpack.c.b16 %v3203, %v3199
    %v3280 = vpack.c.b16 %v3204, %v3200
    %v3281 = vpack.c.b16 %v3209, %v3205
    %v3282 = vpack.c.b16 %v3210, %v3206
    %v3283 = vpack.c.b16 %v3211, %v3207
    %v3284 = vpack.c.b16 %v3212, %v3208
    %v3285 = vpack.c.b16 %v3217, %v3213
    %v3286 = vpack.c.b16 %v3218, %v3214
    %v3287 = vpack.c.b16 %v3219, %v3215
    %v3288 = vpack.c.b16 %v3220, %v3216
    %v3289 = vpack.c.b16 %v3225, %v3221
    %v3290 = vpack.c.b16 %v3226, %v3222
    %v3291 = vpack.c.b16 %v3227, %v3223
    %v3292 = vpack.c.b16 %v3228, %v3224
    %3357 = vmatpush.bf16.msra.mxu0 %v3257
    %3358 = vmatpush.bf16.msra.mxu0 %v3253
    %3359 = vmatpush.bf16.msra.mxu0 %v3249
    %3360 = vmatpush.bf16.msra.mxu0 %v3245
    %3361 = vmatpush.bf16.msra.mxu0 %v3241
    %3362 = vmatpush.bf16.msra.mxu0 %v3237
    %3363 = vmatpush.bf16.msra.mxu0 %v3233
    %3364 = vmatpush.bf16.msra.mxu0 %v3229
    %3365 = vmatmul.bf16.gmra.mxu0 %v3033
    %v3366 = vpop.f32.mrf.mxu0
    %v3367 = vadd.f32 0.0, %v3366
    %v3368 = vpop.f32.mrf.mxu0
    %3369 = vdwg.mxu0
    %3370 = vmatpush.bf16.msra.mxu0 %v3289
    %3371 = vmatpush.bf16.msra.mxu0 %v3285
    %3372 = vmatpush.bf16.msra.mxu0 %v3281
    %3373 = vmatpush.bf16.msra.mxu0 %v3277
    %3374 = vmatpush.bf16.msra.mxu0 %v3273
    %3375 = vmatpush.bf16.msra.mxu0 %v3269
    %3376 = vmatpush.bf16.msra.mxu0 %v3265
    %3377 = vmatpush.bf16.msra.mxu0 %v3261
    %3378 = vmatmul.bf16.gmra.mxu0 %v3034
    %v3379 = vpop.f32.mrf.mxu0
    %v3380 = vadd.f32 %v3367, %v3379
    %v3381 = vpop.f32.mrf.mxu0
    %3382 = vdwg.mxu0
    %3383 = vmatpush.bf16.msra.mxu0 %v3258
    %3384 = vmatpush.bf16.msra.mxu0 %v3254
    %3385 = vmatpush.bf16.msra.mxu0 %v3250
    %3386 = vmatpush.bf16.msra.mxu0 %v3246
    %3387 = vmatpush.bf16.msra.mxu0 %v3242
    %3388 = vmatpush.bf16.msra.mxu0 %v3238
    %3389 = vmatpush.bf16.msra.mxu0 %v3234
    %3390 = vmatpush.bf16.msra.mxu0 %v3230
    %3391 = vmatmul.bf16.gmra.mxu0 %v3033
    %v3392 = vpop.f32.mrf.mxu0
    %v3393 = vadd.f32 0.0, %v3392
    %v3394 = vpop.f32.mrf.mxu0
    %3395 = vdwg.mxu0
    %3396 = vmatpush.bf16.msra.mxu0 %v3290
    %3397 = vmatpush.bf16.msra.mxu0 %v3286
    %3398 = vmatpush.bf16.msra.mxu0 %v3282
    %3399 = vmatpush.bf16.msra.mxu0 %v3278
    %3400 = vmatpush.bf16.msra.mxu0 %v3274
    %3401 = vmatpush.bf16.msra.mxu0 %v3270
    %3402 = vmatpush.bf16.msra.mxu0 %v3266
    %3403 = vmatpush.bf16.msra.mxu0 %v3262
    %3404 = vmatmul.bf16.gmra.mxu0 %v3034
    %v3405 = vpop.f32.mrf.mxu0
    %v3406 = vadd.f32 %v3393, %v3405
    %v3407 = vpop.f32.mrf.mxu0
    %3408 = vdwg.mxu0
    %3409 = vmatpush.bf16.msra.mxu0 %v3259
    %3410 = vmatpush.bf16.msra.mxu0 %v3255
    %3411 = vmatpush.bf16.msra.mxu0 %v3251
    %3412 = vmatpush.bf16.msra.mxu0 %v3247
    %3413 = vmatpush.bf16.msra.mxu0 %v3243
    %3414 = vmatpush.bf16.msra.mxu0 %v3239
    %3415 = vmatpush.bf16.msra.mxu0 %v3235
    %3416 = vmatpush.bf16.msra.mxu0 %v3231
    %3417 = vmatmul.bf16.gmra.mxu0 %v3033
    %v3418 = vpop.f32.mrf.mxu0
    %v3419 = vadd.f32 0.0, %v3418
    %v3420 = vpop.f32.mrf.mxu0
    %3421 = vdwg.mxu0
    %3422 = vmatpush.bf16.msra.mxu0 %v3291
    %3423 = vmatpush.bf16.msra.mxu0 %v3287
    %3424 = vmatpush.bf16.msra.mxu0 %v3283
    %3425 = vmatpush.bf16.msra.mxu0 %v3279
    %3426 = vmatpush.bf16.msra.mxu0 %v3275
    %3427 = vmatpush.bf16.msra.mxu0 %v3271
    %3428 = vmatpush.bf16.msra.mxu0 %v3267
    %3429 = vmatpush.bf16.msra.mxu0 %v3263
    %3430 = vmatmul.bf16.gmra.mxu0 %v3034
    %v3431 = vpop.f32.mrf.mxu0
    %v3432 = vadd.f32 %v3419, %v3431
    %v3433 = vpop.f32.mrf.mxu0
    %3434 = vdwg.mxu0
    %3435 = vmatpush.bf16.msra.mxu0 %v3260
    %3436 = vmatpush.bf16.msra.mxu0 %v3256
    %3437 = vmatpush.bf16.msra.mxu0 %v3252
    %3438 = vmatpush.bf16.msra.mxu0 %v3248
    %3439 = vmatpush.bf16.msra.mxu0 %v3244
    %3440 = vmatpush.bf16.msra.mxu0 %v3240
    %3441 = vmatpush.bf16.msra.mxu0 %v3236
    %3442 = vmatpush.bf16.msra.mxu0 %v3232
    %3443 = vmatmul.bf16.gmra.mxu0 %v3033
    %v3444 = vpop.f32.mrf.mxu0
    %v3445 = vadd.f32 0.0, %v3444
    %v3446 = vpop.f32.mrf.mxu0
    %3447 = vdwg.mxu0
    %3448 = vmatpush.bf16.msra.mxu0 %v3292
    %3449 = vmatpush.bf16.msra.mxu0 %v3288
    %3450 = vmatpush.bf16.msra.mxu0 %v3284
    %3451 = vmatpush.bf16.msra.mxu0 %v3280
    %3452 = vmatpush.bf16.msra.mxu0 %v3276
    %3453 = vmatpush.bf16.msra.mxu0 %v3272
    %3454 = vmatpush.bf16.msra.mxu0 %v3268
    %3455 = vmatpush.bf16.msra.mxu0 %v3264
    %3456 = vmatmul.bf16.gmra.mxu0 %v3034
    %v3457 = vpop.f32.mrf.mxu0
    %v3458 = vadd.f32 %v3445, %v3457
    %v3459 = vpop.f32.mrf.mxu0
    %3460 = vdwg.mxu0
    %v3461 = vadd.f32 %v2249, %v3380
    %v3462 = vadd.f32 %v2275, %v3406
    %v3463 = vadd.f32 %v2301, %v3432
    %v3464 = vadd.f32 %v2327, %v3458
    %3465 = vrot.lane.b32.xlu0 %v99, 80
    %v3466 = vpop.permute.xlu0 %3465
    %3467 = vrot.lane.b32.xlu0 %v100, 80
    %v3468 = vpop.permute.xlu0 %3467
    %3469 = vrot.lane.b32.xlu0 %v101, 80
    %v3470 = vpop.permute.xlu0 %3469
    %3471 = vrot.lane.b32.xlu0 %v102, 80
    %v3472 = vpop.permute.xlu0 %3471
    %3473 = vrot.lane.b32.xlu0 %v103, 80
    %v3474 = vpop.permute.xlu0 %3473
    %3475 = vrot.lane.b32.xlu0 %v104, 80
    %v3476 = vpop.permute.xlu0 %3475
    %3477 = vrot.lane.b32.xlu0 %v105, 80
    %v3478 = vpop.permute.xlu0 %3477
    %3479 = vrot.lane.b32.xlu0 %v106, 80
    %v3480 = vpop.permute.xlu0 %3479
    %3481 = vrot.lane.b32.xlu0 %v107, 80
    %v3482 = vpop.permute.xlu0 %3481
    %3483 = vrot.lane.b32.xlu0 %v108, 80
    %v3484 = vpop.permute.xlu0 %3483
    %3485 = vrot.lane.b32.xlu0 %v109, 80
    %v3486 = vpop.permute.xlu0 %3485
    %3487 = vrot.lane.b32.xlu0 %v110, 80
    %v3488 = vpop.permute.xlu0 %3487
    %3489 = vrot.lane.b32.xlu0 %v111, 80
    %v3490 = vpop.permute.xlu0 %3489
    %3491 = vrot.lane.b32.xlu0 %v112, 80
    %v3492 = vpop.permute.xlu0 %3491
    %3493 = vrot.lane.b32.xlu0 %v113, 80
    %v3494 = vpop.permute.xlu0 %3493
    %3495 = vrot.lane.b32.xlu0 %v114, 80
    %v3496 = vpop.permute.xlu0 %3495
    %3497 = vrot.lane.b32.xlu0 %v115, 80
    %v3498 = vpop.permute.xlu0 %3497
    %3499 = vrot.lane.b32.xlu0 %v116, 80
    %v3500 = vpop.permute.xlu0 %3499
    %3501 = vrot.lane.b32.xlu0 %v117, 80
    %v3502 = vpop.permute.xlu0 %3501
    %3503 = vrot.lane.b32.xlu0 %v118, 80
    %v3504 = vpop.permute.xlu0 %3503
    %3505 = vrot.lane.b32.xlu0 %v119, 80
    %v3506 = vpop.permute.xlu0 %3505
    %3507 = vrot.lane.b32.xlu0 %v120, 80
    %v3508 = vpop.permute.xlu0 %3507
    %3509 = vrot.lane.b32.xlu0 %v121, 80
    %v3510 = vpop.permute.xlu0 %3509
    %3511 = vrot.lane.b32.xlu0 %v122, 80
    %v3512 = vpop.permute.xlu0 %3511
    %3513 = vrot.lane.b32.xlu0 %v123, 80
    %v3514 = vpop.permute.xlu0 %3513
    %3515 = vrot.lane.b32.xlu0 %v124, 80
    %v3516 = vpop.permute.xlu0 %3515
    %3517 = vrot.lane.b32.xlu0 %v125, 80
    %v3518 = vpop.permute.xlu0 %3517
    %3519 = vrot.lane.b32.xlu0 %v126, 80
    %v3520 = vpop.permute.xlu0 %3519
    %3521 = vrot.lane.b32.xlu0 %v127, 80
    %v3522 = vpop.permute.xlu0 %3521
    %3523 = vrot.lane.b32.xlu0 %v128, 80
    %v3524 = vpop.permute.xlu0 %3523
    %3525 = vrot.lane.b32.xlu0 %v129, 80
    %v3526 = vpop.permute.xlu0 %3525
    %3527 = vrot.lane.b32.xlu0 %v130, 80
    %v3528 = vpop.permute.xlu0 %3527
    %3529 = vrot.lane.b32.xlu0 %v131, 80
    %v3530 = vpop.permute.xlu0 %3529
    %3531 = vrot.lane.b32.xlu0 %v132, 80
    %v3532 = vpop.permute.xlu0 %3531
    %3533 = vrot.lane.b32.xlu0 %v133, 80
    %v3534 = vpop.permute.xlu0 %3533
    %3535 = vrot.lane.b32.xlu0 %v134, 80
    %v3536 = vpop.permute.xlu0 %3535
    %3537 = vrot.lane.b32.xlu0 %v135, 80
    %v3538 = vpop.permute.xlu0 %3537
    %3539 = vrot.lane.b32.xlu0 %v136, 80
    %v3540 = vpop.permute.xlu0 %3539
    %3541 = vrot.lane.b32.xlu0 %v137, 80
    %v3542 = vpop.permute.xlu0 %3541
    %3543 = vrot.lane.b32.xlu0 %v138, 80
    %v3544 = vpop.permute.xlu0 %3543
    %3545 = vrot.lane.b32.xlu0 %v139, 80
    %v3546 = vpop.permute.xlu0 %3545
    %3547 = vrot.lane.b32.xlu0 %v140, 80
    %v3548 = vpop.permute.xlu0 %3547
    %3549 = vrot.lane.b32.xlu0 %v141, 80
    %v3550 = vpop.permute.xlu0 %3549
    %3551 = vrot.lane.b32.xlu0 %v142, 80
    %v3552 = vpop.permute.xlu0 %3551
    %3553 = vrot.lane.b32.xlu0 %v143, 80
    %v3554 = vpop.permute.xlu0 %3553
    %3555 = vrot.lane.b32.xlu0 %v144, 80
    %v3556 = vpop.permute.xlu0 %3555
    %3557 = vrot.lane.b32.xlu0 %v145, 80
    %v3558 = vpop.permute.xlu0 %3557
    %3559 = vrot.lane.b32.xlu0 %v146, 80
    %v3560 = vpop.permute.xlu0 %3559
    %3561 = vrot.lane.b32.xlu0 %v147, 80
    %v3562 = vpop.permute.xlu0 %3561
    %3563 = vrot.lane.b32.xlu0 %v148, 80
    %v3564 = vpop.permute.xlu0 %3563
    %3565 = vrot.lane.b32.xlu0 %v149, 80
    %v3566 = vpop.permute.xlu0 %3565
    %3567 = vrot.lane.b32.xlu0 %v150, 80
    %v3568 = vpop.permute.xlu0 %3567
    %3569 = vrot.lane.b32.xlu0 %v151, 80
    %v3570 = vpop.permute.xlu0 %3569
    %3571 = vrot.lane.b32.xlu0 %v152, 80
    %v3572 = vpop.permute.xlu0 %3571
    %3573 = vrot.lane.b32.xlu0 %v153, 80
    %v3574 = vpop.permute.xlu0 %3573
    %3575 = vrot.lane.b32.xlu0 %v154, 80
    %v3576 = vpop.permute.xlu0 %3575
    %3577 = vrot.lane.b32.xlu0 %v155, 80
    %v3578 = vpop.permute.xlu0 %3577
    %3579 = vrot.lane.b32.xlu0 %v156, 80
    %v3580 = vpop.permute.xlu0 %3579
    %3581 = vrot.lane.b32.xlu0 %v157, 80
    %v3582 = vpop.permute.xlu0 %3581
    %3583 = vrot.lane.b32.xlu0 %v158, 80
    %v3584 = vpop.permute.xlu0 %3583
    %3585 = vrot.lane.b32.xlu0 %v159, 80
    %v3586 = vpop.permute.xlu0 %3585
    %3587 = vrot.lane.b32.xlu0 %v160, 80
    %v3588 = vpop.permute.xlu0 %3587
    %3589 = vrot.lane.b32.xlu0 %v161, 80
    %v3590 = vpop.permute.xlu0 %3589
    %3591 = vrot.lane.b32.xlu0 %v162, 80
    %v3592 = vpop.permute.xlu0 %3591
    %v3657 = vsel %vm163, %v3466, 0.0
    %3658 = vadd.xlane.f32.xlu0 %v3657
    %v3659 = vpop.xlane.xlu0 %3658
    %v3660 = vsel %vm163, %v3468, 0.0
    %3661 = vadd.xlane.f32.xlu0 %v3660
    %v3662 = vpop.xlane.xlu0 %3661
    %v3663 = vsel %vm163, %v3470, 0.0
    %3664 = vadd.xlane.f32.xlu0 %v3663
    %v3665 = vpop.xlane.xlu0 %3664
    %v3666 = vsel %vm163, %v3472, 0.0
    %3667 = vadd.xlane.f32.xlu0 %v3666
    %v3668 = vpop.xlane.xlu0 %3667
    %v3669 = vsel %vm163, %v3474, 0.0
    %3670 = vadd.xlane.f32.xlu0 %v3669
    %v3671 = vpop.xlane.xlu0 %3670
    %v3672 = vsel %vm163, %v3476, 0.0
    %3673 = vadd.xlane.f32.xlu0 %v3672
    %v3674 = vpop.xlane.xlu0 %3673
    %v3675 = vsel %vm163, %v3478, 0.0
    %3676 = vadd.xlane.f32.xlu0 %v3675
    %v3677 = vpop.xlane.xlu0 %3676
    %v3678 = vsel %vm163, %v3480, 0.0
    %3679 = vadd.xlane.f32.xlu0 %v3678
    %v3680 = vpop.xlane.xlu0 %3679
    %v3681 = vsel %vm163, %v3482, 0.0
    %3682 = vadd.xlane.f32.xlu0 %v3681
    %v3683 = vpop.xlane.xlu0 %3682
    %v3684 = vsel %vm163, %v3484, 0.0
    %3685 = vadd.xlane.f32.xlu0 %v3684
    %v3686 = vpop.xlane.xlu0 %3685
    %v3687 = vsel %vm163, %v3486, 0.0
    %3688 = vadd.xlane.f32.xlu0 %v3687
    %v3689 = vpop.xlane.xlu0 %3688
    %v3690 = vsel %vm163, %v3488, 0.0
    %3691 = vadd.xlane.f32.xlu0 %v3690
    %v3692 = vpop.xlane.xlu0 %3691
    %v3693 = vsel %vm163, %v3490, 0.0
    %3694 = vadd.xlane.f32.xlu0 %v3693
    %v3695 = vpop.xlane.xlu0 %3694
    %v3696 = vsel %vm163, %v3492, 0.0
    %3697 = vadd.xlane.f32.xlu0 %v3696
    %v3698 = vpop.xlane.xlu0 %3697
    %v3699 = vsel %vm163, %v3494, 0.0
    %3700 = vadd.xlane.f32.xlu0 %v3699
    %v3701 = vpop.xlane.xlu0 %3700
    %v3702 = vsel %vm163, %v3496, 0.0
    %3703 = vadd.xlane.f32.xlu0 %v3702
    %v3704 = vpop.xlane.xlu0 %3703
    %v3705 = vsel %vm163, %v3498, 0.0
    %3706 = vadd.xlane.f32.xlu0 %v3705
    %v3707 = vpop.xlane.xlu0 %3706
    %v3708 = vsel %vm163, %v3500, 0.0
    %3709 = vadd.xlane.f32.xlu0 %v3708
    %v3710 = vpop.xlane.xlu0 %3709
    %v3711 = vsel %vm163, %v3502, 0.0
    %3712 = vadd.xlane.f32.xlu0 %v3711
    %v3713 = vpop.xlane.xlu0 %3712
    %v3714 = vsel %vm163, %v3504, 0.0
    %3715 = vadd.xlane.f32.xlu0 %v3714
    %v3716 = vpop.xlane.xlu0 %3715
    %v3717 = vsel %vm163, %v3506, 0.0
    %3718 = vadd.xlane.f32.xlu0 %v3717
    %v3719 = vpop.xlane.xlu0 %3718
    %v3720 = vsel %vm163, %v3508, 0.0
    %3721 = vadd.xlane.f32.xlu0 %v3720
    %v3722 = vpop.xlane.xlu0 %3721
    %v3723 = vsel %vm163, %v3510, 0.0
    %3724 = vadd.xlane.f32.xlu0 %v3723
    %v3725 = vpop.xlane.xlu0 %3724
    %v3726 = vsel %vm163, %v3512, 0.0
    %3727 = vadd.xlane.f32.xlu0 %v3726
    %v3728 = vpop.xlane.xlu0 %3727
    %v3729 = vsel %vm163, %v3514, 0.0
    %3730 = vadd.xlane.f32.xlu0 %v3729
    %v3731 = vpop.xlane.xlu0 %3730
    %v3732 = vsel %vm163, %v3516, 0.0
    %3733 = vadd.xlane.f32.xlu0 %v3732
    %v3734 = vpop.xlane.xlu0 %3733
    %v3735 = vsel %vm163, %v3518, 0.0
    %3736 = vadd.xlane.f32.xlu0 %v3735
    %v3737 = vpop.xlane.xlu0 %3736
    %v3738 = vsel %vm163, %v3520, 0.0
    %3739 = vadd.xlane.f32.xlu0 %v3738
    %v3740 = vpop.xlane.xlu0 %3739
    %v3741 = vsel %vm163, %v3522, 0.0
    %3742 = vadd.xlane.f32.xlu0 %v3741
    %v3743 = vpop.xlane.xlu0 %3742
    %v3744 = vsel %vm163, %v3524, 0.0
    %3745 = vadd.xlane.f32.xlu0 %v3744
    %v3746 = vpop.xlane.xlu0 %3745
    %v3747 = vsel %vm163, %v3526, 0.0
    %3748 = vadd.xlane.f32.xlu0 %v3747
    %v3749 = vpop.xlane.xlu0 %3748
    %v3750 = vsel %vm163, %v3528, 0.0
    %3751 = vadd.xlane.f32.xlu0 %v3750
    %v3752 = vpop.xlane.xlu0 %3751
    %v3753 = vsel %vm163, %v3530, 0.0
    %3754 = vadd.xlane.f32.xlu0 %v3753
    %v3755 = vpop.xlane.xlu0 %3754
    %v3756 = vsel %vm163, %v3532, 0.0
    %3757 = vadd.xlane.f32.xlu0 %v3756
    %v3758 = vpop.xlane.xlu0 %3757
    %v3759 = vsel %vm163, %v3534, 0.0
    %3760 = vadd.xlane.f32.xlu0 %v3759
    %v3761 = vpop.xlane.xlu0 %3760
    %v3762 = vsel %vm163, %v3536, 0.0
    %3763 = vadd.xlane.f32.xlu0 %v3762
    %v3764 = vpop.xlane.xlu0 %3763
    %v3765 = vsel %vm163, %v3538, 0.0
    %3766 = vadd.xlane.f32.xlu0 %v3765
    %v3767 = vpop.xlane.xlu0 %3766
    %v3768 = vsel %vm163, %v3540, 0.0
    %3769 = vadd.xlane.f32.xlu0 %v3768
    %v3770 = vpop.xlane.xlu0 %3769
    %v3771 = vsel %vm163, %v3542, 0.0
    %3772 = vadd.xlane.f32.xlu0 %v3771
    %v3773 = vpop.xlane.xlu0 %3772
    %v3774 = vsel %vm163, %v3544, 0.0
    %3775 = vadd.xlane.f32.xlu0 %v3774
    %v3776 = vpop.xlane.xlu0 %3775
    %v3777 = vsel %vm163, %v3546, 0.0
    %3778 = vadd.xlane.f32.xlu0 %v3777
    %v3779 = vpop.xlane.xlu0 %3778
    %v3780 = vsel %vm163, %v3548, 0.0
    %3781 = vadd.xlane.f32.xlu0 %v3780
    %v3782 = vpop.xlane.xlu0 %3781
    %v3783 = vsel %vm163, %v3550, 0.0
    %3784 = vadd.xlane.f32.xlu0 %v3783
    %v3785 = vpop.xlane.xlu0 %3784
    %v3786 = vsel %vm163, %v3552, 0.0
    %3787 = vadd.xlane.f32.xlu0 %v3786
    %v3788 = vpop.xlane.xlu0 %3787
    %v3789 = vsel %vm163, %v3554, 0.0
    %3790 = vadd.xlane.f32.xlu0 %v3789
    %v3791 = vpop.xlane.xlu0 %3790
    %v3792 = vsel %vm163, %v3556, 0.0
    %3793 = vadd.xlane.f32.xlu0 %v3792
    %v3794 = vpop.xlane.xlu0 %3793
    %v3795 = vsel %vm163, %v3558, 0.0
    %3796 = vadd.xlane.f32.xlu0 %v3795
    %v3797 = vpop.xlane.xlu0 %3796
    %v3798 = vsel %vm163, %v3560, 0.0
    %3799 = vadd.xlane.f32.xlu0 %v3798
    %v3800 = vpop.xlane.xlu0 %3799
    %v3801 = vsel %vm163, %v3562, 0.0
    %3802 = vadd.xlane.f32.xlu0 %v3801
    %v3803 = vpop.xlane.xlu0 %3802
    %v3804 = vsel %vm163, %v3564, 0.0
    %3805 = vadd.xlane.f32.xlu0 %v3804
    %v3806 = vpop.xlane.xlu0 %3805
    %v3807 = vsel %vm163, %v3566, 0.0
    %3808 = vadd.xlane.f32.xlu0 %v3807
    %v3809 = vpop.xlane.xlu0 %3808
    %v3810 = vsel %vm163, %v3568, 0.0
    %3811 = vadd.xlane.f32.xlu0 %v3810
    %v3812 = vpop.xlane.xlu0 %3811
    %v3813 = vsel %vm163, %v3570, 0.0
    %3814 = vadd.xlane.f32.xlu0 %v3813
    %v3815 = vpop.xlane.xlu0 %3814
    %v3816 = vsel %vm163, %v3572, 0.0
    %3817 = vadd.xlane.f32.xlu0 %v3816
    %v3818 = vpop.xlane.xlu0 %3817
    %v3819 = vsel %vm163, %v3574, 0.0
    %3820 = vadd.xlane.f32.xlu0 %v3819
    %v3821 = vpop.xlane.xlu0 %3820
    %v3822 = vsel %vm163, %v3576, 0.0
    %3823 = vadd.xlane.f32.xlu0 %v3822
    %v3824 = vpop.xlane.xlu0 %3823
    %v3825 = vsel %vm163, %v3578, 0.0
    %3826 = vadd.xlane.f32.xlu0 %v3825
    %v3827 = vpop.xlane.xlu0 %3826
    %v3828 = vsel %vm163, %v3580, 0.0
    %3829 = vadd.xlane.f32.xlu0 %v3828
    %v3830 = vpop.xlane.xlu0 %3829
    %v3831 = vsel %vm163, %v3582, 0.0
    %3832 = vadd.xlane.f32.xlu0 %v3831
    %v3833 = vpop.xlane.xlu0 %3832
    %v3834 = vsel %vm163, %v3584, 0.0
    %3835 = vadd.xlane.f32.xlu0 %v3834
    %v3836 = vpop.xlane.xlu0 %3835
    %v3837 = vsel %vm163, %v3586, 0.0
    %3838 = vadd.xlane.f32.xlu0 %v3837
    %v3839 = vpop.xlane.xlu0 %3838
    %v3840 = vsel %vm163, %v3588, 0.0
    %3841 = vadd.xlane.f32.xlu0 %v3840
    %v3842 = vpop.xlane.xlu0 %3841
    %v3843 = vsel %vm163, %v3590, 0.0
    %3844 = vadd.xlane.f32.xlu0 %v3843
    %v3845 = vpop.xlane.xlu0 %3844
    %v3846 = vsel %vm163, %v3592, 0.0
    %3847 = vadd.xlane.f32.xlu0 %v3846
    %v3848 = vpop.xlane.xlu0 %3847
    %v3849 = vpack.c.bf16 %v3662, %v3659
    %v3850 = vpack.c.bf16 %v3668, %v3665
    %v3851 = vpack.c.bf16 %v3674, %v3671
    %v3852 = vpack.c.bf16 %v3680, %v3677
    %v3853 = vpack.c.bf16 %v3686, %v3683
    %v3854 = vpack.c.bf16 %v3692, %v3689
    %v3855 = vpack.c.bf16 %v3698, %v3695
    %v3856 = vpack.c.bf16 %v3704, %v3701
    %v3857 = vpack.c.bf16 %v3710, %v3707
    %v3858 = vpack.c.bf16 %v3716, %v3713
    %v3859 = vpack.c.bf16 %v3722, %v3719
    %v3860 = vpack.c.bf16 %v3728, %v3725
    %v3861 = vpack.c.bf16 %v3734, %v3731
    %v3862 = vpack.c.bf16 %v3740, %v3737
    %v3863 = vpack.c.bf16 %v3746, %v3743
    %v3864 = vpack.c.bf16 %v3752, %v3749
    %v3865 = vpack.c.bf16 %v3758, %v3755
    %v3866 = vpack.c.bf16 %v3764, %v3761
    %v3867 = vpack.c.bf16 %v3770, %v3767
    %v3868 = vpack.c.bf16 %v3776, %v3773
    %v3869 = vpack.c.bf16 %v3782, %v3779
    %v3870 = vpack.c.bf16 %v3788, %v3785
    %v3871 = vpack.c.bf16 %v3794, %v3791
    %v3872 = vpack.c.bf16 %v3800, %v3797
    %v3873 = vpack.c.bf16 %v3806, %v3803
    %v3874 = vpack.c.bf16 %v3812, %v3809
    %v3875 = vpack.c.bf16 %v3818, %v3815
    %v3876 = vpack.c.bf16 %v3824, %v3821
    %v3877 = vpack.c.bf16 %v3830, %v3827
    %v3878 = vpack.c.bf16 %v3836, %v3833
    %v3879 = vpack.c.bf16 %v3842, %v3839
    %v3880 = vpack.c.bf16 %v3848, %v3845
    %s3881 = scalar_lea.vmem [#allocation6], 1536
    %v3882 = vld [vmem:[%s3881] sm:$0xff]
    %v3883 = vld [vmem:[%s3881 + $0x8] sm:$0xff]
    %v3884 = vld [vmem:[%s3881 + $0x10] sm:$0xff]
    %v3885 = vld [vmem:[%s3881 + $0x18] sm:$0xff]
    %v3886 = vld [vmem:[%s3881 + $0x20] sm:$0xff]
    %v3887 = vld [vmem:[%s3881 + $0x28] sm:$0xff]
    %v3888 = vld [vmem:[%s3881 + $0x30] sm:$0xff]
    %v3889 = vld [vmem:[%s3881 + $0x38] sm:$0xff]
    %v3890 = vld [vmem:[%s3881 + $0x40] sm:$0xff]
    %v3891 = vld [vmem:[%s3881 + $0x48] sm:$0xff]
    %v3892 = vld [vmem:[%s3881 + $0x50] sm:$0xff]
    %v3893 = vld [vmem:[%s3881 + $0x58] sm:$0xff]
    %v3894 = vld [vmem:[%s3881 + $0x60] sm:$0xff]
    %v3895 = vld [vmem:[%s3881 + $0x68] sm:$0xff]
    %v3896 = vld [vmem:[%s3881 + $0x70] sm:$0xff]
    %v3897 = vld [vmem:[%s3881 + $0x78] sm:$0xff]
    %v3898 = vld [vmem:[%s3881 + $0x80] sm:$0xff]
    %v3899 = vld [vmem:[%s3881 + $0x88] sm:$0xff]
    %v3900 = vld [vmem:[%s3881 + $0x90] sm:$0xff]
    %v3901 = vld [vmem:[%s3881 + $0x98] sm:$0xff]
    %v3902 = vld [vmem:[%s3881 + $0xa0] sm:$0xff]
    %v3903 = vld [vmem:[%s3881 + $0xa8] sm:$0xff]
    %v3904 = vld [vmem:[%s3881 + $0xb0] sm:$0xff]
    %v3905 = vld [vmem:[%s3881 + $0xb8] sm:$0xff]
    %v3906 = vld [vmem:[%s3881 + $0xc0] sm:$0xff]
    %v3907 = vld [vmem:[%s3881 + $0xc8] sm:$0xff]
    %v3908 = vld [vmem:[%s3881 + $0xd0] sm:$0xff]
    %v3909 = vld [vmem:[%s3881 + $0xd8] sm:$0xff]
    %v3910 = vld [vmem:[%s3881 + $0xe0] sm:$0xff]
    %v3911 = vld [vmem:[%s3881 + $0xe8] sm:$0xff]
    %v3912 = vld [vmem:[%s3881 + $0xf0] sm:$0xff]
    %v3913 = vld [vmem:[%s3881 + $0xf8] sm:$0xff]
    %v3914 = vld [vmem:[%s3881 + $0x100] sm:$0xff]
    %v3915 = vld [vmem:[%s3881 + $0x108] sm:$0xff]
    %v3916 = vld [vmem:[%s3881 + $0x110] sm:$0xff]
    %v3917 = vld [vmem:[%s3881 + $0x118] sm:$0xff]
    %v3918 = vld [vmem:[%s3881 + $0x120] sm:$0xff]
    %v3919 = vld [vmem:[%s3881 + $0x128] sm:$0xff]
    %v3920 = vld [vmem:[%s3881 + $0x130] sm:$0xff]
    %v3921 = vld [vmem:[%s3881 + $0x138] sm:$0xff]
    %v3922 = vld [vmem:[%s3881 + $0x140] sm:$0xff]
    %v3923 = vld [vmem:[%s3881 + $0x148] sm:$0xff]
    %v3924 = vld [vmem:[%s3881 + $0x150] sm:$0xff]
    %v3925 = vld [vmem:[%s3881 + $0x158] sm:$0xff]
    %v3926 = vld [vmem:[%s3881 + $0x160] sm:$0xff]
    %v3927 = vld [vmem:[%s3881 + $0x168] sm:$0xff]
    %v3928 = vld [vmem:[%s3881 + $0x170] sm:$0xff]
    %v3929 = vld [vmem:[%s3881 + $0x178] sm:$0xff]
    %v3930 = vld [vmem:[%s3881 + $0x180] sm:$0xff]
    %v3931 = vld [vmem:[%s3881 + $0x188] sm:$0xff]
    %v3932 = vld [vmem:[%s3881 + $0x190] sm:$0xff]
    %v3933 = vld [vmem:[%s3881 + $0x198] sm:$0xff]
    %v3934 = vld [vmem:[%s3881 + $0x1a0] sm:$0xff]
    %v3935 = vld [vmem:[%s3881 + $0x1a8] sm:$0xff]
    %v3936 = vld [vmem:[%s3881 + $0x1b0] sm:$0xff]
    %v3937 = vld [vmem:[%s3881 + $0x1b8] sm:$0xff]
    %v3938 = vld [vmem:[%s3881 + $0x1c0] sm:$0xff]
    %v3939 = vld [vmem:[%s3881 + $0x1c8] sm:$0xff]
    %v3940 = vld [vmem:[%s3881 + $0x1d0] sm:$0xff]
    %v3941 = vld [vmem:[%s3881 + $0x1d8] sm:$0xff]
    %v3942 = vld [vmem:[%s3881 + $0x1e0] sm:$0xff]
    %v3943 = vld [vmem:[%s3881 + $0x1e8] sm:$0xff]
    %v3944 = vld [vmem:[%s3881 + $0x1f0] sm:$0xff]
    %v3945 = vld [vmem:[%s3881 + $0x1f8] sm:$0xff]
    %v3978 = vunpack.c.l.b16 %v3849
    %v3979 = vunpack.c.h.b16 %v3849
    %v3980 = vunpack.c.l.b16 %v3850
    %v3981 = vunpack.c.h.b16 %v3850
    %v3982 = vunpack.c.l.b16 %v3851
    %v3983 = vunpack.c.h.b16 %v3851
    %v3984 = vunpack.c.l.b16 %v3852
    %v3985 = vunpack.c.h.b16 %v3852
    %v3986 = vunpack.c.l.b16 %v3853
    %v3987 = vunpack.c.h.b16 %v3853
    %v3988 = vunpack.c.l.b16 %v3854
    %v3989 = vunpack.c.h.b16 %v3854
    %v3990 = vunpack.c.l.b16 %v3855
    %v3991 = vunpack.c.h.b16 %v3855
    %v3992 = vunpack.c.l.b16 %v3856
    %v3993 = vunpack.c.h.b16 %v3856
    %v3994 = vunpack.c.l.b16 %v3857
    %v3995 = vunpack.c.h.b16 %v3857
    %v3996 = vunpack.c.l.b16 %v3858
    %v3997 = vunpack.c.h.b16 %v3858
    %v3998 = vunpack.c.l.b16 %v3859
    %v3999 = vunpack.c.h.b16 %v3859
    %v4000 = vunpack.c.l.b16 %v3860
    %v4001 = vunpack.c.h.b16 %v3860
    %v4002 = vunpack.c.l.b16 %v3861
    %v4003 = vunpack.c.h.b16 %v3861
    %v4004 = vunpack.c.l.b16 %v3862
    %v4005 = vunpack.c.h.b16 %v3862
    %v4006 = vunpack.c.l.b16 %v3863
    %v4007 = vunpack.c.h.b16 %v3863
    %v4008 = vunpack.c.l.b16 %v3864
    %v4009 = vunpack.c.h.b16 %v3864
    %v4010 = vunpack.c.l.b16 %v3865
    %v4011 = vunpack.c.h.b16 %v3865
    %v4012 = vunpack.c.l.b16 %v3866
    %v4013 = vunpack.c.h.b16 %v3866
    %v4014 = vunpack.c.l.b16 %v3867
    %v4015 = vunpack.c.h.b16 %v3867
    %v4016 = vunpack.c.l.b16 %v3868
    %v4017 = vunpack.c.h.b16 %v3868
    %v4018 = vunpack.c.l.b16 %v3869
    %v4019 = vunpack.c.h.b16 %v3869
    %v4020 = vunpack.c.l.b16 %v3870
    %v4021 = vunpack.c.h.b16 %v3870
    %v4022 = vunpack.c.l.b16 %v3871
    %v4023 = vunpack.c.h.b16 %v3871
    %v4024 = vunpack.c.l.b16 %v3872
    %v4025 = vunpack.c.h.b16 %v3872
    %v4026 = vunpack.c.l.b16 %v3873
    %v4027 = vunpack.c.h.b16 %v3873
    %v4028 = vunpack.c.l.b16 %v3874
    %v4029 = vunpack.c.h.b16 %v3874
    %v4030 = vunpack.c.l.b16 %v3875
    %v4031 = vunpack.c.h.b16 %v3875
    %v4032 = vunpack.c.l.b16 %v3876
    %v4033 = vunpack.c.h.b16 %v3876
    %v4034 = vunpack.c.l.b16 %v3877
    %v4035 = vunpack.c.h.b16 %v3877
    %v4036 = vunpack.c.l.b16 %v3878
    %v4037 = vunpack.c.h.b16 %v3878
    %v4038 = vunpack.c.l.b16 %v3879
    %v4039 = vunpack.c.h.b16 %v3879
    %v4040 = vunpack.c.l.b16 %v3880
    %v4041 = vunpack.c.h.b16 %v3880
    %v4042 = vperm.slane %v3978, %v1094
    %v4043 = vperm.slane %v3979, %v1096
    %v4044 = vsel %vm1098, %v4043, %v4042
    %v4045 = vperm.slane %v3980, %v1100
    %v4046 = vsel %vm1102, %v4045, %v4044
    %v4047 = vperm.slane %v3981, %v1104
    %v4048 = vsel %vm1106, %v4047, %v4046
    %v4049 = vperm.slane %v3982, %v1108
    %v4050 = vsel %vm1110, %v4049, %v4048
    %v4051 = vperm.slane %v3983, %v1112
    %v4052 = vsel %vm1114, %v4051, %v4050
    %v4053 = vperm.slane %v3984, %v1116
    %v4054 = vsel %vm1118, %v4053, %v4052
    %v4055 = vperm.slane %v3985, %v1120
    %v4056 = vsel %vm1122, %v4055, %v4054
    %v4057 = vperm.slane %v3986, %v1124
    %v4058 = vsel %vm1126, %v4057, %v4056
    %v4059 = vperm.slane %v3987, %v1128
    %v4060 = vsel %vm1130, %v4059, %v4058
    %v4061 = vperm.slane %v3988, %v1132
    %v4062 = vsel %vm1134, %v4061, %v4060
    %v4063 = vperm.slane %v3989, %v1136
    %v4064 = vsel %vm1138, %v4063, %v4062
    %v4065 = vperm.slane %v3990, %v1140
    %v4066 = vsel %vm1142, %v4065, %v4064
    %v4067 = vperm.slane %v3991, %v1144
    %v4068 = vsel %vm1146, %v4067, %v4066
    %v4069 = vperm.slane %v3992, %v1148
    %v4070 = vsel %vm1150, %v4069, %v4068
    %v4071 = vperm.slane %v3993, %v1152
    %v4072 = vsel %vm1154, %v4071, %v4070
    %v4073 = vperm.slane %v3994, %v1094
    %v4074 = vperm.slane %v3995, %v1096
    %v4075 = vsel %vm1098, %v4074, %v4073
    %v4076 = vperm.slane %v3996, %v1100
    %v4077 = vsel %vm1102, %v4076, %v4075
    %v4078 = vperm.slane %v3997, %v1104
    %v4079 = vsel %vm1106, %v4078, %v4077
    %v4080 = vperm.slane %v3998, %v1108
    %v4081 = vsel %vm1110, %v4080, %v4079
    %v4082 = vperm.slane %v3999, %v1112
    %v4083 = vsel %vm1114, %v4082, %v4081
    %v4084 = vperm.slane %v4000, %v1116
    %v4085 = vsel %vm1118, %v4084, %v4083
    %v4086 = vperm.slane %v4001, %v1120
    %v4087 = vsel %vm1122, %v4086, %v4085
    %v4088 = vperm.slane %v4002, %v1124
    %v4089 = vsel %vm1126, %v4088, %v4087
    %v4090 = vperm.slane %v4003, %v1128
    %v4091 = vsel %vm1130, %v4090, %v4089
    %v4092 = vperm.slane %v4004, %v1132
    %v4093 = vsel %vm1134, %v4092, %v4091
    %v4094 = vperm.slane %v4005, %v1136
    %v4095 = vsel %vm1138, %v4094, %v4093
    %v4096 = vperm.slane %v4006, %v1140
    %v4097 = vsel %vm1142, %v4096, %v4095
    %v4098 = vperm.slane %v4007, %v1144
    %v4099 = vsel %vm1146, %v4098, %v4097
    %v4100 = vperm.slane %v4008, %v1148
    %v4101 = vsel %vm1150, %v4100, %v4099
    %v4102 = vperm.slane %v4009, %v1152
    %v4103 = vsel %vm1154, %v4102, %v4101
    %v4104 = vperm.slane %v4010, %v1094
    %v4105 = vperm.slane %v4011, %v1096
    %v4106 = vsel %vm1098, %v4105, %v4104
    %v4107 = vperm.slane %v4012, %v1100
    %v4108 = vsel %vm1102, %v4107, %v4106
    %v4109 = vperm.slane %v4013, %v1104
    %v4110 = vsel %vm1106, %v4109, %v4108
    %v4111 = vperm.slane %v4014, %v1108
    %v4112 = vsel %vm1110, %v4111, %v4110
    %v4113 = vperm.slane %v4015, %v1112
    %v4114 = vsel %vm1114, %v4113, %v4112
    %v4115 = vperm.slane %v4016, %v1116
    %v4116 = vsel %vm1118, %v4115, %v4114
    %v4117 = vperm.slane %v4017, %v1120
    %v4118 = vsel %vm1122, %v4117, %v4116
    %v4119 = vperm.slane %v4018, %v1124
    %v4120 = vsel %vm1126, %v4119, %v4118
    %v4121 = vperm.slane %v4019, %v1128
    %v4122 = vsel %vm1130, %v4121, %v4120
    %v4123 = vperm.slane %v4020, %v1132
    %v4124 = vsel %vm1134, %v4123, %v4122
    %v4125 = vperm.slane %v4021, %v1136
    %v4126 = vsel %vm1138, %v4125, %v4124
    %v4127 = vperm.slane %v4022, %v1140
    %v4128 = vsel %vm1142, %v4127, %v4126
    %v4129 = vperm.slane %v4023, %v1144
    %v4130 = vsel %vm1146, %v4129, %v4128
    %v4131 = vperm.slane %v4024, %v1148
    %v4132 = vsel %vm1150, %v4131, %v4130
    %v4133 = vperm.slane %v4025, %v1152
    %v4134 = vsel %vm1154, %v4133, %v4132
    %v4135 = vperm.slane %v4026, %v1094
    %v4136 = vperm.slane %v4027, %v1096
    %v4137 = vsel %vm1098, %v4136, %v4135
    %v4138 = vperm.slane %v4028, %v1100
    %v4139 = vsel %vm1102, %v4138, %v4137
    %v4140 = vperm.slane %v4029, %v1104
    %v4141 = vsel %vm1106, %v4140, %v4139
    %v4142 = vperm.slane %v4030, %v1108
    %v4143 = vsel %vm1110, %v4142, %v4141
    %v4144 = vperm.slane %v4031, %v1112
    %v4145 = vsel %vm1114, %v4144, %v4143
    %v4146 = vperm.slane %v4032, %v1116
    %v4147 = vsel %vm1118, %v4146, %v4145
    %v4148 = vperm.slane %v4033, %v1120
    %v4149 = vsel %vm1122, %v4148, %v4147
    %v4150 = vperm.slane %v4034, %v1124
    %v4151 = vsel %vm1126, %v4150, %v4149
    %v4152 = vperm.slane %v4035, %v1128
    %v4153 = vsel %vm1130, %v4152, %v4151
    %v4154 = vperm.slane %v4036, %v1132
    %v4155 = vsel %vm1134, %v4154, %v4153
    %v4156 = vperm.slane %v4037, %v1136
    %v4157 = vsel %vm1138, %v4156, %v4155
    %v4158 = vperm.slane %v4038, %v1140
    %v4159 = vsel %vm1142, %v4158, %v4157
    %v4160 = vperm.slane %v4039, %v1144
    %v4161 = vsel %vm1146, %v4160, %v4159
    %v4162 = vperm.slane %v4040, %v1148
    %v4163 = vsel %vm1150, %v4162, %v4161
    %v4164 = vperm.slane %v4041, %v1152
    %v4165 = vsel %vm1154, %v4164, %v4163
    %v4166 = vsel %vm1249, %v4134, %v4072
    %v4167 = vsel %vm1249, %v4165, %v4103
    %v4168 = vpack.c.b16 %v4166, %v4166
    %v4169 = vpack.c.b16 %v4167, %v4167
    %v4236 = vunpack.c.l.b16 %v3882
    %v4237 = vunpack.c.h.b16 %v3882
    %v4238 = vunpack.c.l.b16 %v3883
    %v4239 = vunpack.c.h.b16 %v3883
    %v4240 = vunpack.c.l.b16 %v3884
    %v4241 = vunpack.c.h.b16 %v3884
    %v4242 = vunpack.c.l.b16 %v3885
    %v4243 = vunpack.c.h.b16 %v3885
    %v4244 = vunpack.c.l.b16 %v3886
    %v4245 = vunpack.c.h.b16 %v3886
    %v4246 = vunpack.c.l.b16 %v3887
    %v4247 = vunpack.c.h.b16 %v3887
    %v4248 = vunpack.c.l.b16 %v3888
    %v4249 = vunpack.c.h.b16 %v3888
    %v4250 = vunpack.c.l.b16 %v3889
    %v4251 = vunpack.c.h.b16 %v3889
    %v4252 = vunpack.c.l.b16 %v3890
    %v4253 = vunpack.c.h.b16 %v3890
    %v4254 = vunpack.c.l.b16 %v3891
    %v4255 = vunpack.c.h.b16 %v3891
    %v4256 = vunpack.c.l.b16 %v3892
    %v4257 = vunpack.c.h.b16 %v3892
    %v4258 = vunpack.c.l.b16 %v3893
    %v4259 = vunpack.c.h.b16 %v3893
    %v4260 = vunpack.c.l.b16 %v3894
    %v4261 = vunpack.c.h.b16 %v3894
    %v4262 = vunpack.c.l.b16 %v3895
    %v4263 = vunpack.c.h.b16 %v3895
    %v4264 = vunpack.c.l.b16 %v3896
    %v4265 = vunpack.c.h.b16 %v3896
    %v4266 = vunpack.c.l.b16 %v3897
    %v4267 = vunpack.c.h.b16 %v3897
    %v4268 = vunpack.c.l.b16 %v3898
    %v4269 = vunpack.c.h.b16 %v3898
    %v4270 = vunpack.c.l.b16 %v3899
    %v4271 = vunpack.c.h.b16 %v3899
    %v4272 = vunpack.c.l.b16 %v3900
    %v4273 = vunpack.c.h.b16 %v3900
    %v4274 = vunpack.c.l.b16 %v3901
    %v4275 = vunpack.c.h.b16 %v3901
    %v4276 = vunpack.c.l.b16 %v3902
    %v4277 = vunpack.c.h.b16 %v3902
    %v4278 = vunpack.c.l.b16 %v3903
    %v4279 = vunpack.c.h.b16 %v3903
    %v4280 = vunpack.c.l.b16 %v3904
    %v4281 = vunpack.c.h.b16 %v3904
    %v4282 = vunpack.c.l.b16 %v3905
    %v4283 = vunpack.c.h.b16 %v3905
    %v4284 = vunpack.c.l.b16 %v3906
    %v4285 = vunpack.c.h.b16 %v3906
    %v4286 = vunpack.c.l.b16 %v3907
    %v4287 = vunpack.c.h.b16 %v3907
    %v4288 = vunpack.c.l.b16 %v3908
    %v4289 = vunpack.c.h.b16 %v3908
    %v4290 = vunpack.c.l.b16 %v3909
    %v4291 = vunpack.c.h.b16 %v3909
    %v4292 = vunpack.c.l.b16 %v3910
    %v4293 = vunpack.c.h.b16 %v3910
    %v4294 = vunpack.c.l.b16 %v3911
    %v4295 = vunpack.c.h.b16 %v3911
    %v4296 = vunpack.c.l.b16 %v3912
    %v4297 = vunpack.c.h.b16 %v3912
    %v4298 = vunpack.c.l.b16 %v3913
    %v4299 = vunpack.c.h.b16 %v3913
    %v4300 = vunpack.c.l.b16 %v3914
    %v4301 = vunpack.c.h.b16 %v3914
    %v4302 = vunpack.c.l.b16 %v3915
    %v4303 = vunpack.c.h.b16 %v3915
    %v4304 = vunpack.c.l.b16 %v3916
    %v4305 = vunpack.c.h.b16 %v3916
    %v4306 = vunpack.c.l.b16 %v3917
    %v4307 = vunpack.c.h.b16 %v3917
    %v4308 = vunpack.c.l.b16 %v3918
    %v4309 = vunpack.c.h.b16 %v3918
    %v4310 = vunpack.c.l.b16 %v3919
    %v4311 = vunpack.c.h.b16 %v3919
    %v4312 = vunpack.c.l.b16 %v3920
    %v4313 = vunpack.c.h.b16 %v3920
    %v4314 = vunpack.c.l.b16 %v3921
    %v4315 = vunpack.c.h.b16 %v3921
    %v4316 = vunpack.c.l.b16 %v3922
    %v4317 = vunpack.c.h.b16 %v3922
    %v4318 = vunpack.c.l.b16 %v3923
    %v4319 = vunpack.c.h.b16 %v3923
    %v4320 = vunpack.c.l.b16 %v3924
    %v4321 = vunpack.c.h.b16 %v3924
    %v4322 = vunpack.c.l.b16 %v3925
    %v4323 = vunpack.c.h.b16 %v3925
    %v4324 = vunpack.c.l.b16 %v3926
    %v4325 = vunpack.c.h.b16 %v3926
    %v4326 = vunpack.c.l.b16 %v3927
    %v4327 = vunpack.c.h.b16 %v3927
    %v4328 = vunpack.c.l.b16 %v3928
    %v4329 = vunpack.c.h.b16 %v3928
    %v4330 = vunpack.c.l.b16 %v3929
    %v4331 = vunpack.c.h.b16 %v3929
    %v4332 = vunpack.c.l.b16 %v3930
    %v4333 = vunpack.c.h.b16 %v3930
    %v4334 = vunpack.c.l.b16 %v3931
    %v4335 = vunpack.c.h.b16 %v3931
    %v4336 = vunpack.c.l.b16 %v3932
    %v4337 = vunpack.c.h.b16 %v3932
    %v4338 = vunpack.c.l.b16 %v3933
    %v4339 = vunpack.c.h.b16 %v3933
    %v4340 = vunpack.c.l.b16 %v3934
    %v4341 = vunpack.c.h.b16 %v3934
    %v4342 = vunpack.c.l.b16 %v3935
    %v4343 = vunpack.c.h.b16 %v3935
    %v4344 = vunpack.c.l.b16 %v3936
    %v4345 = vunpack.c.h.b16 %v3936
    %v4346 = vunpack.c.l.b16 %v3937
    %v4347 = vunpack.c.h.b16 %v3937
    %v4348 = vunpack.c.l.b16 %v3938
    %v4349 = vunpack.c.h.b16 %v3938
    %v4350 = vunpack.c.l.b16 %v3939
    %v4351 = vunpack.c.h.b16 %v3939
    %v4352 = vunpack.c.l.b16 %v3940
    %v4353 = vunpack.c.h.b16 %v3940
    %v4354 = vunpack.c.l.b16 %v3941
    %v4355 = vunpack.c.h.b16 %v3941
    %v4356 = vunpack.c.l.b16 %v3942
    %v4357 = vunpack.c.h.b16 %v3942
    %v4358 = vunpack.c.l.b16 %v3943
    %v4359 = vunpack.c.h.b16 %v3943
    %v4360 = vunpack.c.l.b16 %v3944
    %v4361 = vunpack.c.h.b16 %v3944
    %v4362 = vunpack.c.l.b16 %v3945
    %v4363 = vunpack.c.h.b16 %v3945
    %v4364 = vpack.c.b16 %v4240, %v4236
    %v4365 = vpack.c.b16 %v4241, %v4237
    %v4366 = vpack.c.b16 %v4242, %v4238
    %v4367 = vpack.c.b16 %v4243, %v4239
    %v4368 = vpack.c.b16 %v4248, %v4244
    %v4369 = vpack.c.b16 %v4249, %v4245
    %v4370 = vpack.c.b16 %v4250, %v4246
    %v4371 = vpack.c.b16 %v4251, %v4247
    %v4372 = vpack.c.b16 %v4256, %v4252
    %v4373 = vpack.c.b16 %v4257, %v4253
    %v4374 = vpack.c.b16 %v4258, %v4254
    %v4375 = vpack.c.b16 %v4259, %v4255
    %v4376 = vpack.c.b16 %v4264, %v4260
    %v4377 = vpack.c.b16 %v4265, %v4261
    %v4378 = vpack.c.b16 %v4266, %v4262
    %v4379 = vpack.c.b16 %v4267, %v4263
    %v4380 = vpack.c.b16 %v4272, %v4268
    %v4381 = vpack.c.b16 %v4273, %v4269
    %v4382 = vpack.c.b16 %v4274, %v4270
    %v4383 = vpack.c.b16 %v4275, %v4271
    %v4384 = vpack.c.b16 %v4280, %v4276
    %v4385 = vpack.c.b16 %v4281, %v4277
    %v4386 = vpack.c.b16 %v4282, %v4278
    %v4387 = vpack.c.b16 %v4283, %v4279
    %v4388 = vpack.c.b16 %v4288, %v4284
    %v4389 = vpack.c.b16 %v4289, %v4285
    %v4390 = vpack.c.b16 %v4290, %v4286
    %v4391 = vpack.c.b16 %v4291, %v4287
    %v4392 = vpack.c.b16 %v4296, %v4292
    %v4393 = vpack.c.b16 %v4297, %v4293
    %v4394 = vpack.c.b16 %v4298, %v4294
    %v4395 = vpack.c.b16 %v4299, %v4295
    %v4396 = vpack.c.b16 %v4304, %v4300
    %v4397 = vpack.c.b16 %v4305, %v4301
    %v4398 = vpack.c.b16 %v4306, %v4302
    %v4399 = vpack.c.b16 %v4307, %v4303
    %v4400 = vpack.c.b16 %v4312, %v4308
    %v4401 = vpack.c.b16 %v4313, %v4309
    %v4402 = vpack.c.b16 %v4314, %v4310
    %v4403 = vpack.c.b16 %v4315, %v4311
    %v4404 = vpack.c.b16 %v4320, %v4316
    %v4405 = vpack.c.b16 %v4321, %v4317
    %v4406 = vpack.c.b16 %v4322, %v4318
    %v4407 = vpack.c.b16 %v4323, %v4319
    %v4408 = vpack.c.b16 %v4328, %v4324
    %v4409 = vpack.c.b16 %v4329, %v4325
    %v4410 = vpack.c.b16 %v4330, %v4326
    %v4411 = vpack.c.b16 %v4331, %v4327
    %v4412 = vpack.c.b16 %v4336, %v4332
    %v4413 = vpack.c.b16 %v4337, %v4333
    %v4414 = vpack.c.b16 %v4338, %v4334
    %v4415 = vpack.c.b16 %v4339, %v4335
    %v4416 = vpack.c.b16 %v4344, %v4340
    %v4417 = vpack.c.b16 %v4345, %v4341
    %v4418 = vpack.c.b16 %v4346, %v4342
    %v4419 = vpack.c.b16 %v4347, %v4343
    %v4420 = vpack.c.b16 %v4352, %v4348
    %v4421 = vpack.c.b16 %v4353, %v4349
    %v4422 = vpack.c.b16 %v4354, %v4350
    %v4423 = vpack.c.b16 %v4355, %v4351
    %v4424 = vpack.c.b16 %v4360, %v4356
    %v4425 = vpack.c.b16 %v4361, %v4357
    %v4426 = vpack.c.b16 %v4362, %v4358
    %v4427 = vpack.c.b16 %v4363, %v4359
    %4492 = vmatpush.bf16.msra.mxu0 %v4392
    %4493 = vmatpush.bf16.msra.mxu0 %v4388
    %4494 = vmatpush.bf16.msra.mxu0 %v4384
    %4495 = vmatpush.bf16.msra.mxu0 %v4380
    %4496 = vmatpush.bf16.msra.mxu0 %v4376
    %4497 = vmatpush.bf16.msra.mxu0 %v4372
    %4498 = vmatpush.bf16.msra.mxu0 %v4368
    %4499 = vmatpush.bf16.msra.mxu0 %v4364
    %4500 = vmatmul.bf16.gmra.mxu0 %v4168
    %v4501 = vpop.f32.mrf.mxu0
    %v4502 = vadd.f32 0.0, %v4501
    %v4503 = vpop.f32.mrf.mxu0
    %4504 = vdwg.mxu0
    %4505 = vmatpush.bf16.msra.mxu0 %v4424
    %4506 = vmatpush.bf16.msra.mxu0 %v4420
    %4507 = vmatpush.bf16.msra.mxu0 %v4416
    %4508 = vmatpush.bf16.msra.mxu0 %v4412
    %4509 = vmatpush.bf16.msra.mxu0 %v4408
    %4510 = vmatpush.bf16.msra.mxu0 %v4404
    %4511 = vmatpush.bf16.msra.mxu0 %v4400
    %4512 = vmatpush.bf16.msra.mxu0 %v4396
    %4513 = vmatmul.bf16.gmra.mxu0 %v4169
    %v4514 = vpop.f32.mrf.mxu0
    %v4515 = vadd.f32 %v4502, %v4514
    %v4516 = vpop.f32.mrf.mxu0
    %4517 = vdwg.mxu0
    %4518 = vmatpush.bf16.msra.mxu0 %v4393
    %4519 = vmatpush.bf16.msra.mxu0 %v4389
    %4520 = vmatpush.bf16.msra.mxu0 %v4385
    %4521 = vmatpush.bf16.msra.mxu0 %v4381
    %4522 = vmatpush.bf16.msra.mxu0 %v4377
    %4523 = vmatpush.bf16.msra.mxu0 %v4373
    %4524 = vmatpush.bf16.msra.mxu0 %v4369
    %4525 = vmatpush.bf16.msra.mxu0 %v4365
    %4526 = vmatmul.bf16.gmra.mxu0 %v4168
    %v4527 = vpop.f32.mrf.mxu0
    %v4528 = vadd.f32 0.0, %v4527
    %v4529 = vpop.f32.mrf.mxu0
    %4530 = vdwg.mxu0
    %4531 = vmatpush.bf16.msra.mxu0 %v4425
    %4532 = vmatpush.bf16.msra.mxu0 %v4421
    %4533 = vmatpush.bf16.msra.mxu0 %v4417
    %4534 = vmatpush.bf16.msra.mxu0 %v4413
    %4535 = vmatpush.bf16.msra.mxu0 %v4409
    %4536 = vmatpush.bf16.msra.mxu0 %v4405
    %4537 = vmatpush.bf16.msra.mxu0 %v4401
    %4538 = vmatpush.bf16.msra.mxu0 %v4397
    %4539 = vmatmul.bf16.gmra.mxu0 %v4169
    %v4540 = vpop.f32.mrf.mxu0
    %v4541 = vadd.f32 %v4528, %v4540
    %v4542 = vpop.f32.mrf.mxu0
    %4543 = vdwg.mxu0
    %4544 = vmatpush.bf16.msra.mxu0 %v4394
    %4545 = vmatpush.bf16.msra.mxu0 %v4390
    %4546 = vmatpush.bf16.msra.mxu0 %v4386
    %4547 = vmatpush.bf16.msra.mxu0 %v4382
    %4548 = vmatpush.bf16.msra.mxu0 %v4378
    %4549 = vmatpush.bf16.msra.mxu0 %v4374
    %4550 = vmatpush.bf16.msra.mxu0 %v4370
    %4551 = vmatpush.bf16.msra.mxu0 %v4366
    %4552 = vmatmul.bf16.gmra.mxu0 %v4168
    %v4553 = vpop.f32.mrf.mxu0
    %v4554 = vadd.f32 0.0, %v4553
    %v4555 = vpop.f32.mrf.mxu0
    %4556 = vdwg.mxu0
    %4557 = vmatpush.bf16.msra.mxu0 %v4426
    %4558 = vmatpush.bf16.msra.mxu0 %v4422
    %4559 = vmatpush.bf16.msra.mxu0 %v4418
    %4560 = vmatpush.bf16.msra.mxu0 %v4414
    %4561 = vmatpush.bf16.msra.mxu0 %v4410
    %4562 = vmatpush.bf16.msra.mxu0 %v4406
    %4563 = vmatpush.bf16.msra.mxu0 %v4402
    %4564 = vmatpush.bf16.msra.mxu0 %v4398
    %4565 = vmatmul.bf16.gmra.mxu0 %v4169
    %v4566 = vpop.f32.mrf.mxu0
    %v4567 = vadd.f32 %v4554, %v4566
    %v4568 = vpop.f32.mrf.mxu0
    %4569 = vdwg.mxu0
    %4570 = vmatpush.bf16.msra.mxu0 %v4395
    %4571 = vmatpush.bf16.msra.mxu0 %v4391
    %4572 = vmatpush.bf16.msra.mxu0 %v4387
    %4573 = vmatpush.bf16.msra.mxu0 %v4383
    %4574 = vmatpush.bf16.msra.mxu0 %v4379
    %4575 = vmatpush.bf16.msra.mxu0 %v4375
    %4576 = vmatpush.bf16.msra.mxu0 %v4371
    %4577 = vmatpush.bf16.msra.mxu0 %v4367
    %4578 = vmatmul.bf16.gmra.mxu0 %v4168
    %v4579 = vpop.f32.mrf.mxu0
    %v4580 = vadd.f32 0.0, %v4579
    %v4581 = vpop.f32.mrf.mxu0
    %4582 = vdwg.mxu0
    %4583 = vmatpush.bf16.msra.mxu0 %v4427
    %4584 = vmatpush.bf16.msra.mxu0 %v4423
    %4585 = vmatpush.bf16.msra.mxu0 %v4419
    %4586 = vmatpush.bf16.msra.mxu0 %v4415
    %4587 = vmatpush.bf16.msra.mxu0 %v4411
    %4588 = vmatpush.bf16.msra.mxu0 %v4407
    %4589 = vmatpush.bf16.msra.mxu0 %v4403
    %4590 = vmatpush.bf16.msra.mxu0 %v4399
    %4591 = vmatmul.bf16.gmra.mxu0 %v4169
    %v4592 = vpop.f32.mrf.mxu0
    %v4593 = vadd.f32 %v4580, %v4592
    %v4594 = vpop.f32.mrf.mxu0
    %4595 = vdwg.mxu0
    %v4596 = vadd.f32 %v3461, %v4515
    %v4597 = vadd.f32 %v3462, %v4541
    %v4598 = vadd.f32 %v3463, %v4567
    %v4599 = vadd.f32 %v3464, %v4593
    %4600 = vrot.lane.b32.xlu0 %v99, 64
    %v4601 = vpop.permute.xlu0 %4600
    %4602 = vrot.lane.b32.xlu0 %v100, 64
    %v4603 = vpop.permute.xlu0 %4602
    %4604 = vrot.lane.b32.xlu0 %v101, 64
    %v4605 = vpop.permute.xlu0 %4604
    %4606 = vrot.lane.b32.xlu0 %v102, 64
    %v4607 = vpop.permute.xlu0 %4606
    %4608 = vrot.lane.b32.xlu0 %v103, 64
    %v4609 = vpop.permute.xlu0 %4608
    %4610 = vrot.lane.b32.xlu0 %v104, 64
    %v4611 = vpop.permute.xlu0 %4610
    %4612 = vrot.lane.b32.xlu0 %v105, 64
    %v4613 = vpop.permute.xlu0 %4612
    %4614 = vrot.lane.b32.xlu0 %v106, 64
    %v4615 = vpop.permute.xlu0 %4614
    %4616 = vrot.lane.b32.xlu0 %v107, 64
    %v4617 = vpop.permute.xlu0 %4616
    %4618 = vrot.lane.b32.xlu0 %v108, 64
    %v4619 = vpop.permute.xlu0 %4618
    %4620 = vrot.lane.b32.xlu0 %v109, 64
    %v4621 = vpop.permute.xlu0 %4620
    %4622 = vrot.lane.b32.xlu0 %v110, 64
    %v4623 = vpop.permute.xlu0 %4622
    %4624 = vrot.lane.b32.xlu0 %v111, 64
    %v4625 = vpop.permute.xlu0 %4624
    %4626 = vrot.lane.b32.xlu0 %v112, 64
    %v4627 = vpop.permute.xlu0 %4626
    %4628 = vrot.lane.b32.xlu0 %v113, 64
    %v4629 = vpop.permute.xlu0 %4628
    %4630 = vrot.lane.b32.xlu0 %v114, 64
    %v4631 = vpop.permute.xlu0 %4630
    %4632 = vrot.lane.b32.xlu0 %v115, 64
    %v4633 = vpop.permute.xlu0 %4632
    %4634 = vrot.lane.b32.xlu0 %v116, 64
    %v4635 = vpop.permute.xlu0 %4634
    %4636 = vrot.lane.b32.xlu0 %v117, 64
    %v4637 = vpop.permute.xlu0 %4636
    %4638 = vrot.lane.b32.xlu0 %v118, 64
    %v4639 = vpop.permute.xlu0 %4638
    %4640 = vrot.lane.b32.xlu0 %v119, 64
    %v4641 = vpop.permute.xlu0 %4640
    %4642 = vrot.lane.b32.xlu0 %v120, 64
    %v4643 = vpop.permute.xlu0 %4642
    %4644 = vrot.lane.b32.xlu0 %v121, 64
    %v4645 = vpop.permute.xlu0 %4644
    %4646 = vrot.lane.b32.xlu0 %v122, 64
    %v4647 = vpop.permute.xlu0 %4646
    %4648 = vrot.lane.b32.xlu0 %v123, 64
    %v4649 = vpop.permute.xlu0 %4648
    %4650 = vrot.lane.b32.xlu0 %v124, 64
    %v4651 = vpop.permute.xlu0 %4650
    %4652 = vrot.lane.b32.xlu0 %v125, 64
    %v4653 = vpop.permute.xlu0 %4652
    %4654 = vrot.lane.b32.xlu0 %v126, 64
    %v4655 = vpop.permute.xlu0 %4654
    %4656 = vrot.lane.b32.xlu0 %v127, 64
    %v4657 = vpop.permute.xlu0 %4656
    %4658 = vrot.lane.b32.xlu0 %v128, 64
    %v4659 = vpop.permute.xlu0 %4658
    %4660 = vrot.lane.b32.xlu0 %v129, 64
    %v4661 = vpop.permute.xlu0 %4660
    %4662 = vrot.lane.b32.xlu0 %v130, 64
    %v4663 = vpop.permute.xlu0 %4662
    %4664 = vrot.lane.b32.xlu0 %v131, 64
    %v4665 = vpop.permute.xlu0 %4664
    %4666 = vrot.lane.b32.xlu0 %v132, 64
    %v4667 = vpop.permute.xlu0 %4666
    %4668 = vrot.lane.b32.xlu0 %v133, 64
    %v4669 = vpop.permute.xlu0 %4668
    %4670 = vrot.lane.b32.xlu0 %v134, 64
    %v4671 = vpop.permute.xlu0 %4670
    %4672 = vrot.lane.b32.xlu0 %v135, 64
    %v4673 = vpop.permute.xlu0 %4672
    %4674 = vrot.lane.b32.xlu0 %v136, 64
    %v4675 = vpop.permute.xlu0 %4674
    %4676 = vrot.lane.b32.xlu0 %v137, 64
    %v4677 = vpop.permute.xlu0 %4676
    %4678 = vrot.lane.b32.xlu0 %v138, 64
    %v4679 = vpop.permute.xlu0 %4678
    %4680 = vrot.lane.b32.xlu0 %v139, 64
    %v4681 = vpop.permute.xlu0 %4680
    %4682 = vrot.lane.b32.xlu0 %v140, 64
    %v4683 = vpop.permute.xlu0 %4682
    %4684 = vrot.lane.b32.xlu0 %v141, 64
    %v4685 = vpop.permute.xlu0 %4684
    %4686 = vrot.lane.b32.xlu0 %v142, 64
    %v4687 = vpop.permute.xlu0 %4686
    %4688 = vrot.lane.b32.xlu0 %v143, 64
    %v4689 = vpop.permute.xlu0 %4688
    %4690 = vrot.lane.b32.xlu0 %v144, 64
    %v4691 = vpop.permute.xlu0 %4690
    %4692 = vrot.lane.b32.xlu0 %v145, 64
    %v4693 = vpop.permute.xlu0 %4692
    %4694 = vrot.lane.b32.xlu0 %v146, 64
    %v4695 = vpop.permute.xlu0 %4694
    %4696 = vrot.lane.b32.xlu0 %v147, 64
    %v4697 = vpop.permute.xlu0 %4696
    %4698 = vrot.lane.b32.xlu0 %v148, 64
    %v4699 = vpop.permute.xlu0 %4698
    %4700 = vrot.lane.b32.xlu0 %v149, 64
    %v4701 = vpop.permute.xlu0 %4700
    %4702 = vrot.lane.b32.xlu0 %v150, 64
    %v4703 = vpop.permute.xlu0 %4702
    %4704 = vrot.lane.b32.xlu0 %v151, 64
    %v4705 = vpop.permute.xlu0 %4704
    %4706 = vrot.lane.b32.xlu0 %v152, 64
    %v4707 = vpop.permute.xlu0 %4706
    %4708 = vrot.lane.b32.xlu0 %v153, 64
    %v4709 = vpop.permute.xlu0 %4708
    %4710 = vrot.lane.b32.xlu0 %v154, 64
    %v4711 = vpop.permute.xlu0 %4710
    %4712 = vrot.lane.b32.xlu0 %v155, 64
    %v4713 = vpop.permute.xlu0 %4712
    %4714 = vrot.lane.b32.xlu0 %v156, 64
    %v4715 = vpop.permute.xlu0 %4714
    %4716 = vrot.lane.b32.xlu0 %v157, 64
    %v4717 = vpop.permute.xlu0 %4716
    %4718 = vrot.lane.b32.xlu0 %v158, 64
    %v4719 = vpop.permute.xlu0 %4718
    %4720 = vrot.lane.b32.xlu0 %v159, 64
    %v4721 = vpop.permute.xlu0 %4720
    %4722 = vrot.lane.b32.xlu0 %v160, 64
    %v4723 = vpop.permute.xlu0 %4722
    %4724 = vrot.lane.b32.xlu0 %v161, 64
    %v4725 = vpop.permute.xlu0 %4724
    %4726 = vrot.lane.b32.xlu0 %v162, 64
    %v4727 = vpop.permute.xlu0 %4726
    %v4792 = vsel %vm163, %v4601, 0.0
    %4793 = vadd.xlane.f32.xlu0 %v4792
    %v4794 = vpop.xlane.xlu0 %4793
    %v4795 = vsel %vm163, %v4603, 0.0
    %4796 = vadd.xlane.f32.xlu0 %v4795
    %v4797 = vpop.xlane.xlu0 %4796
    %v4798 = vsel %vm163, %v4605, 0.0
    %4799 = vadd.xlane.f32.xlu0 %v4798
    %v4800 = vpop.xlane.xlu0 %4799
    %v4801 = vsel %vm163, %v4607, 0.0
    %4802 = vadd.xlane.f32.xlu0 %v4801
    %v4803 = vpop.xlane.xlu0 %4802
    %v4804 = vsel %vm163, %v4609, 0.0
    %4805 = vadd.xlane.f32.xlu0 %v4804
    %v4806 = vpop.xlane.xlu0 %4805
    %v4807 = vsel %vm163, %v4611, 0.0
    %4808 = vadd.xlane.f32.xlu0 %v4807
    %v4809 = vpop.xlane.xlu0 %4808
    %v4810 = vsel %vm163, %v4613, 0.0
    %4811 = vadd.xlane.f32.xlu0 %v4810
    %v4812 = vpop.xlane.xlu0 %4811
    %v4813 = vsel %vm163, %v4615, 0.0
    %4814 = vadd.xlane.f32.xlu0 %v4813
    %v4815 = vpop.xlane.xlu0 %4814
    %v4816 = vsel %vm163, %v4617, 0.0
    %4817 = vadd.xlane.f32.xlu0 %v4816
    %v4818 = vpop.xlane.xlu0 %4817
    %v4819 = vsel %vm163, %v4619, 0.0
    %4820 = vadd.xlane.f32.xlu0 %v4819
    %v4821 = vpop.xlane.xlu0 %4820
    %v4822 = vsel %vm163, %v4621, 0.0
    %4823 = vadd.xlane.f32.xlu0 %v4822
    %v4824 = vpop.xlane.xlu0 %4823
    %v4825 = vsel %vm163, %v4623, 0.0
    %4826 = vadd.xlane.f32.xlu0 %v4825
    %v4827 = vpop.xlane.xlu0 %4826
    %v4828 = vsel %vm163, %v4625, 0.0
    %4829 = vadd.xlane.f32.xlu0 %v4828
    %v4830 = vpop.xlane.xlu0 %4829
    %v4831 = vsel %vm163, %v4627, 0.0
    %4832 = vadd.xlane.f32.xlu0 %v4831
    %v4833 = vpop.xlane.xlu0 %4832
    %v4834 = vsel %vm163, %v4629, 0.0
    %4835 = vadd.xlane.f32.xlu0 %v4834
    %v4836 = vpop.xlane.xlu0 %4835
    %v4837 = vsel %vm163, %v4631, 0.0
    %4838 = vadd.xlane.f32.xlu0 %v4837
    %v4839 = vpop.xlane.xlu0 %4838
    %v4840 = vsel %vm163, %v4633, 0.0
    %4841 = vadd.xlane.f32.xlu0 %v4840
    %v4842 = vpop.xlane.xlu0 %4841
    %v4843 = vsel %vm163, %v4635, 0.0
    %4844 = vadd.xlane.f32.xlu0 %v4843
    %v4845 = vpop.xlane.xlu0 %4844
    %v4846 = vsel %vm163, %v4637, 0.0
    %4847 = vadd.xlane.f32.xlu0 %v4846
    %v4848 = vpop.xlane.xlu0 %4847
    %v4849 = vsel %vm163, %v4639, 0.0
    %4850 = vadd.xlane.f32.xlu0 %v4849
    %v4851 = vpop.xlane.xlu0 %4850
    %v4852 = vsel %vm163, %v4641, 0.0
    %4853 = vadd.xlane.f32.xlu0 %v4852
    %v4854 = vpop.xlane.xlu0 %4853
    %v4855 = vsel %vm163, %v4643, 0.0
    %4856 = vadd.xlane.f32.xlu0 %v4855
    %v4857 = vpop.xlane.xlu0 %4856
    %v4858 = vsel %vm163, %v4645, 0.0
    %4859 = vadd.xlane.f32.xlu0 %v4858
    %v4860 = vpop.xlane.xlu0 %4859
    %v4861 = vsel %vm163, %v4647, 0.0
    %4862 = vadd.xlane.f32.xlu0 %v4861
    %v4863 = vpop.xlane.xlu0 %4862
    %v4864 = vsel %vm163, %v4649, 0.0
    %4865 = vadd.xlane.f32.xlu0 %v4864
    %v4866 = vpop.xlane.xlu0 %4865
    %v4867 = vsel %vm163, %v4651, 0.0
    %4868 = vadd.xlane.f32.xlu0 %v4867
    %v4869 = vpop.xlane.xlu0 %4868
    %v4870 = vsel %vm163, %v4653, 0.0
    %4871 = vadd.xlane.f32.xlu0 %v4870
    %v4872 = vpop.xlane.xlu0 %4871
    %v4873 = vsel %vm163, %v4655, 0.0
    %4874 = vadd.xlane.f32.xlu0 %v4873
    %v4875 = vpop.xlane.xlu0 %4874
    %v4876 = vsel %vm163, %v4657, 0.0
    %4877 = vadd.xlane.f32.xlu0 %v4876
    %v4878 = vpop.xlane.xlu0 %4877
    %v4879 = vsel %vm163, %v4659, 0.0
    %4880 = vadd.xlane.f32.xlu0 %v4879
    %v4881 = vpop.xlane.xlu0 %4880
    %v4882 = vsel %vm163, %v4661, 0.0
    %4883 = vadd.xlane.f32.xlu0 %v4882
    %v4884 = vpop.xlane.xlu0 %4883
    %v4885 = vsel %vm163, %v4663, 0.0
    %4886 = vadd.xlane.f32.xlu0 %v4885
    %v4887 = vpop.xlane.xlu0 %4886
    %v4888 = vsel %vm163, %v4665, 0.0
    %4889 = vadd.xlane.f32.xlu0 %v4888
    %v4890 = vpop.xlane.xlu0 %4889
    %v4891 = vsel %vm163, %v4667, 0.0
    %4892 = vadd.xlane.f32.xlu0 %v4891
    %v4893 = vpop.xlane.xlu0 %4892
    %v4894 = vsel %vm163, %v4669, 0.0
    %4895 = vadd.xlane.f32.xlu0 %v4894
    %v4896 = vpop.xlane.xlu0 %4895
    %v4897 = vsel %vm163, %v4671, 0.0
    %4898 = vadd.xlane.f32.xlu0 %v4897
    %v4899 = vpop.xlane.xlu0 %4898
    %v4900 = vsel %vm163, %v4673, 0.0
    %4901 = vadd.xlane.f32.xlu0 %v4900
    %v4902 = vpop.xlane.xlu0 %4901
    %v4903 = vsel %vm163, %v4675, 0.0
    %4904 = vadd.xlane.f32.xlu0 %v4903
    %v4905 = vpop.xlane.xlu0 %4904
    %v4906 = vsel %vm163, %v4677, 0.0
    %4907 = vadd.xlane.f32.xlu0 %v4906
    %v4908 = vpop.xlane.xlu0 %4907
    %v4909 = vsel %vm163, %v4679, 0.0
    %4910 = vadd.xlane.f32.xlu0 %v4909
    %v4911 = vpop.xlane.xlu0 %4910
    %v4912 = vsel %vm163, %v4681, 0.0
    %4913 = vadd.xlane.f32.xlu0 %v4912
    %v4914 = vpop.xlane.xlu0 %4913
    %v4915 = vsel %vm163, %v4683, 0.0
    %4916 = vadd.xlane.f32.xlu0 %v4915
    %v4917 = vpop.xlane.xlu0 %4916
    %v4918 = vsel %vm163, %v4685, 0.0
    %4919 = vadd.xlane.f32.xlu0 %v4918
    %v4920 = vpop.xlane.xlu0 %4919
    %v4921 = vsel %vm163, %v4687, 0.0
    %4922 = vadd.xlane.f32.xlu0 %v4921
    %v4923 = vpop.xlane.xlu0 %4922
    %v4924 = vsel %vm163, %v4689, 0.0
    %4925 = vadd.xlane.f32.xlu0 %v4924
    %v4926 = vpop.xlane.xlu0 %4925
    %v4927 = vsel %vm163, %v4691, 0.0
    %4928 = vadd.xlane.f32.xlu0 %v4927
    %v4929 = vpop.xlane.xlu0 %4928
    %v4930 = vsel %vm163, %v4693, 0.0
    %4931 = vadd.xlane.f32.xlu0 %v4930
    %v4932 = vpop.xlane.xlu0 %4931
    %v4933 = vsel %vm163, %v4695, 0.0
    %4934 = vadd.xlane.f32.xlu0 %v4933
    %v4935 = vpop.xlane.xlu0 %4934
    %v4936 = vsel %vm163, %v4697, 0.0
    %4937 = vadd.xlane.f32.xlu0 %v4936
    %v4938 = vpop.xlane.xlu0 %4937
    %v4939 = vsel %vm163, %v4699, 0.0
    %4940 = vadd.xlane.f32.xlu0 %v4939
    %v4941 = vpop.xlane.xlu0 %4940
    %v4942 = vsel %vm163, %v4701, 0.0
    %4943 = vadd.xlane.f32.xlu0 %v4942
    %v4944 = vpop.xlane.xlu0 %4943
    %v4945 = vsel %vm163, %v4703, 0.0
    %4946 = vadd.xlane.f32.xlu0 %v4945
    %v4947 = vpop.xlane.xlu0 %4946
    %v4948 = vsel %vm163, %v4705, 0.0
    %4949 = vadd.xlane.f32.xlu0 %v4948
    %v4950 = vpop.xlane.xlu0 %4949
    %v4951 = vsel %vm163, %v4707, 0.0
    %4952 = vadd.xlane.f32.xlu0 %v4951
    %v4953 = vpop.xlane.xlu0 %4952
    %v4954 = vsel %vm163, %v4709, 0.0
    %4955 = vadd.xlane.f32.xlu0 %v4954
    %v4956 = vpop.xlane.xlu0 %4955
    %v4957 = vsel %vm163, %v4711, 0.0
    %4958 = vadd.xlane.f32.xlu0 %v4957
    %v4959 = vpop.xlane.xlu0 %4958
    %v4960 = vsel %vm163, %v4713, 0.0
    %4961 = vadd.xlane.f32.xlu0 %v4960
    %v4962 = vpop.xlane.xlu0 %4961
    %v4963 = vsel %vm163, %v4715, 0.0
    %4964 = vadd.xlane.f32.xlu0 %v4963
    %v4965 = vpop.xlane.xlu0 %4964
    %v4966 = vsel %vm163, %v4717, 0.0
    %4967 = vadd.xlane.f32.xlu0 %v4966
    %v4968 = vpop.xlane.xlu0 %4967
    %v4969 = vsel %vm163, %v4719, 0.0
    %4970 = vadd.xlane.f32.xlu0 %v4969
    %v4971 = vpop.xlane.xlu0 %4970
    %v4972 = vsel %vm163, %v4721, 0.0
    %4973 = vadd.xlane.f32.xlu0 %v4972
    %v4974 = vpop.xlane.xlu0 %4973
    %v4975 = vsel %vm163, %v4723, 0.0
    %4976 = vadd.xlane.f32.xlu0 %v4975
    %v4977 = vpop.xlane.xlu0 %4976
    %v4978 = vsel %vm163, %v4725, 0.0
    %4979 = vadd.xlane.f32.xlu0 %v4978
    %v4980 = vpop.xlane.xlu0 %4979
    %v4981 = vsel %vm163, %v4727, 0.0
    %4982 = vadd.xlane.f32.xlu0 %v4981
    %v4983 = vpop.xlane.xlu0 %4982
    %v4984 = vpack.c.bf16 %v4797, %v4794
    %v4985 = vpack.c.bf16 %v4803, %v4800
    %v4986 = vpack.c.bf16 %v4809, %v4806
    %v4987 = vpack.c.bf16 %v4815, %v4812
    %v4988 = vpack.c.bf16 %v4821, %v4818
    %v4989 = vpack.c.bf16 %v4827, %v4824
    %v4990 = vpack.c.bf16 %v4833, %v4830
    %v4991 = vpack.c.bf16 %v4839, %v4836
    %v4992 = vpack.c.bf16 %v4845, %v4842
    %v4993 = vpack.c.bf16 %v4851, %v4848
    %v4994 = vpack.c.bf16 %v4857, %v4854
    %v4995 = vpack.c.bf16 %v4863, %v4860
    %v4996 = vpack.c.bf16 %v4869, %v4866
    %v4997 = vpack.c.bf16 %v4875, %v4872
    %v4998 = vpack.c.bf16 %v4881, %v4878
    %v4999 = vpack.c.bf16 %v4887, %v4884
    %v5000 = vpack.c.bf16 %v4893, %v4890
    %v5001 = vpack.c.bf16 %v4899, %v4896
    %v5002 = vpack.c.bf16 %v4905, %v4902
    %v5003 = vpack.c.bf16 %v4911, %v4908
    %v5004 = vpack.c.bf16 %v4917, %v4914
    %v5005 = vpack.c.bf16 %v4923, %v4920
    %v5006 = vpack.c.bf16 %v4929, %v4926
    %v5007 = vpack.c.bf16 %v4935, %v4932
    %v5008 = vpack.c.bf16 %v4941, %v4938
    %v5009 = vpack.c.bf16 %v4947, %v4944
    %v5010 = vpack.c.bf16 %v4953, %v4950
    %v5011 = vpack.c.bf16 %v4959, %v4956
    %v5012 = vpack.c.bf16 %v4965, %v4962
    %v5013 = vpack.c.bf16 %v4971, %v4968
    %v5014 = vpack.c.bf16 %v4977, %v4974
    %v5015 = vpack.c.bf16 %v4983, %v4980
    %s5016 = scalar_lea.vmem [#allocation6], 2048
    %v5017 = vld [vmem:[%s5016] sm:$0xff]
    %v5018 = vld [vmem:[%s5016 + $0x8] sm:$0xff]
    %v5019 = vld [vmem:[%s5016 + $0x10] sm:$0xff]
    %v5020 = vld [vmem:[%s5016 + $0x18] sm:$0xff]
    %v5021 = vld [vmem:[%s5016 + $0x20] sm:$0xff]
    %v5022 = vld [vmem:[%s5016 + $0x28] sm:$0xff]
    %v5023 = vld [vmem:[%s5016 + $0x30] sm:$0xff]
    %v5024 = vld [vmem:[%s5016 + $0x38] sm:$0xff]
    %v5025 = vld [vmem:[%s5016 + $0x40] sm:$0xff]
    %v5026 = vld [vmem:[%s5016 + $0x48] sm:$0xff]
    %v5027 = vld [vmem:[%s5016 + $0x50] sm:$0xff]
    %v5028 = vld [vmem:[%s5016 + $0x58] sm:$0xff]
    %v5029 = vld [vmem:[%s5016 + $0x60] sm:$0xff]
    %v5030 = vld [vmem:[%s5016 + $0x68] sm:$0xff]
    %v5031 = vld [vmem:[%s5016 + $0x70] sm:$0xff]
    %v5032 = vld [vmem:[%s5016 + $0x78] sm:$0xff]
    %v5033 = vld [vmem:[%s5016 + $0x80] sm:$0xff]
    %v5034 = vld [vmem:[%s5016 + $0x88] sm:$0xff]
    %v5035 = vld [vmem:[%s5016 + $0x90] sm:$0xff]
    %v5036 = vld [vmem:[%s5016 + $0x98] sm:$0xff]
    %v5037 = vld [vmem:[%s5016 + $0xa0] sm:$0xff]
    %v5038 = vld [vmem:[%s5016 + $0xa8] sm:$0xff]
    %v5039 = vld [vmem:[%s5016 + $0xb0] sm:$0xff]
    %v5040 = vld [vmem:[%s5016 + $0xb8] sm:$0xff]
    %v5041 = vld [vmem:[%s5016 + $0xc0] sm:$0xff]
    %v5042 = vld [vmem:[%s5016 + $0xc8] sm:$0xff]
    %v5043 = vld [vmem:[%s5016 + $0xd0] sm:$0xff]
    %v5044 = vld [vmem:[%s5016 + $0xd8] sm:$0xff]
    %v5045 = vld [vmem:[%s5016 + $0xe0] sm:$0xff]
    %v5046 = vld [vmem:[%s5016 + $0xe8] sm:$0xff]
    %v5047 = vld [vmem:[%s5016 + $0xf0] sm:$0xff]
    %v5048 = vld [vmem:[%s5016 + $0xf8] sm:$0xff]
    %v5049 = vld [vmem:[%s5016 + $0x100] sm:$0xff]
    %v5050 = vld [vmem:[%s5016 + $0x108] sm:$0xff]
    %v5051 = vld [vmem:[%s5016 + $0x110] sm:$0xff]
    %v5052 = vld [vmem:[%s5016 + $0x118] sm:$0xff]
    %v5053 = vld [vmem:[%s5016 + $0x120] sm:$0xff]
    %v5054 = vld [vmem:[%s5016 + $0x128] sm:$0xff]
    %v5055 = vld [vmem:[%s5016 + $0x130] sm:$0xff]
    %v5056 = vld [vmem:[%s5016 + $0x138] sm:$0xff]
    %v5057 = vld [vmem:[%s5016 + $0x140] sm:$0xff]
    %v5058 = vld [vmem:[%s5016 + $0x148] sm:$0xff]
    %v5059 = vld [vmem:[%s5016 + $0x150] sm:$0xff]
    %v5060 = vld [vmem:[%s5016 + $0x158] sm:$0xff]
    %v5061 = vld [vmem:[%s5016 + $0x160] sm:$0xff]
    %v5062 = vld [vmem:[%s5016 + $0x168] sm:$0xff]
    %v5063 = vld [vmem:[%s5016 + $0x170] sm:$0xff]
    %v5064 = vld [vmem:[%s5016 + $0x178] sm:$0xff]
    %v5065 = vld [vmem:[%s5016 + $0x180] sm:$0xff]
    %v5066 = vld [vmem:[%s5016 + $0x188] sm:$0xff]
    %v5067 = vld [vmem:[%s5016 + $0x190] sm:$0xff]
    %v5068 = vld [vmem:[%s5016 + $0x198] sm:$0xff]
    %v5069 = vld [vmem:[%s5016 + $0x1a0] sm:$0xff]
    %v5070 = vld [vmem:[%s5016 + $0x1a8] sm:$0xff]
    %v5071 = vld [vmem:[%s5016 + $0x1b0] sm:$0xff]
    %v5072 = vld [vmem:[%s5016 + $0x1b8] sm:$0xff]
    %v5073 = vld [vmem:[%s5016 + $0x1c0] sm:$0xff]
    %v5074 = vld [vmem:[%s5016 + $0x1c8] sm:$0xff]
    %v5075 = vld [vmem:[%s5016 + $0x1d0] sm:$0xff]
    %v5076 = vld [vmem:[%s5016 + $0x1d8] sm:$0xff]
    %v5077 = vld [vmem:[%s5016 + $0x1e0] sm:$0xff]
    %v5078 = vld [vmem:[%s5016 + $0x1e8] sm:$0xff]
    %v5079 = vld [vmem:[%s5016 + $0x1f0] sm:$0xff]
    %v5080 = vld [vmem:[%s5016 + $0x1f8] sm:$0xff]
    %v5113 = vunpack.c.l.b16 %v4984
    %v5114 = vunpack.c.h.b16 %v4984
    %v5115 = vunpack.c.l.b16 %v4985
    %v5116 = vunpack.c.h.b16 %v4985
    %v5117 = vunpack.c.l.b16 %v4986
    %v5118 = vunpack.c.h.b16 %v4986
    %v5119 = vunpack.c.l.b16 %v4987
    %v5120 = vunpack.c.h.b16 %v4987
    %v5121 = vunpack.c.l.b16 %v4988
    %v5122 = vunpack.c.h.b16 %v4988
    %v5123 = vunpack.c.l.b16 %v4989
    %v5124 = vunpack.c.h.b16 %v4989
    %v5125 = vunpack.c.l.b16 %v4990
    %v5126 = vunpack.c.h.b16 %v4990
    %v5127 = vunpack.c.l.b16 %v4991
    %v5128 = vunpack.c.h.b16 %v4991
    %v5129 = vunpack.c.l.b16 %v4992
    %v5130 = vunpack.c.h.b16 %v4992
    %v5131 = vunpack.c.l.b16 %v4993
    %v5132 = vunpack.c.h.b16 %v4993
    %v5133 = vunpack.c.l.b16 %v4994
    %v5134 = vunpack.c.h.b16 %v4994
    %v5135 = vunpack.c.l.b16 %v4995
    %v5136 = vunpack.c.h.b16 %v4995
    %v5137 = vunpack.c.l.b16 %v4996
    %v5138 = vunpack.c.h.b16 %v4996
    %v5139 = vunpack.c.l.b16 %v4997
    %v5140 = vunpack.c.h.b16 %v4997
    %v5141 = vunpack.c.l.b16 %v4998
    %v5142 = vunpack.c.h.b16 %v4998
    %v5143 = vunpack.c.l.b16 %v4999
    %v5144 = vunpack.c.h.b16 %v4999
    %v5145 = vunpack.c.l.b16 %v5000
    %v5146 = vunpack.c.h.b16 %v5000
    %v5147 = vunpack.c.l.b16 %v5001
    %v5148 = vunpack.c.h.b16 %v5001
    %v5149 = vunpack.c.l.b16 %v5002
    %v5150 = vunpack.c.h.b16 %v5002
    %v5151 = vunpack.c.l.b16 %v5003
    %v5152 = vunpack.c.h.b16 %v5003
    %v5153 = vunpack.c.l.b16 %v5004
    %v5154 = vunpack.c.h.b16 %v5004
    %v5155 = vunpack.c.l.b16 %v5005
    %v5156 = vunpack.c.h.b16 %v5005
    %v5157 = vunpack.c.l.b16 %v5006
    %v5158 = vunpack.c.h.b16 %v5006
    %v5159 = vunpack.c.l.b16 %v5007
    %v5160 = vunpack.c.h.b16 %v5007
    %v5161 = vunpack.c.l.b16 %v5008
    %v5162 = vunpack.c.h.b16 %v5008
    %v5163 = vunpack.c.l.b16 %v5009
    %v5164 = vunpack.c.h.b16 %v5009
    %v5165 = vunpack.c.l.b16 %v5010
    %v5166 = vunpack.c.h.b16 %v5010
    %v5167 = vunpack.c.l.b16 %v5011
    %v5168 = vunpack.c.h.b16 %v5011
    %v5169 = vunpack.c.l.b16 %v5012
    %v5170 = vunpack.c.h.b16 %v5012
    %v5171 = vunpack.c.l.b16 %v5013
    %v5172 = vunpack.c.h.b16 %v5013
    %v5173 = vunpack.c.l.b16 %v5014
    %v5174 = vunpack.c.h.b16 %v5014
    %v5175 = vunpack.c.l.b16 %v5015
    %v5176 = vunpack.c.h.b16 %v5015
    %v5177 = vperm.slane %v5113, %v1094
    %v5178 = vperm.slane %v5114, %v1096
    %v5179 = vsel %vm1098, %v5178, %v5177
    %v5180 = vperm.slane %v5115, %v1100
    %v5181 = vsel %vm1102, %v5180, %v5179
    %v5182 = vperm.slane %v5116, %v1104
    %v5183 = vsel %vm1106, %v5182, %v5181
    %v5184 = vperm.slane %v5117, %v1108
    %v5185 = vsel %vm1110, %v5184, %v5183
    %v5186 = vperm.slane %v5118, %v1112
    %v5187 = vsel %vm1114, %v5186, %v5185
    %v5188 = vperm.slane %v5119, %v1116
    %v5189 = vsel %vm1118, %v5188, %v5187
    %v5190 = vperm.slane %v5120, %v1120
    %v5191 = vsel %vm1122, %v5190, %v5189
    %v5192 = vperm.slane %v5121, %v1124
    %v5193 = vsel %vm1126, %v5192, %v5191
    %v5194 = vperm.slane %v5122, %v1128
    %v5195 = vsel %vm1130, %v5194, %v5193
    %v5196 = vperm.slane %v5123, %v1132
    %v5197 = vsel %vm1134, %v5196, %v5195
    %v5198 = vperm.slane %v5124, %v1136
    %v5199 = vsel %vm1138, %v5198, %v5197
    %v5200 = vperm.slane %v5125, %v1140
    %v5201 = vsel %vm1142, %v5200, %v5199
    %v5202 = vperm.slane %v5126, %v1144
    %v5203 = vsel %vm1146, %v5202, %v5201
    %v5204 = vperm.slane %v5127, %v1148
    %v5205 = vsel %vm1150, %v5204, %v5203
    %v5206 = vperm.slane %v5128, %v1152
    %v5207 = vsel %vm1154, %v5206, %v5205
    %v5208 = vperm.slane %v5129, %v1094
    %v5209 = vperm.slane %v5130, %v1096
    %v5210 = vsel %vm1098, %v5209, %v5208
    %v5211 = vperm.slane %v5131, %v1100
    %v5212 = vsel %vm1102, %v5211, %v5210
    %v5213 = vperm.slane %v5132, %v1104
    %v5214 = vsel %vm1106, %v5213, %v5212
    %v5215 = vperm.slane %v5133, %v1108
    %v5216 = vsel %vm1110, %v5215, %v5214
    %v5217 = vperm.slane %v5134, %v1112
    %v5218 = vsel %vm1114, %v5217, %v5216
    %v5219 = vperm.slane %v5135, %v1116
    %v5220 = vsel %vm1118, %v5219, %v5218
    %v5221 = vperm.slane %v5136, %v1120
    %v5222 = vsel %vm1122, %v5221, %v5220
    %v5223 = vperm.slane %v5137, %v1124
    %v5224 = vsel %vm1126, %v5223, %v5222
    %v5225 = vperm.slane %v5138, %v1128
    %v5226 = vsel %vm1130, %v5225, %v5224
    %v5227 = vperm.slane %v5139, %v1132
    %v5228 = vsel %vm1134, %v5227, %v5226
    %v5229 = vperm.slane %v5140, %v1136
    %v5230 = vsel %vm1138, %v5229, %v5228
    %v5231 = vperm.slane %v5141, %v1140
    %v5232 = vsel %vm1142, %v5231, %v5230
    %v5233 = vperm.slane %v5142, %v1144
    %v5234 = vsel %vm1146, %v5233, %v5232
    %v5235 = vperm.slane %v5143, %v1148
    %v5236 = vsel %vm1150, %v5235, %v5234
    %v5237 = vperm.slane %v5144, %v1152
    %v5238 = vsel %vm1154, %v5237, %v5236
    %v5239 = vperm.slane %v5145, %v1094
    %v5240 = vperm.slane %v5146, %v1096
    %v5241 = vsel %vm1098, %v5240, %v5239
    %v5242 = vperm.slane %v5147, %v1100
    %v5243 = vsel %vm1102, %v5242, %v5241
    %v5244 = vperm.slane %v5148, %v1104
    %v5245 = vsel %vm1106, %v5244, %v5243
    %v5246 = vperm.slane %v5149, %v1108
    %v5247 = vsel %vm1110, %v5246, %v5245
    %v5248 = vperm.slane %v5150, %v1112
    %v5249 = vsel %vm1114, %v5248, %v5247
    %v5250 = vperm.slane %v5151, %v1116
    %v5251 = vsel %vm1118, %v5250, %v5249
    %v5252 = vperm.slane %v5152, %v1120
    %v5253 = vsel %vm1122, %v5252, %v5251
    %v5254 = vperm.slane %v5153, %v1124
    %v5255 = vsel %vm1126, %v5254, %v5253
    %v5256 = vperm.slane %v5154, %v1128
    %v5257 = vsel %vm1130, %v5256, %v5255
    %v5258 = vperm.slane %v5155, %v1132
    %v5259 = vsel %vm1134, %v5258, %v5257
    %v5260 = vperm.slane %v5156, %v1136
    %v5261 = vsel %vm1138, %v5260, %v5259
    %v5262 = vperm.slane %v5157, %v1140
    %v5263 = vsel %vm1142, %v5262, %v5261
    %v5264 = vperm.slane %v5158, %v1144
    %v5265 = vsel %vm1146, %v5264, %v5263
    %v5266 = vperm.slane %v5159, %v1148
    %v5267 = vsel %vm1150, %v5266, %v5265
    %v5268 = vperm.slane %v5160, %v1152
    %v5269 = vsel %vm1154, %v5268, %v5267
    %v5270 = vperm.slane %v5161, %v1094
    %v5271 = vperm.slane %v5162, %v1096
    %v5272 = vsel %vm1098, %v5271, %v5270
    %v5273 = vperm.slane %v5163, %v1100
    %v5274 = vsel %vm1102, %v5273, %v5272
    %v5275 = vperm.slane %v5164, %v1104
    %v5276 = vsel %vm1106, %v5275, %v5274
    %v5277 = vperm.slane %v5165, %v1108
    %v5278 = vsel %vm1110, %v5277, %v5276
    %v5279 = vperm.slane %v5166, %v1112
    %v5280 = vsel %vm1114, %v5279, %v5278
    %v5281 = vperm.slane %v5167, %v1116
    %v5282 = vsel %vm1118, %v5281, %v5280
    %v5283 = vperm.slane %v5168, %v1120
    %v5284 = vsel %vm1122, %v5283, %v5282
    %v5285 = vperm.slane %v5169, %v1124
    %v5286 = vsel %vm1126, %v5285, %v5284
    %v5287 = vperm.slane %v5170, %v1128
    %v5288 = vsel %vm1130, %v5287, %v5286
    %v5289 = vperm.slane %v5171, %v1132
    %v5290 = vsel %vm1134, %v5289, %v5288
    %v5291 = vperm.slane %v5172, %v1136
    %v5292 = vsel %vm1138, %v5291, %v5290
    %v5293 = vperm.slane %v5173, %v1140
    %v5294 = vsel %vm1142, %v5293, %v5292
    %v5295 = vperm.slane %v5174, %v1144
    %v5296 = vsel %vm1146, %v5295, %v5294
    %v5297 = vperm.slane %v5175, %v1148
    %v5298 = vsel %vm1150, %v5297, %v5296
    %v5299 = vperm.slane %v5176, %v1152
    %v5300 = vsel %vm1154, %v5299, %v5298
    %v5301 = vsel %vm1249, %v5269, %v5207
    %v5302 = vsel %vm1249, %v5300, %v5238
    %v5303 = vpack.c.b16 %v5301, %v5301
    %v5304 = vpack.c.b16 %v5302, %v5302
    %v5371 = vunpack.c.l.b16 %v5017
    %v5372 = vunpack.c.h.b16 %v5017
    %v5373 = vunpack.c.l.b16 %v5018
    %v5374 = vunpack.c.h.b16 %v5018
    %v5375 = vunpack.c.l.b16 %v5019
    %v5376 = vunpack.c.h.b16 %v5019
    %v5377 = vunpack.c.l.b16 %v5020
    %v5378 = vunpack.c.h.b16 %v5020
    %v5379 = vunpack.c.l.b16 %v5021
    %v5380 = vunpack.c.h.b16 %v5021
    %v5381 = vunpack.c.l.b16 %v5022
    %v5382 = vunpack.c.h.b16 %v5022
    %v5383 = vunpack.c.l.b16 %v5023
    %v5384 = vunpack.c.h.b16 %v5023
    %v5385 = vunpack.c.l.b16 %v5024
    %v5386 = vunpack.c.h.b16 %v5024
    %v5387 = vunpack.c.l.b16 %v5025
    %v5388 = vunpack.c.h.b16 %v5025
    %v5389 = vunpack.c.l.b16 %v5026
    %v5390 = vunpack.c.h.b16 %v5026
    %v5391 = vunpack.c.l.b16 %v5027
    %v5392 = vunpack.c.h.b16 %v5027
    %v5393 = vunpack.c.l.b16 %v5028
    %v5394 = vunpack.c.h.b16 %v5028
    %v5395 = vunpack.c.l.b16 %v5029
    %v5396 = vunpack.c.h.b16 %v5029
    %v5397 = vunpack.c.l.b16 %v5030
    %v5398 = vunpack.c.h.b16 %v5030
    %v5399 = vunpack.c.l.b16 %v5031
    %v5400 = vunpack.c.h.b16 %v5031
    %v5401 = vunpack.c.l.b16 %v5032
    %v5402 = vunpack.c.h.b16 %v5032
    %v5403 = vunpack.c.l.b16 %v5033
    %v5404 = vunpack.c.h.b16 %v5033
    %v5405 = vunpack.c.l.b16 %v5034
    %v5406 = vunpack.c.h.b16 %v5034
    %v5407 = vunpack.c.l.b16 %v5035
    %v5408 = vunpack.c.h.b16 %v5035
    %v5409 = vunpack.c.l.b16 %v5036
    %v5410 = vunpack.c.h.b16 %v5036
    %v5411 = vunpack.c.l.b16 %v5037
    %v5412 = vunpack.c.h.b16 %v5037
    %v5413 = vunpack.c.l.b16 %v5038
    %v5414 = vunpack.c.h.b16 %v5038
    %v5415 = vunpack.c.l.b16 %v5039
    %v5416 = vunpack.c.h.b16 %v5039
    %v5417 = vunpack.c.l.b16 %v5040
    %v5418 = vunpack.c.h.b16 %v5040
    %v5419 = vunpack.c.l.b16 %v5041
    %v5420 = vunpack.c.h.b16 %v5041
    %v5421 = vunpack.c.l.b16 %v5042
    %v5422 = vunpack.c.h.b16 %v5042
    %v5423 = vunpack.c.l.b16 %v5043
    %v5424 = vunpack.c.h.b16 %v5043
    %v5425 = vunpack.c.l.b16 %v5044
    %v5426 = vunpack.c.h.b16 %v5044
    %v5427 = vunpack.c.l.b16 %v5045
    %v5428 = vunpack.c.h.b16 %v5045
    %v5429 = vunpack.c.l.b16 %v5046
    %v5430 = vunpack.c.h.b16 %v5046
    %v5431 = vunpack.c.l.b16 %v5047
    %v5432 = vunpack.c.h.b16 %v5047
    %v5433 = vunpack.c.l.b16 %v5048
    %v5434 = vunpack.c.h.b16 %v5048
    %v5435 = vunpack.c.l.b16 %v5049
    %v5436 = vunpack.c.h.b16 %v5049
    %v5437 = vunpack.c.l.b16 %v5050
    %v5438 = vunpack.c.h.b16 %v5050
    %v5439 = vunpack.c.l.b16 %v5051
    %v5440 = vunpack.c.h.b16 %v5051
    %v5441 = vunpack.c.l.b16 %v5052
    %v5442 = vunpack.c.h.b16 %v5052
    %v5443 = vunpack.c.l.b16 %v5053
    %v5444 = vunpack.c.h.b16 %v5053
    %v5445 = vunpack.c.l.b16 %v5054
    %v5446 = vunpack.c.h.b16 %v5054
    %v5447 = vunpack.c.l.b16 %v5055
    %v5448 = vunpack.c.h.b16 %v5055
    %v5449 = vunpack.c.l.b16 %v5056
    %v5450 = vunpack.c.h.b16 %v5056
    %v5451 = vunpack.c.l.b16 %v5057
    %v5452 = vunpack.c.h.b16 %v5057
    %v5453 = vunpack.c.l.b16 %v5058
    %v5454 = vunpack.c.h.b16 %v5058
    %v5455 = vunpack.c.l.b16 %v5059
    %v5456 = vunpack.c.h.b16 %v5059
    %v5457 = vunpack.c.l.b16 %v5060
    %v5458 = vunpack.c.h.b16 %v5060
    %v5459 = vunpack.c.l.b16 %v5061
    %v5460 = vunpack.c.h.b16 %v5061
    %v5461 = vunpack.c.l.b16 %v5062
    %v5462 = vunpack.c.h.b16 %v5062
    %v5463 = vunpack.c.l.b16 %v5063
    %v5464 = vunpack.c.h.b16 %v5063
    %v5465 = vunpack.c.l.b16 %v5064
    %v5466 = vunpack.c.h.b16 %v5064
    %v5467 = vunpack.c.l.b16 %v5065
    %v5468 = vunpack.c.h.b16 %v5065
    %v5469 = vunpack.c.l.b16 %v5066
    %v5470 = vunpack.c.h.b16 %v5066
    %v5471 = vunpack.c.l.b16 %v5067
    %v5472 = vunpack.c.h.b16 %v5067
    %v5473 = vunpack.c.l.b16 %v5068
    %v5474 = vunpack.c.h.b16 %v5068
    %v5475 = vunpack.c.l.b16 %v5069
    %v5476 = vunpack.c.h.b16 %v5069
    %v5477 = vunpack.c.l.b16 %v5070
    %v5478 = vunpack.c.h.b16 %v5070
    %v5479 = vunpack.c.l.b16 %v5071
    %v5480 = vunpack.c.h.b16 %v5071
    %v5481 = vunpack.c.l.b16 %v5072
    %v5482 = vunpack.c.h.b16 %v5072
    %v5483 = vunpack.c.l.b16 %v5073
    %v5484 = vunpack.c.h.b16 %v5073
    %v5485 = vunpack.c.l.b16 %v5074
    %v5486 = vunpack.c.h.b16 %v5074
    %v5487 = vunpack.c.l.b16 %v5075
    %v5488 = vunpack.c.h.b16 %v5075
    %v5489 = vunpack.c.l.b16 %v5076
    %v5490 = vunpack.c.h.b16 %v5076
    %v5491 = vunpack.c.l.b16 %v5077
    %v5492 = vunpack.c.h.b16 %v5077
    %v5493 = vunpack.c.l.b16 %v5078
    %v5494 = vunpack.c.h.b16 %v5078
    %v5495 = vunpack.c.l.b16 %v5079
    %v5496 = vunpack.c.h.b16 %v5079
    %v5497 = vunpack.c.l.b16 %v5080
    %v5498 = vunpack.c.h.b16 %v5080
    %v5499 = vpack.c.b16 %v5375, %v5371
    %v5500 = vpack.c.b16 %v5376, %v5372
    %v5501 = vpack.c.b16 %v5377, %v5373
    %v5502 = vpack.c.b16 %v5378, %v5374
    %v5503 = vpack.c.b16 %v5383, %v5379
    %v5504 = vpack.c.b16 %v5384, %v5380
    %v5505 = vpack.c.b16 %v5385, %v5381
    %v5506 = vpack.c.b16 %v5386, %v5382
    %v5507 = vpack.c.b16 %v5391, %v5387
    %v5508 = vpack.c.b16 %v5392, %v5388
    %v5509 = vpack.c.b16 %v5393, %v5389
    %v5510 = vpack.c.b16 %v5394, %v5390
    %v5511 = vpack.c.b16 %v5399, %v5395
    %v5512 = vpack.c.b16 %v5400, %v5396
    %v5513 = vpack.c.b16 %v5401, %v5397
    %v5514 = vpack.c.b16 %v5402, %v5398
    %v5515 = vpack.c.b16 %v5407, %v5403
    %v5516 = vpack.c.b16 %v5408, %v5404
    %v5517 = vpack.c.b16 %v5409, %v5405
    %v5518 = vpack.c.b16 %v5410, %v5406
    %v5519 = vpack.c.b16 %v5415, %v5411
    %v5520 = vpack.c.b16 %v5416, %v5412
    %v5521 = vpack.c.b16 %v5417, %v5413
    %v5522 = vpack.c.b16 %v5418, %v5414
    %v5523 = vpack.c.b16 %v5423, %v5419
    %v5524 = vpack.c.b16 %v5424, %v5420
    %v5525 = vpack.c.b16 %v5425, %v5421
    %v5526 = vpack.c.b16 %v5426, %v5422
    %v5527 = vpack.c.b16 %v5431, %v5427
    %v5528 = vpack.c.b16 %v5432, %v5428
    %v5529 = vpack.c.b16 %v5433, %v5429
    %v5530 = vpack.c.b16 %v5434, %v5430
    %v5531 = vpack.c.b16 %v5439, %v5435
    %v5532 = vpack.c.b16 %v5440, %v5436
    %v5533 = vpack.c.b16 %v5441, %v5437
    %v5534 = vpack.c.b16 %v5442, %v5438
    %v5535 = vpack.c.b16 %v5447, %v5443
    %v5536 = vpack.c.b16 %v5448, %v5444
    %v5537 = vpack.c.b16 %v5449, %v5445
    %v5538 = vpack.c.b16 %v5450, %v5446
    %v5539 = vpack.c.b16 %v5455, %v5451
    %v5540 = vpack.c.b16 %v5456, %v5452
    %v5541 = vpack.c.b16 %v5457, %v5453
    %v5542 = vpack.c.b16 %v5458, %v5454
    %v5543 = vpack.c.b16 %v5463, %v5459
    %v5544 = vpack.c.b16 %v5464, %v5460
    %v5545 = vpack.c.b16 %v5465, %v5461
    %v5546 = vpack.c.b16 %v5466, %v5462
    %v5547 = vpack.c.b16 %v5471, %v5467
    %v5548 = vpack.c.b16 %v5472, %v5468
    %v5549 = vpack.c.b16 %v5473, %v5469
    %v5550 = vpack.c.b16 %v5474, %v5470
    %v5551 = vpack.c.b16 %v5479, %v5475
    %v5552 = vpack.c.b16 %v5480, %v5476
    %v5553 = vpack.c.b16 %v5481, %v5477
    %v5554 = vpack.c.b16 %v5482, %v5478
    %v5555 = vpack.c.b16 %v5487, %v5483
    %v5556 = vpack.c.b16 %v5488, %v5484
    %v5557 = vpack.c.b16 %v5489, %v5485
    %v5558 = vpack.c.b16 %v5490, %v5486
    %v5559 = vpack.c.b16 %v5495, %v5491
    %v5560 = vpack.c.b16 %v5496, %v5492
    %v5561 = vpack.c.b16 %v5497, %v5493
    %v5562 = vpack.c.b16 %v5498, %v5494
    %5627 = vmatpush.bf16.msra.mxu0 %v5527
    %5628 = vmatpush.bf16.msra.mxu0 %v5523
    %5629 = vmatpush.bf16.msra.mxu0 %v5519
    %5630 = vmatpush.bf16.msra.mxu0 %v5515
    %5631 = vmatpush.bf16.msra.mxu0 %v5511
    %5632 = vmatpush.bf16.msra.mxu0 %v5507
    %5633 = vmatpush.bf16.msra.mxu0 %v5503
    %5634 = vmatpush.bf16.msra.mxu0 %v5499
    %5635 = vmatmul.bf16.gmra.mxu0 %v5303
    %v5636 = vpop.f32.mrf.mxu0
    %v5637 = vadd.f32 0.0, %v5636
    %v5638 = vpop.f32.mrf.mxu0
    %5639 = vdwg.mxu0
    %5640 = vmatpush.bf16.msra.mxu0 %v5559
    %5641 = vmatpush.bf16.msra.mxu0 %v5555
    %5642 = vmatpush.bf16.msra.mxu0 %v5551
    %5643 = vmatpush.bf16.msra.mxu0 %v5547
    %5644 = vmatpush.bf16.msra.mxu0 %v5543
    %5645 = vmatpush.bf16.msra.mxu0 %v5539
    %5646 = vmatpush.bf16.msra.mxu0 %v5535
    %5647 = vmatpush.bf16.msra.mxu0 %v5531
    %5648 = vmatmul.bf16.gmra.mxu0 %v5304
    %v5649 = vpop.f32.mrf.mxu0
    %v5650 = vadd.f32 %v5637, %v5649
    %v5651 = vpop.f32.mrf.mxu0
    %5652 = vdwg.mxu0
    %5653 = vmatpush.bf16.msra.mxu0 %v5528
    %5654 = vmatpush.bf16.msra.mxu0 %v5524
    %5655 = vmatpush.bf16.msra.mxu0 %v5520
    %5656 = vmatpush.bf16.msra.mxu0 %v5516
    %5657 = vmatpush.bf16.msra.mxu0 %v5512
    %5658 = vmatpush.bf16.msra.mxu0 %v5508
    %5659 = vmatpush.bf16.msra.mxu0 %v5504
    %5660 = vmatpush.bf16.msra.mxu0 %v5500
    %5661 = vmatmul.bf16.gmra.mxu0 %v5303
    %v5662 = vpop.f32.mrf.mxu0
    %v5663 = vadd.f32 0.0, %v5662
    %v5664 = vpop.f32.mrf.mxu0
    %5665 = vdwg.mxu0
    %5666 = vmatpush.bf16.msra.mxu0 %v5560
    %5667 = vmatpush.bf16.msra.mxu0 %v5556
    %5668 = vmatpush.bf16.msra.mxu0 %v5552
    %5669 = vmatpush.bf16.msra.mxu0 %v5548
    %5670 = vmatpush.bf16.msra.mxu0 %v5544
    %5671 = vmatpush.bf16.msra.mxu0 %v5540
    %5672 = vmatpush.bf16.msra.mxu0 %v5536
    %5673 = vmatpush.bf16.msra.mxu0 %v5532
    %5674 = vmatmul.bf16.gmra.mxu0 %v5304
    %v5675 = vpop.f32.mrf.mxu0
    %v5676 = vadd.f32 %v5663, %v5675
    %v5677 = vpop.f32.mrf.mxu0
    %5678 = vdwg.mxu0
    %5679 = vmatpush.bf16.msra.mxu0 %v5529
    %5680 = vmatpush.bf16.msra.mxu0 %v5525
    %5681 = vmatpush.bf16.msra.mxu0 %v5521
    %5682 = vmatpush.bf16.msra.mxu0 %v5517
    %5683 = vmatpush.bf16.msra.mxu0 %v5513
    %5684 = vmatpush.bf16.msra.mxu0 %v5509
    %5685 = vmatpush.bf16.msra.mxu0 %v5505
    %5686 = vmatpush.bf16.msra.mxu0 %v5501
    %5687 = vmatmul.bf16.gmra.mxu0 %v5303
    %v5688 = vpop.f32.mrf.mxu0
    %v5689 = vadd.f32 0.0, %v5688
    %v5690 = vpop.f32.mrf.mxu0
    %5691 = vdwg.mxu0
    %5692 = vmatpush.bf16.msra.mxu0 %v5561
    %5693 = vmatpush.bf16.msra.mxu0 %v5557
    %5694 = vmatpush.bf16.msra.mxu0 %v5553
    %5695 = vmatpush.bf16.msra.mxu0 %v5549
    %5696 = vmatpush.bf16.msra.mxu0 %v5545
    %5697 = vmatpush.bf16.msra.mxu0 %v5541
    %5698 = vmatpush.bf16.msra.mxu0 %v5537
    %5699 = vmatpush.bf16.msra.mxu0 %v5533
    %5700 = vmatmul.bf16.gmra.mxu0 %v5304
    %v5701 = vpop.f32.mrf.mxu0
    %v5702 = vadd.f32 %v5689, %v5701
    %v5703 = vpop.f32.mrf.mxu0
    %5704 = vdwg.mxu0
    %5705 = vmatpush.bf16.msra.mxu0 %v5530
    %5706 = vmatpush.bf16.msra.mxu0 %v5526
    %5707 = vmatpush.bf16.msra.mxu0 %v5522
    %5708 = vmatpush.bf16.msra.mxu0 %v5518
    %5709 = vmatpush.bf16.msra.mxu0 %v5514
    %5710 = vmatpush.bf16.msra.mxu0 %v5510
    %5711 = vmatpush.bf16.msra.mxu0 %v5506
    %5712 = vmatpush.bf16.msra.mxu0 %v5502
    %5713 = vmatmul.bf16.gmra.mxu0 %v5303
    %v5714 = vpop.f32.mrf.mxu0
    %v5715 = vadd.f32 0.0, %v5714
    %v5716 = vpop.f32.mrf.mxu0
    %5717 = vdwg.mxu0
    %5718 = vmatpush.bf16.msra.mxu0 %v5562
    %5719 = vmatpush.bf16.msra.mxu0 %v5558
    %5720 = vmatpush.bf16.msra.mxu0 %v5554
    %5721 = vmatpush.bf16.msra.mxu0 %v5550
    %5722 = vmatpush.bf16.msra.mxu0 %v5546
    %5723 = vmatpush.bf16.msra.mxu0 %v5542
    %5724 = vmatpush.bf16.msra.mxu0 %v5538
    %5725 = vmatpush.bf16.msra.mxu0 %v5534
    %5726 = vmatmul.bf16.gmra.mxu0 %v5304
    %v5727 = vpop.f32.mrf.mxu0
    %v5728 = vadd.f32 %v5715, %v5727
    %v5729 = vpop.f32.mrf.mxu0
    %5730 = vdwg.mxu0
    %v5731 = vadd.f32 %v4596, %v5650
    %v5732 = vadd.f32 %v4597, %v5676
    %v5733 = vadd.f32 %v4598, %v5702
    %v5734 = vadd.f32 %v4599, %v5728
    %5735 = vrot.lane.b32.xlu0 %v99, 48
    %v5736 = vpop.permute.xlu0 %5735
    %5737 = vrot.lane.b32.xlu0 %v100, 48
    %v5738 = vpop.permute.xlu0 %5737
    %5739 = vrot.lane.b32.xlu0 %v101, 48
    %v5740 = vpop.permute.xlu0 %5739
    %5741 = vrot.lane.b32.xlu0 %v102, 48
    %v5742 = vpop.permute.xlu0 %5741
    %5743 = vrot.lane.b32.xlu0 %v103, 48
    %v5744 = vpop.permute.xlu0 %5743
    %5745 = vrot.lane.b32.xlu0 %v104, 48
    %v5746 = vpop.permute.xlu0 %5745
    %5747 = vrot.lane.b32.xlu0 %v105, 48
    %v5748 = vpop.permute.xlu0 %5747
    %5749 = vrot.lane.b32.xlu0 %v106, 48
    %v5750 = vpop.permute.xlu0 %5749
    %5751 = vrot.lane.b32.xlu0 %v107, 48
    %v5752 = vpop.permute.xlu0 %5751
    %5753 = vrot.lane.b32.xlu0 %v108, 48
    %v5754 = vpop.permute.xlu0 %5753
    %5755 = vrot.lane.b32.xlu0 %v109, 48
    %v5756 = vpop.permute.xlu0 %5755
    %5757 = vrot.lane.b32.xlu0 %v110, 48
    %v5758 = vpop.permute.xlu0 %5757
    %5759 = vrot.lane.b32.xlu0 %v111, 48
    %v5760 = vpop.permute.xlu0 %5759
    %5761 = vrot.lane.b32.xlu0 %v112, 48
    %v5762 = vpop.permute.xlu0 %5761
    %5763 = vrot.lane.b32.xlu0 %v113, 48
    %v5764 = vpop.permute.xlu0 %5763
    %5765 = vrot.lane.b32.xlu0 %v114, 48
    %v5766 = vpop.permute.xlu0 %5765
    %5767 = vrot.lane.b32.xlu0 %v115, 48
    %v5768 = vpop.permute.xlu0 %5767
    %5769 = vrot.lane.b32.xlu0 %v116, 48
    %v5770 = vpop.permute.xlu0 %5769
    %5771 = vrot.lane.b32.xlu0 %v117, 48
    %v5772 = vpop.permute.xlu0 %5771
    %5773 = vrot.lane.b32.xlu0 %v118, 48
    %v5774 = vpop.permute.xlu0 %5773
    %5775 = vrot.lane.b32.xlu0 %v119, 48
    %v5776 = vpop.permute.xlu0 %5775
    %5777 = vrot.lane.b32.xlu0 %v120, 48
    %v5778 = vpop.permute.xlu0 %5777
    %5779 = vrot.lane.b32.xlu0 %v121, 48
    %v5780 = vpop.permute.xlu0 %5779
    %5781 = vrot.lane.b32.xlu0 %v122, 48
    %v5782 = vpop.permute.xlu0 %5781
    %5783 = vrot.lane.b32.xlu0 %v123, 48
    %v5784 = vpop.permute.xlu0 %5783
    %5785 = vrot.lane.b32.xlu0 %v124, 48
    %v5786 = vpop.permute.xlu0 %5785
    %5787 = vrot.lane.b32.xlu0 %v125, 48
    %v5788 = vpop.permute.xlu0 %5787
    %5789 = vrot.lane.b32.xlu0 %v126, 48
    %v5790 = vpop.permute.xlu0 %5789
    %5791 = vrot.lane.b32.xlu0 %v127, 48
    %v5792 = vpop.permute.xlu0 %5791
    %5793 = vrot.lane.b32.xlu0 %v128, 48
    %v5794 = vpop.permute.xlu0 %5793
    %5795 = vrot.lane.b32.xlu0 %v129, 48
    %v5796 = vpop.permute.xlu0 %5795
    %5797 = vrot.lane.b32.xlu0 %v130, 48
    %v5798 = vpop.permute.xlu0 %5797
    %5799 = vrot.lane.b32.xlu0 %v131, 48
    %v5800 = vpop.permute.xlu0 %5799
    %5801 = vrot.lane.b32.xlu0 %v132, 48
    %v5802 = vpop.permute.xlu0 %5801
    %5803 = vrot.lane.b32.xlu0 %v133, 48
    %v5804 = vpop.permute.xlu0 %5803
    %5805 = vrot.lane.b32.xlu0 %v134, 48
    %v5806 = vpop.permute.xlu0 %5805
    %5807 = vrot.lane.b32.xlu0 %v135, 48
    %v5808 = vpop.permute.xlu0 %5807
    %5809 = vrot.lane.b32.xlu0 %v136, 48
    %v5810 = vpop.permute.xlu0 %5809
    %5811 = vrot.lane.b32.xlu0 %v137, 48
    %v5812 = vpop.permute.xlu0 %5811
    %5813 = vrot.lane.b32.xlu0 %v138, 48
    %v5814 = vpop.permute.xlu0 %5813
    %5815 = vrot.lane.b32.xlu0 %v139, 48
    %v5816 = vpop.permute.xlu0 %5815
    %5817 = vrot.lane.b32.xlu0 %v140, 48
    %v5818 = vpop.permute.xlu0 %5817
    %5819 = vrot.lane.b32.xlu0 %v141, 48
    %v5820 = vpop.permute.xlu0 %5819
    %5821 = vrot.lane.b32.xlu0 %v142, 48
    %v5822 = vpop.permute.xlu0 %5821
    %5823 = vrot.lane.b32.xlu0 %v143, 48
    %v5824 = vpop.permute.xlu0 %5823
    %5825 = vrot.lane.b32.xlu0 %v144, 48
    %v5826 = vpop.permute.xlu0 %5825
    %5827 = vrot.lane.b32.xlu0 %v145, 48
    %v5828 = vpop.permute.xlu0 %5827
    %5829 = vrot.lane.b32.xlu0 %v146, 48
    %v5830 = vpop.permute.xlu0 %5829
    %5831 = vrot.lane.b32.xlu0 %v147, 48
    %v5832 = vpop.permute.xlu0 %5831
    %5833 = vrot.lane.b32.xlu0 %v148, 48
    %v5834 = vpop.permute.xlu0 %5833
    %5835 = vrot.lane.b32.xlu0 %v149, 48
    %v5836 = vpop.permute.xlu0 %5835
    %5837 = vrot.lane.b32.xlu0 %v150, 48
    %v5838 = vpop.permute.xlu0 %5837
    %5839 = vrot.lane.b32.xlu0 %v151, 48
    %v5840 = vpop.permute.xlu0 %5839
    %5841 = vrot.lane.b32.xlu0 %v152, 48
    %v5842 = vpop.permute.xlu0 %5841
    %5843 = vrot.lane.b32.xlu0 %v153, 48
    %v5844 = vpop.permute.xlu0 %5843
    %5845 = vrot.lane.b32.xlu0 %v154, 48
    %v5846 = vpop.permute.xlu0 %5845
    %5847 = vrot.lane.b32.xlu0 %v155, 48
    %v5848 = vpop.permute.xlu0 %5847
    %5849 = vrot.lane.b32.xlu0 %v156, 48
    %v5850 = vpop.permute.xlu0 %5849
    %5851 = vrot.lane.b32.xlu0 %v157, 48
    %v5852 = vpop.permute.xlu0 %5851
    %5853 = vrot.lane.b32.xlu0 %v158, 48
    %v5854 = vpop.permute.xlu0 %5853
    %5855 = vrot.lane.b32.xlu0 %v159, 48
    %v5856 = vpop.permute.xlu0 %5855
    %5857 = vrot.lane.b32.xlu0 %v160, 48
    %v5858 = vpop.permute.xlu0 %5857
    %5859 = vrot.lane.b32.xlu0 %v161, 48
    %v5860 = vpop.permute.xlu0 %5859
    %5861 = vrot.lane.b32.xlu0 %v162, 48
    %v5862 = vpop.permute.xlu0 %5861
    %v5927 = vsel %vm163, %v5736, 0.0
    %5928 = vadd.xlane.f32.xlu0 %v5927
    %v5929 = vpop.xlane.xlu0 %5928
    %v5930 = vsel %vm163, %v5738, 0.0
    %5931 = vadd.xlane.f32.xlu0 %v5930
    %v5932 = vpop.xlane.xlu0 %5931
    %v5933 = vsel %vm163, %v5740, 0.0
    %5934 = vadd.xlane.f32.xlu0 %v5933
    %v5935 = vpop.xlane.xlu0 %5934
    %v5936 = vsel %vm163, %v5742, 0.0
    %5937 = vadd.xlane.f32.xlu0 %v5936
    %v5938 = vpop.xlane.xlu0 %5937
    %v5939 = vsel %vm163, %v5744, 0.0
    %5940 = vadd.xlane.f32.xlu0 %v5939
    %v5941 = vpop.xlane.xlu0 %5940
    %v5942 = vsel %vm163, %v5746, 0.0
    %5943 = vadd.xlane.f32.xlu0 %v5942
    %v5944 = vpop.xlane.xlu0 %5943
    %v5945 = vsel %vm163, %v5748, 0.0
    %5946 = vadd.xlane.f32.xlu0 %v5945
    %v5947 = vpop.xlane.xlu0 %5946
    %v5948 = vsel %vm163, %v5750, 0.0
    %5949 = vadd.xlane.f32.xlu0 %v5948
    %v5950 = vpop.xlane.xlu0 %5949
    %v5951 = vsel %vm163, %v5752, 0.0
    %5952 = vadd.xlane.f32.xlu0 %v5951
    %v5953 = vpop.xlane.xlu0 %5952
    %v5954 = vsel %vm163, %v5754, 0.0
    %5955 = vadd.xlane.f32.xlu0 %v5954
    %v5956 = vpop.xlane.xlu0 %5955
    %v5957 = vsel %vm163, %v5756, 0.0
    %5958 = vadd.xlane.f32.xlu0 %v5957
    %v5959 = vpop.xlane.xlu0 %5958
    %v5960 = vsel %vm163, %v5758, 0.0
    %5961 = vadd.xlane.f32.xlu0 %v5960
    %v5962 = vpop.xlane.xlu0 %5961
    %v5963 = vsel %vm163, %v5760, 0.0
    %5964 = vadd.xlane.f32.xlu0 %v5963
    %v5965 = vpop.xlane.xlu0 %5964
    %v5966 = vsel %vm163, %v5762, 0.0
    %5967 = vadd.xlane.f32.xlu0 %v5966
    %v5968 = vpop.xlane.xlu0 %5967
    %v5969 = vsel %vm163, %v5764, 0.0
    %5970 = vadd.xlane.f32.xlu0 %v5969
    %v5971 = vpop.xlane.xlu0 %5970
    %v5972 = vsel %vm163, %v5766, 0.0
    %5973 = vadd.xlane.f32.xlu0 %v5972
    %v5974 = vpop.xlane.xlu0 %5973
    %v5975 = vsel %vm163, %v5768, 0.0
    %5976 = vadd.xlane.f32.xlu0 %v5975
    %v5977 = vpop.xlane.xlu0 %5976
    %v5978 = vsel %vm163, %v5770, 0.0
    %5979 = vadd.xlane.f32.xlu0 %v5978
    %v5980 = vpop.xlane.xlu0 %5979
    %v5981 = vsel %vm163, %v5772, 0.0
    %5982 = vadd.xlane.f32.xlu0 %v5981
    %v5983 = vpop.xlane.xlu0 %5982
    %v5984 = vsel %vm163, %v5774, 0.0
    %5985 = vadd.xlane.f32.xlu0 %v5984
    %v5986 = vpop.xlane.xlu0 %5985
    %v5987 = vsel %vm163, %v5776, 0.0
    %5988 = vadd.xlane.f32.xlu0 %v5987
    %v5989 = vpop.xlane.xlu0 %5988
    %v5990 = vsel %vm163, %v5778, 0.0
    %5991 = vadd.xlane.f32.xlu0 %v5990
    %v5992 = vpop.xlane.xlu0 %5991
    %v5993 = vsel %vm163, %v5780, 0.0
    %5994 = vadd.xlane.f32.xlu0 %v5993
    %v5995 = vpop.xlane.xlu0 %5994
    %v5996 = vsel %vm163, %v5782, 0.0
    %5997 = vadd.xlane.f32.xlu0 %v5996
    %v5998 = vpop.xlane.xlu0 %5997
    %v5999 = vsel %vm163, %v5784, 0.0
    %6000 = vadd.xlane.f32.xlu0 %v5999
    %v6001 = vpop.xlane.xlu0 %6000
    %v6002 = vsel %vm163, %v5786, 0.0
    %6003 = vadd.xlane.f32.xlu0 %v6002
    %v6004 = vpop.xlane.xlu0 %6003
    %v6005 = vsel %vm163, %v5788, 0.0
    %6006 = vadd.xlane.f32.xlu0 %v6005
    %v6007 = vpop.xlane.xlu0 %6006
    %v6008 = vsel %vm163, %v5790, 0.0
    %6009 = vadd.xlane.f32.xlu0 %v6008
    %v6010 = vpop.xlane.xlu0 %6009
    %v6011 = vsel %vm163, %v5792, 0.0
    %6012 = vadd.xlane.f32.xlu0 %v6011
    %v6013 = vpop.xlane.xlu0 %6012
    %v6014 = vsel %vm163, %v5794, 0.0
    %6015 = vadd.xlane.f32.xlu0 %v6014
    %v6016 = vpop.xlane.xlu0 %6015
    %v6017 = vsel %vm163, %v5796, 0.0
    %6018 = vadd.xlane.f32.xlu0 %v6017
    %v6019 = vpop.xlane.xlu0 %6018
    %v6020 = vsel %vm163, %v5798, 0.0
    %6021 = vadd.xlane.f32.xlu0 %v6020
    %v6022 = vpop.xlane.xlu0 %6021
    %v6023 = vsel %vm163, %v5800, 0.0
    %6024 = vadd.xlane.f32.xlu0 %v6023
    %v6025 = vpop.xlane.xlu0 %6024
    %v6026 = vsel %vm163, %v5802, 0.0
    %6027 = vadd.xlane.f32.xlu0 %v6026
    %v6028 = vpop.xlane.xlu0 %6027
    %v6029 = vsel %vm163, %v5804, 0.0
    %6030 = vadd.xlane.f32.xlu0 %v6029
    %v6031 = vpop.xlane.xlu0 %6030
    %v6032 = vsel %vm163, %v5806, 0.0
    %6033 = vadd.xlane.f32.xlu0 %v6032
    %v6034 = vpop.xlane.xlu0 %6033
    %v6035 = vsel %vm163, %v5808, 0.0
    %6036 = vadd.xlane.f32.xlu0 %v6035
    %v6037 = vpop.xlane.xlu0 %6036
    %v6038 = vsel %vm163, %v5810, 0.0
    %6039 = vadd.xlane.f32.xlu0 %v6038
    %v6040 = vpop.xlane.xlu0 %6039
    %v6041 = vsel %vm163, %v5812, 0.0
    %6042 = vadd.xlane.f32.xlu0 %v6041
    %v6043 = vpop.xlane.xlu0 %6042
    %v6044 = vsel %vm163, %v5814, 0.0
    %6045 = vadd.xlane.f32.xlu0 %v6044
    %v6046 = vpop.xlane.xlu0 %6045
    %v6047 = vsel %vm163, %v5816, 0.0
    %6048 = vadd.xlane.f32.xlu0 %v6047
    %v6049 = vpop.xlane.xlu0 %6048
    %v6050 = vsel %vm163, %v5818, 0.0
    %6051 = vadd.xlane.f32.xlu0 %v6050
    %v6052 = vpop.xlane.xlu0 %6051
    %v6053 = vsel %vm163, %v5820, 0.0
    %6054 = vadd.xlane.f32.xlu0 %v6053
    %v6055 = vpop.xlane.xlu0 %6054
    %v6056 = vsel %vm163, %v5822, 0.0
    %6057 = vadd.xlane.f32.xlu0 %v6056
    %v6058 = vpop.xlane.xlu0 %6057
    %v6059 = vsel %vm163, %v5824, 0.0
    %6060 = vadd.xlane.f32.xlu0 %v6059
    %v6061 = vpop.xlane.xlu0 %6060
    %v6062 = vsel %vm163, %v5826, 0.0
    %6063 = vadd.xlane.f32.xlu0 %v6062
    %v6064 = vpop.xlane.xlu0 %6063
    %v6065 = vsel %vm163, %v5828, 0.0
    %6066 = vadd.xlane.f32.xlu0 %v6065
    %v6067 = vpop.xlane.xlu0 %6066
    %v6068 = vsel %vm163, %v5830, 0.0
    %6069 = vadd.xlane.f32.xlu0 %v6068
    %v6070 = vpop.xlane.xlu0 %6069
    %v6071 = vsel %vm163, %v5832, 0.0
    %6072 = vadd.xlane.f32.xlu0 %v6071
    %v6073 = vpop.xlane.xlu0 %6072
    %v6074 = vsel %vm163, %v5834, 0.0
    %6075 = vadd.xlane.f32.xlu0 %v6074
    %v6076 = vpop.xlane.xlu0 %6075
    %v6077 = vsel %vm163, %v5836, 0.0
    %6078 = vadd.xlane.f32.xlu0 %v6077
    %v6079 = vpop.xlane.xlu0 %6078
    %v6080 = vsel %vm163, %v5838, 0.0
    %6081 = vadd.xlane.f32.xlu0 %v6080
    %v6082 = vpop.xlane.xlu0 %6081
    %v6083 = vsel %vm163, %v5840, 0.0
    %6084 = vadd.xlane.f32.xlu0 %v6083
    %v6085 = vpop.xlane.xlu0 %6084
    %v6086 = vsel %vm163, %v5842, 0.0
    %6087 = vadd.xlane.f32.xlu0 %v6086
    %v6088 = vpop.xlane.xlu0 %6087
    %v6089 = vsel %vm163, %v5844, 0.0
    %6090 = vadd.xlane.f32.xlu0 %v6089
    %v6091 = vpop.xlane.xlu0 %6090
    %v6092 = vsel %vm163, %v5846, 0.0
    %6093 = vadd.xlane.f32.xlu0 %v6092
    %v6094 = vpop.xlane.xlu0 %6093
    %v6095 = vsel %vm163, %v5848, 0.0
    %6096 = vadd.xlane.f32.xlu0 %v6095
    %v6097 = vpop.xlane.xlu0 %6096
    %v6098 = vsel %vm163, %v5850, 0.0
    %6099 = vadd.xlane.f32.xlu0 %v6098
    %v6100 = vpop.xlane.xlu0 %6099
    %v6101 = vsel %vm163, %v5852, 0.0
    %6102 = vadd.xlane.f32.xlu0 %v6101
    %v6103 = vpop.xlane.xlu0 %6102
    %v6104 = vsel %vm163, %v5854, 0.0
    %6105 = vadd.xlane.f32.xlu0 %v6104
    %v6106 = vpop.xlane.xlu0 %6105
    %v6107 = vsel %vm163, %v5856, 0.0
    %6108 = vadd.xlane.f32.xlu0 %v6107
    %v6109 = vpop.xlane.xlu0 %6108
    %v6110 = vsel %vm163, %v5858, 0.0
    %6111 = vadd.xlane.f32.xlu0 %v6110
    %v6112 = vpop.xlane.xlu0 %6111
    %v6113 = vsel %vm163, %v5860, 0.0
    %6114 = vadd.xlane.f32.xlu0 %v6113
    %v6115 = vpop.xlane.xlu0 %6114
    %v6116 = vsel %vm163, %v5862, 0.0
    %6117 = vadd.xlane.f32.xlu0 %v6116
    %v6118 = vpop.xlane.xlu0 %6117
    %v6119 = vpack.c.bf16 %v5932, %v5929
    %v6120 = vpack.c.bf16 %v5938, %v5935
    %v6121 = vpack.c.bf16 %v5944, %v5941
    %v6122 = vpack.c.bf16 %v5950, %v5947
    %v6123 = vpack.c.bf16 %v5956, %v5953
    %v6124 = vpack.c.bf16 %v5962, %v5959
    %v6125 = vpack.c.bf16 %v5968, %v5965
    %v6126 = vpack.c.bf16 %v5974, %v5971
    %v6127 = vpack.c.bf16 %v5980, %v5977
    %v6128 = vpack.c.bf16 %v5986, %v5983
    %v6129 = vpack.c.bf16 %v5992, %v5989
    %v6130 = vpack.c.bf16 %v5998, %v5995
    %v6131 = vpack.c.bf16 %v6004, %v6001
    %v6132 = vpack.c.bf16 %v6010, %v6007
    %v6133 = vpack.c.bf16 %v6016, %v6013
    %v6134 = vpack.c.bf16 %v6022, %v6019
    %v6135 = vpack.c.bf16 %v6028, %v6025
    %v6136 = vpack.c.bf16 %v6034, %v6031
    %v6137 = vpack.c.bf16 %v6040, %v6037
    %v6138 = vpack.c.bf16 %v6046, %v6043
    %v6139 = vpack.c.bf16 %v6052, %v6049
    %v6140 = vpack.c.bf16 %v6058, %v6055
    %v6141 = vpack.c.bf16 %v6064, %v6061
    %v6142 = vpack.c.bf16 %v6070, %v6067
    %v6143 = vpack.c.bf16 %v6076, %v6073
    %v6144 = vpack.c.bf16 %v6082, %v6079
    %v6145 = vpack.c.bf16 %v6088, %v6085
    %v6146 = vpack.c.bf16 %v6094, %v6091
    %v6147 = vpack.c.bf16 %v6100, %v6097
    %v6148 = vpack.c.bf16 %v6106, %v6103
    %v6149 = vpack.c.bf16 %v6112, %v6109
    %v6150 = vpack.c.bf16 %v6118, %v6115
    %s6151 = scalar_lea.vmem [#allocation6], 2560
    %v6152 = vld [vmem:[%s6151] sm:$0xff]
    %v6153 = vld [vmem:[%s6151 + $0x8] sm:$0xff]
    %v6154 = vld [vmem:[%s6151 + $0x10] sm:$0xff]
    %v6155 = vld [vmem:[%s6151 + $0x18] sm:$0xff]
    %v6156 = vld [vmem:[%s6151 + $0x20] sm:$0xff]
    %v6157 = vld [vmem:[%s6151 + $0x28] sm:$0xff]
    %v6158 = vld [vmem:[%s6151 + $0x30] sm:$0xff]
    %v6159 = vld [vmem:[%s6151 + $0x38] sm:$0xff]
    %v6160 = vld [vmem:[%s6151 + $0x40] sm:$0xff]
    %v6161 = vld [vmem:[%s6151 + $0x48] sm:$0xff]
    %v6162 = vld [vmem:[%s6151 + $0x50] sm:$0xff]
    %v6163 = vld [vmem:[%s6151 + $0x58] sm:$0xff]
    %v6164 = vld [vmem:[%s6151 + $0x60] sm:$0xff]
    %v6165 = vld [vmem:[%s6151 + $0x68] sm:$0xff]
    %v6166 = vld [vmem:[%s6151 + $0x70] sm:$0xff]
    %v6167 = vld [vmem:[%s6151 + $0x78] sm:$0xff]
    %v6168 = vld [vmem:[%s6151 + $0x80] sm:$0xff]
    %v6169 = vld [vmem:[%s6151 + $0x88] sm:$0xff]
    %v6170 = vld [vmem:[%s6151 + $0x90] sm:$0xff]
    %v6171 = vld [vmem:[%s6151 + $0x98] sm:$0xff]
    %v6172 = vld [vmem:[%s6151 + $0xa0] sm:$0xff]
    %v6173 = vld [vmem:[%s6151 + $0xa8] sm:$0xff]
    %v6174 = vld [vmem:[%s6151 + $0xb0] sm:$0xff]
    %v6175 = vld [vmem:[%s6151 + $0xb8] sm:$0xff]
    %v6176 = vld [vmem:[%s6151 + $0xc0] sm:$0xff]
    %v6177 = vld [vmem:[%s6151 + $0xc8] sm:$0xff]
    %v6178 = vld [vmem:[%s6151 + $0xd0] sm:$0xff]
    %v6179 = vld [vmem:[%s6151 + $0xd8] sm:$0xff]
    %v6180 = vld [vmem:[%s6151 + $0xe0] sm:$0xff]
    %v6181 = vld [vmem:[%s6151 + $0xe8] sm:$0xff]
    %v6182 = vld [vmem:[%s6151 + $0xf0] sm:$0xff]
    %v6183 = vld [vmem:[%s6151 + $0xf8] sm:$0xff]
    %v6184 = vld [vmem:[%s6151 + $0x100] sm:$0xff]
    %v6185 = vld [vmem:[%s6151 + $0x108] sm:$0xff]
    %v6186 = vld [vmem:[%s6151 + $0x110] sm:$0xff]
    %v6187 = vld [vmem:[%s6151 + $0x118] sm:$0xff]
    %v6188 = vld [vmem:[%s6151 + $0x120] sm:$0xff]
    %v6189 = vld [vmem:[%s6151 + $0x128] sm:$0xff]
    %v6190 = vld [vmem:[%s6151 + $0x130] sm:$0xff]
    %v6191 = vld [vmem:[%s6151 + $0x138] sm:$0xff]
    %v6192 = vld [vmem:[%s6151 + $0x140] sm:$0xff]
    %v6193 = vld [vmem:[%s6151 + $0x148] sm:$0xff]
    %v6194 = vld [vmem:[%s6151 + $0x150] sm:$0xff]
    %v6195 = vld [vmem:[%s6151 + $0x158] sm:$0xff]
    %v6196 = vld [vmem:[%s6151 + $0x160] sm:$0xff]
    %v6197 = vld [vmem:[%s6151 + $0x168] sm:$0xff]
    %v6198 = vld [vmem:[%s6151 + $0x170] sm:$0xff]
    %v6199 = vld [vmem:[%s6151 + $0x178] sm:$0xff]
    %v6200 = vld [vmem:[%s6151 + $0x180] sm:$0xff]
    %v6201 = vld [vmem:[%s6151 + $0x188] sm:$0xff]
    %v6202 = vld [vmem:[%s6151 + $0x190] sm:$0xff]
    %v6203 = vld [vmem:[%s6151 + $0x198] sm:$0xff]
    %v6204 = vld [vmem:[%s6151 + $0x1a0] sm:$0xff]
    %v6205 = vld [vmem:[%s6151 + $0x1a8] sm:$0xff]
    %v6206 = vld [vmem:[%s6151 + $0x1b0] sm:$0xff]
    %v6207 = vld [vmem:[%s6151 + $0x1b8] sm:$0xff]
    %v6208 = vld [vmem:[%s6151 + $0x1c0] sm:$0xff]
    %v6209 = vld [vmem:[%s6151 + $0x1c8] sm:$0xff]
    %v6210 = vld [vmem:[%s6151 + $0x1d0] sm:$0xff]
    %v6211 = vld [vmem:[%s6151 + $0x1d8] sm:$0xff]
    %v6212 = vld [vmem:[%s6151 + $0x1e0] sm:$0xff]
    %v6213 = vld [vmem:[%s6151 + $0x1e8] sm:$0xff]
    %v6214 = vld [vmem:[%s6151 + $0x1f0] sm:$0xff]
    %v6215 = vld [vmem:[%s6151 + $0x1f8] sm:$0xff]
    %v6248 = vunpack.c.l.b16 %v6119
    %v6249 = vunpack.c.h.b16 %v6119
    %v6250 = vunpack.c.l.b16 %v6120
    %v6251 = vunpack.c.h.b16 %v6120
    %v6252 = vunpack.c.l.b16 %v6121
    %v6253 = vunpack.c.h.b16 %v6121
    %v6254 = vunpack.c.l.b16 %v6122
    %v6255 = vunpack.c.h.b16 %v6122
    %v6256 = vunpack.c.l.b16 %v6123
    %v6257 = vunpack.c.h.b16 %v6123
    %v6258 = vunpack.c.l.b16 %v6124
    %v6259 = vunpack.c.h.b16 %v6124
    %v6260 = vunpack.c.l.b16 %v6125
    %v6261 = vunpack.c.h.b16 %v6125
    %v6262 = vunpack.c.l.b16 %v6126
    %v6263 = vunpack.c.h.b16 %v6126
    %v6264 = vunpack.c.l.b16 %v6127
    %v6265 = vunpack.c.h.b16 %v6127
    %v6266 = vunpack.c.l.b16 %v6128
    %v6267 = vunpack.c.h.b16 %v6128
    %v6268 = vunpack.c.l.b16 %v6129
    %v6269 = vunpack.c.h.b16 %v6129
    %v6270 = vunpack.c.l.b16 %v6130
    %v6271 = vunpack.c.h.b16 %v6130
    %v6272 = vunpack.c.l.b16 %v6131
    %v6273 = vunpack.c.h.b16 %v6131
    %v6274 = vunpack.c.l.b16 %v6132
    %v6275 = vunpack.c.h.b16 %v6132
    %v6276 = vunpack.c.l.b16 %v6133
    %v6277 = vunpack.c.h.b16 %v6133
    %v6278 = vunpack.c.l.b16 %v6134
    %v6279 = vunpack.c.h.b16 %v6134
    %v6280 = vunpack.c.l.b16 %v6135
    %v6281 = vunpack.c.h.b16 %v6135
    %v6282 = vunpack.c.l.b16 %v6136
    %v6283 = vunpack.c.h.b16 %v6136
    %v6284 = vunpack.c.l.b16 %v6137
    %v6285 = vunpack.c.h.b16 %v6137
    %v6286 = vunpack.c.l.b16 %v6138
    %v6287 = vunpack.c.h.b16 %v6138
    %v6288 = vunpack.c.l.b16 %v6139
    %v6289 = vunpack.c.h.b16 %v6139
    %v6290 = vunpack.c.l.b16 %v6140
    %v6291 = vunpack.c.h.b16 %v6140
    %v6292 = vunpack.c.l.b16 %v6141
    %v6293 = vunpack.c.h.b16 %v6141
    %v6294 = vunpack.c.l.b16 %v6142
    %v6295 = vunpack.c.h.b16 %v6142
    %v6296 = vunpack.c.l.b16 %v6143
    %v6297 = vunpack.c.h.b16 %v6143
    %v6298 = vunpack.c.l.b16 %v6144
    %v6299 = vunpack.c.h.b16 %v6144
    %v6300 = vunpack.c.l.b16 %v6145
    %v6301 = vunpack.c.h.b16 %v6145
    %v6302 = vunpack.c.l.b16 %v6146
    %v6303 = vunpack.c.h.b16 %v6146
    %v6304 = vunpack.c.l.b16 %v6147
    %v6305 = vunpack.c.h.b16 %v6147
    %v6306 = vunpack.c.l.b16 %v6148
    %v6307 = vunpack.c.h.b16 %v6148
    %v6308 = vunpack.c.l.b16 %v6149
    %v6309 = vunpack.c.h.b16 %v6149
    %v6310 = vunpack.c.l.b16 %v6150
    %v6311 = vunpack.c.h.b16 %v6150
    %v6312 = vperm.slane %v6248, %v1094
    %v6313 = vperm.slane %v6249, %v1096
    %v6314 = vsel %vm1098, %v6313, %v6312
    %v6315 = vperm.slane %v6250, %v1100
    %v6316 = vsel %vm1102, %v6315, %v6314
    %v6317 = vperm.slane %v6251, %v1104
    %v6318 = vsel %vm1106, %v6317, %v6316
    %v6319 = vperm.slane %v6252, %v1108
    %v6320 = vsel %vm1110, %v6319, %v6318
    %v6321 = vperm.slane %v6253, %v1112
    %v6322 = vsel %vm1114, %v6321, %v6320
    %v6323 = vperm.slane %v6254, %v1116
    %v6324 = vsel %vm1118, %v6323, %v6322
    %v6325 = vperm.slane %v6255, %v1120
    %v6326 = vsel %vm1122, %v6325, %v6324
    %v6327 = vperm.slane %v6256, %v1124
    %v6328 = vsel %vm1126, %v6327, %v6326
    %v6329 = vperm.slane %v6257, %v1128
    %v6330 = vsel %vm1130, %v6329, %v6328
    %v6331 = vperm.slane %v6258, %v1132
    %v6332 = vsel %vm1134, %v6331, %v6330
    %v6333 = vperm.slane %v6259, %v1136
    %v6334 = vsel %vm1138, %v6333, %v6332
    %v6335 = vperm.slane %v6260, %v1140
    %v6336 = vsel %vm1142, %v6335, %v6334
    %v6337 = vperm.slane %v6261, %v1144
    %v6338 = vsel %vm1146, %v6337, %v6336
    %v6339 = vperm.slane %v6262, %v1148
    %v6340 = vsel %vm1150, %v6339, %v6338
    %v6341 = vperm.slane %v6263, %v1152
    %v6342 = vsel %vm1154, %v6341, %v6340
    %v6343 = vperm.slane %v6264, %v1094
    %v6344 = vperm.slane %v6265, %v1096
    %v6345 = vsel %vm1098, %v6344, %v6343
    %v6346 = vperm.slane %v6266, %v1100
    %v6347 = vsel %vm1102, %v6346, %v6345
    %v6348 = vperm.slane %v6267, %v1104
    %v6349 = vsel %vm1106, %v6348, %v6347
    %v6350 = vperm.slane %v6268, %v1108
    %v6351 = vsel %vm1110, %v6350, %v6349
    %v6352 = vperm.slane %v6269, %v1112
    %v6353 = vsel %vm1114, %v6352, %v6351
    %v6354 = vperm.slane %v6270, %v1116
    %v6355 = vsel %vm1118, %v6354, %v6353
    %v6356 = vperm.slane %v6271, %v1120
    %v6357 = vsel %vm1122, %v6356, %v6355
    %v6358 = vperm.slane %v6272, %v1124
    %v6359 = vsel %vm1126, %v6358, %v6357
    %v6360 = vperm.slane %v6273, %v1128
    %v6361 = vsel %vm1130, %v6360, %v6359
    %v6362 = vperm.slane %v6274, %v1132
    %v6363 = vsel %vm1134, %v6362, %v6361
    %v6364 = vperm.slane %v6275, %v1136
    %v6365 = vsel %vm1138, %v6364, %v6363
    %v6366 = vperm.slane %v6276, %v1140
    %v6367 = vsel %vm1142, %v6366, %v6365
    %v6368 = vperm.slane %v6277, %v1144
    %v6369 = vsel %vm1146, %v6368, %v6367
    %v6370 = vperm.slane %v6278, %v1148
    %v6371 = vsel %vm1150, %v6370, %v6369
    %v6372 = vperm.slane %v6279, %v1152
    %v6373 = vsel %vm1154, %v6372, %v6371
    %v6374 = vperm.slane %v6280, %v1094
    %v6375 = vperm.slane %v6281, %v1096
    %v6376 = vsel %vm1098, %v6375, %v6374
    %v6377 = vperm.slane %v6282, %v1100
    %v6378 = vsel %vm1102, %v6377, %v6376
    %v6379 = vperm.slane %v6283, %v1104
    %v6380 = vsel %vm1106, %v6379, %v6378
    %v6381 = vperm.slane %v6284, %v1108
    %v6382 = vsel %vm1110, %v6381, %v6380
    %v6383 = vperm.slane %v6285, %v1112
    %v6384 = vsel %vm1114, %v6383, %v6382
    %v6385 = vperm.slane %v6286, %v1116
    %v6386 = vsel %vm1118, %v6385, %v6384
    %v6387 = vperm.slane %v6287, %v1120
    %v6388 = vsel %vm1122, %v6387, %v6386
    %v6389 = vperm.slane %v6288, %v1124
    %v6390 = vsel %vm1126, %v6389, %v6388
    %v6391 = vperm.slane %v6289, %v1128
    %v6392 = vsel %vm1130, %v6391, %v6390
    %v6393 = vperm.slane %v6290, %v1132
    %v6394 = vsel %vm1134, %v6393, %v6392
    %v6395 = vperm.slane %v6291, %v1136
    %v6396 = vsel %vm1138, %v6395, %v6394
    %v6397 = vperm.slane %v6292, %v1140
    %v6398 = vsel %vm1142, %v6397, %v6396
    %v6399 = vperm.slane %v6293, %v1144
    %v6400 = vsel %vm1146, %v6399, %v6398
    %v6401 = vperm.slane %v6294, %v1148
    %v6402 = vsel %vm1150, %v6401, %v6400
    %v6403 = vperm.slane %v6295, %v1152
    %v6404 = vsel %vm1154, %v6403, %v6402
    %v6405 = vperm.slane %v6296, %v1094
    %v6406 = vperm.slane %v6297, %v1096
    %v6407 = vsel %vm1098, %v6406, %v6405
    %v6408 = vperm.slane %v6298, %v1100
    %v6409 = vsel %vm1102, %v6408, %v6407
    %v6410 = vperm.slane %v6299, %v1104
    %v6411 = vsel %vm1106, %v6410, %v6409
    %v6412 = vperm.slane %v6300, %v1108
    %v6413 = vsel %vm1110, %v6412, %v6411
    %v6414 = vperm.slane %v6301, %v1112
    %v6415 = vsel %vm1114, %v6414, %v6413
    %v6416 = vperm.slane %v6302, %v1116
    %v6417 = vsel %vm1118, %v6416, %v6415
    %v6418 = vperm.slane %v6303, %v1120
    %v6419 = vsel %vm1122, %v6418, %v6417
    %v6420 = vperm.slane %v6304, %v1124
    %v6421 = vsel %vm1126, %v6420, %v6419
    %v6422 = vperm.slane %v6305, %v1128
    %v6423 = vsel %vm1130, %v6422, %v6421
    %v6424 = vperm.slane %v6306, %v1132
    %v6425 = vsel %vm1134, %v6424, %v6423
    %v6426 = vperm.slane %v6307, %v1136
    %v6427 = vsel %vm1138, %v6426, %v6425
    %v6428 = vperm.slane %v6308, %v1140
    %v6429 = vsel %vm1142, %v6428, %v6427
    %v6430 = vperm.slane %v6309, %v1144
    %v6431 = vsel %vm1146, %v6430, %v6429
    %v6432 = vperm.slane %v6310, %v1148
    %v6433 = vsel %vm1150, %v6432, %v6431
    %v6434 = vperm.slane %v6311, %v1152
    %v6435 = vsel %vm1154, %v6434, %v6433
    %v6436 = vsel %vm1249, %v6404, %v6342
    %v6437 = vsel %vm1249, %v6435, %v6373
    %v6438 = vpack.c.b16 %v6436, %v6436
    %v6439 = vpack.c.b16 %v6437, %v6437
    %v6506 = vunpack.c.l.b16 %v6152
    %v6507 = vunpack.c.h.b16 %v6152
    %v6508 = vunpack.c.l.b16 %v6153
    %v6509 = vunpack.c.h.b16 %v6153
    %v6510 = vunpack.c.l.b16 %v6154
    %v6511 = vunpack.c.h.b16 %v6154
    %v6512 = vunpack.c.l.b16 %v6155
    %v6513 = vunpack.c.h.b16 %v6155
    %v6514 = vunpack.c.l.b16 %v6156
    %v6515 = vunpack.c.h.b16 %v6156
    %v6516 = vunpack.c.l.b16 %v6157
    %v6517 = vunpack.c.h.b16 %v6157
    %v6518 = vunpack.c.l.b16 %v6158
    %v6519 = vunpack.c.h.b16 %v6158
    %v6520 = vunpack.c.l.b16 %v6159
    %v6521 = vunpack.c.h.b16 %v6159
    %v6522 = vunpack.c.l.b16 %v6160
    %v6523 = vunpack.c.h.b16 %v6160
    %v6524 = vunpack.c.l.b16 %v6161
    %v6525 = vunpack.c.h.b16 %v6161
    %v6526 = vunpack.c.l.b16 %v6162
    %v6527 = vunpack.c.h.b16 %v6162
    %v6528 = vunpack.c.l.b16 %v6163
    %v6529 = vunpack.c.h.b16 %v6163
    %v6530 = vunpack.c.l.b16 %v6164
    %v6531 = vunpack.c.h.b16 %v6164
    %v6532 = vunpack.c.l.b16 %v6165
    %v6533 = vunpack.c.h.b16 %v6165
    %v6534 = vunpack.c.l.b16 %v6166
    %v6535 = vunpack.c.h.b16 %v6166
    %v6536 = vunpack.c.l.b16 %v6167
    %v6537 = vunpack.c.h.b16 %v6167
    %v6538 = vunpack.c.l.b16 %v6168
    %v6539 = vunpack.c.h.b16 %v6168
    %v6540 = vunpack.c.l.b16 %v6169
    %v6541 = vunpack.c.h.b16 %v6169
    %v6542 = vunpack.c.l.b16 %v6170
    %v6543 = vunpack.c.h.b16 %v6170
    %v6544 = vunpack.c.l.b16 %v6171
    %v6545 = vunpack.c.h.b16 %v6171
    %v6546 = vunpack.c.l.b16 %v6172
    %v6547 = vunpack.c.h.b16 %v6172
    %v6548 = vunpack.c.l.b16 %v6173
    %v6549 = vunpack.c.h.b16 %v6173
    %v6550 = vunpack.c.l.b16 %v6174
    %v6551 = vunpack.c.h.b16 %v6174
    %v6552 = vunpack.c.l.b16 %v6175
    %v6553 = vunpack.c.h.b16 %v6175
    %v6554 = vunpack.c.l.b16 %v6176
    %v6555 = vunpack.c.h.b16 %v6176
    %v6556 = vunpack.c.l.b16 %v6177
    %v6557 = vunpack.c.h.b16 %v6177
    %v6558 = vunpack.c.l.b16 %v6178
    %v6559 = vunpack.c.h.b16 %v6178
    %v6560 = vunpack.c.l.b16 %v6179
    %v6561 = vunpack.c.h.b16 %v6179
    %v6562 = vunpack.c.l.b16 %v6180
    %v6563 = vunpack.c.h.b16 %v6180
    %v6564 = vunpack.c.l.b16 %v6181
    %v6565 = vunpack.c.h.b16 %v6181
    %v6566 = vunpack.c.l.b16 %v6182
    %v6567 = vunpack.c.h.b16 %v6182
    %v6568 = vunpack.c.l.b16 %v6183
    %v6569 = vunpack.c.h.b16 %v6183
    %v6570 = vunpack.c.l.b16 %v6184
    %v6571 = vunpack.c.h.b16 %v6184
    %v6572 = vunpack.c.l.b16 %v6185
    %v6573 = vunpack.c.h.b16 %v6185
    %v6574 = vunpack.c.l.b16 %v6186
    %v6575 = vunpack.c.h.b16 %v6186
    %v6576 = vunpack.c.l.b16 %v6187
    %v6577 = vunpack.c.h.b16 %v6187
    %v6578 = vunpack.c.l.b16 %v6188
    %v6579 = vunpack.c.h.b16 %v6188
    %v6580 = vunpack.c.l.b16 %v6189
    %v6581 = vunpack.c.h.b16 %v6189
    %v6582 = vunpack.c.l.b16 %v6190
    %v6583 = vunpack.c.h.b16 %v6190
    %v6584 = vunpack.c.l.b16 %v6191
    %v6585 = vunpack.c.h.b16 %v6191
    %v6586 = vunpack.c.l.b16 %v6192
    %v6587 = vunpack.c.h.b16 %v6192
    %v6588 = vunpack.c.l.b16 %v6193
    %v6589 = vunpack.c.h.b16 %v6193
    %v6590 = vunpack.c.l.b16 %v6194
    %v6591 = vunpack.c.h.b16 %v6194
    %v6592 = vunpack.c.l.b16 %v6195
    %v6593 = vunpack.c.h.b16 %v6195
    %v6594 = vunpack.c.l.b16 %v6196
    %v6595 = vunpack.c.h.b16 %v6196
    %v6596 = vunpack.c.l.b16 %v6197
    %v6597 = vunpack.c.h.b16 %v6197
    %v6598 = vunpack.c.l.b16 %v6198
    %v6599 = vunpack.c.h.b16 %v6198
    %v6600 = vunpack.c.l.b16 %v6199
    %v6601 = vunpack.c.h.b16 %v6199
    %v6602 = vunpack.c.l.b16 %v6200
    %v6603 = vunpack.c.h.b16 %v6200
    %v6604 = vunpack.c.l.b16 %v6201
    %v6605 = vunpack.c.h.b16 %v6201
    %v6606 = vunpack.c.l.b16 %v6202
    %v6607 = vunpack.c.h.b16 %v6202
    %v6608 = vunpack.c.l.b16 %v6203
    %v6609 = vunpack.c.h.b16 %v6203
    %v6610 = vunpack.c.l.b16 %v6204
    %v6611 = vunpack.c.h.b16 %v6204
    %v6612 = vunpack.c.l.b16 %v6205
    %v6613 = vunpack.c.h.b16 %v6205
    %v6614 = vunpack.c.l.b16 %v6206
    %v6615 = vunpack.c.h.b16 %v6206
    %v6616 = vunpack.c.l.b16 %v6207
    %v6617 = vunpack.c.h.b16 %v6207
    %v6618 = vunpack.c.l.b16 %v6208
    %v6619 = vunpack.c.h.b16 %v6208
    %v6620 = vunpack.c.l.b16 %v6209
    %v6621 = vunpack.c.h.b16 %v6209
    %v6622 = vunpack.c.l.b16 %v6210
    %v6623 = vunpack.c.h.b16 %v6210
    %v6624 = vunpack.c.l.b16 %v6211
    %v6625 = vunpack.c.h.b16 %v6211
    %v6626 = vunpack.c.l.b16 %v6212
    %v6627 = vunpack.c.h.b16 %v6212
    %v6628 = vunpack.c.l.b16 %v6213
    %v6629 = vunpack.c.h.b16 %v6213
    %v6630 = vunpack.c.l.b16 %v6214
    %v6631 = vunpack.c.h.b16 %v6214
    %v6632 = vunpack.c.l.b16 %v6215
    %v6633 = vunpack.c.h.b16 %v6215
    %v6634 = vpack.c.b16 %v6510, %v6506
    %v6635 = vpack.c.b16 %v6511, %v6507
    %v6636 = vpack.c.b16 %v6512, %v6508
    %v6637 = vpack.c.b16 %v6513, %v6509
    %v6638 = vpack.c.b16 %v6518, %v6514
    %v6639 = vpack.c.b16 %v6519, %v6515
    %v6640 = vpack.c.b16 %v6520, %v6516
    %v6641 = vpack.c.b16 %v6521, %v6517
    %v6642 = vpack.c.b16 %v6526, %v6522
    %v6643 = vpack.c.b16 %v6527, %v6523
    %v6644 = vpack.c.b16 %v6528, %v6524
    %v6645 = vpack.c.b16 %v6529, %v6525
    %v6646 = vpack.c.b16 %v6534, %v6530
    %v6647 = vpack.c.b16 %v6535, %v6531
    %v6648 = vpack.c.b16 %v6536, %v6532
    %v6649 = vpack.c.b16 %v6537, %v6533
    %v6650 = vpack.c.b16 %v6542, %v6538
    %v6651 = vpack.c.b16 %v6543, %v6539
    %v6652 = vpack.c.b16 %v6544, %v6540
    %v6653 = vpack.c.b16 %v6545, %v6541
    %v6654 = vpack.c.b16 %v6550, %v6546
    %v6655 = vpack.c.b16 %v6551, %v6547
    %v6656 = vpack.c.b16 %v6552, %v6548
    %v6657 = vpack.c.b16 %v6553, %v6549
    %v6658 = vpack.c.b16 %v6558, %v6554
    %v6659 = vpack.c.b16 %v6559, %v6555
    %v6660 = vpack.c.b16 %v6560, %v6556
    %v6661 = vpack.c.b16 %v6561, %v6557
    %v6662 = vpack.c.b16 %v6566, %v6562
    %v6663 = vpack.c.b16 %v6567, %v6563
    %v6664 = vpack.c.b16 %v6568, %v6564
    %v6665 = vpack.c.b16 %v6569, %v6565
    %v6666 = vpack.c.b16 %v6574, %v6570
    %v6667 = vpack.c.b16 %v6575, %v6571
    %v6668 = vpack.c.b16 %v6576, %v6572
    %v6669 = vpack.c.b16 %v6577, %v6573
    %v6670 = vpack.c.b16 %v6582, %v6578
    %v6671 = vpack.c.b16 %v6583, %v6579
    %v6672 = vpack.c.b16 %v6584, %v6580
    %v6673 = vpack.c.b16 %v6585, %v6581
    %v6674 = vpack.c.b16 %v6590, %v6586
    %v6675 = vpack.c.b16 %v6591, %v6587
    %v6676 = vpack.c.b16 %v6592, %v6588
    %v6677 = vpack.c.b16 %v6593, %v6589
    %v6678 = vpack.c.b16 %v6598, %v6594
    %v6679 = vpack.c.b16 %v6599, %v6595
    %v6680 = vpack.c.b16 %v6600, %v6596
    %v6681 = vpack.c.b16 %v6601, %v6597
    %v6682 = vpack.c.b16 %v6606, %v6602
    %v6683 = vpack.c.b16 %v6607, %v6603
    %v6684 = vpack.c.b16 %v6608, %v6604
    %v6685 = vpack.c.b16 %v6609, %v6605
    %v6686 = vpack.c.b16 %v6614, %v6610
    %v6687 = vpack.c.b16 %v6615, %v6611
    %v6688 = vpack.c.b16 %v6616, %v6612
    %v6689 = vpack.c.b16 %v6617, %v6613
    %v6690 = vpack.c.b16 %v6622, %v6618
    %v6691 = vpack.c.b16 %v6623, %v6619
    %v6692 = vpack.c.b16 %v6624, %v6620
    %v6693 = vpack.c.b16 %v6625, %v6621
    %v6694 = vpack.c.b16 %v6630, %v6626
    %v6695 = vpack.c.b16 %v6631, %v6627
    %v6696 = vpack.c.b16 %v6632, %v6628
    %v6697 = vpack.c.b16 %v6633, %v6629
    %6762 = vmatpush.bf16.msra.mxu0 %v6662
    %6763 = vmatpush.bf16.msra.mxu0 %v6658
    %6764 = vmatpush.bf16.msra.mxu0 %v6654
    %6765 = vmatpush.bf16.msra.mxu0 %v6650
    %6766 = vmatpush.bf16.msra.mxu0 %v6646
    %6767 = vmatpush.bf16.msra.mxu0 %v6642
    %6768 = vmatpush.bf16.msra.mxu0 %v6638
    %6769 = vmatpush.bf16.msra.mxu0 %v6634
    %6770 = vmatmul.bf16.gmra.mxu0 %v6438
    %v6771 = vpop.f32.mrf.mxu0
    %v6772 = vadd.f32 0.0, %v6771
    %v6773 = vpop.f32.mrf.mxu0
    %6774 = vdwg.mxu0
    %6775 = vmatpush.bf16.msra.mxu0 %v6694
    %6776 = vmatpush.bf16.msra.mxu0 %v6690
    %6777 = vmatpush.bf16.msra.mxu0 %v6686
    %6778 = vmatpush.bf16.msra.mxu0 %v6682
    %6779 = vmatpush.bf16.msra.mxu0 %v6678
    %6780 = vmatpush.bf16.msra.mxu0 %v6674
    %6781 = vmatpush.bf16.msra.mxu0 %v6670
    %6782 = vmatpush.bf16.msra.mxu0 %v6666
    %6783 = vmatmul.bf16.gmra.mxu0 %v6439
    %v6784 = vpop.f32.mrf.mxu0
    %v6785 = vadd.f32 %v6772, %v6784
    %v6786 = vpop.f32.mrf.mxu0
    %6787 = vdwg.mxu0
    %6788 = vmatpush.bf16.msra.mxu0 %v6663
    %6789 = vmatpush.bf16.msra.mxu0 %v6659
    %6790 = vmatpush.bf16.msra.mxu0 %v6655
    %6791 = vmatpush.bf16.msra.mxu0 %v6651
    %6792 = vmatpush.bf16.msra.mxu0 %v6647
    %6793 = vmatpush.bf16.msra.mxu0 %v6643
    %6794 = vmatpush.bf16.msra.mxu0 %v6639
    %6795 = vmatpush.bf16.msra.mxu0 %v6635
    %6796 = vmatmul.bf16.gmra.mxu0 %v6438
    %v6797 = vpop.f32.mrf.mxu0
    %v6798 = vadd.f32 0.0, %v6797
    %v6799 = vpop.f32.mrf.mxu0
    %6800 = vdwg.mxu0
    %6801 = vmatpush.bf16.msra.mxu0 %v6695
    %6802 = vmatpush.bf16.msra.mxu0 %v6691
    %6803 = vmatpush.bf16.msra.mxu0 %v6687
    %6804 = vmatpush.bf16.msra.mxu0 %v6683
    %6805 = vmatpush.bf16.msra.mxu0 %v6679
    %6806 = vmatpush.bf16.msra.mxu0 %v6675
    %6807 = vmatpush.bf16.msra.mxu0 %v6671
    %6808 = vmatpush.bf16.msra.mxu0 %v6667
    %6809 = vmatmul.bf16.gmra.mxu0 %v6439
    %v6810 = vpop.f32.mrf.mxu0
    %v6811 = vadd.f32 %v6798, %v6810
    %v6812 = vpop.f32.mrf.mxu0
    %6813 = vdwg.mxu0
    %6814 = vmatpush.bf16.msra.mxu0 %v6664
    %6815 = vmatpush.bf16.msra.mxu0 %v6660
    %6816 = vmatpush.bf16.msra.mxu0 %v6656
    %6817 = vmatpush.bf16.msra.mxu0 %v6652
    %6818 = vmatpush.bf16.msra.mxu0 %v6648
    %6819 = vmatpush.bf16.msra.mxu0 %v6644
    %6820 = vmatpush.bf16.msra.mxu0 %v6640
    %6821 = vmatpush.bf16.msra.mxu0 %v6636
    %6822 = vmatmul.bf16.gmra.mxu0 %v6438
    %v6823 = vpop.f32.mrf.mxu0
    %v6824 = vadd.f32 0.0, %v6823
    %v6825 = vpop.f32.mrf.mxu0
    %6826 = vdwg.mxu0
    %6827 = vmatpush.bf16.msra.mxu0 %v6696
    %6828 = vmatpush.bf16.msra.mxu0 %v6692
    %6829 = vmatpush.bf16.msra.mxu0 %v6688
    %6830 = vmatpush.bf16.msra.mxu0 %v6684
    %6831 = vmatpush.bf16.msra.mxu0 %v6680
    %6832 = vmatpush.bf16.msra.mxu0 %v6676
    %6833 = vmatpush.bf16.msra.mxu0 %v6672
    %6834 = vmatpush.bf16.msra.mxu0 %v6668
    %6835 = vmatmul.bf16.gmra.mxu0 %v6439
    %v6836 = vpop.f32.mrf.mxu0
    %v6837 = vadd.f32 %v6824, %v6836
    %v6838 = vpop.f32.mrf.mxu0
    %6839 = vdwg.mxu0
    %6840 = vmatpush.bf16.msra.mxu0 %v6665
    %6841 = vmatpush.bf16.msra.mxu0 %v6661
    %6842 = vmatpush.bf16.msra.mxu0 %v6657
    %6843 = vmatpush.bf16.msra.mxu0 %v6653
    %6844 = vmatpush.bf16.msra.mxu0 %v6649
    %6845 = vmatpush.bf16.msra.mxu0 %v6645
    %6846 = vmatpush.bf16.msra.mxu0 %v6641
    %6847 = vmatpush.bf16.msra.mxu0 %v6637
    %6848 = vmatmul.bf16.gmra.mxu0 %v6438
    %v6849 = vpop.f32.mrf.mxu0
    %v6850 = vadd.f32 0.0, %v6849
    %v6851 = vpop.f32.mrf.mxu0
    %6852 = vdwg.mxu0
    %6853 = vmatpush.bf16.msra.mxu0 %v6697
    %6854 = vmatpush.bf16.msra.mxu0 %v6693
    %6855 = vmatpush.bf16.msra.mxu0 %v6689
    %6856 = vmatpush.bf16.msra.mxu0 %v6685
    %6857 = vmatpush.bf16.msra.mxu0 %v6681
    %6858 = vmatpush.bf16.msra.mxu0 %v6677
    %6859 = vmatpush.bf16.msra.mxu0 %v6673
    %6860 = vmatpush.bf16.msra.mxu0 %v6669
    %6861 = vmatmul.bf16.gmra.mxu0 %v6439
    %v6862 = vpop.f32.mrf.mxu0
    %v6863 = vadd.f32 %v6850, %v6862
    %v6864 = vpop.f32.mrf.mxu0
    %6865 = vdwg.mxu0
    %v6866 = vadd.f32 %v5731, %v6785
    %v6867 = vadd.f32 %v5732, %v6811
    %v6868 = vadd.f32 %v5733, %v6837
    %v6869 = vadd.f32 %v5734, %v6863
    %6870 = vrot.lane.b32.xlu0 %v99, 32
    %v6871 = vpop.permute.xlu0 %6870
    %6872 = vrot.lane.b32.xlu0 %v100, 32
    %v6873 = vpop.permute.xlu0 %6872
    %6874 = vrot.lane.b32.xlu0 %v101, 32
    %v6875 = vpop.permute.xlu0 %6874
    %6876 = vrot.lane.b32.xlu0 %v102, 32
    %v6877 = vpop.permute.xlu0 %6876
    %6878 = vrot.lane.b32.xlu0 %v103, 32
    %v6879 = vpop.permute.xlu0 %6878
    %6880 = vrot.lane.b32.xlu0 %v104, 32
    %v6881 = vpop.permute.xlu0 %6880
    %6882 = vrot.lane.b32.xlu0 %v105, 32
    %v6883 = vpop.permute.xlu0 %6882
    %6884 = vrot.lane.b32.xlu0 %v106, 32
    %v6885 = vpop.permute.xlu0 %6884
    %6886 = vrot.lane.b32.xlu0 %v107, 32
    %v6887 = vpop.permute.xlu0 %6886
    %6888 = vrot.lane.b32.xlu0 %v108, 32
    %v6889 = vpop.permute.xlu0 %6888
    %6890 = vrot.lane.b32.xlu0 %v109, 32
    %v6891 = vpop.permute.xlu0 %6890
    %6892 = vrot.lane.b32.xlu0 %v110, 32
    %v6893 = vpop.permute.xlu0 %6892
    %6894 = vrot.lane.b32.xlu0 %v111, 32
    %v6895 = vpop.permute.xlu0 %6894
    %6896 = vrot.lane.b32.xlu0 %v112, 32
    %v6897 = vpop.permute.xlu0 %6896
    %6898 = vrot.lane.b32.xlu0 %v113, 32
    %v6899 = vpop.permute.xlu0 %6898
    %6900 = vrot.lane.b32.xlu0 %v114, 32
    %v6901 = vpop.permute.xlu0 %6900
    %6902 = vrot.lane.b32.xlu0 %v115, 32
    %v6903 = vpop.permute.xlu0 %6902
    %6904 = vrot.lane.b32.xlu0 %v116, 32
    %v6905 = vpop.permute.xlu0 %6904
    %6906 = vrot.lane.b32.xlu0 %v117, 32
    %v6907 = vpop.permute.xlu0 %6906
    %6908 = vrot.lane.b32.xlu0 %v118, 32
    %v6909 = vpop.permute.xlu0 %6908
    %6910 = vrot.lane.b32.xlu0 %v119, 32
    %v6911 = vpop.permute.xlu0 %6910
    %6912 = vrot.lane.b32.xlu0 %v120, 32
    %v6913 = vpop.permute.xlu0 %6912
    %6914 = vrot.lane.b32.xlu0 %v121, 32
    %v6915 = vpop.permute.xlu0 %6914
    %6916 = vrot.lane.b32.xlu0 %v122, 32
    %v6917 = vpop.permute.xlu0 %6916
    %6918 = vrot.lane.b32.xlu0 %v123, 32
    %v6919 = vpop.permute.xlu0 %6918
    %6920 = vrot.lane.b32.xlu0 %v124, 32
    %v6921 = vpop.permute.xlu0 %6920
    %6922 = vrot.lane.b32.xlu0 %v125, 32
    %v6923 = vpop.permute.xlu0 %6922
    %6924 = vrot.lane.b32.xlu0 %v126, 32
    %v6925 = vpop.permute.xlu0 %6924
    %6926 = vrot.lane.b32.xlu0 %v127, 32
    %v6927 = vpop.permute.xlu0 %6926
    %6928 = vrot.lane.b32.xlu0 %v128, 32
    %v6929 = vpop.permute.xlu0 %6928
    %6930 = vrot.lane.b32.xlu0 %v129, 32
    %v6931 = vpop.permute.xlu0 %6930
    %6932 = vrot.lane.b32.xlu0 %v130, 32
    %v6933 = vpop.permute.xlu0 %6932
    %6934 = vrot.lane.b32.xlu0 %v131, 32
    %v6935 = vpop.permute.xlu0 %6934
    %6936 = vrot.lane.b32.xlu0 %v132, 32
    %v6937 = vpop.permute.xlu0 %6936
    %6938 = vrot.lane.b32.xlu0 %v133, 32
    %v6939 = vpop.permute.xlu0 %6938
    %6940 = vrot.lane.b32.xlu0 %v134, 32
    %v6941 = vpop.permute.xlu0 %6940
    %6942 = vrot.lane.b32.xlu0 %v135, 32
    %v6943 = vpop.permute.xlu0 %6942
    %6944 = vrot.lane.b32.xlu0 %v136, 32
    %v6945 = vpop.permute.xlu0 %6944
    %6946 = vrot.lane.b32.xlu0 %v137, 32
    %v6947 = vpop.permute.xlu0 %6946
    %6948 = vrot.lane.b32.xlu0 %v138, 32
    %v6949 = vpop.permute.xlu0 %6948
    %6950 = vrot.lane.b32.xlu0 %v139, 32
    %v6951 = vpop.permute.xlu0 %6950
    %6952 = vrot.lane.b32.xlu0 %v140, 32
    %v6953 = vpop.permute.xlu0 %6952
    %6954 = vrot.lane.b32.xlu0 %v141, 32
    %v6955 = vpop.permute.xlu0 %6954
    %6956 = vrot.lane.b32.xlu0 %v142, 32
    %v6957 = vpop.permute.xlu0 %6956
    %6958 = vrot.lane.b32.xlu0 %v143, 32
    %v6959 = vpop.permute.xlu0 %6958
    %6960 = vrot.lane.b32.xlu0 %v144, 32
    %v6961 = vpop.permute.xlu0 %6960
    %6962 = vrot.lane.b32.xlu0 %v145, 32
    %v6963 = vpop.permute.xlu0 %6962
    %6964 = vrot.lane.b32.xlu0 %v146, 32
    %v6965 = vpop.permute.xlu0 %6964
    %6966 = vrot.lane.b32.xlu0 %v147, 32
    %v6967 = vpop.permute.xlu0 %6966
    %6968 = vrot.lane.b32.xlu0 %v148, 32
    %v6969 = vpop.permute.xlu0 %6968
    %6970 = vrot.lane.b32.xlu0 %v149, 32
    %v6971 = vpop.permute.xlu0 %6970
    %6972 = vrot.lane.b32.xlu0 %v150, 32
    %v6973 = vpop.permute.xlu0 %6972
    %6974 = vrot.lane.b32.xlu0 %v151, 32
    %v6975 = vpop.permute.xlu0 %6974
    %6976 = vrot.lane.b32.xlu0 %v152, 32
    %v6977 = vpop.permute.xlu0 %6976
    %6978 = vrot.lane.b32.xlu0 %v153, 32
    %v6979 = vpop.permute.xlu0 %6978
    %6980 = vrot.lane.b32.xlu0 %v154, 32
    %v6981 = vpop.permute.xlu0 %6980
    %6982 = vrot.lane.b32.xlu0 %v155, 32
    %v6983 = vpop.permute.xlu0 %6982
    %6984 = vrot.lane.b32.xlu0 %v156, 32
    %v6985 = vpop.permute.xlu0 %6984
    %6986 = vrot.lane.b32.xlu0 %v157, 32
    %v6987 = vpop.permute.xlu0 %6986
    %6988 = vrot.lane.b32.xlu0 %v158, 32
    %v6989 = vpop.permute.xlu0 %6988
    %6990 = vrot.lane.b32.xlu0 %v159, 32
    %v6991 = vpop.permute.xlu0 %6990
    %6992 = vrot.lane.b32.xlu0 %v160, 32
    %v6993 = vpop.permute.xlu0 %6992
    %6994 = vrot.lane.b32.xlu0 %v161, 32
    %v6995 = vpop.permute.xlu0 %6994
    %6996 = vrot.lane.b32.xlu0 %v162, 32
    %v6997 = vpop.permute.xlu0 %6996
    %v7062 = vsel %vm163, %v6871, 0.0
    %7063 = vadd.xlane.f32.xlu0 %v7062
    %v7064 = vpop.xlane.xlu0 %7063
    %v7065 = vsel %vm163, %v6873, 0.0
    %7066 = vadd.xlane.f32.xlu0 %v7065
    %v7067 = vpop.xlane.xlu0 %7066
    %v7068 = vsel %vm163, %v6875, 0.0
    %7069 = vadd.xlane.f32.xlu0 %v7068
    %v7070 = vpop.xlane.xlu0 %7069
    %v7071 = vsel %vm163, %v6877, 0.0
    %7072 = vadd.xlane.f32.xlu0 %v7071
    %v7073 = vpop.xlane.xlu0 %7072
    %v7074 = vsel %vm163, %v6879, 0.0
    %7075 = vadd.xlane.f32.xlu0 %v7074
    %v7076 = vpop.xlane.xlu0 %7075
    %v7077 = vsel %vm163, %v6881, 0.0
    %7078 = vadd.xlane.f32.xlu0 %v7077
    %v7079 = vpop.xlane.xlu0 %7078
    %v7080 = vsel %vm163, %v6883, 0.0
    %7081 = vadd.xlane.f32.xlu0 %v7080
    %v7082 = vpop.xlane.xlu0 %7081
    %v7083 = vsel %vm163, %v6885, 0.0
    %7084 = vadd.xlane.f32.xlu0 %v7083
    %v7085 = vpop.xlane.xlu0 %7084
    %v7086 = vsel %vm163, %v6887, 0.0
    %7087 = vadd.xlane.f32.xlu0 %v7086
    %v7088 = vpop.xlane.xlu0 %7087
    %v7089 = vsel %vm163, %v6889, 0.0
    %7090 = vadd.xlane.f32.xlu0 %v7089
    %v7091 = vpop.xlane.xlu0 %7090
    %v7092 = vsel %vm163, %v6891, 0.0
    %7093 = vadd.xlane.f32.xlu0 %v7092
    %v7094 = vpop.xlane.xlu0 %7093
    %v7095 = vsel %vm163, %v6893, 0.0
    %7096 = vadd.xlane.f32.xlu0 %v7095
    %v7097 = vpop.xlane.xlu0 %7096
    %v7098 = vsel %vm163, %v6895, 0.0
    %7099 = vadd.xlane.f32.xlu0 %v7098
    %v7100 = vpop.xlane.xlu0 %7099
    %v7101 = vsel %vm163, %v6897, 0.0
    %7102 = vadd.xlane.f32.xlu0 %v7101
    %v7103 = vpop.xlane.xlu0 %7102
    %v7104 = vsel %vm163, %v6899, 0.0
    %7105 = vadd.xlane.f32.xlu0 %v7104
    %v7106 = vpop.xlane.xlu0 %7105
    %v7107 = vsel %vm163, %v6901, 0.0
    %7108 = vadd.xlane.f32.xlu0 %v7107
    %v7109 = vpop.xlane.xlu0 %7108
    %v7110 = vsel %vm163, %v6903, 0.0
    %7111 = vadd.xlane.f32.xlu0 %v7110
    %v7112 = vpop.xlane.xlu0 %7111
    %v7113 = vsel %vm163, %v6905, 0.0
    %7114 = vadd.xlane.f32.xlu0 %v7113
    %v7115 = vpop.xlane.xlu0 %7114
    %v7116 = vsel %vm163, %v6907, 0.0
    %7117 = vadd.xlane.f32.xlu0 %v7116
    %v7118 = vpop.xlane.xlu0 %7117
    %v7119 = vsel %vm163, %v6909, 0.0
    %7120 = vadd.xlane.f32.xlu0 %v7119
    %v7121 = vpop.xlane.xlu0 %7120
    %v7122 = vsel %vm163, %v6911, 0.0
    %7123 = vadd.xlane.f32.xlu0 %v7122
    %v7124 = vpop.xlane.xlu0 %7123
    %v7125 = vsel %vm163, %v6913, 0.0
    %7126 = vadd.xlane.f32.xlu0 %v7125
    %v7127 = vpop.xlane.xlu0 %7126
    %v7128 = vsel %vm163, %v6915, 0.0
    %7129 = vadd.xlane.f32.xlu0 %v7128
    %v7130 = vpop.xlane.xlu0 %7129
    %v7131 = vsel %vm163, %v6917, 0.0
    %7132 = vadd.xlane.f32.xlu0 %v7131
    %v7133 = vpop.xlane.xlu0 %7132
    %v7134 = vsel %vm163, %v6919, 0.0
    %7135 = vadd.xlane.f32.xlu0 %v7134
    %v7136 = vpop.xlane.xlu0 %7135
    %v7137 = vsel %vm163, %v6921, 0.0
    %7138 = vadd.xlane.f32.xlu0 %v7137
    %v7139 = vpop.xlane.xlu0 %7138
    %v7140 = vsel %vm163, %v6923, 0.0
    %7141 = vadd.xlane.f32.xlu0 %v7140
    %v7142 = vpop.xlane.xlu0 %7141
    %v7143 = vsel %vm163, %v6925, 0.0
    %7144 = vadd.xlane.f32.xlu0 %v7143
    %v7145 = vpop.xlane.xlu0 %7144
    %v7146 = vsel %vm163, %v6927, 0.0
    %7147 = vadd.xlane.f32.xlu0 %v7146
    %v7148 = vpop.xlane.xlu0 %7147
    %v7149 = vsel %vm163, %v6929, 0.0
    %7150 = vadd.xlane.f32.xlu0 %v7149
    %v7151 = vpop.xlane.xlu0 %7150
    %v7152 = vsel %vm163, %v6931, 0.0
    %7153 = vadd.xlane.f32.xlu0 %v7152
    %v7154 = vpop.xlane.xlu0 %7153
    %v7155 = vsel %vm163, %v6933, 0.0
    %7156 = vadd.xlane.f32.xlu0 %v7155
    %v7157 = vpop.xlane.xlu0 %7156
    %v7158 = vsel %vm163, %v6935, 0.0
    %7159 = vadd.xlane.f32.xlu0 %v7158
    %v7160 = vpop.xlane.xlu0 %7159
    %v7161 = vsel %vm163, %v6937, 0.0
    %7162 = vadd.xlane.f32.xlu0 %v7161
    %v7163 = vpop.xlane.xlu0 %7162
    %v7164 = vsel %vm163, %v6939, 0.0
    %7165 = vadd.xlane.f32.xlu0 %v7164
    %v7166 = vpop.xlane.xlu0 %7165
    %v7167 = vsel %vm163, %v6941, 0.0
    %7168 = vadd.xlane.f32.xlu0 %v7167
    %v7169 = vpop.xlane.xlu0 %7168
    %v7170 = vsel %vm163, %v6943, 0.0
    %7171 = vadd.xlane.f32.xlu0 %v7170
    %v7172 = vpop.xlane.xlu0 %7171
    %v7173 = vsel %vm163, %v6945, 0.0
    %7174 = vadd.xlane.f32.xlu0 %v7173
    %v7175 = vpop.xlane.xlu0 %7174
    %v7176 = vsel %vm163, %v6947, 0.0
    %7177 = vadd.xlane.f32.xlu0 %v7176
    %v7178 = vpop.xlane.xlu0 %7177
    %v7179 = vsel %vm163, %v6949, 0.0
    %7180 = vadd.xlane.f32.xlu0 %v7179
    %v7181 = vpop.xlane.xlu0 %7180
    %v7182 = vsel %vm163, %v6951, 0.0
    %7183 = vadd.xlane.f32.xlu0 %v7182
    %v7184 = vpop.xlane.xlu0 %7183
    %v7185 = vsel %vm163, %v6953, 0.0
    %7186 = vadd.xlane.f32.xlu0 %v7185
    %v7187 = vpop.xlane.xlu0 %7186
    %v7188 = vsel %vm163, %v6955, 0.0
    %7189 = vadd.xlane.f32.xlu0 %v7188
    %v7190 = vpop.xlane.xlu0 %7189
    %v7191 = vsel %vm163, %v6957, 0.0
    %7192 = vadd.xlane.f32.xlu0 %v7191
    %v7193 = vpop.xlane.xlu0 %7192
    %v7194 = vsel %vm163, %v6959, 0.0
    %7195 = vadd.xlane.f32.xlu0 %v7194
    %v7196 = vpop.xlane.xlu0 %7195
    %v7197 = vsel %vm163, %v6961, 0.0
    %7198 = vadd.xlane.f32.xlu0 %v7197
    %v7199 = vpop.xlane.xlu0 %7198
    %v7200 = vsel %vm163, %v6963, 0.0
    %7201 = vadd.xlane.f32.xlu0 %v7200
    %v7202 = vpop.xlane.xlu0 %7201
    %v7203 = vsel %vm163, %v6965, 0.0
    %7204 = vadd.xlane.f32.xlu0 %v7203
    %v7205 = vpop.xlane.xlu0 %7204
    %v7206 = vsel %vm163, %v6967, 0.0
    %7207 = vadd.xlane.f32.xlu0 %v7206
    %v7208 = vpop.xlane.xlu0 %7207
    %v7209 = vsel %vm163, %v6969, 0.0
    %7210 = vadd.xlane.f32.xlu0 %v7209
    %v7211 = vpop.xlane.xlu0 %7210
    %v7212 = vsel %vm163, %v6971, 0.0
    %7213 = vadd.xlane.f32.xlu0 %v7212
    %v7214 = vpop.xlane.xlu0 %7213
    %v7215 = vsel %vm163, %v6973, 0.0
    %7216 = vadd.xlane.f32.xlu0 %v7215
    %v7217 = vpop.xlane.xlu0 %7216
    %v7218 = vsel %vm163, %v6975, 0.0
    %7219 = vadd.xlane.f32.xlu0 %v7218
    %v7220 = vpop.xlane.xlu0 %7219
    %v7221 = vsel %vm163, %v6977, 0.0
    %7222 = vadd.xlane.f32.xlu0 %v7221
    %v7223 = vpop.xlane.xlu0 %7222
    %v7224 = vsel %vm163, %v6979, 0.0
    %7225 = vadd.xlane.f32.xlu0 %v7224
    %v7226 = vpop.xlane.xlu0 %7225
    %v7227 = vsel %vm163, %v6981, 0.0
    %7228 = vadd.xlane.f32.xlu0 %v7227
    %v7229 = vpop.xlane.xlu0 %7228
    %v7230 = vsel %vm163, %v6983, 0.0
    %7231 = vadd.xlane.f32.xlu0 %v7230
    %v7232 = vpop.xlane.xlu0 %7231
    %v7233 = vsel %vm163, %v6985, 0.0
    %7234 = vadd.xlane.f32.xlu0 %v7233
    %v7235 = vpop.xlane.xlu0 %7234
    %v7236 = vsel %vm163, %v6987, 0.0
    %7237 = vadd.xlane.f32.xlu0 %v7236
    %v7238 = vpop.xlane.xlu0 %7237
    %v7239 = vsel %vm163, %v6989, 0.0
    %7240 = vadd.xlane.f32.xlu0 %v7239
    %v7241 = vpop.xlane.xlu0 %7240
    %v7242 = vsel %vm163, %v6991, 0.0
    %7243 = vadd.xlane.f32.xlu0 %v7242
    %v7244 = vpop.xlane.xlu0 %7243
    %v7245 = vsel %vm163, %v6993, 0.0
    %7246 = vadd.xlane.f32.xlu0 %v7245
    %v7247 = vpop.xlane.xlu0 %7246
    %v7248 = vsel %vm163, %v6995, 0.0
    %7249 = vadd.xlane.f32.xlu0 %v7248
    %v7250 = vpop.xlane.xlu0 %7249
    %v7251 = vsel %vm163, %v6997, 0.0
    %7252 = vadd.xlane.f32.xlu0 %v7251
    %v7253 = vpop.xlane.xlu0 %7252
    %v7254 = vpack.c.bf16 %v7067, %v7064
    %v7255 = vpack.c.bf16 %v7073, %v7070
    %v7256 = vpack.c.bf16 %v7079, %v7076
    %v7257 = vpack.c.bf16 %v7085, %v7082
    %v7258 = vpack.c.bf16 %v7091, %v7088
    %v7259 = vpack.c.bf16 %v7097, %v7094
    %v7260 = vpack.c.bf16 %v7103, %v7100
    %v7261 = vpack.c.bf16 %v7109, %v7106
    %v7262 = vpack.c.bf16 %v7115, %v7112
    %v7263 = vpack.c.bf16 %v7121, %v7118
    %v7264 = vpack.c.bf16 %v7127, %v7124
    %v7265 = vpack.c.bf16 %v7133, %v7130
    %v7266 = vpack.c.bf16 %v7139, %v7136
    %v7267 = vpack.c.bf16 %v7145, %v7142
    %v7268 = vpack.c.bf16 %v7151, %v7148
    %v7269 = vpack.c.bf16 %v7157, %v7154
    %v7270 = vpack.c.bf16 %v7163, %v7160
    %v7271 = vpack.c.bf16 %v7169, %v7166
    %v7272 = vpack.c.bf16 %v7175, %v7172
    %v7273 = vpack.c.bf16 %v7181, %v7178
    %v7274 = vpack.c.bf16 %v7187, %v7184
    %v7275 = vpack.c.bf16 %v7193, %v7190
    %v7276 = vpack.c.bf16 %v7199, %v7196
    %v7277 = vpack.c.bf16 %v7205, %v7202
    %v7278 = vpack.c.bf16 %v7211, %v7208
    %v7279 = vpack.c.bf16 %v7217, %v7214
    %v7280 = vpack.c.bf16 %v7223, %v7220
    %v7281 = vpack.c.bf16 %v7229, %v7226
    %v7282 = vpack.c.bf16 %v7235, %v7232
    %v7283 = vpack.c.bf16 %v7241, %v7238
    %v7284 = vpack.c.bf16 %v7247, %v7244
    %v7285 = vpack.c.bf16 %v7253, %v7250
    %s7286 = scalar_lea.vmem [#allocation6], 3072
    %v7287 = vld [vmem:[%s7286] sm:$0xff]
    %v7288 = vld [vmem:[%s7286 + $0x8] sm:$0xff]
    %v7289 = vld [vmem:[%s7286 + $0x10] sm:$0xff]
    %v7290 = vld [vmem:[%s7286 + $0x18] sm:$0xff]
    %v7291 = vld [vmem:[%s7286 + $0x20] sm:$0xff]
    %v7292 = vld [vmem:[%s7286 + $0x28] sm:$0xff]
    %v7293 = vld [vmem:[%s7286 + $0x30] sm:$0xff]
    %v7294 = vld [vmem:[%s7286 + $0x38] sm:$0xff]
    %v7295 = vld [vmem:[%s7286 + $0x40] sm:$0xff]
    %v7296 = vld [vmem:[%s7286 + $0x48] sm:$0xff]
    %v7297 = vld [vmem:[%s7286 + $0x50] sm:$0xff]
    %v7298 = vld [vmem:[%s7286 + $0x58] sm:$0xff]
    %v7299 = vld [vmem:[%s7286 + $0x60] sm:$0xff]
    %v7300 = vld [vmem:[%s7286 + $0x68] sm:$0xff]
    %v7301 = vld [vmem:[%s7286 + $0x70] sm:$0xff]
    %v7302 = vld [vmem:[%s7286 + $0x78] sm:$0xff]
    %v7303 = vld [vmem:[%s7286 + $0x80] sm:$0xff]
    %v7304 = vld [vmem:[%s7286 + $0x88] sm:$0xff]
    %v7305 = vld [vmem:[%s7286 + $0x90] sm:$0xff]
    %v7306 = vld [vmem:[%s7286 + $0x98] sm:$0xff]
    %v7307 = vld [vmem:[%s7286 + $0xa0] sm:$0xff]
    %v7308 = vld [vmem:[%s7286 + $0xa8] sm:$0xff]
    %v7309 = vld [vmem:[%s7286 + $0xb0] sm:$0xff]
    %v7310 = vld [vmem:[%s7286 + $0xb8] sm:$0xff]
    %v7311 = vld [vmem:[%s7286 + $0xc0] sm:$0xff]
    %v7312 = vld [vmem:[%s7286 + $0xc8] sm:$0xff]
    %v7313 = vld [vmem:[%s7286 + $0xd0] sm:$0xff]
    %v7314 = vld [vmem:[%s7286 + $0xd8] sm:$0xff]
    %v7315 = vld [vmem:[%s7286 + $0xe0] sm:$0xff]
    %v7316 = vld [vmem:[%s7286 + $0xe8] sm:$0xff]
    %v7317 = vld [vmem:[%s7286 + $0xf0] sm:$0xff]
    %v7318 = vld [vmem:[%s7286 + $0xf8] sm:$0xff]
    %v7319 = vld [vmem:[%s7286 + $0x100] sm:$0xff]
    %v7320 = vld [vmem:[%s7286 + $0x108] sm:$0xff]
    %v7321 = vld [vmem:[%s7286 + $0x110] sm:$0xff]
    %v7322 = vld [vmem:[%s7286 + $0x118] sm:$0xff]
    %v7323 = vld [vmem:[%s7286 + $0x120] sm:$0xff]
    %v7324 = vld [vmem:[%s7286 + $0x128] sm:$0xff]
    %v7325 = vld [vmem:[%s7286 + $0x130] sm:$0xff]
    %v7326 = vld [vmem:[%s7286 + $0x138] sm:$0xff]
    %v7327 = vld [vmem:[%s7286 + $0x140] sm:$0xff]
    %v7328 = vld [vmem:[%s7286 + $0x148] sm:$0xff]
    %v7329 = vld [vmem:[%s7286 + $0x150] sm:$0xff]
    %v7330 = vld [vmem:[%s7286 + $0x158] sm:$0xff]
    %v7331 = vld [vmem:[%s7286 + $0x160] sm:$0xff]
    %v7332 = vld [vmem:[%s7286 + $0x168] sm:$0xff]
    %v7333 = vld [vmem:[%s7286 + $0x170] sm:$0xff]
    %v7334 = vld [vmem:[%s7286 + $0x178] sm:$0xff]
    %v7335 = vld [vmem:[%s7286 + $0x180] sm:$0xff]
    %v7336 = vld [vmem:[%s7286 + $0x188] sm:$0xff]
    %v7337 = vld [vmem:[%s7286 + $0x190] sm:$0xff]
    %v7338 = vld [vmem:[%s7286 + $0x198] sm:$0xff]
    %v7339 = vld [vmem:[%s7286 + $0x1a0] sm:$0xff]
    %v7340 = vld [vmem:[%s7286 + $0x1a8] sm:$0xff]
    %v7341 = vld [vmem:[%s7286 + $0x1b0] sm:$0xff]
    %v7342 = vld [vmem:[%s7286 + $0x1b8] sm:$0xff]
    %v7343 = vld [vmem:[%s7286 + $0x1c0] sm:$0xff]
    %v7344 = vld [vmem:[%s7286 + $0x1c8] sm:$0xff]
    %v7345 = vld [vmem:[%s7286 + $0x1d0] sm:$0xff]
    %v7346 = vld [vmem:[%s7286 + $0x1d8] sm:$0xff]
    %v7347 = vld [vmem:[%s7286 + $0x1e0] sm:$0xff]
    %v7348 = vld [vmem:[%s7286 + $0x1e8] sm:$0xff]
    %v7349 = vld [vmem:[%s7286 + $0x1f0] sm:$0xff]
    %v7350 = vld [vmem:[%s7286 + $0x1f8] sm:$0xff]
    %v7383 = vunpack.c.l.b16 %v7254
    %v7384 = vunpack.c.h.b16 %v7254
    %v7385 = vunpack.c.l.b16 %v7255
    %v7386 = vunpack.c.h.b16 %v7255
    %v7387 = vunpack.c.l.b16 %v7256
    %v7388 = vunpack.c.h.b16 %v7256
    %v7389 = vunpack.c.l.b16 %v7257
    %v7390 = vunpack.c.h.b16 %v7257
    %v7391 = vunpack.c.l.b16 %v7258
    %v7392 = vunpack.c.h.b16 %v7258
    %v7393 = vunpack.c.l.b16 %v7259
    %v7394 = vunpack.c.h.b16 %v7259
    %v7395 = vunpack.c.l.b16 %v7260
    %v7396 = vunpack.c.h.b16 %v7260
    %v7397 = vunpack.c.l.b16 %v7261
    %v7398 = vunpack.c.h.b16 %v7261
    %v7399 = vunpack.c.l.b16 %v7262
    %v7400 = vunpack.c.h.b16 %v7262
    %v7401 = vunpack.c.l.b16 %v7263
    %v7402 = vunpack.c.h.b16 %v7263
    %v7403 = vunpack.c.l.b16 %v7264
    %v7404 = vunpack.c.h.b16 %v7264
    %v7405 = vunpack.c.l.b16 %v7265
    %v7406 = vunpack.c.h.b16 %v7265
    %v7407 = vunpack.c.l.b16 %v7266
    %v7408 = vunpack.c.h.b16 %v7266
    %v7409 = vunpack.c.l.b16 %v7267
    %v7410 = vunpack.c.h.b16 %v7267
    %v7411 = vunpack.c.l.b16 %v7268
    %v7412 = vunpack.c.h.b16 %v7268
    %v7413 = vunpack.c.l.b16 %v7269
    %v7414 = vunpack.c.h.b16 %v7269
    %v7415 = vunpack.c.l.b16 %v7270
    %v7416 = vunpack.c.h.b16 %v7270
    %v7417 = vunpack.c.l.b16 %v7271
    %v7418 = vunpack.c.h.b16 %v7271
    %v7419 = vunpack.c.l.b16 %v7272
    %v7420 = vunpack.c.h.b16 %v7272
    %v7421 = vunpack.c.l.b16 %v7273
    %v7422 = vunpack.c.h.b16 %v7273
    %v7423 = vunpack.c.l.b16 %v7274
    %v7424 = vunpack.c.h.b16 %v7274
    %v7425 = vunpack.c.l.b16 %v7275
    %v7426 = vunpack.c.h.b16 %v7275
    %v7427 = vunpack.c.l.b16 %v7276
    %v7428 = vunpack.c.h.b16 %v7276
    %v7429 = vunpack.c.l.b16 %v7277
    %v7430 = vunpack.c.h.b16 %v7277
    %v7431 = vunpack.c.l.b16 %v7278
    %v7432 = vunpack.c.h.b16 %v7278
    %v7433 = vunpack.c.l.b16 %v7279
    %v7434 = vunpack.c.h.b16 %v7279
    %v7435 = vunpack.c.l.b16 %v7280
    %v7436 = vunpack.c.h.b16 %v7280
    %v7437 = vunpack.c.l.b16 %v7281
    %v7438 = vunpack.c.h.b16 %v7281
    %v7439 = vunpack.c.l.b16 %v7282
    %v7440 = vunpack.c.h.b16 %v7282
    %v7441 = vunpack.c.l.b16 %v7283
    %v7442 = vunpack.c.h.b16 %v7283
    %v7443 = vunpack.c.l.b16 %v7284
    %v7444 = vunpack.c.h.b16 %v7284
    %v7445 = vunpack.c.l.b16 %v7285
    %v7446 = vunpack.c.h.b16 %v7285
    %v7447 = vperm.slane %v7383, %v1094
    %v7448 = vperm.slane %v7384, %v1096
    %v7449 = vsel %vm1098, %v7448, %v7447
    %v7450 = vperm.slane %v7385, %v1100
    %v7451 = vsel %vm1102, %v7450, %v7449
    %v7452 = vperm.slane %v7386, %v1104
    %v7453 = vsel %vm1106, %v7452, %v7451
    %v7454 = vperm.slane %v7387, %v1108
    %v7455 = vsel %vm1110, %v7454, %v7453
    %v7456 = vperm.slane %v7388, %v1112
    %v7457 = vsel %vm1114, %v7456, %v7455
    %v7458 = vperm.slane %v7389, %v1116
    %v7459 = vsel %vm1118, %v7458, %v7457
    %v7460 = vperm.slane %v7390, %v1120
    %v7461 = vsel %vm1122, %v7460, %v7459
    %v7462 = vperm.slane %v7391, %v1124
    %v7463 = vsel %vm1126, %v7462, %v7461
    %v7464 = vperm.slane %v7392, %v1128
    %v7465 = vsel %vm1130, %v7464, %v7463
    %v7466 = vperm.slane %v7393, %v1132
    %v7467 = vsel %vm1134, %v7466, %v7465
    %v7468 = vperm.slane %v7394, %v1136
    %v7469 = vsel %vm1138, %v7468, %v7467
    %v7470 = vperm.slane %v7395, %v1140
    %v7471 = vsel %vm1142, %v7470, %v7469
    %v7472 = vperm.slane %v7396, %v1144
    %v7473 = vsel %vm1146, %v7472, %v7471
    %v7474 = vperm.slane %v7397, %v1148
    %v7475 = vsel %vm1150, %v7474, %v7473
    %v7476 = vperm.slane %v7398, %v1152
    %v7477 = vsel %vm1154, %v7476, %v7475
    %v7478 = vperm.slane %v7399, %v1094
    %v7479 = vperm.slane %v7400, %v1096
    %v7480 = vsel %vm1098, %v7479, %v7478
    %v7481 = vperm.slane %v7401, %v1100
    %v7482 = vsel %vm1102, %v7481, %v7480
    %v7483 = vperm.slane %v7402, %v1104
    %v7484 = vsel %vm1106, %v7483, %v7482
    %v7485 = vperm.slane %v7403, %v1108
    %v7486 = vsel %vm1110, %v7485, %v7484
    %v7487 = vperm.slane %v7404, %v1112
    %v7488 = vsel %vm1114, %v7487, %v7486
    %v7489 = vperm.slane %v7405, %v1116
    %v7490 = vsel %vm1118, %v7489, %v7488
    %v7491 = vperm.slane %v7406, %v1120
    %v7492 = vsel %vm1122, %v7491, %v7490
    %v7493 = vperm.slane %v7407, %v1124
    %v7494 = vsel %vm1126, %v7493, %v7492
    %v7495 = vperm.slane %v7408, %v1128
    %v7496 = vsel %vm1130, %v7495, %v7494
    %v7497 = vperm.slane %v7409, %v1132
    %v7498 = vsel %vm1134, %v7497, %v7496
    %v7499 = vperm.slane %v7410, %v1136
    %v7500 = vsel %vm1138, %v7499, %v7498
    %v7501 = vperm.slane %v7411, %v1140
    %v7502 = vsel %vm1142, %v7501, %v7500
    %v7503 = vperm.slane %v7412, %v1144
    %v7504 = vsel %vm1146, %v7503, %v7502
    %v7505 = vperm.slane %v7413, %v1148
    %v7506 = vsel %vm1150, %v7505, %v7504
    %v7507 = vperm.slane %v7414, %v1152
    %v7508 = vsel %vm1154, %v7507, %v7506
    %v7509 = vperm.slane %v7415, %v1094
    %v7510 = vperm.slane %v7416, %v1096
    %v7511 = vsel %vm1098, %v7510, %v7509
    %v7512 = vperm.slane %v7417, %v1100
    %v7513 = vsel %vm1102, %v7512, %v7511
    %v7514 = vperm.slane %v7418, %v1104
    %v7515 = vsel %vm1106, %v7514, %v7513
    %v7516 = vperm.slane %v7419, %v1108
    %v7517 = vsel %vm1110, %v7516, %v7515
    %v7518 = vperm.slane %v7420, %v1112
    %v7519 = vsel %vm1114, %v7518, %v7517
    %v7520 = vperm.slane %v7421, %v1116
    %v7521 = vsel %vm1118, %v7520, %v7519
    %v7522 = vperm.slane %v7422, %v1120
    %v7523 = vsel %vm1122, %v7522, %v7521
    %v7524 = vperm.slane %v7423, %v1124
    %v7525 = vsel %vm1126, %v7524, %v7523
    %v7526 = vperm.slane %v7424, %v1128
    %v7527 = vsel %vm1130, %v7526, %v7525
    %v7528 = vperm.slane %v7425, %v1132
    %v7529 = vsel %vm1134, %v7528, %v7527
    %v7530 = vperm.slane %v7426, %v1136
    %v7531 = vsel %vm1138, %v7530, %v7529
    %v7532 = vperm.slane %v7427, %v1140
    %v7533 = vsel %vm1142, %v7532, %v7531
    %v7534 = vperm.slane %v7428, %v1144
    %v7535 = vsel %vm1146, %v7534, %v7533
    %v7536 = vperm.slane %v7429, %v1148
    %v7537 = vsel %vm1150, %v7536, %v7535
    %v7538 = vperm.slane %v7430, %v1152
    %v7539 = vsel %vm1154, %v7538, %v7537
    %v7540 = vperm.slane %v7431, %v1094
    %v7541 = vperm.slane %v7432, %v1096
    %v7542 = vsel %vm1098, %v7541, %v7540
    %v7543 = vperm.slane %v7433, %v1100
    %v7544 = vsel %vm1102, %v7543, %v7542
    %v7545 = vperm.slane %v7434, %v1104
    %v7546 = vsel %vm1106, %v7545, %v7544
    %v7547 = vperm.slane %v7435, %v1108
    %v7548 = vsel %vm1110, %v7547, %v7546
    %v7549 = vperm.slane %v7436, %v1112
    %v7550 = vsel %vm1114, %v7549, %v7548
    %v7551 = vperm.slane %v7437, %v1116
    %v7552 = vsel %vm1118, %v7551, %v7550
    %v7553 = vperm.slane %v7438, %v1120
    %v7554 = vsel %vm1122, %v7553, %v7552
    %v7555 = vperm.slane %v7439, %v1124
    %v7556 = vsel %vm1126, %v7555, %v7554
    %v7557 = vperm.slane %v7440, %v1128
    %v7558 = vsel %vm1130, %v7557, %v7556
    %v7559 = vperm.slane %v7441, %v1132
    %v7560 = vsel %vm1134, %v7559, %v7558
    %v7561 = vperm.slane %v7442, %v1136
    %v7562 = vsel %vm1138, %v7561, %v7560
    %v7563 = vperm.slane %v7443, %v1140
    %v7564 = vsel %vm1142, %v7563, %v7562
    %v7565 = vperm.slane %v7444, %v1144
    %v7566 = vsel %vm1146, %v7565, %v7564
    %v7567 = vperm.slane %v7445, %v1148
    %v7568 = vsel %vm1150, %v7567, %v7566
    %v7569 = vperm.slane %v7446, %v1152
    %v7570 = vsel %vm1154, %v7569, %v7568
    %v7571 = vsel %vm1249, %v7539, %v7477
    %v7572 = vsel %vm1249, %v7570, %v7508
    %v7573 = vpack.c.b16 %v7571, %v7571
    %v7574 = vpack.c.b16 %v7572, %v7572
    %v7641 = vunpack.c.l.b16 %v7287
    %v7642 = vunpack.c.h.b16 %v7287
    %v7643 = vunpack.c.l.b16 %v7288
    %v7644 = vunpack.c.h.b16 %v7288
    %v7645 = vunpack.c.l.b16 %v7289
    %v7646 = vunpack.c.h.b16 %v7289
    %v7647 = vunpack.c.l.b16 %v7290
    %v7648 = vunpack.c.h.b16 %v7290
    %v7649 = vunpack.c.l.b16 %v7291
    %v7650 = vunpack.c.h.b16 %v7291
    %v7651 = vunpack.c.l.b16 %v7292
    %v7652 = vunpack.c.h.b16 %v7292
    %v7653 = vunpack.c.l.b16 %v7293
    %v7654 = vunpack.c.h.b16 %v7293
    %v7655 = vunpack.c.l.b16 %v7294
    %v7656 = vunpack.c.h.b16 %v7294
    %v7657 = vunpack.c.l.b16 %v7295
    %v7658 = vunpack.c.h.b16 %v7295
    %v7659 = vunpack.c.l.b16 %v7296
    %v7660 = vunpack.c.h.b16 %v7296
    %v7661 = vunpack.c.l.b16 %v7297
    %v7662 = vunpack.c.h.b16 %v7297
    %v7663 = vunpack.c.l.b16 %v7298
    %v7664 = vunpack.c.h.b16 %v7298
    %v7665 = vunpack.c.l.b16 %v7299
    %v7666 = vunpack.c.h.b16 %v7299
    %v7667 = vunpack.c.l.b16 %v7300
    %v7668 = vunpack.c.h.b16 %v7300
    %v7669 = vunpack.c.l.b16 %v7301
    %v7670 = vunpack.c.h.b16 %v7301
    %v7671 = vunpack.c.l.b16 %v7302
    %v7672 = vunpack.c.h.b16 %v7302
    %v7673 = vunpack.c.l.b16 %v7303
    %v7674 = vunpack.c.h.b16 %v7303
    %v7675 = vunpack.c.l.b16 %v7304
    %v7676 = vunpack.c.h.b16 %v7304
    %v7677 = vunpack.c.l.b16 %v7305
    %v7678 = vunpack.c.h.b16 %v7305
    %v7679 = vunpack.c.l.b16 %v7306
    %v7680 = vunpack.c.h.b16 %v7306
    %v7681 = vunpack.c.l.b16 %v7307
    %v7682 = vunpack.c.h.b16 %v7307
    %v7683 = vunpack.c.l.b16 %v7308
    %v7684 = vunpack.c.h.b16 %v7308
    %v7685 = vunpack.c.l.b16 %v7309
    %v7686 = vunpack.c.h.b16 %v7309
    %v7687 = vunpack.c.l.b16 %v7310
    %v7688 = vunpack.c.h.b16 %v7310
    %v7689 = vunpack.c.l.b16 %v7311
    %v7690 = vunpack.c.h.b16 %v7311
    %v7691 = vunpack.c.l.b16 %v7312
    %v7692 = vunpack.c.h.b16 %v7312
    %v7693 = vunpack.c.l.b16 %v7313
    %v7694 = vunpack.c.h.b16 %v7313
    %v7695 = vunpack.c.l.b16 %v7314
    %v7696 = vunpack.c.h.b16 %v7314
    %v7697 = vunpack.c.l.b16 %v7315
    %v7698 = vunpack.c.h.b16 %v7315
    %v7699 = vunpack.c.l.b16 %v7316
    %v7700 = vunpack.c.h.b16 %v7316
    %v7701 = vunpack.c.l.b16 %v7317
    %v7702 = vunpack.c.h.b16 %v7317
    %v7703 = vunpack.c.l.b16 %v7318
    %v7704 = vunpack.c.h.b16 %v7318
    %v7705 = vunpack.c.l.b16 %v7319
    %v7706 = vunpack.c.h.b16 %v7319
    %v7707 = vunpack.c.l.b16 %v7320
    %v7708 = vunpack.c.h.b16 %v7320
    %v7709 = vunpack.c.l.b16 %v7321
    %v7710 = vunpack.c.h.b16 %v7321
    %v7711 = vunpack.c.l.b16 %v7322
    %v7712 = vunpack.c.h.b16 %v7322
    %v7713 = vunpack.c.l.b16 %v7323
    %v7714 = vunpack.c.h.b16 %v7323
    %v7715 = vunpack.c.l.b16 %v7324
    %v7716 = vunpack.c.h.b16 %v7324
    %v7717 = vunpack.c.l.b16 %v7325
    %v7718 = vunpack.c.h.b16 %v7325
    %v7719 = vunpack.c.l.b16 %v7326
    %v7720 = vunpack.c.h.b16 %v7326
    %v7721 = vunpack.c.l.b16 %v7327
    %v7722 = vunpack.c.h.b16 %v7327
    %v7723 = vunpack.c.l.b16 %v7328
    %v7724 = vunpack.c.h.b16 %v7328
    %v7725 = vunpack.c.l.b16 %v7329
    %v7726 = vunpack.c.h.b16 %v7329
    %v7727 = vunpack.c.l.b16 %v7330
    %v7728 = vunpack.c.h.b16 %v7330
    %v7729 = vunpack.c.l.b16 %v7331
    %v7730 = vunpack.c.h.b16 %v7331
    %v7731 = vunpack.c.l.b16 %v7332
    %v7732 = vunpack.c.h.b16 %v7332
    %v7733 = vunpack.c.l.b16 %v7333
    %v7734 = vunpack.c.h.b16 %v7333
    %v7735 = vunpack.c.l.b16 %v7334
    %v7736 = vunpack.c.h.b16 %v7334
    %v7737 = vunpack.c.l.b16 %v7335
    %v7738 = vunpack.c.h.b16 %v7335
    %v7739 = vunpack.c.l.b16 %v7336
    %v7740 = vunpack.c.h.b16 %v7336
    %v7741 = vunpack.c.l.b16 %v7337
    %v7742 = vunpack.c.h.b16 %v7337
    %v7743 = vunpack.c.l.b16 %v7338
    %v7744 = vunpack.c.h.b16 %v7338
    %v7745 = vunpack.c.l.b16 %v7339
    %v7746 = vunpack.c.h.b16 %v7339
    %v7747 = vunpack.c.l.b16 %v7340
    %v7748 = vunpack.c.h.b16 %v7340
    %v7749 = vunpack.c.l.b16 %v7341
    %v7750 = vunpack.c.h.b16 %v7341
    %v7751 = vunpack.c.l.b16 %v7342
    %v7752 = vunpack.c.h.b16 %v7342
    %v7753 = vunpack.c.l.b16 %v7343
    %v7754 = vunpack.c.h.b16 %v7343
    %v7755 = vunpack.c.l.b16 %v7344
    %v7756 = vunpack.c.h.b16 %v7344
    %v7757 = vunpack.c.l.b16 %v7345
    %v7758 = vunpack.c.h.b16 %v7345
    %v7759 = vunpack.c.l.b16 %v7346
    %v7760 = vunpack.c.h.b16 %v7346
    %v7761 = vunpack.c.l.b16 %v7347
    %v7762 = vunpack.c.h.b16 %v7347
    %v7763 = vunpack.c.l.b16 %v7348
    %v7764 = vunpack.c.h.b16 %v7348
    %v7765 = vunpack.c.l.b16 %v7349
    %v7766 = vunpack.c.h.b16 %v7349
    %v7767 = vunpack.c.l.b16 %v7350
    %v7768 = vunpack.c.h.b16 %v7350
    %v7769 = vpack.c.b16 %v7645, %v7641
    %v7770 = vpack.c.b16 %v7646, %v7642
    %v7771 = vpack.c.b16 %v7647, %v7643
    %v7772 = vpack.c.b16 %v7648, %v7644
    %v7773 = vpack.c.b16 %v7653, %v7649
    %v7774 = vpack.c.b16 %v7654, %v7650
    %v7775 = vpack.c.b16 %v7655, %v7651
    %v7776 = vpack.c.b16 %v7656, %v7652
    %v7777 = vpack.c.b16 %v7661, %v7657
    %v7778 = vpack.c.b16 %v7662, %v7658
    %v7779 = vpack.c.b16 %v7663, %v7659
    %v7780 = vpack.c.b16 %v7664, %v7660
    %v7781 = vpack.c.b16 %v7669, %v7665
    %v7782 = vpack.c.b16 %v7670, %v7666
    %v7783 = vpack.c.b16 %v7671, %v7667
    %v7784 = vpack.c.b16 %v7672, %v7668
    %v7785 = vpack.c.b16 %v7677, %v7673
    %v7786 = vpack.c.b16 %v7678, %v7674
    %v7787 = vpack.c.b16 %v7679, %v7675
    %v7788 = vpack.c.b16 %v7680, %v7676
    %v7789 = vpack.c.b16 %v7685, %v7681
    %v7790 = vpack.c.b16 %v7686, %v7682
    %v7791 = vpack.c.b16 %v7687, %v7683
    %v7792 = vpack.c.b16 %v7688, %v7684
    %v7793 = vpack.c.b16 %v7693, %v7689
    %v7794 = vpack.c.b16 %v7694, %v7690
    %v7795 = vpack.c.b16 %v7695, %v7691
    %v7796 = vpack.c.b16 %v7696, %v7692
    %v7797 = vpack.c.b16 %v7701, %v7697
    %v7798 = vpack.c.b16 %v7702, %v7698
    %v7799 = vpack.c.b16 %v7703, %v7699
    %v7800 = vpack.c.b16 %v7704, %v7700
    %v7801 = vpack.c.b16 %v7709, %v7705
    %v7802 = vpack.c.b16 %v7710, %v7706
    %v7803 = vpack.c.b16 %v7711, %v7707
    %v7804 = vpack.c.b16 %v7712, %v7708
    %v7805 = vpack.c.b16 %v7717, %v7713
    %v7806 = vpack.c.b16 %v7718, %v7714
    %v7807 = vpack.c.b16 %v7719, %v7715
    %v7808 = vpack.c.b16 %v7720, %v7716
    %v7809 = vpack.c.b16 %v7725, %v7721
    %v7810 = vpack.c.b16 %v7726, %v7722
    %v7811 = vpack.c.b16 %v7727, %v7723
    %v7812 = vpack.c.b16 %v7728, %v7724
    %v7813 = vpack.c.b16 %v7733, %v7729
    %v7814 = vpack.c.b16 %v7734, %v7730
    %v7815 = vpack.c.b16 %v7735, %v7731
    %v7816 = vpack.c.b16 %v7736, %v7732
    %v7817 = vpack.c.b16 %v7741, %v7737
    %v7818 = vpack.c.b16 %v7742, %v7738
    %v7819 = vpack.c.b16 %v7743, %v7739
    %v7820 = vpack.c.b16 %v7744, %v7740
    %v7821 = vpack.c.b16 %v7749, %v7745
    %v7822 = vpack.c.b16 %v7750, %v7746
    %v7823 = vpack.c.b16 %v7751, %v7747
    %v7824 = vpack.c.b16 %v7752, %v7748
    %v7825 = vpack.c.b16 %v7757, %v7753
    %v7826 = vpack.c.b16 %v7758, %v7754
    %v7827 = vpack.c.b16 %v7759, %v7755
    %v7828 = vpack.c.b16 %v7760, %v7756
    %v7829 = vpack.c.b16 %v7765, %v7761
    %v7830 = vpack.c.b16 %v7766, %v7762
    %v7831 = vpack.c.b16 %v7767, %v7763
    %v7832 = vpack.c.b16 %v7768, %v7764
    %7897 = vmatpush.bf16.msra.mxu0 %v7797
    %7898 = vmatpush.bf16.msra.mxu0 %v7793
    %7899 = vmatpush.bf16.msra.mxu0 %v7789
    %7900 = vmatpush.bf16.msra.mxu0 %v7785
    %7901 = vmatpush.bf16.msra.mxu0 %v7781
    %7902 = vmatpush.bf16.msra.mxu0 %v7777
    %7903 = vmatpush.bf16.msra.mxu0 %v7773
    %7904 = vmatpush.bf16.msra.mxu0 %v7769
    %7905 = vmatmul.bf16.gmra.mxu0 %v7573
    %v7906 = vpop.f32.mrf.mxu0
    %v7907 = vadd.f32 0.0, %v7906
    %v7908 = vpop.f32.mrf.mxu0
    %7909 = vdwg.mxu0
    %7910 = vmatpush.bf16.msra.mxu0 %v7829
    %7911 = vmatpush.bf16.msra.mxu0 %v7825
    %7912 = vmatpush.bf16.msra.mxu0 %v7821
    %7913 = vmatpush.bf16.msra.mxu0 %v7817
    %7914 = vmatpush.bf16.msra.mxu0 %v7813
    %7915 = vmatpush.bf16.msra.mxu0 %v7809
    %7916 = vmatpush.bf16.msra.mxu0 %v7805
    %7917 = vmatpush.bf16.msra.mxu0 %v7801
    %7918 = vmatmul.bf16.gmra.mxu0 %v7574
    %v7919 = vpop.f32.mrf.mxu0
    %v7920 = vadd.f32 %v7907, %v7919
    %v7921 = vpop.f32.mrf.mxu0
    %7922 = vdwg.mxu0
    %7923 = vmatpush.bf16.msra.mxu0 %v7798
    %7924 = vmatpush.bf16.msra.mxu0 %v7794
    %7925 = vmatpush.bf16.msra.mxu0 %v7790
    %7926 = vmatpush.bf16.msra.mxu0 %v7786
    %7927 = vmatpush.bf16.msra.mxu0 %v7782
    %7928 = vmatpush.bf16.msra.mxu0 %v7778
    %7929 = vmatpush.bf16.msra.mxu0 %v7774
    %7930 = vmatpush.bf16.msra.mxu0 %v7770
    %7931 = vmatmul.bf16.gmra.mxu0 %v7573
    %v7932 = vpop.f32.mrf.mxu0
    %v7933 = vadd.f32 0.0, %v7932
    %v7934 = vpop.f32.mrf.mxu0
    %7935 = vdwg.mxu0
    %7936 = vmatpush.bf16.msra.mxu0 %v7830
    %7937 = vmatpush.bf16.msra.mxu0 %v7826
    %7938 = vmatpush.bf16.msra.mxu0 %v7822
    %7939 = vmatpush.bf16.msra.mxu0 %v7818
    %7940 = vmatpush.bf16.msra.mxu0 %v7814
    %7941 = vmatpush.bf16.msra.mxu0 %v7810
    %7942 = vmatpush.bf16.msra.mxu0 %v7806
    %7943 = vmatpush.bf16.msra.mxu0 %v7802
    %7944 = vmatmul.bf16.gmra.mxu0 %v7574
    %v7945 = vpop.f32.mrf.mxu0
    %v7946 = vadd.f32 %v7933, %v7945
    %v7947 = vpop.f32.mrf.mxu0
    %7948 = vdwg.mxu0
    %7949 = vmatpush.bf16.msra.mxu0 %v7799
    %7950 = vmatpush.bf16.msra.mxu0 %v7795
    %7951 = vmatpush.bf16.msra.mxu0 %v7791
    %7952 = vmatpush.bf16.msra.mxu0 %v7787
    %7953 = vmatpush.bf16.msra.mxu0 %v7783
    %7954 = vmatpush.bf16.msra.mxu0 %v7779
    %7955 = vmatpush.bf16.msra.mxu0 %v7775
    %7956 = vmatpush.bf16.msra.mxu0 %v7771
    %7957 = vmatmul.bf16.gmra.mxu0 %v7573
    %v7958 = vpop.f32.mrf.mxu0
    %v7959 = vadd.f32 0.0, %v7958
    %v7960 = vpop.f32.mrf.mxu0
    %7961 = vdwg.mxu0
    %7962 = vmatpush.bf16.msra.mxu0 %v7831
    %7963 = vmatpush.bf16.msra.mxu0 %v7827
    %7964 = vmatpush.bf16.msra.mxu0 %v7823
    %7965 = vmatpush.bf16.msra.mxu0 %v7819
    %7966 = vmatpush.bf16.msra.mxu0 %v7815
    %7967 = vmatpush.bf16.msra.mxu0 %v7811
    %7968 = vmatpush.bf16.msra.mxu0 %v7807
    %7969 = vmatpush.bf16.msra.mxu0 %v7803
    %7970 = vmatmul.bf16.gmra.mxu0 %v7574
    %v7971 = vpop.f32.mrf.mxu0
    %v7972 = vadd.f32 %v7959, %v7971
    %v7973 = vpop.f32.mrf.mxu0
    %7974 = vdwg.mxu0
    %7975 = vmatpush.bf16.msra.mxu0 %v7800
    %7976 = vmatpush.bf16.msra.mxu0 %v7796
    %7977 = vmatpush.bf16.msra.mxu0 %v7792
    %7978 = vmatpush.bf16.msra.mxu0 %v7788
    %7979 = vmatpush.bf16.msra.mxu0 %v7784
    %7980 = vmatpush.bf16.msra.mxu0 %v7780
    %7981 = vmatpush.bf16.msra.mxu0 %v7776
    %7982 = vmatpush.bf16.msra.mxu0 %v7772
    %7983 = vmatmul.bf16.gmra.mxu0 %v7573
    %v7984 = vpop.f32.mrf.mxu0
    %v7985 = vadd.f32 0.0, %v7984
    %v7986 = vpop.f32.mrf.mxu0
    %7987 = vdwg.mxu0
    %7988 = vmatpush.bf16.msra.mxu0 %v7832
    %7989 = vmatpush.bf16.msra.mxu0 %v7828
    %7990 = vmatpush.bf16.msra.mxu0 %v7824
    %7991 = vmatpush.bf16.msra.mxu0 %v7820
    %7992 = vmatpush.bf16.msra.mxu0 %v7816
    %7993 = vmatpush.bf16.msra.mxu0 %v7812
    %7994 = vmatpush.bf16.msra.mxu0 %v7808
    %7995 = vmatpush.bf16.msra.mxu0 %v7804
    %7996 = vmatmul.bf16.gmra.mxu0 %v7574
    %v7997 = vpop.f32.mrf.mxu0
    %v7998 = vadd.f32 %v7985, %v7997
    %v7999 = vpop.f32.mrf.mxu0
    %8000 = vdwg.mxu0
    %v8001 = vadd.f32 %v6866, %v7920
    %v8002 = vadd.f32 %v6867, %v7946
    %v8003 = vadd.f32 %v6868, %v7972
    %v8004 = vadd.f32 %v6869, %v7998
    %8005 = vrot.lane.b32.xlu0 %v99, 16
    %v8006 = vpop.permute.xlu0 %8005
    %8007 = vrot.lane.b32.xlu0 %v100, 16
    %v8008 = vpop.permute.xlu0 %8007
    %8009 = vrot.lane.b32.xlu0 %v101, 16
    %v8010 = vpop.permute.xlu0 %8009
    %8011 = vrot.lane.b32.xlu0 %v102, 16
    %v8012 = vpop.permute.xlu0 %8011
    %8013 = vrot.lane.b32.xlu0 %v103, 16
    %v8014 = vpop.permute.xlu0 %8013
    %8015 = vrot.lane.b32.xlu0 %v104, 16
    %v8016 = vpop.permute.xlu0 %8015
    %8017 = vrot.lane.b32.xlu0 %v105, 16
    %v8018 = vpop.permute.xlu0 %8017
    %8019 = vrot.lane.b32.xlu0 %v106, 16
    %v8020 = vpop.permute.xlu0 %8019
    %8021 = vrot.lane.b32.xlu0 %v107, 16
    %v8022 = vpop.permute.xlu0 %8021
    %8023 = vrot.lane.b32.xlu0 %v108, 16
    %v8024 = vpop.permute.xlu0 %8023
    %8025 = vrot.lane.b32.xlu0 %v109, 16
    %v8026 = vpop.permute.xlu0 %8025
    %8027 = vrot.lane.b32.xlu0 %v110, 16
    %v8028 = vpop.permute.xlu0 %8027
    %8029 = vrot.lane.b32.xlu0 %v111, 16
    %v8030 = vpop.permute.xlu0 %8029
    %8031 = vrot.lane.b32.xlu0 %v112, 16
    %v8032 = vpop.permute.xlu0 %8031
    %8033 = vrot.lane.b32.xlu0 %v113, 16
    %v8034 = vpop.permute.xlu0 %8033
    %8035 = vrot.lane.b32.xlu0 %v114, 16
    %v8036 = vpop.permute.xlu0 %8035
    %8037 = vrot.lane.b32.xlu0 %v115, 16
    %v8038 = vpop.permute.xlu0 %8037
    %8039 = vrot.lane.b32.xlu0 %v116, 16
    %v8040 = vpop.permute.xlu0 %8039
    %8041 = vrot.lane.b32.xlu0 %v117, 16
    %v8042 = vpop.permute.xlu0 %8041
    %8043 = vrot.lane.b32.xlu0 %v118, 16
    %v8044 = vpop.permute.xlu0 %8043
    %8045 = vrot.lane.b32.xlu0 %v119, 16
    %v8046 = vpop.permute.xlu0 %8045
    %8047 = vrot.lane.b32.xlu0 %v120, 16
    %v8048 = vpop.permute.xlu0 %8047
    %8049 = vrot.lane.b32.xlu0 %v121, 16
    %v8050 = vpop.permute.xlu0 %8049
    %8051 = vrot.lane.b32.xlu0 %v122, 16
    %v8052 = vpop.permute.xlu0 %8051
    %8053 = vrot.lane.b32.xlu0 %v123, 16
    %v8054 = vpop.permute.xlu0 %8053
    %8055 = vrot.lane.b32.xlu0 %v124, 16
    %v8056 = vpop.permute.xlu0 %8055
    %8057 = vrot.lane.b32.xlu0 %v125, 16
    %v8058 = vpop.permute.xlu0 %8057
    %8059 = vrot.lane.b32.xlu0 %v126, 16
    %v8060 = vpop.permute.xlu0 %8059
    %8061 = vrot.lane.b32.xlu0 %v127, 16
    %v8062 = vpop.permute.xlu0 %8061
    %8063 = vrot.lane.b32.xlu0 %v128, 16
    %v8064 = vpop.permute.xlu0 %8063
    %8065 = vrot.lane.b32.xlu0 %v129, 16
    %v8066 = vpop.permute.xlu0 %8065
    %8067 = vrot.lane.b32.xlu0 %v130, 16
    %v8068 = vpop.permute.xlu0 %8067
    %8069 = vrot.lane.b32.xlu0 %v131, 16
    %v8070 = vpop.permute.xlu0 %8069
    %8071 = vrot.lane.b32.xlu0 %v132, 16
    %v8072 = vpop.permute.xlu0 %8071
    %8073 = vrot.lane.b32.xlu0 %v133, 16
    %v8074 = vpop.permute.xlu0 %8073
    %8075 = vrot.lane.b32.xlu0 %v134, 16
    %v8076 = vpop.permute.xlu0 %8075
    %8077 = vrot.lane.b32.xlu0 %v135, 16
    %v8078 = vpop.permute.xlu0 %8077
    %8079 = vrot.lane.b32.xlu0 %v136, 16
    %v8080 = vpop.permute.xlu0 %8079
    %8081 = vrot.lane.b32.xlu0 %v137, 16
    %v8082 = vpop.permute.xlu0 %8081
    %8083 = vrot.lane.b32.xlu0 %v138, 16
    %v8084 = vpop.permute.xlu0 %8083
    %8085 = vrot.lane.b32.xlu0 %v139, 16
    %v8086 = vpop.permute.xlu0 %8085
    %8087 = vrot.lane.b32.xlu0 %v140, 16
    %v8088 = vpop.permute.xlu0 %8087
    %8089 = vrot.lane.b32.xlu0 %v141, 16
    %v8090 = vpop.permute.xlu0 %8089
    %8091 = vrot.lane.b32.xlu0 %v142, 16
    %v8092 = vpop.permute.xlu0 %8091
    %8093 = vrot.lane.b32.xlu0 %v143, 16
    %v8094 = vpop.permute.xlu0 %8093
    %8095 = vrot.lane.b32.xlu0 %v144, 16
    %v8096 = vpop.permute.xlu0 %8095
    %8097 = vrot.lane.b32.xlu0 %v145, 16
    %v8098 = vpop.permute.xlu0 %8097
    %8099 = vrot.lane.b32.xlu0 %v146, 16
    %v8100 = vpop.permute.xlu0 %8099
    %8101 = vrot.lane.b32.xlu0 %v147, 16
    %v8102 = vpop.permute.xlu0 %8101
    %8103 = vrot.lane.b32.xlu0 %v148, 16
    %v8104 = vpop.permute.xlu0 %8103
    %8105 = vrot.lane.b32.xlu0 %v149, 16
    %v8106 = vpop.permute.xlu0 %8105
    %8107 = vrot.lane.b32.xlu0 %v150, 16
    %v8108 = vpop.permute.xlu0 %8107
    %8109 = vrot.lane.b32.xlu0 %v151, 16
    %v8110 = vpop.permute.xlu0 %8109
    %8111 = vrot.lane.b32.xlu0 %v152, 16
    %v8112 = vpop.permute.xlu0 %8111
    %8113 = vrot.lane.b32.xlu0 %v153, 16
    %v8114 = vpop.permute.xlu0 %8113
    %8115 = vrot.lane.b32.xlu0 %v154, 16
    %v8116 = vpop.permute.xlu0 %8115
    %8117 = vrot.lane.b32.xlu0 %v155, 16
    %v8118 = vpop.permute.xlu0 %8117
    %8119 = vrot.lane.b32.xlu0 %v156, 16
    %v8120 = vpop.permute.xlu0 %8119
    %8121 = vrot.lane.b32.xlu0 %v157, 16
    %v8122 = vpop.permute.xlu0 %8121
    %8123 = vrot.lane.b32.xlu0 %v158, 16
    %v8124 = vpop.permute.xlu0 %8123
    %8125 = vrot.lane.b32.xlu0 %v159, 16
    %v8126 = vpop.permute.xlu0 %8125
    %8127 = vrot.lane.b32.xlu0 %v160, 16
    %v8128 = vpop.permute.xlu0 %8127
    %8129 = vrot.lane.b32.xlu0 %v161, 16
    %v8130 = vpop.permute.xlu0 %8129
    %8131 = vrot.lane.b32.xlu0 %v162, 16
    %v8132 = vpop.permute.xlu0 %8131
    %v8197 = vsel %vm163, %v8006, 0.0
    %8198 = vadd.xlane.f32.xlu0 %v8197
    %v8199 = vpop.xlane.xlu0 %8198
    %v8200 = vsel %vm163, %v8008, 0.0
    %8201 = vadd.xlane.f32.xlu0 %v8200
    %v8202 = vpop.xlane.xlu0 %8201
    %v8203 = vsel %vm163, %v8010, 0.0
    %8204 = vadd.xlane.f32.xlu0 %v8203
    %v8205 = vpop.xlane.xlu0 %8204
    %v8206 = vsel %vm163, %v8012, 0.0
    %8207 = vadd.xlane.f32.xlu0 %v8206
    %v8208 = vpop.xlane.xlu0 %8207
    %v8209 = vsel %vm163, %v8014, 0.0
    %8210 = vadd.xlane.f32.xlu0 %v8209
    %v8211 = vpop.xlane.xlu0 %8210
    %v8212 = vsel %vm163, %v8016, 0.0
    %8213 = vadd.xlane.f32.xlu0 %v8212
    %v8214 = vpop.xlane.xlu0 %8213
    %v8215 = vsel %vm163, %v8018, 0.0
    %8216 = vadd.xlane.f32.xlu0 %v8215
    %v8217 = vpop.xlane.xlu0 %8216
    %v8218 = vsel %vm163, %v8020, 0.0
    %8219 = vadd.xlane.f32.xlu0 %v8218
    %v8220 = vpop.xlane.xlu0 %8219
    %v8221 = vsel %vm163, %v8022, 0.0
    %8222 = vadd.xlane.f32.xlu0 %v8221
    %v8223 = vpop.xlane.xlu0 %8222
    %v8224 = vsel %vm163, %v8024, 0.0
    %8225 = vadd.xlane.f32.xlu0 %v8224
    %v8226 = vpop.xlane.xlu0 %8225
    %v8227 = vsel %vm163, %v8026, 0.0
    %8228 = vadd.xlane.f32.xlu0 %v8227
    %v8229 = vpop.xlane.xlu0 %8228
    %v8230 = vsel %vm163, %v8028, 0.0
    %8231 = vadd.xlane.f32.xlu0 %v8230
    %v8232 = vpop.xlane.xlu0 %8231
    %v8233 = vsel %vm163, %v8030, 0.0
    %8234 = vadd.xlane.f32.xlu0 %v8233
    %v8235 = vpop.xlane.xlu0 %8234
    %v8236 = vsel %vm163, %v8032, 0.0
    %8237 = vadd.xlane.f32.xlu0 %v8236
    %v8238 = vpop.xlane.xlu0 %8237
    %v8239 = vsel %vm163, %v8034, 0.0
    %8240 = vadd.xlane.f32.xlu0 %v8239
    %v8241 = vpop.xlane.xlu0 %8240
    %v8242 = vsel %vm163, %v8036, 0.0
    %8243 = vadd.xlane.f32.xlu0 %v8242
    %v8244 = vpop.xlane.xlu0 %8243
    %v8245 = vsel %vm163, %v8038, 0.0
    %8246 = vadd.xlane.f32.xlu0 %v8245
    %v8247 = vpop.xlane.xlu0 %8246
    %v8248 = vsel %vm163, %v8040, 0.0
    %8249 = vadd.xlane.f32.xlu0 %v8248
    %v8250 = vpop.xlane.xlu0 %8249
    %v8251 = vsel %vm163, %v8042, 0.0
    %8252 = vadd.xlane.f32.xlu0 %v8251
    %v8253 = vpop.xlane.xlu0 %8252
    %v8254 = vsel %vm163, %v8044, 0.0
    %8255 = vadd.xlane.f32.xlu0 %v8254
    %v8256 = vpop.xlane.xlu0 %8255
    %v8257 = vsel %vm163, %v8046, 0.0
    %8258 = vadd.xlane.f32.xlu0 %v8257
    %v8259 = vpop.xlane.xlu0 %8258
    %v8260 = vsel %vm163, %v8048, 0.0
    %8261 = vadd.xlane.f32.xlu0 %v8260
    %v8262 = vpop.xlane.xlu0 %8261
    %v8263 = vsel %vm163, %v8050, 0.0
    %8264 = vadd.xlane.f32.xlu0 %v8263
    %v8265 = vpop.xlane.xlu0 %8264
    %v8266 = vsel %vm163, %v8052, 0.0
    %8267 = vadd.xlane.f32.xlu0 %v8266
    %v8268 = vpop.xlane.xlu0 %8267
    %v8269 = vsel %vm163, %v8054, 0.0
    %8270 = vadd.xlane.f32.xlu0 %v8269
    %v8271 = vpop.xlane.xlu0 %8270
    %v8272 = vsel %vm163, %v8056, 0.0
    %8273 = vadd.xlane.f32.xlu0 %v8272
    %v8274 = vpop.xlane.xlu0 %8273
    %v8275 = vsel %vm163, %v8058, 0.0
    %8276 = vadd.xlane.f32.xlu0 %v8275
    %v8277 = vpop.xlane.xlu0 %8276
    %v8278 = vsel %vm163, %v8060, 0.0
    %8279 = vadd.xlane.f32.xlu0 %v8278
    %v8280 = vpop.xlane.xlu0 %8279
    %v8281 = vsel %vm163, %v8062, 0.0
    %8282 = vadd.xlane.f32.xlu0 %v8281
    %v8283 = vpop.xlane.xlu0 %8282
    %v8284 = vsel %vm163, %v8064, 0.0
    %8285 = vadd.xlane.f32.xlu0 %v8284
    %v8286 = vpop.xlane.xlu0 %8285
    %v8287 = vsel %vm163, %v8066, 0.0
    %8288 = vadd.xlane.f32.xlu0 %v8287
    %v8289 = vpop.xlane.xlu0 %8288
    %v8290 = vsel %vm163, %v8068, 0.0
    %8291 = vadd.xlane.f32.xlu0 %v8290
    %v8292 = vpop.xlane.xlu0 %8291
    %v8293 = vsel %vm163, %v8070, 0.0
    %8294 = vadd.xlane.f32.xlu0 %v8293
    %v8295 = vpop.xlane.xlu0 %8294
    %v8296 = vsel %vm163, %v8072, 0.0
    %8297 = vadd.xlane.f32.xlu0 %v8296
    %v8298 = vpop.xlane.xlu0 %8297
    %v8299 = vsel %vm163, %v8074, 0.0
    %8300 = vadd.xlane.f32.xlu0 %v8299
    %v8301 = vpop.xlane.xlu0 %8300
    %v8302 = vsel %vm163, %v8076, 0.0
    %8303 = vadd.xlane.f32.xlu0 %v8302
    %v8304 = vpop.xlane.xlu0 %8303
    %v8305 = vsel %vm163, %v8078, 0.0
    %8306 = vadd.xlane.f32.xlu0 %v8305
    %v8307 = vpop.xlane.xlu0 %8306
    %v8308 = vsel %vm163, %v8080, 0.0
    %8309 = vadd.xlane.f32.xlu0 %v8308
    %v8310 = vpop.xlane.xlu0 %8309
    %v8311 = vsel %vm163, %v8082, 0.0
    %8312 = vadd.xlane.f32.xlu0 %v8311
    %v8313 = vpop.xlane.xlu0 %8312
    %v8314 = vsel %vm163, %v8084, 0.0
    %8315 = vadd.xlane.f32.xlu0 %v8314
    %v8316 = vpop.xlane.xlu0 %8315
    %v8317 = vsel %vm163, %v8086, 0.0
    %8318 = vadd.xlane.f32.xlu0 %v8317
    %v8319 = vpop.xlane.xlu0 %8318
    %v8320 = vsel %vm163, %v8088, 0.0
    %8321 = vadd.xlane.f32.xlu0 %v8320
    %v8322 = vpop.xlane.xlu0 %8321
    %v8323 = vsel %vm163, %v8090, 0.0
    %8324 = vadd.xlane.f32.xlu0 %v8323
    %v8325 = vpop.xlane.xlu0 %8324
    %v8326 = vsel %vm163, %v8092, 0.0
    %8327 = vadd.xlane.f32.xlu0 %v8326
    %v8328 = vpop.xlane.xlu0 %8327
    %v8329 = vsel %vm163, %v8094, 0.0
    %8330 = vadd.xlane.f32.xlu0 %v8329
    %v8331 = vpop.xlane.xlu0 %8330
    %v8332 = vsel %vm163, %v8096, 0.0
    %8333 = vadd.xlane.f32.xlu0 %v8332
    %v8334 = vpop.xlane.xlu0 %8333
    %v8335 = vsel %vm163, %v8098, 0.0
    %8336 = vadd.xlane.f32.xlu0 %v8335
    %v8337 = vpop.xlane.xlu0 %8336
    %v8338 = vsel %vm163, %v8100, 0.0
    %8339 = vadd.xlane.f32.xlu0 %v8338
    %v8340 = vpop.xlane.xlu0 %8339
    %v8341 = vsel %vm163, %v8102, 0.0
    %8342 = vadd.xlane.f32.xlu0 %v8341
    %v8343 = vpop.xlane.xlu0 %8342
    %v8344 = vsel %vm163, %v8104, 0.0
    %8345 = vadd.xlane.f32.xlu0 %v8344
    %v8346 = vpop.xlane.xlu0 %8345
    %v8347 = vsel %vm163, %v8106, 0.0
    %8348 = vadd.xlane.f32.xlu0 %v8347
    %v8349 = vpop.xlane.xlu0 %8348
    %v8350 = vsel %vm163, %v8108, 0.0
    %8351 = vadd.xlane.f32.xlu0 %v8350
    %v8352 = vpop.xlane.xlu0 %8351
    %v8353 = vsel %vm163, %v8110, 0.0
    %8354 = vadd.xlane.f32.xlu0 %v8353
    %v8355 = vpop.xlane.xlu0 %8354
    %v8356 = vsel %vm163, %v8112, 0.0
    %8357 = vadd.xlane.f32.xlu0 %v8356
    %v8358 = vpop.xlane.xlu0 %8357
    %v8359 = vsel %vm163, %v8114, 0.0
    %8360 = vadd.xlane.f32.xlu0 %v8359
    %v8361 = vpop.xlane.xlu0 %8360
    %v8362 = vsel %vm163, %v8116, 0.0
    %8363 = vadd.xlane.f32.xlu0 %v8362
    %v8364 = vpop.xlane.xlu0 %8363
    %v8365 = vsel %vm163, %v8118, 0.0
    %8366 = vadd.xlane.f32.xlu0 %v8365
    %v8367 = vpop.xlane.xlu0 %8366
    %v8368 = vsel %vm163, %v8120, 0.0
    %8369 = vadd.xlane.f32.xlu0 %v8368
    %v8370 = vpop.xlane.xlu0 %8369
    %v8371 = vsel %vm163, %v8122, 0.0
    %8372 = vadd.xlane.f32.xlu0 %v8371
    %v8373 = vpop.xlane.xlu0 %8372
    %v8374 = vsel %vm163, %v8124, 0.0
    %8375 = vadd.xlane.f32.xlu0 %v8374
    %v8376 = vpop.xlane.xlu0 %8375
    %v8377 = vsel %vm163, %v8126, 0.0
    %8378 = vadd.xlane.f32.xlu0 %v8377
    %v8379 = vpop.xlane.xlu0 %8378
    %v8380 = vsel %vm163, %v8128, 0.0
    %8381 = vadd.xlane.f32.xlu0 %v8380
    %v8382 = vpop.xlane.xlu0 %8381
    %v8383 = vsel %vm163, %v8130, 0.0
    %8384 = vadd.xlane.f32.xlu0 %v8383
    %v8385 = vpop.xlane.xlu0 %8384
    %v8386 = vsel %vm163, %v8132, 0.0
    %8387 = vadd.xlane.f32.xlu0 %v8386
    %v8388 = vpop.xlane.xlu0 %8387
    %v8389 = vpack.c.bf16 %v8202, %v8199
    %v8390 = vpack.c.bf16 %v8208, %v8205
    %v8391 = vpack.c.bf16 %v8214, %v8211
    %v8392 = vpack.c.bf16 %v8220, %v8217
    %v8393 = vpack.c.bf16 %v8226, %v8223
    %v8394 = vpack.c.bf16 %v8232, %v8229
    %v8395 = vpack.c.bf16 %v8238, %v8235
    %v8396 = vpack.c.bf16 %v8244, %v8241
    %v8397 = vpack.c.bf16 %v8250, %v8247
    %v8398 = vpack.c.bf16 %v8256, %v8253
    %v8399 = vpack.c.bf16 %v8262, %v8259
    %v8400 = vpack.c.bf16 %v8268, %v8265
    %v8401 = vpack.c.bf16 %v8274, %v8271
    %v8402 = vpack.c.bf16 %v8280, %v8277
    %v8403 = vpack.c.bf16 %v8286, %v8283
    %v8404 = vpack.c.bf16 %v8292, %v8289
    %v8405 = vpack.c.bf16 %v8298, %v8295
    %v8406 = vpack.c.bf16 %v8304, %v8301
    %v8407 = vpack.c.bf16 %v8310, %v8307
    %v8408 = vpack.c.bf16 %v8316, %v8313
    %v8409 = vpack.c.bf16 %v8322, %v8319
    %v8410 = vpack.c.bf16 %v8328, %v8325
    %v8411 = vpack.c.bf16 %v8334, %v8331
    %v8412 = vpack.c.bf16 %v8340, %v8337
    %v8413 = vpack.c.bf16 %v8346, %v8343
    %v8414 = vpack.c.bf16 %v8352, %v8349
    %v8415 = vpack.c.bf16 %v8358, %v8355
    %v8416 = vpack.c.bf16 %v8364, %v8361
    %v8417 = vpack.c.bf16 %v8370, %v8367
    %v8418 = vpack.c.bf16 %v8376, %v8373
    %v8419 = vpack.c.bf16 %v8382, %v8379
    %v8420 = vpack.c.bf16 %v8388, %v8385
    %s8421 = scalar_lea.vmem [#allocation6], 3584
    %v8422 = vld [vmem:[%s8421] sm:$0xff]
    %v8423 = vld [vmem:[%s8421 + $0x8] sm:$0xff]
    %v8424 = vld [vmem:[%s8421 + $0x10] sm:$0xff]
    %v8425 = vld [vmem:[%s8421 + $0x18] sm:$0xff]
    %v8426 = vld [vmem:[%s8421 + $0x20] sm:$0xff]
    %v8427 = vld [vmem:[%s8421 + $0x28] sm:$0xff]
    %v8428 = vld [vmem:[%s8421 + $0x30] sm:$0xff]
    %v8429 = vld [vmem:[%s8421 + $0x38] sm:$0xff]
    %v8430 = vld [vmem:[%s8421 + $0x40] sm:$0xff]
    %v8431 = vld [vmem:[%s8421 + $0x48] sm:$0xff]
    %v8432 = vld [vmem:[%s8421 + $0x50] sm:$0xff]
    %v8433 = vld [vmem:[%s8421 + $0x58] sm:$0xff]
    %v8434 = vld [vmem:[%s8421 + $0x60] sm:$0xff]
    %v8435 = vld [vmem:[%s8421 + $0x68] sm:$0xff]
    %v8436 = vld [vmem:[%s8421 + $0x70] sm:$0xff]
    %v8437 = vld [vmem:[%s8421 + $0x78] sm:$0xff]
    %v8438 = vld [vmem:[%s8421 + $0x80] sm:$0xff]
    %v8439 = vld [vmem:[%s8421 + $0x88] sm:$0xff]
    %v8440 = vld [vmem:[%s8421 + $0x90] sm:$0xff]
    %v8441 = vld [vmem:[%s8421 + $0x98] sm:$0xff]
    %v8442 = vld [vmem:[%s8421 + $0xa0] sm:$0xff]
    %v8443 = vld [vmem:[%s8421 + $0xa8] sm:$0xff]
    %v8444 = vld [vmem:[%s8421 + $0xb0] sm:$0xff]
    %v8445 = vld [vmem:[%s8421 + $0xb8] sm:$0xff]
    %v8446 = vld [vmem:[%s8421 + $0xc0] sm:$0xff]
    %v8447 = vld [vmem:[%s8421 + $0xc8] sm:$0xff]
    %v8448 = vld [vmem:[%s8421 + $0xd0] sm:$0xff]
    %v8449 = vld [vmem:[%s8421 + $0xd8] sm:$0xff]
    %v8450 = vld [vmem:[%s8421 + $0xe0] sm:$0xff]
    %v8451 = vld [vmem:[%s8421 + $0xe8] sm:$0xff]
    %v8452 = vld [vmem:[%s8421 + $0xf0] sm:$0xff]
    %v8453 = vld [vmem:[%s8421 + $0xf8] sm:$0xff]
    %v8454 = vld [vmem:[%s8421 + $0x100] sm:$0xff]
    %v8455 = vld [vmem:[%s8421 + $0x108] sm:$0xff]
    %v8456 = vld [vmem:[%s8421 + $0x110] sm:$0xff]
    %v8457 = vld [vmem:[%s8421 + $0x118] sm:$0xff]
    %v8458 = vld [vmem:[%s8421 + $0x120] sm:$0xff]
    %v8459 = vld [vmem:[%s8421 + $0x128] sm:$0xff]
    %v8460 = vld [vmem:[%s8421 + $0x130] sm:$0xff]
    %v8461 = vld [vmem:[%s8421 + $0x138] sm:$0xff]
    %v8462 = vld [vmem:[%s8421 + $0x140] sm:$0xff]
    %v8463 = vld [vmem:[%s8421 + $0x148] sm:$0xff]
    %v8464 = vld [vmem:[%s8421 + $0x150] sm:$0xff]
    %v8465 = vld [vmem:[%s8421 + $0x158] sm:$0xff]
    %v8466 = vld [vmem:[%s8421 + $0x160] sm:$0xff]
    %v8467 = vld [vmem:[%s8421 + $0x168] sm:$0xff]
    %v8468 = vld [vmem:[%s8421 + $0x170] sm:$0xff]
    %v8469 = vld [vmem:[%s8421 + $0x178] sm:$0xff]
    %v8470 = vld [vmem:[%s8421 + $0x180] sm:$0xff]
    %v8471 = vld [vmem:[%s8421 + $0x188] sm:$0xff]
    %v8472 = vld [vmem:[%s8421 + $0x190] sm:$0xff]
    %v8473 = vld [vmem:[%s8421 + $0x198] sm:$0xff]
    %v8474 = vld [vmem:[%s8421 + $0x1a0] sm:$0xff]
    %v8475 = vld [vmem:[%s8421 + $0x1a8] sm:$0xff]
    %v8476 = vld [vmem:[%s8421 + $0x1b0] sm:$0xff]
    %v8477 = vld [vmem:[%s8421 + $0x1b8] sm:$0xff]
    %v8478 = vld [vmem:[%s8421 + $0x1c0] sm:$0xff]
    %v8479 = vld [vmem:[%s8421 + $0x1c8] sm:$0xff]
    %v8480 = vld [vmem:[%s8421 + $0x1d0] sm:$0xff]
    %v8481 = vld [vmem:[%s8421 + $0x1d8] sm:$0xff]
    %v8482 = vld [vmem:[%s8421 + $0x1e0] sm:$0xff]
    %v8483 = vld [vmem:[%s8421 + $0x1e8] sm:$0xff]
    %v8484 = vld [vmem:[%s8421 + $0x1f0] sm:$0xff]
    %v8485 = vld [vmem:[%s8421 + $0x1f8] sm:$0xff]
    %v8518 = vunpack.c.l.b16 %v8389
    %v8519 = vunpack.c.h.b16 %v8389
    %v8520 = vunpack.c.l.b16 %v8390
    %v8521 = vunpack.c.h.b16 %v8390
    %v8522 = vunpack.c.l.b16 %v8391
    %v8523 = vunpack.c.h.b16 %v8391
    %v8524 = vunpack.c.l.b16 %v8392
    %v8525 = vunpack.c.h.b16 %v8392
    %v8526 = vunpack.c.l.b16 %v8393
    %v8527 = vunpack.c.h.b16 %v8393
    %v8528 = vunpack.c.l.b16 %v8394
    %v8529 = vunpack.c.h.b16 %v8394
    %v8530 = vunpack.c.l.b16 %v8395
    %v8531 = vunpack.c.h.b16 %v8395
    %v8532 = vunpack.c.l.b16 %v8396
    %v8533 = vunpack.c.h.b16 %v8396
    %v8534 = vunpack.c.l.b16 %v8397
    %v8535 = vunpack.c.h.b16 %v8397
    %v8536 = vunpack.c.l.b16 %v8398
    %v8537 = vunpack.c.h.b16 %v8398
    %v8538 = vunpack.c.l.b16 %v8399
    %v8539 = vunpack.c.h.b16 %v8399
    %v8540 = vunpack.c.l.b16 %v8400
    %v8541 = vunpack.c.h.b16 %v8400
    %v8542 = vunpack.c.l.b16 %v8401
    %v8543 = vunpack.c.h.b16 %v8401
    %v8544 = vunpack.c.l.b16 %v8402
    %v8545 = vunpack.c.h.b16 %v8402
    %v8546 = vunpack.c.l.b16 %v8403
    %v8547 = vunpack.c.h.b16 %v8403
    %v8548 = vunpack.c.l.b16 %v8404
    %v8549 = vunpack.c.h.b16 %v8404
    %v8550 = vunpack.c.l.b16 %v8405
    %v8551 = vunpack.c.h.b16 %v8405
    %v8552 = vunpack.c.l.b16 %v8406
    %v8553 = vunpack.c.h.b16 %v8406
    %v8554 = vunpack.c.l.b16 %v8407
    %v8555 = vunpack.c.h.b16 %v8407
    %v8556 = vunpack.c.l.b16 %v8408
    %v8557 = vunpack.c.h.b16 %v8408
    %v8558 = vunpack.c.l.b16 %v8409
    %v8559 = vunpack.c.h.b16 %v8409
    %v8560 = vunpack.c.l.b16 %v8410
    %v8561 = vunpack.c.h.b16 %v8410
    %v8562 = vunpack.c.l.b16 %v8411
    %v8563 = vunpack.c.h.b16 %v8411
    %v8564 = vunpack.c.l.b16 %v8412
    %v8565 = vunpack.c.h.b16 %v8412
    %v8566 = vunpack.c.l.b16 %v8413
    %v8567 = vunpack.c.h.b16 %v8413
    %v8568 = vunpack.c.l.b16 %v8414
    %v8569 = vunpack.c.h.b16 %v8414
    %v8570 = vunpack.c.l.b16 %v8415
    %v8571 = vunpack.c.h.b16 %v8415
    %v8572 = vunpack.c.l.b16 %v8416
    %v8573 = vunpack.c.h.b16 %v8416
    %v8574 = vunpack.c.l.b16 %v8417
    %v8575 = vunpack.c.h.b16 %v8417
    %v8576 = vunpack.c.l.b16 %v8418
    %v8577 = vunpack.c.h.b16 %v8418
    %v8578 = vunpack.c.l.b16 %v8419
    %v8579 = vunpack.c.h.b16 %v8419
    %v8580 = vunpack.c.l.b16 %v8420
    %v8581 = vunpack.c.h.b16 %v8420
    %v8582 = vperm.slane %v8518, %v1094
    %v8583 = vperm.slane %v8519, %v1096
    %v8584 = vsel %vm1098, %v8583, %v8582
    %v8585 = vperm.slane %v8520, %v1100
    %v8586 = vsel %vm1102, %v8585, %v8584
    %v8587 = vperm.slane %v8521, %v1104
    %v8588 = vsel %vm1106, %v8587, %v8586
    %v8589 = vperm.slane %v8522, %v1108
    %v8590 = vsel %vm1110, %v8589, %v8588
    %v8591 = vperm.slane %v8523, %v1112
    %v8592 = vsel %vm1114, %v8591, %v8590
    %v8593 = vperm.slane %v8524, %v1116
    %v8594 = vsel %vm1118, %v8593, %v8592
    %v8595 = vperm.slane %v8525, %v1120
    %v8596 = vsel %vm1122, %v8595, %v8594
    %v8597 = vperm.slane %v8526, %v1124
    %v8598 = vsel %vm1126, %v8597, %v8596
    %v8599 = vperm.slane %v8527, %v1128
    %v8600 = vsel %vm1130, %v8599, %v8598
    %v8601 = vperm.slane %v8528, %v1132
    %v8602 = vsel %vm1134, %v8601, %v8600
    %v8603 = vperm.slane %v8529, %v1136
    %v8604 = vsel %vm1138, %v8603, %v8602
    %v8605 = vperm.slane %v8530, %v1140
    %v8606 = vsel %vm1142, %v8605, %v8604
    %v8607 = vperm.slane %v8531, %v1144
    %v8608 = vsel %vm1146, %v8607, %v8606
    %v8609 = vperm.slane %v8532, %v1148
    %v8610 = vsel %vm1150, %v8609, %v8608
    %v8611 = vperm.slane %v8533, %v1152
    %v8612 = vsel %vm1154, %v8611, %v8610
    %v8613 = vperm.slane %v8534, %v1094
    %v8614 = vperm.slane %v8535, %v1096
    %v8615 = vsel %vm1098, %v8614, %v8613
    %v8616 = vperm.slane %v8536, %v1100
    %v8617 = vsel %vm1102, %v8616, %v8615
    %v8618 = vperm.slane %v8537, %v1104
    %v8619 = vsel %vm1106, %v8618, %v8617
    %v8620 = vperm.slane %v8538, %v1108
    %v8621 = vsel %vm1110, %v8620, %v8619
    %v8622 = vperm.slane %v8539, %v1112
    %v8623 = vsel %vm1114, %v8622, %v8621
    %v8624 = vperm.slane %v8540, %v1116
    %v8625 = vsel %vm1118, %v8624, %v8623
    %v8626 = vperm.slane %v8541, %v1120
    %v8627 = vsel %vm1122, %v8626, %v8625
    %v8628 = vperm.slane %v8542, %v1124
    %v8629 = vsel %vm1126, %v8628, %v8627
    %v8630 = vperm.slane %v8543, %v1128
    %v8631 = vsel %vm1130, %v8630, %v8629
    %v8632 = vperm.slane %v8544, %v1132
    %v8633 = vsel %vm1134, %v8632, %v8631
    %v8634 = vperm.slane %v8545, %v1136
    %v8635 = vsel %vm1138, %v8634, %v8633
    %v8636 = vperm.slane %v8546, %v1140
    %v8637 = vsel %vm1142, %v8636, %v8635
    %v8638 = vperm.slane %v8547, %v1144
    %v8639 = vsel %vm1146, %v8638, %v8637
    %v8640 = vperm.slane %v8548, %v1148
    %v8641 = vsel %vm1150, %v8640, %v8639
    %v8642 = vperm.slane %v8549, %v1152
    %v8643 = vsel %vm1154, %v8642, %v8641
    %v8644 = vperm.slane %v8550, %v1094
    %v8645 = vperm.slane %v8551, %v1096
    %v8646 = vsel %vm1098, %v8645, %v8644
    %v8647 = vperm.slane %v8552, %v1100
    %v8648 = vsel %vm1102, %v8647, %v8646
    %v8649 = vperm.slane %v8553, %v1104
    %v8650 = vsel %vm1106, %v8649, %v8648
    %v8651 = vperm.slane %v8554, %v1108
    %v8652 = vsel %vm1110, %v8651, %v8650
    %v8653 = vperm.slane %v8555, %v1112
    %v8654 = vsel %vm1114, %v8653, %v8652
    %v8655 = vperm.slane %v8556, %v1116
    %v8656 = vsel %vm1118, %v8655, %v8654
    %v8657 = vperm.slane %v8557, %v1120
    %v8658 = vsel %vm1122, %v8657, %v8656
    %v8659 = vperm.slane %v8558, %v1124
    %v8660 = vsel %vm1126, %v8659, %v8658
    %v8661 = vperm.slane %v8559, %v1128
    %v8662 = vsel %vm1130, %v8661, %v8660
    %v8663 = vperm.slane %v8560, %v1132
    %v8664 = vsel %vm1134, %v8663, %v8662
    %v8665 = vperm.slane %v8561, %v1136
    %v8666 = vsel %vm1138, %v8665, %v8664
    %v8667 = vperm.slane %v8562, %v1140
    %v8668 = vsel %vm1142, %v8667, %v8666
    %v8669 = vperm.slane %v8563, %v1144
    %v8670 = vsel %vm1146, %v8669, %v8668
    %v8671 = vperm.slane %v8564, %v1148
    %v8672 = vsel %vm1150, %v8671, %v8670
    %v8673 = vperm.slane %v8565, %v1152
    %v8674 = vsel %vm1154, %v8673, %v8672
    %v8675 = vperm.slane %v8566, %v1094
    %v8676 = vperm.slane %v8567, %v1096
    %v8677 = vsel %vm1098, %v8676, %v8675
    %v8678 = vperm.slane %v8568, %v1100
    %v8679 = vsel %vm1102, %v8678, %v8677
    %v8680 = vperm.slane %v8569, %v1104
    %v8681 = vsel %vm1106, %v8680, %v8679
    %v8682 = vperm.slane %v8570, %v1108
    %v8683 = vsel %vm1110, %v8682, %v8681
    %v8684 = vperm.slane %v8571, %v1112
    %v8685 = vsel %vm1114, %v8684, %v8683
    %v8686 = vperm.slane %v8572, %v1116
    %v8687 = vsel %vm1118, %v8686, %v8685
    %v8688 = vperm.slane %v8573, %v1120
    %v8689 = vsel %vm1122, %v8688, %v8687
    %v8690 = vperm.slane %v8574, %v1124
    %v8691 = vsel %vm1126, %v8690, %v8689
    %v8692 = vperm.slane %v8575, %v1128
    %v8693 = vsel %vm1130, %v8692, %v8691
    %v8694 = vperm.slane %v8576, %v1132
    %v8695 = vsel %vm1134, %v8694, %v8693
    %v8696 = vperm.slane %v8577, %v1136
    %v8697 = vsel %vm1138, %v8696, %v8695
    %v8698 = vperm.slane %v8578, %v1140
    %v8699 = vsel %vm1142, %v8698, %v8697
    %v8700 = vperm.slane %v8579, %v1144
    %v8701 = vsel %vm1146, %v8700, %v8699
    %v8702 = vperm.slane %v8580, %v1148
    %v8703 = vsel %vm1150, %v8702, %v8701
    %v8704 = vperm.slane %v8581, %v1152
    %v8705 = vsel %vm1154, %v8704, %v8703
    %v8706 = vsel %vm1249, %v8674, %v8612
    %v8707 = vsel %vm1249, %v8705, %v8643
    %v8708 = vpack.c.b16 %v8706, %v8706
    %v8709 = vpack.c.b16 %v8707, %v8707
    %v8776 = vunpack.c.l.b16 %v8422
    %v8777 = vunpack.c.h.b16 %v8422
    %v8778 = vunpack.c.l.b16 %v8423
    %v8779 = vunpack.c.h.b16 %v8423
    %v8780 = vunpack.c.l.b16 %v8424
    %v8781 = vunpack.c.h.b16 %v8424
    %v8782 = vunpack.c.l.b16 %v8425
    %v8783 = vunpack.c.h.b16 %v8425
    %v8784 = vunpack.c.l.b16 %v8426
    %v8785 = vunpack.c.h.b16 %v8426
    %v8786 = vunpack.c.l.b16 %v8427
    %v8787 = vunpack.c.h.b16 %v8427
    %v8788 = vunpack.c.l.b16 %v8428
    %v8789 = vunpack.c.h.b16 %v8428
    %v8790 = vunpack.c.l.b16 %v8429
    %v8791 = vunpack.c.h.b16 %v8429
    %v8792 = vunpack.c.l.b16 %v8430
    %v8793 = vunpack.c.h.b16 %v8430
    %v8794 = vunpack.c.l.b16 %v8431
    %v8795 = vunpack.c.h.b16 %v8431
    %v8796 = vunpack.c.l.b16 %v8432
    %v8797 = vunpack.c.h.b16 %v8432
    %v8798 = vunpack.c.l.b16 %v8433
    %v8799 = vunpack.c.h.b16 %v8433
    %v8800 = vunpack.c.l.b16 %v8434
    %v8801 = vunpack.c.h.b16 %v8434
    %v8802 = vunpack.c.l.b16 %v8435
    %v8803 = vunpack.c.h.b16 %v8435
    %v8804 = vunpack.c.l.b16 %v8436
    %v8805 = vunpack.c.h.b16 %v8436
    %v8806 = vunpack.c.l.b16 %v8437
    %v8807 = vunpack.c.h.b16 %v8437
    %v8808 = vunpack.c.l.b16 %v8438
    %v8809 = vunpack.c.h.b16 %v8438
    %v8810 = vunpack.c.l.b16 %v8439
    %v8811 = vunpack.c.h.b16 %v8439
    %v8812 = vunpack.c.l.b16 %v8440
    %v8813 = vunpack.c.h.b16 %v8440
    %v8814 = vunpack.c.l.b16 %v8441
    %v8815 = vunpack.c.h.b16 %v8441
    %v8816 = vunpack.c.l.b16 %v8442
    %v8817 = vunpack.c.h.b16 %v8442
    %v8818 = vunpack.c.l.b16 %v8443
    %v8819 = vunpack.c.h.b16 %v8443
    %v8820 = vunpack.c.l.b16 %v8444
    %v8821 = vunpack.c.h.b16 %v8444
    %v8822 = vunpack.c.l.b16 %v8445
    %v8823 = vunpack.c.h.b16 %v8445
    %v8824 = vunpack.c.l.b16 %v8446
    %v8825 = vunpack.c.h.b16 %v8446
    %v8826 = vunpack.c.l.b16 %v8447
    %v8827 = vunpack.c.h.b16 %v8447
    %v8828 = vunpack.c.l.b16 %v8448
    %v8829 = vunpack.c.h.b16 %v8448
    %v8830 = vunpack.c.l.b16 %v8449
    %v8831 = vunpack.c.h.b16 %v8449
    %v8832 = vunpack.c.l.b16 %v8450
    %v8833 = vunpack.c.h.b16 %v8450
    %v8834 = vunpack.c.l.b16 %v8451
    %v8835 = vunpack.c.h.b16 %v8451
    %v8836 = vunpack.c.l.b16 %v8452
    %v8837 = vunpack.c.h.b16 %v8452
    %v8838 = vunpack.c.l.b16 %v8453
    %v8839 = vunpack.c.h.b16 %v8453
    %v8840 = vunpack.c.l.b16 %v8454
    %v8841 = vunpack.c.h.b16 %v8454
    %v8842 = vunpack.c.l.b16 %v8455
    %v8843 = vunpack.c.h.b16 %v8455
    %v8844 = vunpack.c.l.b16 %v8456
    %v8845 = vunpack.c.h.b16 %v8456
    %v8846 = vunpack.c.l.b16 %v8457
    %v8847 = vunpack.c.h.b16 %v8457
    %v8848 = vunpack.c.l.b16 %v8458
    %v8849 = vunpack.c.h.b16 %v8458
    %v8850 = vunpack.c.l.b16 %v8459
    %v8851 = vunpack.c.h.b16 %v8459
    %v8852 = vunpack.c.l.b16 %v8460
    %v8853 = vunpack.c.h.b16 %v8460
    %v8854 = vunpack.c.l.b16 %v8461
    %v8855 = vunpack.c.h.b16 %v8461
    %v8856 = vunpack.c.l.b16 %v8462
    %v8857 = vunpack.c.h.b16 %v8462
    %v8858 = vunpack.c.l.b16 %v8463
    %v8859 = vunpack.c.h.b16 %v8463
    %v8860 = vunpack.c.l.b16 %v8464
    %v8861 = vunpack.c.h.b16 %v8464
    %v8862 = vunpack.c.l.b16 %v8465
    %v8863 = vunpack.c.h.b16 %v8465
    %v8864 = vunpack.c.l.b16 %v8466
    %v8865 = vunpack.c.h.b16 %v8466
    %v8866 = vunpack.c.l.b16 %v8467
    %v8867 = vunpack.c.h.b16 %v8467
    %v8868 = vunpack.c.l.b16 %v8468
    %v8869 = vunpack.c.h.b16 %v8468
    %v8870 = vunpack.c.l.b16 %v8469
    %v8871 = vunpack.c.h.b16 %v8469
    %v8872 = vunpack.c.l.b16 %v8470
    %v8873 = vunpack.c.h.b16 %v8470
    %v8874 = vunpack.c.l.b16 %v8471
    %v8875 = vunpack.c.h.b16 %v8471
    %v8876 = vunpack.c.l.b16 %v8472
    %v8877 = vunpack.c.h.b16 %v8472
    %v8878 = vunpack.c.l.b16 %v8473
    %v8879 = vunpack.c.h.b16 %v8473
    %v8880 = vunpack.c.l.b16 %v8474
    %v8881 = vunpack.c.h.b16 %v8474
    %v8882 = vunpack.c.l.b16 %v8475
    %v8883 = vunpack.c.h.b16 %v8475
    %v8884 = vunpack.c.l.b16 %v8476
    %v8885 = vunpack.c.h.b16 %v8476
    %v8886 = vunpack.c.l.b16 %v8477
    %v8887 = vunpack.c.h.b16 %v8477
    %v8888 = vunpack.c.l.b16 %v8478
    %v8889 = vunpack.c.h.b16 %v8478
    %v8890 = vunpack.c.l.b16 %v8479
    %v8891 = vunpack.c.h.b16 %v8479
    %v8892 = vunpack.c.l.b16 %v8480
    %v8893 = vunpack.c.h.b16 %v8480
    %v8894 = vunpack.c.l.b16 %v8481
    %v8895 = vunpack.c.h.b16 %v8481
    %v8896 = vunpack.c.l.b16 %v8482
    %v8897 = vunpack.c.h.b16 %v8482
    %v8898 = vunpack.c.l.b16 %v8483
    %v8899 = vunpack.c.h.b16 %v8483
    %v8900 = vunpack.c.l.b16 %v8484
    %v8901 = vunpack.c.h.b16 %v8484
    %v8902 = vunpack.c.l.b16 %v8485
    %v8903 = vunpack.c.h.b16 %v8485
    %v8904 = vpack.c.b16 %v8780, %v8776
    %v8905 = vpack.c.b16 %v8781, %v8777
    %v8906 = vpack.c.b16 %v8782, %v8778
    %v8907 = vpack.c.b16 %v8783, %v8779
    %v8908 = vpack.c.b16 %v8788, %v8784
    %v8909 = vpack.c.b16 %v8789, %v8785
    %v8910 = vpack.c.b16 %v8790, %v8786
    %v8911 = vpack.c.b16 %v8791, %v8787
    %v8912 = vpack.c.b16 %v8796, %v8792
    %v8913 = vpack.c.b16 %v8797, %v8793
    %v8914 = vpack.c.b16 %v8798, %v8794
    %v8915 = vpack.c.b16 %v8799, %v8795
    %v8916 = vpack.c.b16 %v8804, %v8800
    %v8917 = vpack.c.b16 %v8805, %v8801
    %v8918 = vpack.c.b16 %v8806, %v8802
    %v8919 = vpack.c.b16 %v8807, %v8803
    %v8920 = vpack.c.b16 %v8812, %v8808
    %v8921 = vpack.c.b16 %v8813, %v8809
    %v8922 = vpack.c.b16 %v8814, %v8810
    %v8923 = vpack.c.b16 %v8815, %v8811
    %v8924 = vpack.c.b16 %v8820, %v8816
    %v8925 = vpack.c.b16 %v8821, %v8817
    %v8926 = vpack.c.b16 %v8822, %v8818
    %v8927 = vpack.c.b16 %v8823, %v8819
    %v8928 = vpack.c.b16 %v8828, %v8824
    %v8929 = vpack.c.b16 %v8829, %v8825
    %v8930 = vpack.c.b16 %v8830, %v8826
    %v8931 = vpack.c.b16 %v8831, %v8827
    %v8932 = vpack.c.b16 %v8836, %v8832
    %v8933 = vpack.c.b16 %v8837, %v8833
    %v8934 = vpack.c.b16 %v8838, %v8834
    %v8935 = vpack.c.b16 %v8839, %v8835
    %v8936 = vpack.c.b16 %v8844, %v8840
    %v8937 = vpack.c.b16 %v8845, %v8841
    %v8938 = vpack.c.b16 %v8846, %v8842
    %v8939 = vpack.c.b16 %v8847, %v8843
    %v8940 = vpack.c.b16 %v8852, %v8848
    %v8941 = vpack.c.b16 %v8853, %v8849
    %v8942 = vpack.c.b16 %v8854, %v8850
    %v8943 = vpack.c.b16 %v8855, %v8851
    %v8944 = vpack.c.b16 %v8860, %v8856
    %v8945 = vpack.c.b16 %v8861, %v8857
    %v8946 = vpack.c.b16 %v8862, %v8858
    %v8947 = vpack.c.b16 %v8863, %v8859
    %v8948 = vpack.c.b16 %v8868, %v8864
    %v8949 = vpack.c.b16 %v8869, %v8865
    %v8950 = vpack.c.b16 %v8870, %v8866
    %v8951 = vpack.c.b16 %v8871, %v8867
    %v8952 = vpack.c.b16 %v8876, %v8872
    %v8953 = vpack.c.b16 %v8877, %v8873
    %v8954 = vpack.c.b16 %v8878, %v8874
    %v8955 = vpack.c.b16 %v8879, %v8875
    %v8956 = vpack.c.b16 %v8884, %v8880
    %v8957 = vpack.c.b16 %v8885, %v8881
    %v8958 = vpack.c.b16 %v8886, %v8882
    %v8959 = vpack.c.b16 %v8887, %v8883
    %v8960 = vpack.c.b16 %v8892, %v8888
    %v8961 = vpack.c.b16 %v8893, %v8889
    %v8962 = vpack.c.b16 %v8894, %v8890
    %v8963 = vpack.c.b16 %v8895, %v8891
    %v8964 = vpack.c.b16 %v8900, %v8896
    %v8965 = vpack.c.b16 %v8901, %v8897
    %v8966 = vpack.c.b16 %v8902, %v8898
    %v8967 = vpack.c.b16 %v8903, %v8899
    %9032 = vmatpush.bf16.msra.mxu0 %v8932
    %9033 = vmatpush.bf16.msra.mxu0 %v8928
    %9034 = vmatpush.bf16.msra.mxu0 %v8924
    %9035 = vmatpush.bf16.msra.mxu0 %v8920
    %9036 = vmatpush.bf16.msra.mxu0 %v8916
    %9037 = vmatpush.bf16.msra.mxu0 %v8912
    %9038 = vmatpush.bf16.msra.mxu0 %v8908
    %9039 = vmatpush.bf16.msra.mxu0 %v8904
    %9040 = vmatmul.bf16.gmra.mxu0 %v8708
    %v9041 = vpop.f32.mrf.mxu0
    %v9042 = vadd.f32 0.0, %v9041
    %v9043 = vpop.f32.mrf.mxu0
    %9044 = vdwg.mxu0
    %9045 = vmatpush.bf16.msra.mxu0 %v8964
    %9046 = vmatpush.bf16.msra.mxu0 %v8960
    %9047 = vmatpush.bf16.msra.mxu0 %v8956
    %9048 = vmatpush.bf16.msra.mxu0 %v8952
    %9049 = vmatpush.bf16.msra.mxu0 %v8948
    %9050 = vmatpush.bf16.msra.mxu0 %v8944
    %9051 = vmatpush.bf16.msra.mxu0 %v8940
    %9052 = vmatpush.bf16.msra.mxu0 %v8936
    %9053 = vmatmul.bf16.gmra.mxu0 %v8709
    %v9054 = vpop.f32.mrf.mxu0
    %v9055 = vadd.f32 %v9042, %v9054
    %v9056 = vpop.f32.mrf.mxu0
    %9057 = vdwg.mxu0
    %9058 = vmatpush.bf16.msra.mxu0 %v8933
    %9059 = vmatpush.bf16.msra.mxu0 %v8929
    %9060 = vmatpush.bf16.msra.mxu0 %v8925
    %9061 = vmatpush.bf16.msra.mxu0 %v8921
    %9062 = vmatpush.bf16.msra.mxu0 %v8917
    %9063 = vmatpush.bf16.msra.mxu0 %v8913
    %9064 = vmatpush.bf16.msra.mxu0 %v8909
    %9065 = vmatpush.bf16.msra.mxu0 %v8905
    %9066 = vmatmul.bf16.gmra.mxu0 %v8708
    %v9067 = vpop.f32.mrf.mxu0
    %v9068 = vadd.f32 0.0, %v9067
    %v9069 = vpop.f32.mrf.mxu0
    %9070 = vdwg.mxu0
    %9071 = vmatpush.bf16.msra.mxu0 %v8965
    %9072 = vmatpush.bf16.msra.mxu0 %v8961
    %9073 = vmatpush.bf16.msra.mxu0 %v8957
    %9074 = vmatpush.bf16.msra.mxu0 %v8953
    %9075 = vmatpush.bf16.msra.mxu0 %v8949
    %9076 = vmatpush.bf16.msra.mxu0 %v8945
    %9077 = vmatpush.bf16.msra.mxu0 %v8941
    %9078 = vmatpush.bf16.msra.mxu0 %v8937
    %9079 = vmatmul.bf16.gmra.mxu0 %v8709
    %v9080 = vpop.f32.mrf.mxu0
    %v9081 = vadd.f32 %v9068, %v9080
    %v9082 = vpop.f32.mrf.mxu0
    %9083 = vdwg.mxu0
    %9084 = vmatpush.bf16.msra.mxu0 %v8934
    %9085 = vmatpush.bf16.msra.mxu0 %v8930
    %9086 = vmatpush.bf16.msra.mxu0 %v8926
    %9087 = vmatpush.bf16.msra.mxu0 %v8922
    %9088 = vmatpush.bf16.msra.mxu0 %v8918
    %9089 = vmatpush.bf16.msra.mxu0 %v8914
    %9090 = vmatpush.bf16.msra.mxu0 %v8910
    %9091 = vmatpush.bf16.msra.mxu0 %v8906
    %9092 = vmatmul.bf16.gmra.mxu0 %v8708
    %v9093 = vpop.f32.mrf.mxu0
    %v9094 = vadd.f32 0.0, %v9093
    %v9095 = vpop.f32.mrf.mxu0
    %9096 = vdwg.mxu0
    %9097 = vmatpush.bf16.msra.mxu0 %v8966
    %9098 = vmatpush.bf16.msra.mxu0 %v8962
    %9099 = vmatpush.bf16.msra.mxu0 %v8958
    %9100 = vmatpush.bf16.msra.mxu0 %v8954
    %9101 = vmatpush.bf16.msra.mxu0 %v8950
    %9102 = vmatpush.bf16.msra.mxu0 %v8946
    %9103 = vmatpush.bf16.msra.mxu0 %v8942
    %9104 = vmatpush.bf16.msra.mxu0 %v8938
    %9105 = vmatmul.bf16.gmra.mxu0 %v8709
    %v9106 = vpop.f32.mrf.mxu0
    %v9107 = vadd.f32 %v9094, %v9106
    %v9108 = vpop.f32.mrf.mxu0
    %9109 = vdwg.mxu0
    %9110 = vmatpush.bf16.msra.mxu0 %v8935
    %9111 = vmatpush.bf16.msra.mxu0 %v8931
    %9112 = vmatpush.bf16.msra.mxu0 %v8927
    %9113 = vmatpush.bf16.msra.mxu0 %v8923
    %9114 = vmatpush.bf16.msra.mxu0 %v8919
    %9115 = vmatpush.bf16.msra.mxu0 %v8915
    %9116 = vmatpush.bf16.msra.mxu0 %v8911
    %9117 = vmatpush.bf16.msra.mxu0 %v8907
    %9118 = vmatmul.bf16.gmra.mxu0 %v8708
    %v9119 = vpop.f32.mrf.mxu0
    %v9120 = vadd.f32 0.0, %v9119
    %v9121 = vpop.f32.mrf.mxu0
    %9122 = vdwg.mxu0
    %9123 = vmatpush.bf16.msra.mxu0 %v8967
    %9124 = vmatpush.bf16.msra.mxu0 %v8963
    %9125 = vmatpush.bf16.msra.mxu0 %v8959
    %9126 = vmatpush.bf16.msra.mxu0 %v8955
    %9127 = vmatpush.bf16.msra.mxu0 %v8951
    %9128 = vmatpush.bf16.msra.mxu0 %v8947
    %9129 = vmatpush.bf16.msra.mxu0 %v8943
    %9130 = vmatpush.bf16.msra.mxu0 %v8939
    %9131 = vmatmul.bf16.gmra.mxu0 %v8709
    %v9132 = vpop.f32.mrf.mxu0
    %v9133 = vadd.f32 %v9120, %v9132
    %v9134 = vpop.f32.mrf.mxu0
    %9135 = vdwg.mxu0
    %v9136 = vadd.f32 %v8001, %v9055
    %v9137 = vadd.f32 %v8002, %v9081
    %v9138 = vadd.f32 %v8003, %v9107
    %v9139 = vadd.f32 %v8004, %v9133
    %v9140 = vmul.f32 %v9136, 0.0625
    %v9141 = vmul.f32 %v9137, 0.0625
    %v9142 = vmul.f32 %v9138, 0.0625
    %v9143 = vmul.f32 %v9139, 0.0625
    %vm9144 = vcmp.gt.f32.partialorder %v9140, 0.0
    %vm9145 = vcmp.gt.f32.partialorder %v9141, 0.0
    %vm9146 = vcmp.gt.f32.partialorder %v9142, 0.0
    %vm9147 = vcmp.gt.f32.partialorder %v9143, 0.0
    %v9148 = vmul.f32 %v9140, 0.01
    %v9149 = vmul.f32 %v9141, 0.01
    %v9150 = vmul.f32 %v9142, 0.01
    %v9151 = vmul.f32 %v9143, 0.01
    %v9152 = vsel %vm9144, %v9140, %v9148
    %v9153 = vsel %vm9145, %v9141, %v9149
    %v9154 = vsel %vm9146, %v9142, %v9150
    %v9155 = vsel %vm9147, %v9143, %v9151
    %v9156 = vld [vmem:[#allocation8] sm:$0xff]
    %v9157 = vld [vmem:[#allocation8 + $0x8] sm:$0xff]
    %v9158 = vld [vmem:[#allocation8 + $0x10] sm:$0xff]
    %v9159 = vld [vmem:[#allocation8 + $0x18] sm:$0xff]
    %v9160 = vld [vmem:[#allocation8 + $0x20] sm:$0xff]
    %v9161 = vld [vmem:[#allocation8 + $0x28] sm:$0xff]
    %v9162 = vld [vmem:[#allocation8 + $0x30] sm:$0xff]
    %v9163 = vld [vmem:[#allocation8 + $0x38] sm:$0xff]
    %v9164 = vld [vmem:[#allocation8 + $0x40] sm:$0xff]
    %v9165 = vld [vmem:[#allocation8 + $0x48] sm:$0xff]
    %v9166 = vld [vmem:[#allocation8 + $0x50] sm:$0xff]
    %v9167 = vld [vmem:[#allocation8 + $0x58] sm:$0xff]
    %v9168 = vld [vmem:[#allocation8 + $0x60] sm:$0xff]
    %v9169 = vld [vmem:[#allocation8 + $0x68] sm:$0xff]
    %v9170 = vld [vmem:[#allocation8 + $0x70] sm:$0xff]
    %v9171 = vld [vmem:[#allocation8 + $0x78] sm:$0xff]
    %v9172 = vld [vmem:[#allocation8 + $0x80] sm:$0xff]
    %v9173 = vld [vmem:[#allocation8 + $0x88] sm:$0xff]
    %v9174 = vld [vmem:[#allocation8 + $0x90] sm:$0xff]
    %v9175 = vld [vmem:[#allocation8 + $0x98] sm:$0xff]
    %v9176 = vld [vmem:[#allocation8 + $0xa0] sm:$0xff]
    %v9177 = vld [vmem:[#allocation8 + $0xa8] sm:$0xff]
    %v9178 = vld [vmem:[#allocation8 + $0xb0] sm:$0xff]
    %v9179 = vld [vmem:[#allocation8 + $0xb8] sm:$0xff]
    %v9180 = vld [vmem:[#allocation8 + $0xc0] sm:$0xff]
    %v9181 = vld [vmem:[#allocation8 + $0xc8] sm:$0xff]
    %v9182 = vld [vmem:[#allocation8 + $0xd0] sm:$0xff]
    %v9183 = vld [vmem:[#allocation8 + $0xd8] sm:$0xff]
    %v9184 = vld [vmem:[#allocation8 + $0xe0] sm:$0xff]
    %v9185 = vld [vmem:[#allocation8 + $0xe8] sm:$0xff]
    %v9186 = vld [vmem:[#allocation8 + $0xf0] sm:$0xff]
    %v9187 = vld [vmem:[#allocation8 + $0xf8] sm:$0xff]
    %v9188 = vld [vmem:[#allocation8 + $0x100] sm:$0xff]
    %v9189 = vld [vmem:[#allocation8 + $0x108] sm:$0xff]
    %v9190 = vld [vmem:[#allocation8 + $0x110] sm:$0xff]
    %v9191 = vld [vmem:[#allocation8 + $0x118] sm:$0xff]
    %v9192 = vld [vmem:[#allocation8 + $0x120] sm:$0xff]
    %v9193 = vld [vmem:[#allocation8 + $0x128] sm:$0xff]
    %v9194 = vld [vmem:[#allocation8 + $0x130] sm:$0xff]
    %v9195 = vld [vmem:[#allocation8 + $0x138] sm:$0xff]
    %v9196 = vld [vmem:[#allocation8 + $0x140] sm:$0xff]
    %v9197 = vld [vmem:[#allocation8 + $0x148] sm:$0xff]
    %v9198 = vld [vmem:[#allocation8 + $0x150] sm:$0xff]
    %v9199 = vld [vmem:[#allocation8 + $0x158] sm:$0xff]
    %v9200 = vld [vmem:[#allocation8 + $0x160] sm:$0xff]
    %v9201 = vld [vmem:[#allocation8 + $0x168] sm:$0xff]
    %v9202 = vld [vmem:[#allocation8 + $0x170] sm:$0xff]
    %v9203 = vld [vmem:[#allocation8 + $0x178] sm:$0xff]
    %v9204 = vld [vmem:[#allocation8 + $0x180] sm:$0xff]
    %v9205 = vld [vmem:[#allocation8 + $0x188] sm:$0xff]
    %v9206 = vld [vmem:[#allocation8 + $0x190] sm:$0xff]
    %v9207 = vld [vmem:[#allocation8 + $0x198] sm:$0xff]
    %v9208 = vld [vmem:[#allocation8 + $0x1a0] sm:$0xff]
    %v9209 = vld [vmem:[#allocation8 + $0x1a8] sm:$0xff]
    %v9210 = vld [vmem:[#allocation8 + $0x1b0] sm:$0xff]
    %v9211 = vld [vmem:[#allocation8 + $0x1b8] sm:$0xff]
    %v9212 = vld [vmem:[#allocation8 + $0x1c0] sm:$0xff]
    %v9213 = vld [vmem:[#allocation8 + $0x1c8] sm:$0xff]
    %v9214 = vld [vmem:[#allocation8 + $0x1d0] sm:$0xff]
    %v9215 = vld [vmem:[#allocation8 + $0x1d8] sm:$0xff]
    %v9216 = vld [vmem:[#allocation8 + $0x1e0] sm:$0xff]
    %v9217 = vld [vmem:[#allocation8 + $0x1e8] sm:$0xff]
    %v9218 = vld [vmem:[#allocation8 + $0x1f0] sm:$0xff]
    %v9219 = vld [vmem:[#allocation8 + $0x1f8] sm:$0xff]
    %v9220 = vld [vmem:[#allocation9] sm:$0x1]
    %v9222 = vperm.slane %v9220, 0
    %9224 = vmatpush.msra.mxu0 %v9171
    %9225 = vmatpush.msra.mxu0 %v9170
    %9226 = vmatpush.msra.mxu0 %v9169
    %9227 = vmatpush.msra.mxu0 %v9168
    %9228 = vmatpush.msra.mxu0 %v9167
    %9229 = vmatpush.msra.mxu0 %v9166
    %9230 = vmatpush.msra.mxu0 %v9165
    %9231 = vmatpush.msra.mxu0 %v9164
    %9232 = vmatpush.msra.mxu0 %v9163
    %9233 = vmatpush.msra.mxu0 %v9162
    %9234 = vmatpush.msra.mxu0 %v9161
    %9235 = vmatpush.msra.mxu0 %v9160
    %9236 = vmatpush.msra.mxu0 %v9159
    %9237 = vmatpush.msra.mxu0 %v9158
    %9238 = vmatpush.msra.mxu0 %v9157
    %9239 = vmatpush.msra.mxu0 %v9156
    %9240 = vmatmul.f32.gmra.mxu0 %v9152
    %v9241 = vpop.f32.mrf.mxu0
    %v9242 = vadd.f32 %v9222, %v9241
    %9243 = vdwg.mxu0
    %9244 = vmatpush.msra.mxu0 %v9187
    %9245 = vmatpush.msra.mxu0 %v9186
    %9246 = vmatpush.msra.mxu0 %v9185
    %9247 = vmatpush.msra.mxu0 %v9184
    %9248 = vmatpush.msra.mxu0 %v9183
    %9249 = vmatpush.msra.mxu0 %v9182
    %9250 = vmatpush.msra.mxu0 %v9181
    %9251 = vmatpush.msra.mxu0 %v9180
    %9252 = vmatpush.msra.mxu0 %v9179
    %9253 = vmatpush.msra.mxu0 %v9178
    %9254 = vmatpush.msra.mxu0 %v9177
    %9255 = vmatpush.msra.mxu0 %v9176
    %9256 = vmatpush.msra.mxu0 %v9175
    %9257 = vmatpush.msra.mxu0 %v9174
    %9258 = vmatpush.msra.mxu0 %v9173
    %9259 = vmatpush.msra.mxu0 %v9172
    %9260 = vmatmul.f32.gmra.mxu0 %v9153
    %v9261 = vpop.f32.mrf.mxu0
    %v9262 = vadd.f32 %v9242, %v9261
    %9263 = vdwg.mxu0
    %9264 = vmatpush.msra.mxu0 %v9203
    %9265 = vmatpush.msra.mxu0 %v9202
    %9266 = vmatpush.msra.mxu0 %v9201
    %9267 = vmatpush.msra.mxu0 %v9200
    %9268 = vmatpush.msra.mxu0 %v9199
    %9269 = vmatpush.msra.mxu0 %v9198
    %9270 = vmatpush.msra.mxu0 %v9197
    %9271 = vmatpush.msra.mxu0 %v9196
    %9272 = vmatpush.msra.mxu0 %v9195
    %9273 = vmatpush.msra.mxu0 %v9194
    %9274 = vmatpush.msra.mxu0 %v9193
    %9275 = vmatpush.msra.mxu0 %v9192
    %9276 = vmatpush.msra.mxu0 %v9191
    %9277 = vmatpush.msra.mxu0 %v9190
    %9278 = vmatpush.msra.mxu0 %v9189
    %9279 = vmatpush.msra.mxu0 %v9188
    %9280 = vmatmul.f32.gmra.mxu0 %v9154
    %v9281 = vpop.f32.mrf.mxu0
    %v9282 = vadd.f32 %v9262, %v9281
    %9283 = vdwg.mxu0
    %9284 = vmatpush.msra.mxu0 %v9219
    %9285 = vmatpush.msra.mxu0 %v9218
    %9286 = vmatpush.msra.mxu0 %v9217
    %9287 = vmatpush.msra.mxu0 %v9216
    %9288 = vmatpush.msra.mxu0 %v9215
    %9289 = vmatpush.msra.mxu0 %v9214
    %9290 = vmatpush.msra.mxu0 %v9213
    %9291 = vmatpush.msra.mxu0 %v9212
    %9292 = vmatpush.msra.mxu0 %v9211
    %9293 = vmatpush.msra.mxu0 %v9210
    %9294 = vmatpush.msra.mxu0 %v9209
    %9295 = vmatpush.msra.mxu0 %v9208
    %9296 = vmatpush.msra.mxu0 %v9207
    %9297 = vmatpush.msra.mxu0 %v9206
    %9298 = vmatpush.msra.mxu0 %v9205
    %9299 = vmatpush.msra.mxu0 %v9204
    %9300 = vmatmul.f32.gmra.mxu0 %v9155
    %v9301 = vpop.f32.mrf.mxu0
    %v9302 = vadd.f32 %v9282, %v9301
    %9303 = vdwg.mxu0
    %vm9304 = vcmp.gt.f32.partialorder %v9302, 0.0
    %v9305 = vmul.f32 %v9302, 0.01
    %v9306 = vsel %vm9304, %v9302, %v9305
    %v9307 = vld [vmem:[#allocation11] sm:$0x1]
    %v9309 = vperm.slane %v9307, 0
    %v9311 = vmul.f32 %v9306, %v9309
    %vm9312 = vcmask 1041408
    %v9313 = vsel %vm9312, %v9311, 0.0
    %9314 = vadd.xlane.f32.xlu0 %v9313
    %v9315 = vpop.xlane.xlu0 %9314
    %v9316 = vld [vmem:[#allocation3] sm:$0x1]
    %v9318 = vperm.slane %v9316, 0
    %v9320 = vadd.f32 %v9315, %v9318
    %vm9321 = vcmask 1024
    %9322 = vst.msk [vmem:[%s6] sm:$0x3] %vm9321, %v9320
    // Predicated region
    $region46: #{tpu_custom_call.1} parent=1 // pred_check
      _
    $region47: #{tpu_custom_call.1} parent=1 // pred_check_branch
      %9324 = sbr.rel (0) target = $region49
    $region48: #{tpu_custom_call.1} parent=1 // pred_region
      _
    $region49: #{tpu_custom_call.1} parent=1 // pred_fallthru
      _
    // Predicated region
    $region50: #{tpu_custom_call.1} parent=1 // pred_check
      _
    $region51: #{tpu_custom_call.1} parent=1 // pred_check_branch
      %9326 = sbr.rel (0) target = $region53
    $region52: #{tpu_custom_call.1} parent=1 // pred_region
      _
    $region53: #{tpu_custom_call.1} parent=1 // pred_fallthru
      _
    %9327 = vsyncpa [#allocation5], 1
    %9328 = vsyncpa [#allocation7], 1
    %9329 = vsyncpa [#allocation10], 1

</llo_original>
